<compile_context>
chip_gen: v6e
topology: v6e:2x2x1
jax: 0.10.0
libtpu: 0.0.40
codegen_flags: <defaults>
</compile_context>

<pallas_src>
import functools
import math

import jax
import jax.numpy as jnp
from jax.experimental import pallas as pl
from jax.experimental.pallas import tpu as pltpu

_MXU_DTYPE = jnp.bfloat16   # matmul-input dtype (f32 accumulation everywhere)


@functools.lru_cache(maxsize=None)
def _vmem_limit_bytes():
    """Generation-aware scoped-VMEM limit (v5e/v6e: 128 MiB, v7x: 64 MiB/TC)."""
    cap = 64 * 1024 * 1024
    try:
        cap = int(getattr(pltpu.get_tpu_info(), "vmem_capacity_bytes", cap))
    except Exception:
        pass
    return min(cap * 5 // 8, 96 * 1024 * 1024)


def _cparams(sem):
    return pltpu.CompilerParams(dimension_semantics=sem,
                                vmem_limit_bytes=_vmem_limit_bytes())


def _pick_tile(dim, pref, steps, allow_any_divisor=True):
    """Largest tile <= pref that divides dim, preferring multiples of `steps`
    (tried in order, e.g. 256 then 128 for MXU-friendly lane tiles).  For
    sublane dims any divisor is allowed as a last resort so we never emit a
    single huge block; lane dims fall back to the full dim (always legal).
    TODO(synk): pad + masked epilogue for huge dims with no nice divisor."""
    if dim <= pref:
        return dim
    for step in steps:
        t = (pref // step) * step
        while t >= step:
            if dim % t == 0:
                return t
            t -= step
    if allow_any_divisor:
        for t in range(min(pref, dim), 0, -1):
            if dim % t == 0:
                return t
    return dim


# ----------------------------------------------------------------------------
# Kernel 1: tiled linear (x @ W + b), f32 VMEM accumulator, bf16-out capable
# ----------------------------------------------------------------------------
def _linear_kernel(x_ref, w_ref, b_ref, o_ref, acc_ref):
    @pl.when(pl.program_id(2) == 0)
    def _():
        acc_ref[...] = jnp.zeros_like(acc_ref)

    acc_ref[...] += jnp.dot(x_ref[...].astype(_MXU_DTYPE),
                            w_ref[...].astype(_MXU_DTYPE),
                            preferred_element_type=jnp.float32)

    @pl.when(pl.program_id(2) == pl.num_programs(2) - 1)
    def _():
        o_ref[...] = (acc_ref[...] + b_ref[...]).astype(o_ref.dtype)


def linear(x, w, b, out_dtype=None, tm=256, tn=512, tk=512):
    """x: (M, K), w: (K, N) [pre-cast bf16], b: (N,) -> (M, N)."""
    M, K = x.shape
    N = w.shape[1]
    out_dtype = out_dtype or x.dtype
    tm = _pick_tile(M, tm, (8,))
    tn = _pick_tile(N, tn, (256, 128), allow_any_divisor=False)
    tk = _pick_tile(K, tk, (256, 128), allow_any_divisor=False)
    return pl.pallas_call(
        _linear_kernel,
        out_shape=jax.ShapeDtypeStruct((M, N), out_dtype),
        grid=(M // tm, N // tn, K // tk),
        in_specs=[
            pl.BlockSpec((tm, tk), lambda i, j, k: (i, k)),
            pl.BlockSpec((tk, tn), lambda i, j, k: (k, j)),
            pl.BlockSpec((1, tn), lambda i, j, k: (0, j)),
        ],
        out_specs=pl.BlockSpec((tm, tn), lambda i, j, k: (i, j)),
        scratch_shapes=[pltpu.VMEM((tm, tn), jnp.float32)],
        compiler_params=_cparams(("parallel", "parallel", "arbitrary")),
    )(x, w, b.reshape(1, N))


# ----------------------------------------------------------------------------
# Kernel 2: tiled matmul fused with residual-add + LayerNorm epilogue
#   out = LayerNorm(resid + x @ W + b)
# ----------------------------------------------------------------------------
def _matmul_res_ln_kernel(x_ref, w_ref, b_ref, r_ref, g_ref, bt_ref,
                          o_ref, acc_ref, *, eps):
    k = pl.program_id(1)

    @pl.when(k == 0)
    def _():
        acc_ref[...] = jnp.zeros_like(acc_ref)

    acc_ref[...] += jnp.dot(x_ref[...].astype(_MXU_DTYPE),
                            w_ref[...].astype(_MXU_DTYPE),
                            preferred_element_type=jnp.float32)

    @pl.when(k == pl.num_programs(1) - 1)
    def _():
        y = acc_ref[...] + b_ref[...] + r_ref[...].astype(jnp.float32)
        mean = jnp.mean(y, axis=-1, keepdims=True)
        var = jnp.mean(jnp.square(y - mean), axis=-1, keepdims=True)
        yn = (y - mean) * jax.lax.rsqrt(var + eps)
        o_ref[...] = (yn * g_ref[...] + bt_ref[...]).astype(o_ref.dtype)


def matmul_res_ln(x, w, b, resid, gamma, beta, eps=1e-5, tk=512):
    """LayerNorm(resid + x @ w + b).  x: (M, K), w: (K, N), resid: (M, N) f32."""
    M, K = x.shape
    N = w.shape[1]
    tm = _pick_tile(M, 256 if N <= 2048 else 128, (8,))
    tk = _pick_tile(K, tk, (256, 128), allow_any_divisor=False)
    # TODO(synk): tile N (two-pass sum/sumsq LayerNorm) for very large d_model.
    return pl.pallas_call(
        functools.partial(_matmul_res_ln_kernel, eps=eps),
        out_shape=jax.ShapeDtypeStruct((M, N), resid.dtype),
        grid=(M // tm, K // tk),
        in_specs=[
            pl.BlockSpec((tm, tk), lambda i, k: (i, k)),
            pl.BlockSpec((tk, N), lambda i, k: (k, 0)),
            pl.BlockSpec((1, N), lambda i, k: (0, 0)),
            pl.BlockSpec((tm, N), lambda i, k: (i, 0)),
            pl.BlockSpec((1, N), lambda i, k: (0, 0)),
            pl.BlockSpec((1, N), lambda i, k: (0, 0)),
        ],
        out_specs=pl.BlockSpec((tm, N), lambda i, k: (i, 0)),
        scratch_shapes=[pltpu.VMEM((tm, N), jnp.float32)],
        compiler_params=_cparams(("parallel", "arbitrary")),
    )(x, w, b.reshape(1, N), resid, gamma.reshape(1, N), beta.reshape(1, N))


# ----------------------------------------------------------------------------
# Kernel 3: fused FFN (ReLU(x@W1+b1) @ W2 + b2) + residual + LayerNorm.
# Tiled over dim_ff; x is cast to bf16 once (f==0) and cached in scratch.
# ----------------------------------------------------------------------------
def _ffn_res_ln_kernel(x_ref, w1_ref, b1_ref, w2_ref, b2_ref, g_ref, bt_ref,
                       o_ref, acc_ref, xb_ref, *, eps):
    f = pl.program_id(1)

    @pl.when(f == 0)
    def _():
        acc_ref[...] = jnp.zeros_like(acc_ref)
        xb_ref[...] = x_ref[...].astype(_MXU_DTYPE)   # cast once, reuse per f

    h = jnp.dot(xb_ref[...], w1_ref[...].astype(_MXU_DTYPE),
                preferred_element_type=jnp.float32) + b1_ref[...]
    h = jnp.maximum(h, 0.0)
    acc_ref[...] += jnp.dot(h.astype(_MXU_DTYPE), w2_ref[...].astype(_MXU_DTYPE),
                            preferred_element_type=jnp.float32)

    @pl.when(f == pl.num_programs(1) - 1)
    def _():
        y = acc_ref[...] + b2_ref[...] + x_ref[...].astype(jnp.float32)
        mean = jnp.mean(y, axis=-1, keepdims=True)
        var = jnp.mean(jnp.square(y - mean), axis=-1, keepdims=True)
        yn = (y - mean) * jax.lax.rsqrt(var + eps)
        o_ref[...] = (yn * g_ref[...] + bt_ref[...]).astype(o_ref.dtype)


def ffn_res_ln(x, w1, b1, w2, b2, gamma, beta, eps=1e-5, tf=512):
    """LayerNorm(x + ReLU(x @ w1 + b1) @ w2 + b2).  x: (M, D) f32."""
    M, D = x.shape
    F = w1.shape[1]
    tm = _pick_tile(M, 256 if D <= 2048 else 128, (8,))
    tf = _pick_tile(F, tf, (256, 128), allow_any_divisor=False)
    return pl.pallas_call(
        functools.partial(_ffn_res_ln_kernel, eps=eps),
        out_shape=jax.ShapeDtypeStruct((M, D), x.dtype),
        grid=(M // tm, F // tf),
        in_specs=[
            pl.BlockSpec((tm, D), lambda i, f: (i, 0)),
            pl.BlockSpec((D, tf), lambda i, f: (0, f)),
            pl.BlockSpec((1, tf), lambda i, f: (0, f)),
            pl.BlockSpec((tf, D), lambda i, f: (f, 0)),
            pl.BlockSpec((1, D), lambda i, f: (0, 0)),
            pl.BlockSpec((1, D), lambda i, f: (0, 0)),
            pl.BlockSpec((1, D), lambda i, f: (0, 0)),
        ],
        out_specs=pl.BlockSpec((tm, D), lambda i, f: (i, 0)),
        scratch_shapes=[pltpu.VMEM((tm, D), jnp.float32),
                        pltpu.VMEM((tm, D), _MXU_DTYPE)],
        compiler_params=_cparams(("parallel", "arbitrary")),
    )(x, w1, b1.reshape(1, F), w2, b2.reshape(1, D),
      gamma.reshape(1, D), beta.reshape(1, D))


# ----------------------------------------------------------------------------
# Kernel 4: flash-style multi-head attention.
# Grid (B, Lq-tiles, Lk-tiles); online softmax with f32 m/l/acc scratch.
# Head split comes from the BlockSpecs (views of the fused QKV projection);
# heads are merged in-kernel so the output store is one lane-dense (tq, D).
# ----------------------------------------------------------------------------
def _flash_attn_kernel(q_ref, k_ref, v_ref, o_ref, m_ref, l_ref, acc_ref, *,
                       scale):
    ki = pl.program_id(2)

    @pl.when(ki == 0)
    def _():
        m_ref[...] = jnp.full(m_ref.shape, -jnp.inf, m_ref.dtype)
        l_ref[...] = jnp.zeros_like(l_ref)
        acc_ref[...] = jnp.zeros_like(acc_ref)

    nhead, dh = q_ref.shape[1], q_ref.shape[2]
    for h in range(nhead):                      # static unroll; 2-D MXU dots
        q_h = q_ref[:, h, :]                    # (tq, dh) bf16
        k_h = k_ref[:, h, :]                    # (tk, dh) bf16
        v_h = v_ref[:, h, :]                    # (tk, dh) bf16
        s = jnp.dot(q_h, k_h.T, preferred_element_type=jnp.float32) * scale
        m_prev = m_ref[:, h:h + 1]
        m_new = jnp.maximum(m_prev, jnp.max(s, axis=-1, keepdims=True))
        alpha = jnp.exp(m_prev - m_new)
        p = jnp.exp(s - m_new)
        l_ref[:, h:h + 1] = alpha * l_ref[:, h:h + 1] + jnp.sum(
            p, axis=-1, keepdims=True)
        sl = slice(h * dh, (h + 1) * dh)
        acc_ref[:, sl] = alpha * acc_ref[:, sl] + jnp.dot(
            p.astype(v_h.dtype), v_h, preferred_element_type=jnp.float32)
        m_ref[:, h:h + 1] = m_new

    @pl.when(ki == pl.num_programs(2) - 1)
    def _():
        for h in range(nhead):
            sl = slice(h * dh, (h + 1) * dh)
            acc_ref[:, sl] = acc_ref[:, sl] / l_ref[:, h:h + 1]  # exact divide
        o_ref[...] = acc_ref[...].astype(o_ref.dtype)            # lane-dense store


def flash_attention(q_arr, k_arr, v_arr, q_sel, k_sel, v_sel, scale,
                    out_dtype=_MXU_DTYPE, tq=256, tk=256):
    """q_arr: (B, Lq, Sq, H, dh), k_arr/v_arr: (B, Lk, Sk, H, dh) — free reshape
    views of fused projection outputs; *_sel picks the Q/K/V plane on axis 2 in
    the index maps (no XLA transpose/slice).  Returns (B, Lq, H*dh)."""
    B, Lq, _, H, dh = q_arr.shape
    Lk = k_arr.shape[1]
    D = H * dh
    tq = _pick_tile(Lq, tq, (128, 8))
    tk = _pick_tile(Lk, tk, (128, 8))
    q_spec = pl.BlockSpec((None, tq, None, H, dh),
                          lambda b, qi, ki: (b, qi, q_sel, 0, 0))
    k_spec = pl.BlockSpec((None, tk, None, H, dh),
                          lambda b, qi, ki: (b, ki, k_sel, 0, 0))
    v_spec = pl.BlockSpec((None, tk, None, H, dh),
                          lambda b, qi, ki: (b, ki, v_sel, 0, 0))
    return pl.pallas_call(
        functools.partial(_flash_attn_kernel, scale=scale),
        out_shape=jax.ShapeDtypeStruct((B, Lq, D), out_dtype),
        grid=(B, Lq // tq, Lk // tk),
        in_specs=[q_spec, k_spec, v_spec],
        out_specs=pl.BlockSpec((None, tq, D), lambda b, qi, ki: (b, qi, 0)),
        scratch_shapes=[pltpu.VMEM((tq, H), jnp.float32),   # running max
                        pltpu.VMEM((tq, H), jnp.float32),   # running sum
                        pltpu.VMEM((tq, D), jnp.float32)],  # output accumulator
        compiler_params=_cparams(("parallel", "parallel", "arbitrary")),
    )(q_arr, k_arr, v_arr)


# ----------------------------------------------------------------------------
# Module forward (kept batch-major (B*L, D) internally; one transpose at the
# PyTorch seq-first boundary)
# ----------------------------------------------------------------------------
def self_attention(x2d, p, nhead, B, L, D):
    dh = D // nhead
    qkv = linear(x2d, p["w_qkv"], p["b_qkv"], out_dtype=_MXU_DTYPE)   # (B*L, 3D)
    qkv5 = qkv.reshape(B, L, 3, nhead, dh)                            # free view
    o = flash_attention(qkv5, qkv5, qkv5, 0, 1, 2, 1.0 / math.sqrt(dh))
    return o.reshape(B * L, D)


def cross_attention(x2d, enc2d, p, nhead, B, Lq, Lk, D):
    dh = D // nhead
    q = linear(x2d, p["w_q"], p["b_q"],
               out_dtype=_MXU_DTYPE).reshape(B, Lq, 1, nhead, dh)
    kv = linear(enc2d, p["w_kv"], p["b_kv"],
                out_dtype=_MXU_DTYPE).reshape(B, Lk, 2, nhead, dh)
    o = flash_attention(q, kv, kv, 0, 0, 1, 1.0 / math.sqrt(dh))
    return o.reshape(B * Lq, D)


def decoder_layer_forward(x2d, enc2d, p, nhead, B, L, Lk, D):
    sa = p["self_attn"]
    a = self_attention(x2d, sa, nhead, B, L, D)
    x2d = matmul_res_ln(a, sa["w_out"], sa["b_out"], x2d,
                        p["norm1_g"], p["norm1_b"])

    ca = p["cross_attn"]
    a = cross_attention(x2d, enc2d, ca, nhead, B, L, Lk, D)
    x2d = matmul_res_ln(a, ca["w_out"], ca["b_out"], x2d,
                        p["norm2_g"], p["norm2_b"])

    x2d = ffn_res_ln(x2d, p["ffn_w1"], p["ffn_b1"], p["ffn_w2"], p["ffn_b2"],
                     p["norm3_g"], p["norm3_b"])
    return x2d


def decoder_forward(x, encoder_output, params, nhead):
    """x: (L, B, D), encoder_output: (L_enc, B, D) — PyTorch seq-first layout."""
    L, B, D = x.shape
    Lk = encoder_output.shape[0]
    x2d = jnp.transpose(x, (1, 0, 2)).reshape(B * L, D)
    enc2d = jnp.transpose(encoder_output, (1, 0, 2)).reshape(B * Lk, D)
    for p in params:
        x2d = decoder_layer_forward(x2d, enc2d, p, nhead, B, L, Lk, D)
    return jnp.transpose(x2d.reshape(B, L, D), (1, 0, 2))


# ----------------------------------------------------------------------------
# Parameter init (PyTorch layout) and one-time conversion to fused bf16 layout
# ----------------------------------------------------------------------------
def init_mha_params(key, d_model):
    k1, k2, k3, k4 = jax.random.split(key, 4)
    return {
        "in_proj_weight": 0.02 * jax.random.normal(k1, (3 * d_model, d_model), jnp.float32),
        "in_proj_bias": 0.01 * jax.random.normal(k2, (3 * d_model,), jnp.float32),
        "out_proj_weight": 0.02 * jax.random.normal(k3, (d_model, d_model), jnp.float32),
        "out_proj_bias": 0.01 * jax.random.normal(k4, (d_model,), jnp.float32),
    }


def init_layer_params(key, d_model, dim_ff):
    ks = jax.random.split(key, 6)
    return {
        "self_attn": init_mha_params(ks[0], d_model),
        "cross_attn": init_mha_params(ks[1], d_model),
        # PyTorch Linear stores weight as (out_features, in_features)
        "ffn_w1": 0.02 * jax.random.normal(ks[2], (dim_ff, d_model), jnp.float32),
        "ffn_b1": 0.01 * jax.random.normal(ks[3], (dim_ff,), jnp.float32),
        "ffn_w2": 0.02 * jax.random.normal(ks[4], (d_model, dim_ff), jnp.float32),
        "ffn_b2": 0.01 * jax.random.normal(ks[5], (d_model,), jnp.float32),
        "norm1_g": jnp.ones((d_model,), jnp.float32),
        "norm1_b": jnp.zeros((d_model,), jnp.float32),
        "norm2_g": jnp.ones((d_model,), jnp.float32),
        "norm2_b": jnp.zeros((d_model,), jnp.float32),
        "norm3_g": jnp.ones((d_model,), jnp.float32),
        "norm3_b": jnp.zeros((d_model,), jnp.float32),
    }


def prepare_mha_params(p, d_model):
    """Transpose + pre-cast weights to bf16 once (half HBM bytes per tile)."""
    w_in, b_in = p["in_proj_weight"], p["in_proj_bias"]
    return {
        "w_qkv": jnp.asarray(w_in.T, dtype=_MXU_DTYPE),            # (D, 3D)
        "b_qkv": b_in,
        "w_q": jnp.asarray(w_in[:d_model].T, dtype=_MXU_DTYPE),    # (D, D)
        "b_q": b_in[:d_model],
        "w_kv": jnp.asarray(w_in[d_model:].T, dtype=_MXU_DTYPE),   # (D, 2D)
        "b_kv": b_in[d_model:],
        "w_out": jnp.asarray(p["out_proj_weight"].T, dtype=_MXU_DTYPE),
        "b_out": p["out_proj_bias"],
    }


def prepare_layer_params(p, d_model):
    return {
        "self_attn": prepare_mha_params(p["self_attn"], d_model),
        "cross_attn": prepare_mha_params(p["cross_attn"], d_model),
        "ffn_w1": jnp.asarray(p["ffn_w1"].T, dtype=_MXU_DTYPE),    # (D, F)
        "ffn_b1": p["ffn_b1"],
        "ffn_w2": jnp.asarray(p["ffn_w2"].T, dtype=_MXU_DTYPE),    # (F, D)
        "ffn_b2": p["ffn_b2"],
        "norm1_g": p["norm1_g"], "norm1_b": p["norm1_b"],
        "norm2_g": p["norm2_g"], "norm2_b": p["norm2_b"],
        "norm3_g": p["norm3_g"], "norm3_b": p["norm3_b"],
    }


# ----------------------------------------------------------------------------
# Pure-JAX f32 reference (PyTorch semantics) for the self-check
# ----------------------------------------------------------------------------
def _ref_ln(x, g, b, eps=1e-5):
    m = x.mean(-1, keepdims=True)
    v = ((x - m) ** 2).mean(-1, keepdims=True)
    return (x - m) / jnp.sqrt(v + eps) * g + b


def _ref_mha(x_q, x_kv, tp, nhead):
    Lq, B, D = x_q.shape
    Lk = x_kv.shape[0]
    dh = D // nhead
    w_in, b_in = tp["in_proj_weight"], tp["in_proj_bias"]
    q = x_q @ w_in[:D].T + b_in[:D]
    k = x_kv @ w_in[D:2 * D].T + b_in[D:2 * D]
    v = x_kv @ w_in[2 * D:].T + b_in[2 * D:]
    q = jnp.transpose(q.reshape(Lq, B, nhead, dh), (1, 2, 0, 3))
    k = jnp.transpose(k.reshape(Lk, B, nhead, dh), (1, 2, 0, 3))
    v = jnp.transpose(v.reshape(Lk, B, nhead, dh), (1, 2, 0, 3))
    s = jnp.einsum("bhqd,bhkd->bhqk", q, k) / math.sqrt(dh)
    p = jax.nn.softmax(s, axis=-1)
    o = jnp.einsum("bhqk,bhkd->bhqd", p, v)
    o = jnp.transpose(o, (2, 0, 1, 3)).reshape(Lq, B, D)
    return o @ tp["out_proj_weight"].T + tp["out_proj_bias"]


def reference_forward(x, enc, torch_params, nhead):
    for tp in torch_params:
        x = _ref_ln(x + _ref_mha(x, x, tp["self_attn"], nhead),
                    tp["norm1_g"], tp["norm1_b"])
        x = _ref_ln(x + _ref_mha(x, enc, tp["cross_attn"], nhead),
                    tp["norm2_g"], tp["norm2_b"])
        h = jnp.maximum(x @ tp["ffn_w1"].T + tp["ffn_b1"], 0.0)
        f = h @ tp["ffn_w2"].T + tp["ffn_b2"]
        x = _ref_ln(x + f, tp["norm3_g"], tp["norm3_b"])
    return x


if __name__ == "__main__":
    d_model, nhead, num_layers, dim_ff = 32, 4, 2, 64
    L, B, L_enc = 8, 2, 8

    key = jax.random.PRNGKey(0)
    kx, kenc, kp = jax.random.split(key, 3)
    x = jax.random.normal(kx, (L, B, d_model), jnp.float32)
    enc = jax.random.normal(kenc, (L_enc, B, d_model), jnp.float32)
    torch_layout_params = [init_layer_params(k, d_model, dim_ff)
                           for k in jax.random.split(kp, num_layers)]
    params = [prepare_layer_params(p, d_model) for p in torch_layout_params]

    fwd = jax.jit(functools.partial(decoder_forward, nhead=nhead))
    out = fwd(x, enc, params)
    jax.block_until_ready(out)

    assert out.shape == (L, B, d_model)
    assert bool(jnp.all(jnp.isfinite(out)))

    ref = reference_forward(x, enc, torch_layout_params, nhead)
    err = float(jnp.max(jnp.abs(out - ref)))
    assert err < 0.1, f"max abs error vs f32 reference too large: {err}"

    print("KERNEL_OK")
</pallas_src>

<mosaic_0001>
module attributes {stable_mosaic.version = 11 : i64} {
  func.func @_linear_kernel(%arg0: i32, %arg1: i32, %arg2: i32, %arg3: memref<16x32xf32, #tpu.memory_space<vmem>>, %arg4: memref<32x96xbf16, #tpu.memory_space<vmem>>, %arg5: memref<1x96xf32, #tpu.memory_space<vmem>>, %arg6: memref<16x96xbf16, #tpu.memory_space<vmem>>, %arg7: memref<16x96xf32, #tpu.memory_space<vmem>>) attributes {dimension_semantics = [#tpu.dimension_semantics<parallel>, #tpu.dimension_semantics<parallel>, #tpu.dimension_semantics<arbitrary>], iteration_bounds = array<i64: 1, 1, 1>, scalar_prefetch = 0 : i64, scratch_operands = 1 : i64, tpu.core_type = #tpu.core_type<tc>, window_params = [{transform_indices = @transform_0, window_bounds = array<i64: 16, 32>}, {transform_indices = @transform_1, window_bounds = array<i64: 32, 96>}, {transform_indices = @transform_2, window_bounds = array<i64: 1, 96>}, {transform_indices = @transform_3, window_bounds = array<i64: 16, 96>}]} {
    %c0_i32 = arith.constant 0 : i32
    %0 = arith.cmpi eq, %arg2, %c0_i32 : i32
    %1 = arith.extui %0 : i1 to i32
    %c0_i32_0 = arith.constant 0 : i32
    %2 = arith.cmpi ne, %1, %c0_i32_0 : i32
    scf.if %2 {
      %cst_10 = arith.constant 0.000000e+00 : f32
      %13 = vector.broadcast %cst_10 : f32 to vector<16x96xf32>
      %c0_11 = arith.constant 0 : index
      %c0_12 = arith.constant 0 : index
      %14 = vector.load %arg7[%c0_11, %c0_12] : memref<16x96xf32, #tpu.memory_space<vmem>>, vector<16x96xf32>
      tpu.vector_store %arg7[%c0_11, %c0_12], %13 {strides = array<i32>} : memref<16x96xf32, #tpu.memory_space<vmem>>, vector<16x96xf32>,
    } else {
    }
    %c0 = arith.constant 0 : index
    %c0_1 = arith.constant 0 : index
    %3 = vector.load %arg7[%c0, %c0_1] : memref<16x96xf32, #tpu.memory_space<vmem>>, vector<16x96xf32>
    %c0_2 = arith.constant 0 : index
    %c0_3 = arith.constant 0 : index
    %4 = vector.load %arg3[%c0_2, %c0_3] : memref<16x32xf32, #tpu.memory_space<vmem>>, vector<16x32xf32>
    %5 = arith.truncf %4 : vector<16x32xf32> to vector<16x32xbf16>
    %c0_4 = arith.constant 0 : index
    %c0_5 = arith.constant 0 : index
    %6 = vector.load %arg4[%c0_4, %c0_5] : memref<32x96xbf16, #tpu.memory_space<vmem>>, vector<32x96xbf16>
    %cst = arith.constant dense<0.000000e+00> : vector<16x96xf32>
    %7 = tpu.matmul %5, %6, %cst {dimension_numbers = #tpu.dot_dimension_numbers<[1], [0], [0], [1], [0, 0, 1, 1], [], []>} : vector<16x32xbf16>, vector<32x96xbf16>, vector<16x96xf32> -> vector<16x96xf32>
    %8 = arith.addf %3, %7 : vector<16x96xf32>
    %c0_6 = arith.constant 0 : index
    %c0_7 = arith.constant 0 : index
    %9 = vector.load %arg7[%c0_6, %c0_7] : memref<16x96xf32, #tpu.memory_space<vmem>>, vector<16x96xf32>
    tpu.vector_store %arg7[%c0_6, %c0_7], %8 {strides = array<i32>} : memref<16x96xf32, #tpu.memory_space<vmem>>, vector<16x96xf32>,
    %c0_i32_8 = arith.constant 0 : i32
    %10 = arith.cmpi eq, %arg2, %c0_i32_8 : i32
    %11 = arith.extui %10 : i1 to i32
    %c0_i32_9 = arith.constant 0 : i32
    %12 = arith.cmpi ne, %11, %c0_i32_9 : i32
    scf.if %12 {
      %c0_10 = arith.constant 0 : index
      %c0_11 = arith.constant 0 : index
      %13 = vector.load %arg7[%c0_10, %c0_11] : memref<16x96xf32, #tpu.memory_space<vmem>>, vector<16x96xf32>
      %c0_12 = arith.constant 0 : index
      %c0_13 = arith.constant 0 : index
      %14 = vector.load %arg5[%c0_12, %c0_13] : memref<1x96xf32, #tpu.memory_space<vmem>>, vector<1x96xf32>
      %15 = vector.broadcast %14 : vector<1x96xf32> to vector<16x96xf32>
      %16 = arith.addf %13, %15 : vector<16x96xf32>
      %17 = arith.truncf %16 : vector<16x96xf32> to vector<16x96xbf16>
      %c0_14 = arith.constant 0 : index
      %c0_15 = arith.constant 0 : index
      %18 = vector.load %arg6[%c0_14, %c0_15] : memref<16x96xbf16, #tpu.memory_space<vmem>>, vector<16x96xbf16>
      tpu.vector_store %arg6[%c0_14, %c0_15], %17 {strides = array<i32>} : memref<16x96xbf16, #tpu.memory_space<vmem>>, vector<16x96xbf16>,
    } else {
    }
    return
  }
  func.func @transform_0(%arg0: i32, %arg1: i32, %arg2: i32) -> (i32, i32) {
    %c0_i32 = arith.constant 0 : i32
    return %arg0, %arg2 : i32, i32
  }
  func.func @transform_1(%arg0: i32, %arg1: i32, %arg2: i32) -> (i32, i32) {
    %c0_i32 = arith.constant 0 : i32
    return %arg2, %arg1 : i32, i32
  }
  func.func @transform_2(%arg0: i32, %arg1: i32, %arg2: i32) -> (i32, i32) {
    %c0_i32 = arith.constant 0 : i32
    %c0_i32_0 = arith.constant 0 : i32
    return %c0_i32, %arg1 : i32, i32
  }
  func.func @transform_3(%arg0: i32, %arg1: i32, %arg2: i32) -> (i32, i32) {
    %c0_i32 = arith.constant 0 : i32
    return %arg0, %arg1 : i32, i32
  }
}

module attributes {stable_mosaic.version = 11 : i64} {
  func.func @_flash_attn_kernel(%arg0: i32, %arg1: i32, %arg2: i32, %arg3: memref<1x8x1x4x8xbf16, #tpu.memory_space<vmem>>, %arg4: memref<1x8x1x4x8xbf16, #tpu.memory_space<vmem>>, %arg5: memref<1x8x1x4x8xbf16, #tpu.memory_space<vmem>>, %arg6: memref<1x8x32xbf16, #tpu.memory_space<vmem>>, %arg7: memref<8x4xf32, #tpu.memory_space<vmem>>, %arg8: memref<8x4xf32, #tpu.memory_space<vmem>>, %arg9: memref<8x32xf32, #tpu.memory_space<vmem>>) attributes {dimension_semantics = [#tpu.dimension_semantics<parallel>, #tpu.dimension_semantics<parallel>, #tpu.dimension_semantics<arbitrary>], iteration_bounds = array<i64: 2, 1, 1>, scalar_prefetch = 0 : i64, scratch_operands = 3 : i64, tpu.core_type = #tpu.core_type<tc>, window_params = [{transform_indices = @transform_0, window_bounds = array<i64: 1, 8, 1, 4, 8>}, {transform_indices = @transform_1, window_bounds = array<i64: 1, 8, 1, 4, 8>}, {transform_indices = @transform_2, window_bounds = array<i64: 1, 8, 1, 4, 8>}, {transform_indices = @transform_3, window_bounds = array<i64: 1, 8, 32>}]} {
    %c0_i32 = arith.constant 0 : i32
    %0 = arith.cmpi eq, %arg2, %c0_i32 : i32
    %1 = arith.extui %0 : i1 to i32
    %c0_i32_0 = arith.constant 0 : i32
    %2 = arith.cmpi ne, %1, %c0_i32_0 : i32
    scf.if %2 {
      %cst_123 = arith.constant 0xFF800000 : f32
      %138 = vector.broadcast %cst_123 : f32 to vector<8x4xf32>
      %c0_124 = arith.constant 0 : index
      %c0_125 = arith.constant 0 : index
      %139 = vector.load %arg7[%c0_124, %c0_125] : memref<8x4xf32, #tpu.memory_space<vmem>>, vector<8x4xf32>
      tpu.vector_store %arg7[%c0_124, %c0_125], %138 {strides = array<i32>} : memref<8x4xf32, #tpu.memory_space<vmem>>, vector<8x4xf32>,
      %cst_126 = arith.constant 0.000000e+00 : f32
      %140 = vector.broadcast %cst_126 : f32 to vector<8x4xf32>
      %c0_127 = arith.constant 0 : index
      %c0_128 = arith.constant 0 : index
      %141 = vector.load %arg8[%c0_127, %c0_128] : memref<8x4xf32, #tpu.memory_space<vmem>>, vector<8x4xf32>
      tpu.vector_store %arg8[%c0_127, %c0_128], %140 {strides = array<i32>} : memref<8x4xf32, #tpu.memory_space<vmem>>, vector<8x4xf32>,
      %cst_129 = arith.constant 0.000000e+00 : f32
      %142 = vector.broadcast %cst_129 : f32 to vector<8x32xf32>
      %c0_130 = arith.constant 0 : index
      %c0_131 = arith.constant 0 : index
      %143 = vector.load %arg9[%c0_130, %c0_131] : memref<8x32xf32, #tpu.memory_space<vmem>>, vector<8x32xf32>
      tpu.vector_store %arg9[%c0_130, %c0_131], %142 {strides = array<i32>} : memref<8x32xf32, #tpu.memory_space<vmem>>, vector<8x32xf32>,
    } else {
    }
    %c0 = arith.constant 0 : index
    %c0_1 = arith.constant 0 : index
    %c0_2 = arith.constant 0 : index
    %c0_3 = arith.constant 0 : index
    %c0_4 = arith.constant 0 : index
    %3 = vector.load %arg3[%c0, %c0_1, %c0_2, %c0_3, %c0_4] : memref<1x8x1x4x8xbf16, #tpu.memory_space<vmem>>, vector<1x8x1x1x8xbf16>
    %4 = vector.shape_cast %3 : vector<1x8x1x1x8xbf16> to vector<8x8xbf16>
    %c0_5 = arith.constant 0 : index
    %c0_6 = arith.constant 0 : index
    %c0_7 = arith.constant 0 : index
    %c0_8 = arith.constant 0 : index
    %c0_9 = arith.constant 0 : index
    %5 = vector.load %arg4[%c0_5, %c0_6, %c0_7, %c0_8, %c0_9] : memref<1x8x1x4x8xbf16, #tpu.memory_space<vmem>>, vector<1x8x1x1x8xbf16>
    %6 = vector.shape_cast %5 : vector<1x8x1x1x8xbf16> to vector<8x8xbf16>
    %c0_10 = arith.constant 0 : index
    %c0_11 = arith.constant 0 : index
    %c0_12 = arith.constant 0 : index
    %c0_13 = arith.constant 0 : index
    %c0_14 = arith.constant 0 : index
    %7 = vector.load %arg5[%c0_10, %c0_11, %c0_12, %c0_13, %c0_14] : memref<1x8x1x4x8xbf16, #tpu.memory_space<vmem>>, vector<1x8x1x1x8xbf16>
    %8 = vector.shape_cast %7 : vector<1x8x1x1x8xbf16> to vector<8x8xbf16>
    %9 = tpu.transpose %6, [1, 0] : vector<8x8xbf16> -> vector<8x8xbf16>
    %cst = arith.constant dense<0.000000e+00> : vector<8x8xf32>
    %10 = tpu.matmul %4, %9, %cst {dimension_numbers = #tpu.dot_dimension_numbers<[1], [0], [0], [1], [0, 0, 1, 1], [], []>} : vector<8x8xbf16>, vector<8x8xbf16>, vector<8x8xf32> -> vector<8x8xf32>
    %cst_15 = arith.constant 0.353553385 : f32
    %11 = vector.broadcast %cst_15 : f32 to vector<8x8xf32>
    %12 = arith.mulf %10, %11 : vector<8x8xf32>
    %c0_16 = arith.constant 0 : index
    %c0_17 = arith.constant 0 : index
    %13 = vector.load %arg7[%c0_16, %c0_17] : memref<8x4xf32, #tpu.memory_space<vmem>>, vector<8x1xf32>
    %cst_18 = arith.constant dense<0xFF800000> : vector<8xf32>
    %14 = vector.multi_reduction <maximumf>, %12, %cst_18 [1] : vector<8x8xf32> to vector<8xf32>
    %15 = vector.shape_cast %14 : vector<8xf32> to vector<8x1xf32>
    %16 = arith.maximumf %13, %15 : vector<8x1xf32>
    %17 = arith.subf %13, %16 : vector<8x1xf32>
    %18 = math.exp %17 : vector<8x1xf32>
    %19 = vector.broadcast %16 : vector<8x1xf32> to vector<8x8xf32>
    %20 = arith.subf %12, %19 : vector<8x8xf32>
    %21 = math.exp %20 : vector<8x8xf32>
    %c0_19 = arith.constant 0 : index
    %c0_20 = arith.constant 0 : index
    %22 = vector.load %arg8[%c0_19, %c0_20] : memref<8x4xf32, #tpu.memory_space<vmem>>, vector<8x1xf32>
    %23 = arith.mulf %18, %22 : vector<8x1xf32>
    %cst_21 = arith.constant dense<0.000000e+00> : vector<8xf32>
    %24 = vector.multi_reduction <add>, %21, %cst_21 [1] : vector<8x8xf32> to vector<8xf32>
    %25 = vector.shape_cast %24 : vector<8xf32> to vector<8x1xf32>
    %26 = arith.addf %23, %25 : vector<8x1xf32>
    %c0_22 = arith.constant 0 : index
    %c0_23 = arith.constant 0 : index
    %27 = vector.load %arg8[%c0_22, %c0_23] : memref<8x4xf32, #tpu.memory_space<vmem>>, vector<8x1xf32>
    tpu.vector_store %arg8[%c0_22, %c0_23], %26 {strides = array<i32>} : memref<8x4xf32, #tpu.memory_space<vmem>>, vector<8x1xf32>,
    %c0_24 = arith.constant 0 : index
    %c0_25 = arith.constant 0 : index
    %28 = vector.load %arg9[%c0_24, %c0_25] : memref<8x32xf32, #tpu.memory_space<vmem>>, vector<8x8xf32>
    %29 = vector.broadcast %18 : vector<8x1xf32> to vector<8x8xf32>
    %30 = arith.mulf %29, %28 : vector<8x8xf32>
    %31 = arith.truncf %21 : vector<8x8xf32> to vector<8x8xbf16>
    %cst_26 = arith.constant dense<0.000000e+00> : vector<8x8xf32>
    %32 = tpu.matmul %31, %8, %cst_26 {dimension_numbers = #tpu.dot_dimension_numbers<[1], [0], [0], [1], [0, 0, 1, 1], [], []>} : vector<8x8xbf16>, vector<8x8xbf16>, vector<8x8xf32> -> vector<8x8xf32>
    %33 = arith.addf %30, %32 : vector<8x8xf32>
    %c0_27 = arith.constant 0 : index
    %c0_28 = arith.constant 0 : index
    %34 = vector.load %arg9[%c0_27, %c0_28] : memref<8x32xf32, #tpu.memory_space<vmem>>, vector<8x8xf32>
    tpu.vector_store %arg9[%c0_27, %c0_28], %33 {strides = array<i32>} : memref<8x32xf32, #tpu.memory_space<vmem>>, vector<8x8xf32>,
    %c0_29 = arith.constant 0 : index
    %c0_30 = arith.constant 0 : index
    %35 = vector.load %arg7[%c0_29, %c0_30] : memref<8x4xf32, #tpu.memory_space<vmem>>, vector<8x1xf32>
    tpu.vector_store %arg7[%c0_29, %c0_30], %16 {strides = array<i32>} : memref<8x4xf32, #tpu.memory_space<vmem>>, vector<8x1xf32>,
    %c0_31 = arith.constant 0 : index
    %c0_32 = arith.constant 0 : index
    %c0_33 = arith.constant 0 : index
    %c1 = arith.constant 1 : index
    %c0_34 = arith.constant 0 : index
    %36 = vector.load %arg3[%c0_31, %c0_32, %c0_33, %c1, %c0_34] : memref<1x8x1x4x8xbf16, #tpu.memory_space<vmem>>, vector<1x8x1x1x8xbf16>
    %37 = vector.shape_cast %36 : vector<1x8x1x1x8xbf16> to vector<8x8xbf16>
    %c0_35 = arith.constant 0 : index
    %c0_36 = arith.constant 0 : index
    %c0_37 = arith.constant 0 : index
    %c1_38 = arith.constant 1 : index
    %c0_39 = arith.constant 0 : index
    %38 = vector.load %arg4[%c0_35, %c0_36, %c0_37, %c1_38, %c0_39] : memref<1x8x1x4x8xbf16, #tpu.memory_space<vmem>>, vector<1x8x1x1x8xbf16>
    %39 = vector.shape_cast %38 : vector<1x8x1x1x8xbf16> to vector<8x8xbf16>
    %c0_40 = arith.constant 0 : index
    %c0_41 = arith.constant 0 : index
    %c0_42 = arith.constant 0 : index
    %c1_43 = arith.constant 1 : index
    %c0_44 = arith.constant 0 : index
    %40 = vector.load %arg5[%c0_40, %c0_41, %c0_42, %c1_43, %c0_44] : memref<1x8x1x4x8xbf16, #tpu.memory_space<vmem>>, vector<1x8x1x1x8xbf16>
    %41 = vector.shape_cast %40 : vector<1x8x1x1x8xbf16> to vector<8x8xbf16>
    %42 = tpu.transpose %39, [1, 0] : vector<8x8xbf16> -> vector<8x8xbf16>
    %cst_45 = arith.constant dense<0.000000e+00> : vector<8x8xf32>
    %43 = tpu.matmul %37, %42, %cst_45 {dimension_numbers = #tpu.dot_dimension_numbers<[1], [0], [0], [1], [0, 0, 1, 1], [], []>} : vector<8x8xbf16>, vector<8x8xbf16>, vector<8x8xf32> -> vector<8x8xf32>
    %cst_46 = arith.constant 0.353553385 : f32
    %44 = vector.broadcast %cst_46 : f32 to vector<8x8xf32>
    %45 = arith.mulf %43, %44 : vector<8x8xf32>
    %c0_47 = arith.constant 0 : index
    %c1_48 = arith.constant 1 : index
    %46 = vector.load %arg7[%c0_47, %c1_48] : memref<8x4xf32, #tpu.memory_space<vmem>>, vector<8x1xf32>
    %cst_49 = arith.constant dense<0xFF800000> : vector<8xf32>
    %47 = vector.multi_reduction <maximumf>, %45, %cst_49 [1] : vector<8x8xf32> to vector<8xf32>
    %48 = vector.shape_cast %47 : vector<8xf32> to vector<8x1xf32>
    %49 = arith.maximumf %46, %48 : vector<8x1xf32>
    %50 = arith.subf %46, %49 : vector<8x1xf32>
    %51 = math.exp %50 : vector<8x1xf32>
    %52 = vector.broadcast %49 : vector<8x1xf32> to vector<8x8xf32>
    %53 = arith.subf %45, %52 : vector<8x8xf32>
    %54 = math.exp %53 : vector<8x8xf32>
    %c0_50 = arith.constant 0 : index
    %c1_51 = arith.constant 1 : index
    %55 = vector.load %arg8[%c0_50, %c1_51] : memref<8x4xf32, #tpu.memory_space<vmem>>, vector<8x1xf32>
    %56 = arith.mulf %51, %55 : vector<8x1xf32>
    %cst_52 = arith.constant dense<0.000000e+00> : vector<8xf32>
    %57 = vector.multi_reduction <add>, %54, %cst_52 [1] : vector<8x8xf32> to vector<8xf32>
    %58 = vector.shape_cast %57 : vector<8xf32> to vector<8x1xf32>
    %59 = arith.addf %56, %58 : vector<8x1xf32>
    %c0_53 = arith.constant 0 : index
    %c1_54 = arith.constant 1 : index
    %60 = vector.load %arg8[%c0_53, %c1_54] : memref<8x4xf32, #tpu.memory_space<vmem>>, vector<8x1xf32>
    tpu.vector_store %arg8[%c0_53, %c1_54], %59 {strides = array<i32>} : memref<8x4xf32, #tpu.memory_space<vmem>>, vector<8x1xf32>,
    %c0_55 = arith.constant 0 : index
    %c8 = arith.constant 8 : index
    %61 = vector.load %arg9[%c0_55, %c8] : memref<8x32xf32, #tpu.memory_space<vmem>>, vector<8x8xf32>
    %62 = vector.broadcast %51 : vector<8x1xf32> to vector<8x8xf32>
    %63 = arith.mulf %62, %61 : vector<8x8xf32>
    %64 = arith.truncf %54 : vector<8x8xf32> to vector<8x8xbf16>
    %cst_56 = arith.constant dense<0.000000e+00> : vector<8x8xf32>
    %65 = tpu.matmul %64, %41, %cst_56 {dimension_numbers = #tpu.dot_dimension_numbers<[1], [0], [0], [1], [0, 0, 1, 1], [], []>} : vector<8x8xbf16>, vector<8x8xbf16>, vector<8x8xf32> -> vector<8x8xf32>
    %66 = arith.addf %63, %65 : vector<8x8xf32>
    %c0_57 = arith.constant 0 : index
    %c8_58 = arith.constant 8 : index
    %67 = vector.load %arg9[%c0_57, %c8_58] : memref<8x32xf32, #tpu.memory_space<vmem>>, vector<8x8xf32>
    tpu.vector_store %arg9[%c0_57, %c8_58], %66 {strides = array<i32>} : memref<8x32xf32, #tpu.memory_space<vmem>>, vector<8x8xf32>,
    %c0_59 = arith.constant 0 : index
    %c1_60 = arith.constant 1 : index
    %68 = vector.load %arg7[%c0_59, %c1_60] : memref<8x4xf32, #tpu.memory_space<vmem>>, vector<8x1xf32>
    tpu.vector_store %arg7[%c0_59, %c1_60], %49 {strides = array<i32>} : memref<8x4xf32, #tpu.memory_space<vmem>>, vector<8x1xf32>,
    %c0_61 = arith.constant 0 : index
    %c0_62 = arith.constant 0 : index
    %c0_63 = arith.constant 0 : index
    %c2 = arith.constant 2 : index
    %c0_64 = arith.constant 0 : index
    %69 = vector.load %arg3[%c0_61, %c0_62, %c0_63, %c2, %c0_64] : memref<1x8x1x4x8xbf16, #tpu.memory_space<vmem>>, vector<1x8x1x1x8xbf16>
    %70 = vector.shape_cast %69 : vector<1x8x1x1x8xbf16> to vector<8x8xbf16>
    %c0_65 = arith.constant 0 : index
    %c0_66 = arith.constant 0 : index
    %c0_67 = arith.constant 0 : index
    %c2_68 = arith.constant 2 : index
    %c0_69 = arith.constant 0 : index
    %71 = vector.load %arg4[%c0_65, %c0_66, %c0_67, %c2_68, %c0_69] : memref<1x8x1x4x8xbf16, #tpu.memory_space<vmem>>, vector<1x8x1x1x8xbf16>
    %72 = vector.shape_cast %71 : vector<1x8x1x1x8xbf16> to vector<8x8xbf16>
    %c0_70 = arith.constant 0 : index
    %c0_71 = arith.constant 0 : index
    %c0_72 = arith.constant 0 : index
    %c2_73 = arith.constant 2 : index
    %c0_74 = arith.constant 0 : index
    %73 = vector.load %arg5[%c0_70, %c0_71, %c0_72, %c2_73, %c0_74] : memref<1x8x1x4x8xbf16, #tpu.memory_space<vmem>>, vector<1x8x1x1x8xbf16>
    %74 = vector.shape_cast %73 : vector<1x8x1x1x8xbf16> to vector<8x8xbf16>
    %75 = tpu.transpose %72, [1, 0] : vector<8x8xbf16> -> vector<8x8xbf16>
    %cst_75 = arith.constant dense<0.000000e+00> : vector<8x8xf32>
    %76 = tpu.matmul %70, %75, %cst_75 {dimension_numbers = #tpu.dot_dimension_numbers<[1], [0], [0], [1], [0, 0, 1, 1], [], []>} : vector<8x8xbf16>, vector<8x8xbf16>, vector<8x8xf32> -> vector<8x8xf32>
    %cst_76 = arith.constant 0.353553385 : f32
    %77 = vector.broadcast %cst_76 : f32 to vector<8x8xf32>
    %78 = arith.mulf %76, %77 : vector<8x8xf32>
    %c0_77 = arith.constant 0 : index
    %c2_78 = arith.constant 2 : index
    %79 = vector.load %arg7[%c0_77, %c2_78] : memref<8x4xf32, #tpu.memory_space<vmem>>, vector<8x1xf32>
    %cst_79 = arith.constant dense<0xFF800000> : vector<8xf32>
    %80 = vector.multi_reduction <maximumf>, %78, %cst_79 [1] : vector<8x8xf32> to vector<8xf32>
    %81 = vector.shape_cast %80 : vector<8xf32> to vector<8x1xf32>
    %82 = arith.maximumf %79, %81 : vector<8x1xf32>
    %83 = arith.subf %79, %82 : vector<8x1xf32>
    %84 = math.exp %83 : vector<8x1xf32>
    %85 = vector.broadcast %82 : vector<8x1xf32> to vector<8x8xf32>
    %86 = arith.subf %78, %85 : vector<8x8xf32>
    %87 = math.exp %86 : vector<8x8xf32>
    %c0_80 = arith.constant 0 : index
    %c2_81 = arith.constant 2 : index
    %88 = vector.load %arg8[%c0_80, %c2_81] : memref<8x4xf32, #tpu.memory_space<vmem>>, vector<8x1xf32>
    %89 = arith.mulf %84, %88 : vector<8x1xf32>
    %cst_82 = arith.constant dense<0.000000e+00> : vector<8xf32>
    %90 = vector.multi_reduction <add>, %87, %cst_82 [1] : vector<8x8xf32> to vector<8xf32>
    %91 = vector.shape_cast %90 : vector<8xf32> to vector<8x1xf32>
    %92 = arith.addf %89, %91 : vector<8x1xf32>
    %c0_83 = arith.constant 0 : index
    %c2_84 = arith.constant 2 : index
    %93 = vector.load %arg8[%c0_83, %c2_84] : memref<8x4xf32, #tpu.memory_space<vmem>>, vector<8x1xf32>
    tpu.vector_store %arg8[%c0_83, %c2_84], %92 {strides = array<i32>} : memref<8x4xf32, #tpu.memory_space<vmem>>, vector<8x1xf32>,
    %c0_85 = arith.constant 0 : index
    %c16 = arith.constant 16 : index
    %94 = vector.load %arg9[%c0_85, %c16] : memref<8x32xf32, #tpu.memory_space<vmem>>, vector<8x8xf32>
    %95 = vector.broadcast %84 : vector<8x1xf32> to vector<8x8xf32>
    %96 = arith.mulf %95, %94 : vector<8x8xf32>
    %97 = arith.truncf %87 : vector<8x8xf32> to vector<8x8xbf16>
    %cst_86 = arith.constant dense<0.000000e+00> : vector<8x8xf32>
    %98 = tpu.matmul %97, %74, %cst_86 {dimension_numbers = #tpu.dot_dimension_numbers<[1], [0], [0], [1], [0, 0, 1, 1], [], []>} : vector<8x8xbf16>, vector<8x8xbf16>, vector<8x8xf32> -> vector<8x8xf32>
    %99 = arith.addf %96, %98 : vector<8x8xf32>
    %c0_87 = arith.constant 0 : index
    %c16_88 = arith.constant 16 : index
    %100 = vector.load %arg9[%c0_87, %c16_88] : memref<8x32xf32, #tpu.memory_space<vmem>>, vector<8x8xf32>
    tpu.vector_store %arg9[%c0_87, %c16_88], %99 {strides = array<i32>} : memref<8x32xf32, #tpu.memory_space<vmem>>, vector<8x8xf32>,
    %c0_89 = arith.constant 0 : index
    %c2_90 = arith.constant 2 : index
    %101 = vector.load %arg7[%c0_89, %c2_90] : memref<8x4xf32, #tpu.memory_space<vmem>>, vector<8x1xf32>
    tpu.vector_store %arg7[%c0_89, %c2_90], %82 {strides = array<i32>} : memref<8x4xf32, #tpu.memory_space<vmem>>, vector<8x1xf32>,
    %c0_91 = arith.constant 0 : index
    %c0_92 = arith.constant 0 : index
    %c0_93 = arith.constant 0 : index
    %c3 = arith.constant 3 : index
    %c0_94 = arith.constant 0 : index
    %102 = vector.load %arg3[%c0_91, %c0_92, %c0_93, %c3, %c0_94] : memref<1x8x1x4x8xbf16, #tpu.memory_space<vmem>>, vector<1x8x1x1x8xbf16>
    %103 = vector.shape_cast %102 : vector<1x8x1x1x8xbf16> to vector<8x8xbf16>
    %c0_95 = arith.constant 0 : index
    %c0_96 = arith.constant 0 : index
    %c0_97 = arith.constant 0 : index
    %c3_98 = arith.constant 3 : index
    %c0_99 = arith.constant 0 : index
    %104 = vector.load %arg4[%c0_95, %c0_96, %c0_97, %c3_98, %c0_99] : memref<1x8x1x4x8xbf16, #tpu.memory_space<vmem>>, vector<1x8x1x1x8xbf16>
    %105 = vector.shape_cast %104 : vector<1x8x1x1x8xbf16> to vector<8x8xbf16>
    %c0_100 = arith.constant 0 : index
    %c0_101 = arith.constant 0 : index
    %c0_102 = arith.constant 0 : index
    %c3_103 = arith.constant 3 : index
    %c0_104 = arith.constant 0 : index
    %106 = vector.load %arg5[%c0_100, %c0_101, %c0_102, %c3_103, %c0_104] : memref<1x8x1x4x8xbf16, #tpu.memory_space<vmem>>, vector<1x8x1x1x8xbf16>
    %107 = vector.shape_cast %106 : vector<1x8x1x1x8xbf16> to vector<8x8xbf16>
    %108 = tpu.transpose %105, [1, 0] : vector<8x8xbf16> -> vector<8x8xbf16>
    %cst_105 = arith.constant dense<0.000000e+00> : vector<8x8xf32>
    %109 = tpu.matmul %103, %108, %cst_105 {dimension_numbers = #tpu.dot_dimension_numbers<[1], [0], [0], [1], [0, 0, 1, 1], [], []>} : vector<8x8xbf16>, vector<8x8xbf16>, vector<8x8xf32> -> vector<8x8xf32>
    %cst_106 = arith.constant 0.353553385 : f32
    %110 = vector.broadcast %cst_106 : f32 to vector<8x8xf32>
    %111 = arith.mulf %109, %110 : vector<8x8xf32>
    %c0_107 = arith.constant 0 : index
    %c3_108 = arith.constant 3 : index
    %112 = vector.load %arg7[%c0_107, %c3_108] : memref<8x4xf32, #tpu.memory_space<vmem>>, vector<8x1xf32>
    %cst_109 = arith.constant dense<0xFF800000> : vector<8xf32>
    %113 = vector.multi_reduction <maximumf>, %111, %cst_109 [1] : vector<8x8xf32> to vector<8xf32>
    %114 = vector.shape_cast %113 : vector<8xf32> to vector<8x1xf32>
    %115 = arith.maximumf %112, %114 : vector<8x1xf32>
    %116 = arith.subf %112, %115 : vector<8x1xf32>
    %117 = math.exp %116 : vector<8x1xf32>
    %118 = vector.broadcast %115 : vector<8x1xf32> to vector<8x8xf32>
    %119 = arith.subf %111, %118 : vector<8x8xf32>
    %120 = math.exp %119 : vector<8x8xf32>
    %c0_110 = arith.constant 0 : index
    %c3_111 = arith.constant 3 : index
    %121 = vector.load %arg8[%c0_110, %c3_111] : memref<8x4xf32, #tpu.memory_space<vmem>>, vector<8x1xf32>
    %122 = arith.mulf %117, %121 : vector<8x1xf32>
    %cst_112 = arith.constant dense<0.000000e+00> : vector<8xf32>
    %123 = vector.multi_reduction <add>, %120, %cst_112 [1] : vector<8x8xf32> to vector<8xf32>
    %124 = vector.shape_cast %123 : vector<8xf32> to vector<8x1xf32>
    %125 = arith.addf %122, %124 : vector<8x1xf32>
    %c0_113 = arith.constant 0 : index
    %c3_114 = arith.constant 3 : index
    %126 = vector.load %arg8[%c0_113, %c3_114] : memref<8x4xf32, #tpu.memory_space<vmem>>, vector<8x1xf32>
    tpu.vector_store %arg8[%c0_113, %c3_114], %125 {strides = array<i32>} : memref<8x4xf32, #tpu.memory_space<vmem>>, vector<8x1xf32>,
    %c0_115 = arith.constant 0 : index
    %c24 = arith.constant 24 : index
    %127 = vector.load %arg9[%c0_115, %c24] : memref<8x32xf32, #tpu.memory_space<vmem>>, vector<8x8xf32>
    %128 = vector.broadcast %117 : vector<8x1xf32> to vector<8x8xf32>
    %129 = arith.mulf %128, %127 : vector<8x8xf32>
    %130 = arith.truncf %120 : vector<8x8xf32> to vector<8x8xbf16>
    %cst_116 = arith.constant dense<0.000000e+00> : vector<8x8xf32>
    %131 = tpu.matmul %130, %107, %cst_116 {dimension_numbers = #tpu.dot_dimension_numbers<[1], [0], [0], [1], [0, 0, 1, 1], [], []>} : vector<8x8xbf16>, vector<8x8xbf16>, vector<8x8xf32> -> vector<8x8xf32>
    %132 = arith.addf %129, %131 : vector<8x8xf32>
    %c0_117 = arith.constant 0 : index
    %c24_118 = arith.constant 24 : index
    %133 = vector.load %arg9[%c0_117, %c24_118] : memref<8x32xf32, #tpu.memory_space<vmem>>, vector<8x8xf32>
    tpu.vector_store %arg9[%c0_117, %c24_118], %132 {strides = array<i32>} : memref<8x32xf32, #tpu.memory_space<vmem>>, vector<8x8xf32>,
    %c0_119 = arith.constant 0 : index
    %c3_120 = arith.constant 3 : index
    %134 = vector.load %arg7[%c0_119, %c3_120] : memref<8x4xf32, #tpu.memory_space<vmem>>, vector<8x1xf32>
    tpu.vector_store %arg7[%c0_119, %c3_120], %115 {strides = array<i32>} : memref<8x4xf32, #tpu.memory_space<vmem>>, vector<8x1xf32>,
    %c0_i32_121 = arith.constant 0 : i32
    %135 = arith.cmpi eq, %arg2, %c0_i32_121 : i32
    %136 = arith.extui %135 : i1 to i32
    %c0_i32_122 = arith.constant 0 : i32
    %137 = arith.cmpi ne, %136, %c0_i32_122 : i32
    scf.if %137 {
      %c0_123 = arith.constant 0 : index
      %c0_124 = arith.constant 0 : index
      %138 = vector.load %arg9[%c0_123, %c0_124] : memref<8x32xf32, #tpu.memory_space<vmem>>, vector<8x8xf32>
      %c0_125 = arith.constant 0 : index
      %c0_126 = arith.constant 0 : index
      %139 = vector.load %arg8[%c0_125, %c0_126] : memref<8x4xf32, #tpu.memory_space<vmem>>, vector<8x1xf32>
      %140 = vector.broadcast %139 : vector<8x1xf32> to vector<8x8xf32>
      %141 = arith.divf %138, %140 : vector<8x8xf32>
      %c0_127 = arith.constant 0 : index
      %c0_128 = arith.constant 0 : index
      %142 = vector.load %arg9[%c0_127, %c0_128] : memref<8x32xf32, #tpu.memory_space<vmem>>, vector<8x8xf32>
      tpu.vector_store %arg9[%c0_127, %c0_128], %141 {strides = array<i32>} : memref<8x32xf32, #tpu.memory_space<vmem>>, vector<8x8xf32>,
      %c0_129 = arith.constant 0 : index
      %c8_130 = arith.constant 8 : index
      %143 = vector.load %arg9[%c0_129, %c8_130] : memref<8x32xf32, #tpu.memory_space<vmem>>, vector<8x8xf32>
      %c0_131 = arith.constant 0 : index
      %c1_132 = arith.constant 1 : index
      %144 = vector.load %arg8[%c0_131, %c1_132] : memref<8x4xf32, #tpu.memory_space<vmem>>, vector<8x1xf32>
      %145 = vector.broadcast %144 : vector<8x1xf32> to vector<8x8xf32>
      %146 = arith.divf %143, %145 : vector<8x8xf32>
      %c0_133 = arith.constant 0 : index
      %c8_134 = arith.constant 8 : index
      %147 = vector.load %arg9[%c0_133, %c8_134] : memref<8x32xf32, #tpu.memory_space<vmem>>, vector<8x8xf32>
      tpu.vector_store %arg9[%c0_133, %c8_134], %146 {strides = array<i32>} : memref<8x32xf32, #tpu.memory_space<vmem>>, vector<8x8xf32>,
      %c0_135 = arith.constant 0 : index
      %c16_136 = arith.constant 16 : index
      %148 = vector.load %arg9[%c0_135, %c16_136] : memref<8x32xf32, #tpu.memory_space<vmem>>, vector<8x8xf32>
      %c0_137 = arith.constant 0 : index
      %c2_138 = arith.constant 2 : index
      %149 = vector.load %arg8[%c0_137, %c2_138] : memref<8x4xf32, #tpu.memory_space<vmem>>, vector<8x1xf32>
      %150 = vector.broadcast %149 : vector<8x1xf32> to vector<8x8xf32>
      %151 = arith.divf %148, %150 : vector<8x8xf32>
      %c0_139 = arith.constant 0 : index
      %c16_140 = arith.constant 16 : index
      %152 = vector.load %arg9[%c0_139, %c16_140] : memref<8x32xf32, #tpu.memory_space<vmem>>, vector<8x8xf32>
      tpu.vector_store %arg9[%c0_139, %c16_140], %151 {strides = array<i32>} : memref<8x32xf32, #tpu.memory_space<vmem>>, vector<8x8xf32>,
      %c0_141 = arith.constant 0 : index
      %c24_142 = arith.constant 24 : index
      %153 = vector.load %arg9[%c0_141, %c24_142] : memref<8x32xf32, #tpu.memory_space<vmem>>, vector<8x8xf32>
      %c0_143 = arith.constant 0 : index
      %c3_144 = arith.constant 3 : index
      %154 = vector.load %arg8[%c0_143, %c3_144] : memref<8x4xf32, #tpu.memory_space<vmem>>, vector<8x1xf32>
      %155 = vector.broadcast %154 : vector<8x1xf32> to vector<8x8xf32>
      %156 = arith.divf %153, %155 : vector<8x8xf32>
      %c0_145 = arith.constant 0 : index
      %c24_146 = arith.constant 24 : index
      %157 = vector.load %arg9[%c0_145, %c24_146] : memref<8x32xf32, #tpu.memory_space<vmem>>, vector<8x8xf32>
      tpu.vector_store %arg9[%c0_145, %c24_146], %156 {strides = array<i32>} : memref<8x32xf32, #tpu.memory_space<vmem>>, vector<8x8xf32>,
      %c0_147 = arith.constant 0 : index
      %c0_148 = arith.constant 0 : index
      %158 = vector.load %arg9[%c0_147, %c0_148] : memref<8x32xf32, #tpu.memory_space<vmem>>, vector<8x32xf32>
      %159 = arith.truncf %158 : vector<8x32xf32> to vector<8x32xbf16>
      %c0_149 = arith.constant 0 : index
      %c0_150 = arith.constant 0 : index
      %c0_151 = arith.constant 0 : index
      %160 = vector.load %arg6[%c0_149, %c0_150, %c0_151] : memref<1x8x32xbf16, #tpu.memory_space<vmem>>, vector<1x8x32xbf16>
      %161 = vector.shape_cast %160 : vector<1x8x32xbf16> to vector<8x32xbf16>
      %162 = vector.shape_cast %159 : vector<8x32xbf16> to vector<1x8x32xbf16>
      tpu.vector_store %arg6[%c0_149, %c0_150, %c0_151], %162 {strides = array<i32>} : memref<1x8x32xbf16, #tpu.memory_space<vmem>>, vector<1x8x32xbf16>,
    } else {
    }
    return
  }
  func.func @transform_0(%arg0: i32, %arg1: i32, %arg2: i32) -> (i32, i32, i32, i32, i32) {
    %c0_i32 = arith.constant 0 : i32
    %c0_i32_0 = arith.constant 0 : i32
    %c0_i32_1 = arith.constant 0 : i32
    %c0_i32_2 = arith.constant 0 : i32
    return %arg0, %arg1, %c0_i32, %c0_i32_0, %c0_i32_1 : i32, i32, i32, i32, i32
  }
  func.func @transform_1(%arg0: i32, %arg1: i32, %arg2: i32) -> (i32, i32, i32, i32, i32) {
    %c1_i32 = arith.constant 1 : i32
    %c0_i32 = arith.constant 0 : i32
    %c0_i32_0 = arith.constant 0 : i32
    %c0_i32_1 = arith.constant 0 : i32
    return %arg0, %arg2, %c1_i32, %c0_i32, %c0_i32_0 : i32, i32, i32, i32, i32
  }
  func.func @transform_2(%arg0: i32, %arg1: i32, %arg2: i32) -> (i32, i32, i32, i32, i32) {
    %c2_i32 = arith.constant 2 : i32
    %c0_i32 = arith.constant 0 : i32
    %c0_i32_0 = arith.constant 0 : i32
    %c0_i32_1 = arith.constant 0 : i32
    return %arg0, %arg2, %c2_i32, %c0_i32, %c0_i32_0 : i32, i32, i32, i32, i32
  }
  func.func @transform_3(%arg0: i32, %arg1: i32, %arg2: i32) -> (i32, i32, i32) {
    %c0_i32 = arith.constant 0 : i32
    %c0_i32_0 = arith.constant 0 : i32
    return %arg0, %arg1, %c0_i32 : i32, i32, i32
  }
}

module attributes {stable_mosaic.version = 11 : i64} {
  func.func @_matmul_res_ln_kernel(%arg0: i32, %arg1: i32, %arg2: memref<16x32xbf16, #tpu.memory_space<vmem>>, %arg3: memref<32x32xbf16, #tpu.memory_space<vmem>>, %arg4: memref<1x32xf32, #tpu.memory_space<vmem>>, %arg5: memref<16x32xf32, #tpu.memory_space<vmem>>, %arg6: memref<1x32xf32, #tpu.memory_space<vmem>>, %arg7: memref<1x32xf32, #tpu.memory_space<vmem>>, %arg8: memref<16x32xf32, #tpu.memory_space<vmem>>, %arg9: memref<16x32xf32, #tpu.memory_space<vmem>>) attributes {dimension_semantics = [#tpu.dimension_semantics<parallel>, #tpu.dimension_semantics<arbitrary>], iteration_bounds = array<i64: 1, 1>, scalar_prefetch = 0 : i64, scratch_operands = 1 : i64, tpu.core_type = #tpu.core_type<tc>, window_params = [{transform_indices = @transform_0, window_bounds = array<i64: 16, 32>}, {transform_indices = @transform_1, window_bounds = array<i64: 32, 32>}, {pipeline_mode = #tpu.pipeline_mode<synchronous>, transform_indices = @transform_2, window_bounds = array<i64: 1, 32>}, {transform_indices = @transform_3, window_bounds = array<i64: 16, 32>}, {pipeline_mode = #tpu.pipeline_mode<synchronous>, transform_indices = @transform_4, window_bounds = array<i64: 1, 32>}, {pipeline_mode = #tpu.pipeline_mode<synchronous>, transform_indices = @transform_5, window_bounds = array<i64: 1, 32>}, {transform_indices = @transform_6, window_bounds = array<i64: 16, 32>}]} {
    %c0_i32 = arith.constant 0 : i32
    %0 = arith.cmpi eq, %arg1, %c0_i32 : i32
    %1 = arith.extui %0 : i1 to i32
    %c0_i32_0 = arith.constant 0 : i32
    %2 = arith.cmpi ne, %1, %c0_i32_0 : i32
    scf.if %2 {
      %cst_10 = arith.constant 0.000000e+00 : f32
      %12 = vector.broadcast %cst_10 : f32 to vector<16x32xf32>
      %c0_11 = arith.constant 0 : index
      %c0_12 = arith.constant 0 : index
      %13 = vector.load %arg9[%c0_11, %c0_12] : memref<16x32xf32, #tpu.memory_space<vmem>>, vector<16x32xf32>
      tpu.vector_store %arg9[%c0_11, %c0_12], %12 {strides = array<i32>} : memref<16x32xf32, #tpu.memory_space<vmem>>, vector<16x32xf32>,
    } else {
    }
    %c0 = arith.constant 0 : index
    %c0_1 = arith.constant 0 : index
    %3 = vector.load %arg9[%c0, %c0_1] : memref<16x32xf32, #tpu.memory_space<vmem>>, vector<16x32xf32>
    %c0_2 = arith.constant 0 : index
    %c0_3 = arith.constant 0 : index
    %4 = vector.load %arg2[%c0_2, %c0_3] : memref<16x32xbf16, #tpu.memory_space<vmem>>, vector<16x32xbf16>
    %c0_4 = arith.constant 0 : index
    %c0_5 = arith.constant 0 : index
    %5 = vector.load %arg3[%c0_4, %c0_5] : memref<32x32xbf16, #tpu.memory_space<vmem>>, vector<32x32xbf16>
    %cst = arith.constant dense<0.000000e+00> : vector<16x32xf32>
    %6 = tpu.matmul %4, %5, %cst {dimension_numbers = #tpu.dot_dimension_numbers<[1], [0], [0], [1], [0, 0, 1, 1], [], []>} : vector<16x32xbf16>, vector<32x32xbf16>, vector<16x32xf32> -> vector<16x32xf32>
    %7 = arith.addf %3, %6 : vector<16x32xf32>
    %c0_6 = arith.constant 0 : index
    %c0_7 = arith.constant 0 : index
    %8 = vector.load %arg9[%c0_6, %c0_7] : memref<16x32xf32, #tpu.memory_space<vmem>>, vector<16x32xf32>
    tpu.vector_store %arg9[%c0_6, %c0_7], %7 {strides = array<i32>} : memref<16x32xf32, #tpu.memory_space<vmem>>, vector<16x32xf32>,
    %c0_i32_8 = arith.constant 0 : i32
    %9 = arith.cmpi eq, %arg1, %c0_i32_8 : i32
    %10 = arith.extui %9 : i1 to i32
    %c0_i32_9 = arith.constant 0 : i32
    %11 = arith.cmpi ne, %10, %c0_i32_9 : i32
    scf.if %11 {
      %c0_10 = arith.constant 0 : index
      %c0_11 = arith.constant 0 : index
      %12 = vector.load %arg9[%c0_10, %c0_11] : memref<16x32xf32, #tpu.memory_space<vmem>>, vector<16x32xf32>
      %c0_12 = arith.constant 0 : index
      %c0_13 = arith.constant 0 : index
      %13 = vector.load %arg4[%c0_12, %c0_13] : memref<1x32xf32, #tpu.memory_space<vmem>>, vector<1x32xf32>
      %14 = vector.broadcast %13 : vector<1x32xf32> to vector<16x32xf32>
      %15 = arith.addf %12, %14 : vector<16x32xf32>
      %c0_14 = arith.constant 0 : index
      %c0_15 = arith.constant 0 : index
      %16 = vector.load %arg5[%c0_14, %c0_15] : memref<16x32xf32, #tpu.memory_space<vmem>>, vector<16x32xf32>
      %17 = arith.addf %15, %16 : vector<16x32xf32>
      %cst_16 = arith.constant dense<0.000000e+00> : vector<16xf32>
      %18 = vector.multi_reduction <add>, %17, %cst_16 [1] : vector<16x32xf32> to vector<16xf32>
      %19 = vector.shape_cast %18 : vector<16xf32> to vector<16x1xf32>
      %cst_17 = arith.constant 3.200000e+01 : f32
      %20 = vector.broadcast %cst_17 : f32 to vector<16x1xf32>
      %21 = arith.divf %19, %20 : vector<16x1xf32>
      %22 = vector.broadcast %21 : vector<16x1xf32> to vector<16x32xf32>
      %23 = arith.subf %17, %22 : vector<16x32xf32>
      %24 = arith.mulf %23, %23 : vector<16x32xf32>
      %cst_18 = arith.constant dense<0.000000e+00> : vector<16xf32>
      %25 = vector.multi_reduction <add>, %24, %cst_18 [1] : vector<16x32xf32> to vector<16xf32>
      %26 = vector.shape_cast %25 : vector<16xf32> to vector<16x1xf32>
      %cst_19 = arith.constant 3.200000e+01 : f32
      %27 = vector.broadcast %cst_19 : f32 to vector<16x1xf32>
      %28 = arith.divf %26, %27 : vector<16x1xf32>
      %29 = vector.broadcast %21 : vector<16x1xf32> to vector<16x32xf32>
      %30 = arith.subf %17, %29 : vector<16x32xf32>
      %cst_20 = arith.constant 9.99999974E-6 : f32
      %31 = vector.broadcast %cst_20 : f32 to vector<16x1xf32>
      %32 = arith.addf %28, %31 : vector<16x1xf32>
      %33 = math.rsqrt %32 : vector<16x1xf32>
      %34 = vector.broadcast %33 : vector<16x1xf32> to vector<16x32xf32>
      %35 = arith.mulf %30, %34 : vector<16x32xf32>
      %c0_21 = arith.constant 0 : index
      %c0_22 = arith.constant 0 : index
      %36 = vector.load %arg6[%c0_21, %c0_22] : memref<1x32xf32, #tpu.memory_space<vmem>>, vector<1x32xf32>
      %37 = vector.broadcast %36 : vector<1x32xf32> to vector<16x32xf32>
      %38 = arith.mulf %35, %37 : vector<16x32xf32>
      %c0_23 = arith.constant 0 : index
      %c0_24 = arith.constant 0 : index
      %39 = vector.load %arg7[%c0_23, %c0_24] : memref<1x32xf32, #tpu.memory_space<vmem>>, vector<1x32xf32>
      %40 = vector.broadcast %39 : vector<1x32xf32> to vector<16x32xf32>
      %41 = arith.addf %38, %40 : vector<16x32xf32>
      %c0_25 = arith.constant 0 : index
      %c0_26 = arith.constant 0 : index
      %42 = vector.load %arg8[%c0_25, %c0_26] : memref<16x32xf32, #tpu.memory_space<vmem>>, vector<16x32xf32>
      tpu.vector_store %arg8[%c0_25, %c0_26], %41 {strides = array<i32>} : memref<16x32xf32, #tpu.memory_space<vmem>>, vector<16x32xf32>,
    } else {
    }
    return
  }
  func.func @transform_0(%arg0: i32, %arg1: i32) -> (i32, i32) {
    %c0_i32 = arith.constant 0 : i32
    return %arg0, %arg1 : i32, i32
  }
  func.func @transform_1(%arg0: i32, %arg1: i32) -> (i32, i32) {
    %c0_i32 = arith.constant 0 : i32
    %c0_i32_0 = arith.constant 0 : i32
    return %arg1, %c0_i32 : i32, i32
  }
  func.func @transform_2(%arg0: i32, %arg1: i32) -> (i32, i32) {
    %c0_i32 = arith.constant 0 : i32
    %c0_i32_0 = arith.constant 0 : i32
    %c0_i32_1 = arith.constant 0 : i32
    return %c0_i32, %c0_i32_0 : i32, i32
  }
  func.func @transform_3(%arg0: i32, %arg1: i32) -> (i32, i32) {
    %c0_i32 = arith.constant 0 : i32
    %c0_i32_0 = arith.constant 0 : i32
    return %arg0, %c0_i32 : i32, i32
  }
  func.func @transform_4(%arg0: i32, %arg1: i32) -> (i32, i32) {
    %c0_i32 = arith.constant 0 : i32
    %c0_i32_0 = arith.constant 0 : i32
    %c0_i32_1 = arith.constant 0 : i32
    return %c0_i32, %c0_i32_0 : i32, i32
  }
  func.func @transform_5(%arg0: i32, %arg1: i32) -> (i32, i32) {
    %c0_i32 = arith.constant 0 : i32
    %c0_i32_0 = arith.constant 0 : i32
    %c0_i32_1 = arith.constant 0 : i32
    return %c0_i32, %c0_i32_0 : i32, i32
  }
  func.func @transform_6(%arg0: i32, %arg1: i32) -> (i32, i32) {
    %c0_i32 = arith.constant 0 : i32
    %c0_i32_0 = arith.constant 0 : i32
    return %arg0, %c0_i32 : i32, i32
  }
}

module attributes {stable_mosaic.version = 11 : i64} {
  func.func @_linear_kernel(%arg0: i32, %arg1: i32, %arg2: i32, %arg3: memref<16x32xf32, #tpu.memory_space<vmem>>, %arg4: memref<32x32xbf16, #tpu.memory_space<vmem>>, %arg5: memref<1x32xf32, #tpu.memory_space<vmem>>, %arg6: memref<16x32xbf16, #tpu.memory_space<vmem>>, %arg7: memref<16x32xf32, #tpu.memory_space<vmem>>) attributes {dimension_semantics = [#tpu.dimension_semantics<parallel>, #tpu.dimension_semantics<parallel>, #tpu.dimension_semantics<arbitrary>], iteration_bounds = array<i64: 1, 1, 1>, scalar_prefetch = 0 : i64, scratch_operands = 1 : i64, tpu.core_type = #tpu.core_type<tc>, window_params = [{transform_indices = @transform_0, window_bounds = array<i64: 16, 32>}, {transform_indices = @transform_1, window_bounds = array<i64: 32, 32>}, {transform_indices = @transform_2, window_bounds = array<i64: 1, 32>}, {transform_indices = @transform_3, window_bounds = array<i64: 16, 32>}]} {
    %c0_i32 = arith.constant 0 : i32
    %0 = arith.cmpi eq, %arg2, %c0_i32 : i32
    %1 = arith.extui %0 : i1 to i32
    %c0_i32_0 = arith.constant 0 : i32
    %2 = arith.cmpi ne, %1, %c0_i32_0 : i32
    scf.if %2 {
      %cst_10 = arith.constant 0.000000e+00 : f32
      %13 = vector.broadcast %cst_10 : f32 to vector<16x32xf32>
      %c0_11 = arith.constant 0 : index
      %c0_12 = arith.constant 0 : index
      %14 = vector.load %arg7[%c0_11, %c0_12] : memref<16x32xf32, #tpu.memory_space<vmem>>, vector<16x32xf32>
      tpu.vector_store %arg7[%c0_11, %c0_12], %13 {strides = array<i32>} : memref<16x32xf32, #tpu.memory_space<vmem>>, vector<16x32xf32>,
    } else {
    }
    %c0 = arith.constant 0 : index
    %c0_1 = arith.constant 0 : index
    %3 = vector.load %arg7[%c0, %c0_1] : memref<16x32xf32, #tpu.memory_space<vmem>>, vector<16x32xf32>
    %c0_2 = arith.constant 0 : index
    %c0_3 = arith.constant 0 : index
    %4 = vector.load %arg3[%c0_2, %c0_3] : memref<16x32xf32, #tpu.memory_space<vmem>>, vector<16x32xf32>
    %5 = arith.truncf %4 : vector<16x32xf32> to vector<16x32xbf16>
    %c0_4 = arith.constant 0 : index
    %c0_5 = arith.constant 0 : index
    %6 = vector.load %arg4[%c0_4, %c0_5] : memref<32x32xbf16, #tpu.memory_space<vmem>>, vector<32x32xbf16>
    %cst = arith.constant dense<0.000000e+00> : vector<16x32xf32>
    %7 = tpu.matmul %5, %6, %cst {dimension_numbers = #tpu.dot_dimension_numbers<[1], [0], [0], [1], [0, 0, 1, 1], [], []>} : vector<16x32xbf16>, vector<32x32xbf16>, vector<16x32xf32> -> vector<16x32xf32>
    %8 = arith.addf %3, %7 : vector<16x32xf32>
    %c0_6 = arith.constant 0 : index
    %c0_7 = arith.constant 0 : index
    %9 = vector.load %arg7[%c0_6, %c0_7] : memref<16x32xf32, #tpu.memory_space<vmem>>, vector<16x32xf32>
    tpu.vector_store %arg7[%c0_6, %c0_7], %8 {strides = array<i32>} : memref<16x32xf32, #tpu.memory_space<vmem>>, vector<16x32xf32>,
    %c0_i32_8 = arith.constant 0 : i32
    %10 = arith.cmpi eq, %arg2, %c0_i32_8 : i32
    %11 = arith.extui %10 : i1 to i32
    %c0_i32_9 = arith.constant 0 : i32
    %12 = arith.cmpi ne, %11, %c0_i32_9 : i32
    scf.if %12 {
      %c0_10 = arith.constant 0 : index
      %c0_11 = arith.constant 0 : index
      %13 = vector.load %arg7[%c0_10, %c0_11] : memref<16x32xf32, #tpu.memory_space<vmem>>, vector<16x32xf32>
      %c0_12 = arith.constant 0 : index
      %c0_13 = arith.constant 0 : index
      %14 = vector.load %arg5[%c0_12, %c0_13] : memref<1x32xf32, #tpu.memory_space<vmem>>, vector<1x32xf32>
      %15 = vector.broadcast %14 : vector<1x32xf32> to vector<16x32xf32>
      %16 = arith.addf %13, %15 : vector<16x32xf32>
      %17 = arith.truncf %16 : vector<16x32xf32> to vector<16x32xbf16>
      %c0_14 = arith.constant 0 : index
      %c0_15 = arith.constant 0 : index
      %18 = vector.load %arg6[%c0_14, %c0_15] : memref<16x32xbf16, #tpu.memory_space<vmem>>, vector<16x32xbf16>
      tpu.vector_store %arg6[%c0_14, %c0_15], %17 {strides = array<i32>} : memref<16x32xbf16, #tpu.memory_space<vmem>>, vector<16x32xbf16>,
    } else {
    }
    return
  }
  func.func @transform_0(%arg0: i32, %arg1: i32, %arg2: i32) -> (i32, i32) {
    %c0_i32 = arith.constant 0 : i32
    return %arg0, %arg2 : i32, i32
  }
  func.func @transform_1(%arg0: i32, %arg1: i32, %arg2: i32) -> (i32, i32) {
    %c0_i32 = arith.constant 0 : i32
    return %arg2, %arg1 : i32, i32
  }
  func.func @transform_2(%arg0: i32, %arg1: i32, %arg2: i32) -> (i32, i32) {
    %c0_i32 = arith.constant 0 : i32
    %c0_i32_0 = arith.constant 0 : i32
    return %c0_i32, %arg1 : i32, i32
  }
  func.func @transform_3(%arg0: i32, %arg1: i32, %arg2: i32) -> (i32, i32) {
    %c0_i32 = arith.constant 0 : i32
    return %arg0, %arg1 : i32, i32
  }
}

module attributes {stable_mosaic.version = 11 : i64} {
  func.func @_linear_kernel(%arg0: i32, %arg1: i32, %arg2: i32, %arg3: memref<16x32xf32, #tpu.memory_space<vmem>>, %arg4: memref<32x64xbf16, #tpu.memory_space<vmem>>, %arg5: memref<1x64xf32, #tpu.memory_space<vmem>>, %arg6: memref<16x64xbf16, #tpu.memory_space<vmem>>, %arg7: memref<16x64xf32, #tpu.memory_space<vmem>>) attributes {dimension_semantics = [#tpu.dimension_semantics<parallel>, #tpu.dimension_semantics<parallel>, #tpu.dimension_semantics<arbitrary>], iteration_bounds = array<i64: 1, 1, 1>, scalar_prefetch = 0 : i64, scratch_operands = 1 : i64, tpu.core_type = #tpu.core_type<tc>, window_params = [{transform_indices = @transform_0, window_bounds = array<i64: 16, 32>}, {transform_indices = @transform_1, window_bounds = array<i64: 32, 64>}, {transform_indices = @transform_2, window_bounds = array<i64: 1, 64>}, {transform_indices = @transform_3, window_bounds = array<i64: 16, 64>}]} {
    %c0_i32 = arith.constant 0 : i32
    %0 = arith.cmpi eq, %arg2, %c0_i32 : i32
    %1 = arith.extui %0 : i1 to i32
    %c0_i32_0 = arith.constant 0 : i32
    %2 = arith.cmpi ne, %1, %c0_i32_0 : i32
    scf.if %2 {
      %cst_10 = arith.constant 0.000000e+00 : f32
      %13 = vector.broadcast %cst_10 : f32 to vector<16x64xf32>
      %c0_11 = arith.constant 0 : index
      %c0_12 = arith.constant 0 : index
      %14 = vector.load %arg7[%c0_11, %c0_12] : memref<16x64xf32, #tpu.memory_space<vmem>>, vector<16x64xf32>
      tpu.vector_store %arg7[%c0_11, %c0_12], %13 {strides = array<i32>} : memref<16x64xf32, #tpu.memory_space<vmem>>, vector<16x64xf32>,
    } else {
    }
    %c0 = arith.constant 0 : index
    %c0_1 = arith.constant 0 : index
    %3 = vector.load %arg7[%c0, %c0_1] : memref<16x64xf32, #tpu.memory_space<vmem>>, vector<16x64xf32>
    %c0_2 = arith.constant 0 : index
    %c0_3 = arith.constant 0 : index
    %4 = vector.load %arg3[%c0_2, %c0_3] : memref<16x32xf32, #tpu.memory_space<vmem>>, vector<16x32xf32>
    %5 = arith.truncf %4 : vector<16x32xf32> to vector<16x32xbf16>
    %c0_4 = arith.constant 0 : index
    %c0_5 = arith.constant 0 : index
    %6 = vector.load %arg4[%c0_4, %c0_5] : memref<32x64xbf16, #tpu.memory_space<vmem>>, vector<32x64xbf16>
    %cst = arith.constant dense<0.000000e+00> : vector<16x64xf32>
    %7 = tpu.matmul %5, %6, %cst {dimension_numbers = #tpu.dot_dimension_numbers<[1], [0], [0], [1], [0, 0, 1, 1], [], []>} : vector<16x32xbf16>, vector<32x64xbf16>, vector<16x64xf32> -> vector<16x64xf32>
    %8 = arith.addf %3, %7 : vector<16x64xf32>
    %c0_6 = arith.constant 0 : index
    %c0_7 = arith.constant 0 : index
    %9 = vector.load %arg7[%c0_6, %c0_7] : memref<16x64xf32, #tpu.memory_space<vmem>>, vector<16x64xf32>
    tpu.vector_store %arg7[%c0_6, %c0_7], %8 {strides = array<i32>} : memref<16x64xf32, #tpu.memory_space<vmem>>, vector<16x64xf32>,
    %c0_i32_8 = arith.constant 0 : i32
    %10 = arith.cmpi eq, %arg2, %c0_i32_8 : i32
    %11 = arith.extui %10 : i1 to i32
    %c0_i32_9 = arith.constant 0 : i32
    %12 = arith.cmpi ne, %11, %c0_i32_9 : i32
    scf.if %12 {
      %c0_10 = arith.constant 0 : index
      %c0_11 = arith.constant 0 : index
      %13 = vector.load %arg7[%c0_10, %c0_11] : memref<16x64xf32, #tpu.memory_space<vmem>>, vector<16x64xf32>
      %c0_12 = arith.constant 0 : index
      %c0_13 = arith.constant 0 : index
      %14 = vector.load %arg5[%c0_12, %c0_13] : memref<1x64xf32, #tpu.memory_space<vmem>>, vector<1x64xf32>
      %15 = vector.broadcast %14 : vector<1x64xf32> to vector<16x64xf32>
      %16 = arith.addf %13, %15 : vector<16x64xf32>
      %17 = arith.truncf %16 : vector<16x64xf32> to vector<16x64xbf16>
      %c0_14 = arith.constant 0 : index
      %c0_15 = arith.constant 0 : index
      %18 = vector.load %arg6[%c0_14, %c0_15] : memref<16x64xbf16, #tpu.memory_space<vmem>>, vector<16x64xbf16>
      tpu.vector_store %arg6[%c0_14, %c0_15], %17 {strides = array<i32>} : memref<16x64xbf16, #tpu.memory_space<vmem>>, vector<16x64xbf16>,
    } else {
    }
    return
  }
  func.func @transform_0(%arg0: i32, %arg1: i32, %arg2: i32) -> (i32, i32) {
    %c0_i32 = arith.constant 0 : i32
    return %arg0, %arg2 : i32, i32
  }
  func.func @transform_1(%arg0: i32, %arg1: i32, %arg2: i32) -> (i32, i32) {
    %c0_i32 = arith.constant 0 : i32
    return %arg2, %arg1 : i32, i32
  }
  func.func @transform_2(%arg0: i32, %arg1: i32, %arg2: i32) -> (i32, i32) {
    %c0_i32 = arith.constant 0 : i32
    %c0_i32_0 = arith.constant 0 : i32
    return %c0_i32, %arg1 : i32, i32
  }
  func.func @transform_3(%arg0: i32, %arg1: i32, %arg2: i32) -> (i32, i32) {
    %c0_i32 = arith.constant 0 : i32
    return %arg0, %arg1 : i32, i32
  }
}

module attributes {stable_mosaic.version = 11 : i64} {
  func.func @_flash_attn_kernel(%arg0: i32, %arg1: i32, %arg2: i32, %arg3: memref<1x8x1x4x8xbf16, #tpu.memory_space<vmem>>, %arg4: memref<1x8x1x4x8xbf16, #tpu.memory_space<vmem>>, %arg5: memref<1x8x1x4x8xbf16, #tpu.memory_space<vmem>>, %arg6: memref<1x8x32xbf16, #tpu.memory_space<vmem>>, %arg7: memref<8x4xf32, #tpu.memory_space<vmem>>, %arg8: memref<8x4xf32, #tpu.memory_space<vmem>>, %arg9: memref<8x32xf32, #tpu.memory_space<vmem>>) attributes {dimension_semantics = [#tpu.dimension_semantics<parallel>, #tpu.dimension_semantics<parallel>, #tpu.dimension_semantics<arbitrary>], iteration_bounds = array<i64: 2, 1, 1>, scalar_prefetch = 0 : i64, scratch_operands = 3 : i64, tpu.core_type = #tpu.core_type<tc>, window_params = [{transform_indices = @transform_0, window_bounds = array<i64: 1, 8, 1, 4, 8>}, {transform_indices = @transform_1, window_bounds = array<i64: 1, 8, 1, 4, 8>}, {transform_indices = @transform_2, window_bounds = array<i64: 1, 8, 1, 4, 8>}, {transform_indices = @transform_3, window_bounds = array<i64: 1, 8, 32>}]} {
    %c0_i32 = arith.constant 0 : i32
    %0 = arith.cmpi eq, %arg2, %c0_i32 : i32
    %1 = arith.extui %0 : i1 to i32
    %c0_i32_0 = arith.constant 0 : i32
    %2 = arith.cmpi ne, %1, %c0_i32_0 : i32
    scf.if %2 {
      %cst_123 = arith.constant 0xFF800000 : f32
      %138 = vector.broadcast %cst_123 : f32 to vector<8x4xf32>
      %c0_124 = arith.constant 0 : index
      %c0_125 = arith.constant 0 : index
      %139 = vector.load %arg7[%c0_124, %c0_125] : memref<8x4xf32, #tpu.memory_space<vmem>>, vector<8x4xf32>
      tpu.vector_store %arg7[%c0_124, %c0_125], %138 {strides = array<i32>} : memref<8x4xf32, #tpu.memory_space<vmem>>, vector<8x4xf32>,
      %cst_126 = arith.constant 0.000000e+00 : f32
      %140 = vector.broadcast %cst_126 : f32 to vector<8x4xf32>
      %c0_127 = arith.constant 0 : index
      %c0_128 = arith.constant 0 : index
      %141 = vector.load %arg8[%c0_127, %c0_128] : memref<8x4xf32, #tpu.memory_space<vmem>>, vector<8x4xf32>
      tpu.vector_store %arg8[%c0_127, %c0_128], %140 {strides = array<i32>} : memref<8x4xf32, #tpu.memory_space<vmem>>, vector<8x4xf32>,
      %cst_129 = arith.constant 0.000000e+00 : f32
      %142 = vector.broadcast %cst_129 : f32 to vector<8x32xf32>
      %c0_130 = arith.constant 0 : index
      %c0_131 = arith.constant 0 : index
      %143 = vector.load %arg9[%c0_130, %c0_131] : memref<8x32xf32, #tpu.memory_space<vmem>>, vector<8x32xf32>
      tpu.vector_store %arg9[%c0_130, %c0_131], %142 {strides = array<i32>} : memref<8x32xf32, #tpu.memory_space<vmem>>, vector<8x32xf32>,
    } else {
    }
    %c0 = arith.constant 0 : index
    %c0_1 = arith.constant 0 : index
    %c0_2 = arith.constant 0 : index
    %c0_3 = arith.constant 0 : index
    %c0_4 = arith.constant 0 : index
    %3 = vector.load %arg3[%c0, %c0_1, %c0_2, %c0_3, %c0_4] : memref<1x8x1x4x8xbf16, #tpu.memory_space<vmem>>, vector<1x8x1x1x8xbf16>
    %4 = vector.shape_cast %3 : vector<1x8x1x1x8xbf16> to vector<8x8xbf16>
    %c0_5 = arith.constant 0 : index
    %c0_6 = arith.constant 0 : index
    %c0_7 = arith.constant 0 : index
    %c0_8 = arith.constant 0 : index
    %c0_9 = arith.constant 0 : index
    %5 = vector.load %arg4[%c0_5, %c0_6, %c0_7, %c0_8, %c0_9] : memref<1x8x1x4x8xbf16, #tpu.memory_space<vmem>>, vector<1x8x1x1x8xbf16>
    %6 = vector.shape_cast %5 : vector<1x8x1x1x8xbf16> to vector<8x8xbf16>
    %c0_10 = arith.constant 0 : index
    %c0_11 = arith.constant 0 : index
    %c0_12 = arith.constant 0 : index
    %c0_13 = arith.constant 0 : index
    %c0_14 = arith.constant 0 : index
    %7 = vector.load %arg5[%c0_10, %c0_11, %c0_12, %c0_13, %c0_14] : memref<1x8x1x4x8xbf16, #tpu.memory_space<vmem>>, vector<1x8x1x1x8xbf16>
    %8 = vector.shape_cast %7 : vector<1x8x1x1x8xbf16> to vector<8x8xbf16>
    %9 = tpu.transpose %6, [1, 0] : vector<8x8xbf16> -> vector<8x8xbf16>
    %cst = arith.constant dense<0.000000e+00> : vector<8x8xf32>
    %10 = tpu.matmul %4, %9, %cst {dimension_numbers = #tpu.dot_dimension_numbers<[1], [0], [0], [1], [0, 0, 1, 1], [], []>} : vector<8x8xbf16>, vector<8x8xbf16>, vector<8x8xf32> -> vector<8x8xf32>
    %cst_15 = arith.constant 0.353553385 : f32
    %11 = vector.broadcast %cst_15 : f32 to vector<8x8xf32>
    %12 = arith.mulf %10, %11 : vector<8x8xf32>
    %c0_16 = arith.constant 0 : index
    %c0_17 = arith.constant 0 : index
    %13 = vector.load %arg7[%c0_16, %c0_17] : memref<8x4xf32, #tpu.memory_space<vmem>>, vector<8x1xf32>
    %cst_18 = arith.constant dense<0xFF800000> : vector<8xf32>
    %14 = vector.multi_reduction <maximumf>, %12, %cst_18 [1] : vector<8x8xf32> to vector<8xf32>
    %15 = vector.shape_cast %14 : vector<8xf32> to vector<8x1xf32>
    %16 = arith.maximumf %13, %15 : vector<8x1xf32>
    %17 = arith.subf %13, %16 : vector<8x1xf32>
    %18 = math.exp %17 : vector<8x1xf32>
    %19 = vector.broadcast %16 : vector<8x1xf32> to vector<8x8xf32>
    %20 = arith.subf %12, %19 : vector<8x8xf32>
    %21 = math.exp %20 : vector<8x8xf32>
    %c0_19 = arith.constant 0 : index
    %c0_20 = arith.constant 0 : index
    %22 = vector.load %arg8[%c0_19, %c0_20] : memref<8x4xf32, #tpu.memory_space<vmem>>, vector<8x1xf32>
    %23 = arith.mulf %18, %22 : vector<8x1xf32>
    %cst_21 = arith.constant dense<0.000000e+00> : vector<8xf32>
    %24 = vector.multi_reduction <add>, %21, %cst_21 [1] : vector<8x8xf32> to vector<8xf32>
    %25 = vector.shape_cast %24 : vector<8xf32> to vector<8x1xf32>
    %26 = arith.addf %23, %25 : vector<8x1xf32>
    %c0_22 = arith.constant 0 : index
    %c0_23 = arith.constant 0 : index
    %27 = vector.load %arg8[%c0_22, %c0_23] : memref<8x4xf32, #tpu.memory_space<vmem>>, vector<8x1xf32>
    tpu.vector_store %arg8[%c0_22, %c0_23], %26 {strides = array<i32>} : memref<8x4xf32, #tpu.memory_space<vmem>>, vector<8x1xf32>,
    %c0_24 = arith.constant 0 : index
    %c0_25 = arith.constant 0 : index
    %28 = vector.load %arg9[%c0_24, %c0_25] : memref<8x32xf32, #tpu.memory_space<vmem>>, vector<8x8xf32>
    %29 = vector.broadcast %18 : vector<8x1xf32> to vector<8x8xf32>
    %30 = arith.mulf %29, %28 : vector<8x8xf32>
    %31 = arith.truncf %21 : vector<8x8xf32> to vector<8x8xbf16>
    %cst_26 = arith.constant dense<0.000000e+00> : vector<8x8xf32>
    %32 = tpu.matmul %31, %8, %cst_26 {dimension_numbers = #tpu.dot_dimension_numbers<[1], [0], [0], [1], [0, 0, 1, 1], [], []>} : vector<8x8xbf16>, vector<8x8xbf16>, vector<8x8xf32> -> vector<8x8xf32>
    %33 = arith.addf %30, %32 : vector<8x8xf32>
    %c0_27 = arith.constant 0 : index
    %c0_28 = arith.constant 0 : index
    %34 = vector.load %arg9[%c0_27, %c0_28] : memref<8x32xf32, #tpu.memory_space<vmem>>, vector<8x8xf32>
    tpu.vector_store %arg9[%c0_27, %c0_28], %33 {strides = array<i32>} : memref<8x32xf32, #tpu.memory_space<vmem>>, vector<8x8xf32>,
    %c0_29 = arith.constant 0 : index
    %c0_30 = arith.constant 0 : index
    %35 = vector.load %arg7[%c0_29, %c0_30] : memref<8x4xf32, #tpu.memory_space<vmem>>, vector<8x1xf32>
    tpu.vector_store %arg7[%c0_29, %c0_30], %16 {strides = array<i32>} : memref<8x4xf32, #tpu.memory_space<vmem>>, vector<8x1xf32>,
    %c0_31 = arith.constant 0 : index
    %c0_32 = arith.constant 0 : index
    %c0_33 = arith.constant 0 : index
    %c1 = arith.constant 1 : index
    %c0_34 = arith.constant 0 : index
    %36 = vector.load %arg3[%c0_31, %c0_32, %c0_33, %c1, %c0_34] : memref<1x8x1x4x8xbf16, #tpu.memory_space<vmem>>, vector<1x8x1x1x8xbf16>
    %37 = vector.shape_cast %36 : vector<1x8x1x1x8xbf16> to vector<8x8xbf16>
    %c0_35 = arith.constant 0 : index
    %c0_36 = arith.constant 0 : index
    %c0_37 = arith.constant 0 : index
    %c1_38 = arith.constant 1 : index
    %c0_39 = arith.constant 0 : index
    %38 = vector.load %arg4[%c0_35, %c0_36, %c0_37, %c1_38, %c0_39] : memref<1x8x1x4x8xbf16, #tpu.memory_space<vmem>>, vector<1x8x1x1x8xbf16>
    %39 = vector.shape_cast %38 : vector<1x8x1x1x8xbf16> to vector<8x8xbf16>
    %c0_40 = arith.constant 0 : index
    %c0_41 = arith.constant 0 : index
    %c0_42 = arith.constant 0 : index
    %c1_43 = arith.constant 1 : index
    %c0_44 = arith.constant 0 : index
    %40 = vector.load %arg5[%c0_40, %c0_41, %c0_42, %c1_43, %c0_44] : memref<1x8x1x4x8xbf16, #tpu.memory_space<vmem>>, vector<1x8x1x1x8xbf16>
    %41 = vector.shape_cast %40 : vector<1x8x1x1x8xbf16> to vector<8x8xbf16>
    %42 = tpu.transpose %39, [1, 0] : vector<8x8xbf16> -> vector<8x8xbf16>
    %cst_45 = arith.constant dense<0.000000e+00> : vector<8x8xf32>
    %43 = tpu.matmul %37, %42, %cst_45 {dimension_numbers = #tpu.dot_dimension_numbers<[1], [0], [0], [1], [0, 0, 1, 1], [], []>} : vector<8x8xbf16>, vector<8x8xbf16>, vector<8x8xf32> -> vector<8x8xf32>
    %cst_46 = arith.constant 0.353553385 : f32
    %44 = vector.broadcast %cst_46 : f32 to vector<8x8xf32>
    %45 = arith.mulf %43, %44 : vector<8x8xf32>
    %c0_47 = arith.constant 0 : index
    %c1_48 = arith.constant 1 : index
    %46 = vector.load %arg7[%c0_47, %c1_48] : memref<8x4xf32, #tpu.memory_space<vmem>>, vector<8x1xf32>
    %cst_49 = arith.constant dense<0xFF800000> : vector<8xf32>
    %47 = vector.multi_reduction <maximumf>, %45, %cst_49 [1] : vector<8x8xf32> to vector<8xf32>
    %48 = vector.shape_cast %47 : vector<8xf32> to vector<8x1xf32>
    %49 = arith.maximumf %46, %48 : vector<8x1xf32>
    %50 = arith.subf %46, %49 : vector<8x1xf32>
    %51 = math.exp %50 : vector<8x1xf32>
    %52 = vector.broadcast %49 : vector<8x1xf32> to vector<8x8xf32>
    %53 = arith.subf %45, %52 : vector<8x8xf32>
    %54 = math.exp %53 : vector<8x8xf32>
    %c0_50 = arith.constant 0 : index
    %c1_51 = arith.constant 1 : index
    %55 = vector.load %arg8[%c0_50, %c1_51] : memref<8x4xf32, #tpu.memory_space<vmem>>, vector<8x1xf32>
    %56 = arith.mulf %51, %55 : vector<8x1xf32>
    %cst_52 = arith.constant dense<0.000000e+00> : vector<8xf32>
    %57 = vector.multi_reduction <add>, %54, %cst_52 [1] : vector<8x8xf32> to vector<8xf32>
    %58 = vector.shape_cast %57 : vector<8xf32> to vector<8x1xf32>
    %59 = arith.addf %56, %58 : vector<8x1xf32>
    %c0_53 = arith.constant 0 : index
    %c1_54 = arith.constant 1 : index
    %60 = vector.load %arg8[%c0_53, %c1_54] : memref<8x4xf32, #tpu.memory_space<vmem>>, vector<8x1xf32>
    tpu.vector_store %arg8[%c0_53, %c1_54], %59 {strides = array<i32>} : memref<8x4xf32, #tpu.memory_space<vmem>>, vector<8x1xf32>,
    %c0_55 = arith.constant 0 : index
    %c8 = arith.constant 8 : index
    %61 = vector.load %arg9[%c0_55, %c8] : memref<8x32xf32, #tpu.memory_space<vmem>>, vector<8x8xf32>
    %62 = vector.broadcast %51 : vector<8x1xf32> to vector<8x8xf32>
    %63 = arith.mulf %62, %61 : vector<8x8xf32>
    %64 = arith.truncf %54 : vector<8x8xf32> to vector<8x8xbf16>
    %cst_56 = arith.constant dense<0.000000e+00> : vector<8x8xf32>
    %65 = tpu.matmul %64, %41, %cst_56 {dimension_numbers = #tpu.dot_dimension_numbers<[1], [0], [0], [1], [0, 0, 1, 1], [], []>} : vector<8x8xbf16>, vector<8x8xbf16>, vector<8x8xf32> -> vector<8x8xf32>
    %66 = arith.addf %63, %65 : vector<8x8xf32>
    %c0_57 = arith.constant 0 : index
    %c8_58 = arith.constant 8 : index
    %67 = vector.load %arg9[%c0_57, %c8_58] : memref<8x32xf32, #tpu.memory_space<vmem>>, vector<8x8xf32>
    tpu.vector_store %arg9[%c0_57, %c8_58], %66 {strides = array<i32>} : memref<8x32xf32, #tpu.memory_space<vmem>>, vector<8x8xf32>,
    %c0_59 = arith.constant 0 : index
    %c1_60 = arith.constant 1 : index
    %68 = vector.load %arg7[%c0_59, %c1_60] : memref<8x4xf32, #tpu.memory_space<vmem>>, vector<8x1xf32>
    tpu.vector_store %arg7[%c0_59, %c1_60], %49 {strides = array<i32>} : memref<8x4xf32, #tpu.memory_space<vmem>>, vector<8x1xf32>,
    %c0_61 = arith.constant 0 : index
    %c0_62 = arith.constant 0 : index
    %c0_63 = arith.constant 0 : index
    %c2 = arith.constant 2 : index
    %c0_64 = arith.constant 0 : index
    %69 = vector.load %arg3[%c0_61, %c0_62, %c0_63, %c2, %c0_64] : memref<1x8x1x4x8xbf16, #tpu.memory_space<vmem>>, vector<1x8x1x1x8xbf16>
    %70 = vector.shape_cast %69 : vector<1x8x1x1x8xbf16> to vector<8x8xbf16>
    %c0_65 = arith.constant 0 : index
    %c0_66 = arith.constant 0 : index
    %c0_67 = arith.constant 0 : index
    %c2_68 = arith.constant 2 : index
    %c0_69 = arith.constant 0 : index
    %71 = vector.load %arg4[%c0_65, %c0_66, %c0_67, %c2_68, %c0_69] : memref<1x8x1x4x8xbf16, #tpu.memory_space<vmem>>, vector<1x8x1x1x8xbf16>
    %72 = vector.shape_cast %71 : vector<1x8x1x1x8xbf16> to vector<8x8xbf16>
    %c0_70 = arith.constant 0 : index
    %c0_71 = arith.constant 0 : index
    %c0_72 = arith.constant 0 : index
    %c2_73 = arith.constant 2 : index
    %c0_74 = arith.constant 0 : index
    %73 = vector.load %arg5[%c0_70, %c0_71, %c0_72, %c2_73, %c0_74] : memref<1x8x1x4x8xbf16, #tpu.memory_space<vmem>>, vector<1x8x1x1x8xbf16>
    %74 = vector.shape_cast %73 : vector<1x8x1x1x8xbf16> to vector<8x8xbf16>
    %75 = tpu.transpose %72, [1, 0] : vector<8x8xbf16> -> vector<8x8xbf16>
    %cst_75 = arith.constant dense<0.000000e+00> : vector<8x8xf32>
    %76 = tpu.matmul %70, %75, %cst_75 {dimension_numbers = #tpu.dot_dimension_numbers<[1], [0], [0], [1], [0, 0, 1, 1], [], []>} : vector<8x8xbf16>, vector<8x8xbf16>, vector<8x8xf32> -> vector<8x8xf32>
    %cst_76 = arith.constant 0.353553385 : f32
    %77 = vector.broadcast %cst_76 : f32 to vector<8x8xf32>
    %78 = arith.mulf %76, %77 : vector<8x8xf32>
    %c0_77 = arith.constant 0 : index
    %c2_78 = arith.constant 2 : index
    %79 = vector.load %arg7[%c0_77, %c2_78] : memref<8x4xf32, #tpu.memory_space<vmem>>, vector<8x1xf32>
    %cst_79 = arith.constant dense<0xFF800000> : vector<8xf32>
    %80 = vector.multi_reduction <maximumf>, %78, %cst_79 [1] : vector<8x8xf32> to vector<8xf32>
    %81 = vector.shape_cast %80 : vector<8xf32> to vector<8x1xf32>
    %82 = arith.maximumf %79, %81 : vector<8x1xf32>
    %83 = arith.subf %79, %82 : vector<8x1xf32>
    %84 = math.exp %83 : vector<8x1xf32>
    %85 = vector.broadcast %82 : vector<8x1xf32> to vector<8x8xf32>
    %86 = arith.subf %78, %85 : vector<8x8xf32>
    %87 = math.exp %86 : vector<8x8xf32>
    %c0_80 = arith.constant 0 : index
    %c2_81 = arith.constant 2 : index
    %88 = vector.load %arg8[%c0_80, %c2_81] : memref<8x4xf32, #tpu.memory_space<vmem>>, vector<8x1xf32>
    %89 = arith.mulf %84, %88 : vector<8x1xf32>
    %cst_82 = arith.constant dense<0.000000e+00> : vector<8xf32>
    %90 = vector.multi_reduction <add>, %87, %cst_82 [1] : vector<8x8xf32> to vector<8xf32>
    %91 = vector.shape_cast %90 : vector<8xf32> to vector<8x1xf32>
    %92 = arith.addf %89, %91 : vector<8x1xf32>
    %c0_83 = arith.constant 0 : index
    %c2_84 = arith.constant 2 : index
    %93 = vector.load %arg8[%c0_83, %c2_84] : memref<8x4xf32, #tpu.memory_space<vmem>>, vector<8x1xf32>
    tpu.vector_store %arg8[%c0_83, %c2_84], %92 {strides = array<i32>} : memref<8x4xf32, #tpu.memory_space<vmem>>, vector<8x1xf32>,
    %c0_85 = arith.constant 0 : index
    %c16 = arith.constant 16 : index
    %94 = vector.load %arg9[%c0_85, %c16] : memref<8x32xf32, #tpu.memory_space<vmem>>, vector<8x8xf32>
    %95 = vector.broadcast %84 : vector<8x1xf32> to vector<8x8xf32>
    %96 = arith.mulf %95, %94 : vector<8x8xf32>
    %97 = arith.truncf %87 : vector<8x8xf32> to vector<8x8xbf16>
    %cst_86 = arith.constant dense<0.000000e+00> : vector<8x8xf32>
    %98 = tpu.matmul %97, %74, %cst_86 {dimension_numbers = #tpu.dot_dimension_numbers<[1], [0], [0], [1], [0, 0, 1, 1], [], []>} : vector<8x8xbf16>, vector<8x8xbf16>, vector<8x8xf32> -> vector<8x8xf32>
    %99 = arith.addf %96, %98 : vector<8x8xf32>
    %c0_87 = arith.constant 0 : index
    %c16_88 = arith.constant 16 : index
    %100 = vector.load %arg9[%c0_87, %c16_88] : memref<8x32xf32, #tpu.memory_space<vmem>>, vector<8x8xf32>
    tpu.vector_store %arg9[%c0_87, %c16_88], %99 {strides = array<i32>} : memref<8x32xf32, #tpu.memory_space<vmem>>, vector<8x8xf32>,
    %c0_89 = arith.constant 0 : index
    %c2_90 = arith.constant 2 : index
    %101 = vector.load %arg7[%c0_89, %c2_90] : memref<8x4xf32, #tpu.memory_space<vmem>>, vector<8x1xf32>
    tpu.vector_store %arg7[%c0_89, %c2_90], %82 {strides = array<i32>} : memref<8x4xf32, #tpu.memory_space<vmem>>, vector<8x1xf32>,
    %c0_91 = arith.constant 0 : index
    %c0_92 = arith.constant 0 : index
    %c0_93 = arith.constant 0 : index
    %c3 = arith.constant 3 : index
    %c0_94 = arith.constant 0 : index
    %102 = vector.load %arg3[%c0_91, %c0_92, %c0_93, %c3, %c0_94] : memref<1x8x1x4x8xbf16, #tpu.memory_space<vmem>>, vector<1x8x1x1x8xbf16>
    %103 = vector.shape_cast %102 : vector<1x8x1x1x8xbf16> to vector<8x8xbf16>
    %c0_95 = arith.constant 0 : index
    %c0_96 = arith.constant 0 : index
    %c0_97 = arith.constant 0 : index
    %c3_98 = arith.constant 3 : index
    %c0_99 = arith.constant 0 : index
    %104 = vector.load %arg4[%c0_95, %c0_96, %c0_97, %c3_98, %c0_99] : memref<1x8x1x4x8xbf16, #tpu.memory_space<vmem>>, vector<1x8x1x1x8xbf16>
    %105 = vector.shape_cast %104 : vector<1x8x1x1x8xbf16> to vector<8x8xbf16>
    %c0_100 = arith.constant 0 : index
    %c0_101 = arith.constant 0 : index
    %c0_102 = arith.constant 0 : index
    %c3_103 = arith.constant 3 : index
    %c0_104 = arith.constant 0 : index
    %106 = vector.load %arg5[%c0_100, %c0_101, %c0_102, %c3_103, %c0_104] : memref<1x8x1x4x8xbf16, #tpu.memory_space<vmem>>, vector<1x8x1x1x8xbf16>
    %107 = vector.shape_cast %106 : vector<1x8x1x1x8xbf16> to vector<8x8xbf16>
    %108 = tpu.transpose %105, [1, 0] : vector<8x8xbf16> -> vector<8x8xbf16>
    %cst_105 = arith.constant dense<0.000000e+00> : vector<8x8xf32>
    %109 = tpu.matmul %103, %108, %cst_105 {dimension_numbers = #tpu.dot_dimension_numbers<[1], [0], [0], [1], [0, 0, 1, 1], [], []>} : vector<8x8xbf16>, vector<8x8xbf16>, vector<8x8xf32> -> vector<8x8xf32>
    %cst_106 = arith.constant 0.353553385 : f32
    %110 = vector.broadcast %cst_106 : f32 to vector<8x8xf32>
    %111 = arith.mulf %109, %110 : vector<8x8xf32>
    %c0_107 = arith.constant 0 : index
    %c3_108 = arith.constant 3 : index
    %112 = vector.load %arg7[%c0_107, %c3_108] : memref<8x4xf32, #tpu.memory_space<vmem>>, vector<8x1xf32>
    %cst_109 = arith.constant dense<0xFF800000> : vector<8xf32>
    %113 = vector.multi_reduction <maximumf>, %111, %cst_109 [1] : vector<8x8xf32> to vector<8xf32>
    %114 = vector.shape_cast %113 : vector<8xf32> to vector<8x1xf32>
    %115 = arith.maximumf %112, %114 : vector<8x1xf32>
    %116 = arith.subf %112, %115 : vector<8x1xf32>
    %117 = math.exp %116 : vector<8x1xf32>
    %118 = vector.broadcast %115 : vector<8x1xf32> to vector<8x8xf32>
    %119 = arith.subf %111, %118 : vector<8x8xf32>
    %120 = math.exp %119 : vector<8x8xf32>
    %c0_110 = arith.constant 0 : index
    %c3_111 = arith.constant 3 : index
    %121 = vector.load %arg8[%c0_110, %c3_111] : memref<8x4xf32, #tpu.memory_space<vmem>>, vector<8x1xf32>
    %122 = arith.mulf %117, %121 : vector<8x1xf32>
    %cst_112 = arith.constant dense<0.000000e+00> : vector<8xf32>
    %123 = vector.multi_reduction <add>, %120, %cst_112 [1] : vector<8x8xf32> to vector<8xf32>
    %124 = vector.shape_cast %123 : vector<8xf32> to vector<8x1xf32>
    %125 = arith.addf %122, %124 : vector<8x1xf32>
    %c0_113 = arith.constant 0 : index
    %c3_114 = arith.constant 3 : index
    %126 = vector.load %arg8[%c0_113, %c3_114] : memref<8x4xf32, #tpu.memory_space<vmem>>, vector<8x1xf32>
    tpu.vector_store %arg8[%c0_113, %c3_114], %125 {strides = array<i32>} : memref<8x4xf32, #tpu.memory_space<vmem>>, vector<8x1xf32>,
    %c0_115 = arith.constant 0 : index
    %c24 = arith.constant 24 : index
    %127 = vector.load %arg9[%c0_115, %c24] : memref<8x32xf32, #tpu.memory_space<vmem>>, vector<8x8xf32>
    %128 = vector.broadcast %117 : vector<8x1xf32> to vector<8x8xf32>
    %129 = arith.mulf %128, %127 : vector<8x8xf32>
    %130 = arith.truncf %120 : vector<8x8xf32> to vector<8x8xbf16>
    %cst_116 = arith.constant dense<0.000000e+00> : vector<8x8xf32>
    %131 = tpu.matmul %130, %107, %cst_116 {dimension_numbers = #tpu.dot_dimension_numbers<[1], [0], [0], [1], [0, 0, 1, 1], [], []>} : vector<8x8xbf16>, vector<8x8xbf16>, vector<8x8xf32> -> vector<8x8xf32>
    %132 = arith.addf %129, %131 : vector<8x8xf32>
    %c0_117 = arith.constant 0 : index
    %c24_118 = arith.constant 24 : index
    %133 = vector.load %arg9[%c0_117, %c24_118] : memref<8x32xf32, #tpu.memory_space<vmem>>, vector<8x8xf32>
    tpu.vector_store %arg9[%c0_117, %c24_118], %132 {strides = array<i32>} : memref<8x32xf32, #tpu.memory_space<vmem>>, vector<8x8xf32>,
    %c0_119 = arith.constant 0 : index
    %c3_120 = arith.constant 3 : index
    %134 = vector.load %arg7[%c0_119, %c3_120] : memref<8x4xf32, #tpu.memory_space<vmem>>, vector<8x1xf32>
    tpu.vector_store %arg7[%c0_119, %c3_120], %115 {strides = array<i32>} : memref<8x4xf32, #tpu.memory_space<vmem>>, vector<8x1xf32>,
    %c0_i32_121 = arith.constant 0 : i32
    %135 = arith.cmpi eq, %arg2, %c0_i32_121 : i32
    %136 = arith.extui %135 : i1 to i32
    %c0_i32_122 = arith.constant 0 : i32
    %137 = arith.cmpi ne, %136, %c0_i32_122 : i32
    scf.if %137 {
      %c0_123 = arith.constant 0 : index
      %c0_124 = arith.constant 0 : index
      %138 = vector.load %arg9[%c0_123, %c0_124] : memref<8x32xf32, #tpu.memory_space<vmem>>, vector<8x8xf32>
      %c0_125 = arith.constant 0 : index
      %c0_126 = arith.constant 0 : index
      %139 = vector.load %arg8[%c0_125, %c0_126] : memref<8x4xf32, #tpu.memory_space<vmem>>, vector<8x1xf32>
      %140 = vector.broadcast %139 : vector<8x1xf32> to vector<8x8xf32>
      %141 = arith.divf %138, %140 : vector<8x8xf32>
      %c0_127 = arith.constant 0 : index
      %c0_128 = arith.constant 0 : index
      %142 = vector.load %arg9[%c0_127, %c0_128] : memref<8x32xf32, #tpu.memory_space<vmem>>, vector<8x8xf32>
      tpu.vector_store %arg9[%c0_127, %c0_128], %141 {strides = array<i32>} : memref<8x32xf32, #tpu.memory_space<vmem>>, vector<8x8xf32>,
      %c0_129 = arith.constant 0 : index
      %c8_130 = arith.constant 8 : index
      %143 = vector.load %arg9[%c0_129, %c8_130] : memref<8x32xf32, #tpu.memory_space<vmem>>, vector<8x8xf32>
      %c0_131 = arith.constant 0 : index
      %c1_132 = arith.constant 1 : index
      %144 = vector.load %arg8[%c0_131, %c1_132] : memref<8x4xf32, #tpu.memory_space<vmem>>, vector<8x1xf32>
      %145 = vector.broadcast %144 : vector<8x1xf32> to vector<8x8xf32>
      %146 = arith.divf %143, %145 : vector<8x8xf32>
      %c0_133 = arith.constant 0 : index
      %c8_134 = arith.constant 8 : index
      %147 = vector.load %arg9[%c0_133, %c8_134] : memref<8x32xf32, #tpu.memory_space<vmem>>, vector<8x8xf32>
      tpu.vector_store %arg9[%c0_133, %c8_134], %146 {strides = array<i32>} : memref<8x32xf32, #tpu.memory_space<vmem>>, vector<8x8xf32>,
      %c0_135 = arith.constant 0 : index
      %c16_136 = arith.constant 16 : index
      %148 = vector.load %arg9[%c0_135, %c16_136] : memref<8x32xf32, #tpu.memory_space<vmem>>, vector<8x8xf32>
      %c0_137 = arith.constant 0 : index
      %c2_138 = arith.constant 2 : index
      %149 = vector.load %arg8[%c0_137, %c2_138] : memref<8x4xf32, #tpu.memory_space<vmem>>, vector<8x1xf32>
      %150 = vector.broadcast %149 : vector<8x1xf32> to vector<8x8xf32>
      %151 = arith.divf %148, %150 : vector<8x8xf32>
      %c0_139 = arith.constant 0 : index
      %c16_140 = arith.constant 16 : index
      %152 = vector.load %arg9[%c0_139, %c16_140] : memref<8x32xf32, #tpu.memory_space<vmem>>, vector<8x8xf32>
      tpu.vector_store %arg9[%c0_139, %c16_140], %151 {strides = array<i32>} : memref<8x32xf32, #tpu.memory_space<vmem>>, vector<8x8xf32>,
      %c0_141 = arith.constant 0 : index
      %c24_142 = arith.constant 24 : index
      %153 = vector.load %arg9[%c0_141, %c24_142] : memref<8x32xf32, #tpu.memory_space<vmem>>, vector<8x8xf32>
      %c0_143 = arith.constant 0 : index
      %c3_144 = arith.constant 3 : index
      %154 = vector.load %arg8[%c0_143, %c3_144] : memref<8x4xf32, #tpu.memory_space<vmem>>, vector<8x1xf32>
      %155 = vector.broadcast %154 : vector<8x1xf32> to vector<8x8xf32>
      %156 = arith.divf %153, %155 : vector<8x8xf32>
      %c0_145 = arith.constant 0 : index
      %c24_146 = arith.constant 24 : index
      %157 = vector.load %arg9[%c0_145, %c24_146] : memref<8x32xf32, #tpu.memory_space<vmem>>, vector<8x8xf32>
      tpu.vector_store %arg9[%c0_145, %c24_146], %156 {strides = array<i32>} : memref<8x32xf32, #tpu.memory_space<vmem>>, vector<8x8xf32>,
      %c0_147 = arith.constant 0 : index
      %c0_148 = arith.constant 0 : index
      %158 = vector.load %arg9[%c0_147, %c0_148] : memref<8x32xf32, #tpu.memory_space<vmem>>, vector<8x32xf32>
      %159 = arith.truncf %158 : vector<8x32xf32> to vector<8x32xbf16>
      %c0_149 = arith.constant 0 : index
      %c0_150 = arith.constant 0 : index
      %c0_151 = arith.constant 0 : index
      %160 = vector.load %arg6[%c0_149, %c0_150, %c0_151] : memref<1x8x32xbf16, #tpu.memory_space<vmem>>, vector<1x8x32xbf16>
      %161 = vector.shape_cast %160 : vector<1x8x32xbf16> to vector<8x32xbf16>
      %162 = vector.shape_cast %159 : vector<8x32xbf16> to vector<1x8x32xbf16>
      tpu.vector_store %arg6[%c0_149, %c0_150, %c0_151], %162 {strides = array<i32>} : memref<1x8x32xbf16, #tpu.memory_space<vmem>>, vector<1x8x32xbf16>,
    } else {
    }
    return
  }
  func.func @transform_0(%arg0: i32, %arg1: i32, %arg2: i32) -> (i32, i32, i32, i32, i32) {
    %c0_i32 = arith.constant 0 : i32
    %c0_i32_0 = arith.constant 0 : i32
    %c0_i32_1 = arith.constant 0 : i32
    %c0_i32_2 = arith.constant 0 : i32
    return %arg0, %arg1, %c0_i32, %c0_i32_0, %c0_i32_1 : i32, i32, i32, i32, i32
  }
  func.func @transform_1(%arg0: i32, %arg1: i32, %arg2: i32) -> (i32, i32, i32, i32, i32) {
    %c0_i32 = arith.constant 0 : i32
    %c0_i32_0 = arith.constant 0 : i32
    %c0_i32_1 = arith.constant 0 : i32
    %c0_i32_2 = arith.constant 0 : i32
    return %arg0, %arg2, %c0_i32, %c0_i32_0, %c0_i32_1 : i32, i32, i32, i32, i32
  }
  func.func @transform_2(%arg0: i32, %arg1: i32, %arg2: i32) -> (i32, i32, i32, i32, i32) {
    %c1_i32 = arith.constant 1 : i32
    %c0_i32 = arith.constant 0 : i32
    %c0_i32_0 = arith.constant 0 : i32
    %c0_i32_1 = arith.constant 0 : i32
    return %arg0, %arg2, %c1_i32, %c0_i32, %c0_i32_0 : i32, i32, i32, i32, i32
  }
  func.func @transform_3(%arg0: i32, %arg1: i32, %arg2: i32) -> (i32, i32, i32) {
    %c0_i32 = arith.constant 0 : i32
    %c0_i32_0 = arith.constant 0 : i32
    return %arg0, %arg1, %c0_i32 : i32, i32, i32
  }
}

module attributes {stable_mosaic.version = 11 : i64} {
  func.func @_ffn_res_ln_kernel(%arg0: i32, %arg1: i32, %arg2: memref<16x32xf32, #tpu.memory_space<vmem>>, %arg3: memref<32x64xbf16, #tpu.memory_space<vmem>>, %arg4: memref<1x64xf32, #tpu.memory_space<vmem>>, %arg5: memref<64x32xbf16, #tpu.memory_space<vmem>>, %arg6: memref<1x32xf32, #tpu.memory_space<vmem>>, %arg7: memref<1x32xf32, #tpu.memory_space<vmem>>, %arg8: memref<1x32xf32, #tpu.memory_space<vmem>>, %arg9: memref<16x32xf32, #tpu.memory_space<vmem>>, %arg10: memref<16x32xf32, #tpu.memory_space<vmem>>, %arg11: memref<16x32xbf16, #tpu.memory_space<vmem>>) attributes {dimension_semantics = [#tpu.dimension_semantics<parallel>, #tpu.dimension_semantics<arbitrary>], iteration_bounds = array<i64: 1, 1>, scalar_prefetch = 0 : i64, scratch_operands = 2 : i64, tpu.core_type = #tpu.core_type<tc>, window_params = [{transform_indices = @transform_0, window_bounds = array<i64: 16, 32>}, {transform_indices = @transform_1, window_bounds = array<i64: 32, 64>}, {transform_indices = @transform_2, window_bounds = array<i64: 1, 64>}, {transform_indices = @transform_3, window_bounds = array<i64: 64, 32>}, {pipeline_mode = #tpu.pipeline_mode<synchronous>, transform_indices = @transform_4, window_bounds = array<i64: 1, 32>}, {pipeline_mode = #tpu.pipeline_mode<synchronous>, transform_indices = @transform_5, window_bounds = array<i64: 1, 32>}, {pipeline_mode = #tpu.pipeline_mode<synchronous>, transform_indices = @transform_6, window_bounds = array<i64: 1, 32>}, {transform_indices = @transform_7, window_bounds = array<i64: 16, 32>}]} {
    %c0_i32 = arith.constant 0 : i32
    %0 = arith.cmpi eq, %arg1, %c0_i32 : i32
    %1 = arith.extui %0 : i1 to i32
    %c0_i32_0 = arith.constant 0 : i32
    %2 = arith.cmpi ne, %1, %c0_i32_0 : i32
    scf.if %2 {
      %cst_16 = arith.constant 0.000000e+00 : f32
      %20 = vector.broadcast %cst_16 : f32 to vector<16x32xf32>
      %c0_17 = arith.constant 0 : index
      %c0_18 = arith.constant 0 : index
      %21 = vector.load %arg10[%c0_17, %c0_18] : memref<16x32xf32, #tpu.memory_space<vmem>>, vector<16x32xf32>
      tpu.vector_store %arg10[%c0_17, %c0_18], %20 {strides = array<i32>} : memref<16x32xf32, #tpu.memory_space<vmem>>, vector<16x32xf32>,
      %c0_19 = arith.constant 0 : index
      %c0_20 = arith.constant 0 : index
      %22 = vector.load %arg2[%c0_19, %c0_20] : memref<16x32xf32, #tpu.memory_space<vmem>>, vector<16x32xf32>
      %23 = arith.truncf %22 : vector<16x32xf32> to vector<16x32xbf16>
      %c0_21 = arith.constant 0 : index
      %c0_22 = arith.constant 0 : index
      %24 = vector.load %arg11[%c0_21, %c0_22] : memref<16x32xbf16, #tpu.memory_space<vmem>>, vector<16x32xbf16>
      tpu.vector_store %arg11[%c0_21, %c0_22], %23 {strides = array<i32>} : memref<16x32xbf16, #tpu.memory_space<vmem>>, vector<16x32xbf16>,
    } else {
    }
    %c0 = arith.constant 0 : index
    %c0_1 = arith.constant 0 : index
    %3 = vector.load %arg11[%c0, %c0_1] : memref<16x32xbf16, #tpu.memory_space<vmem>>, vector<16x32xbf16>
    %c0_2 = arith.constant 0 : index
    %c0_3 = arith.constant 0 : index
    %4 = vector.load %arg3[%c0_2, %c0_3] : memref<32x64xbf16, #tpu.memory_space<vmem>>, vector<32x64xbf16>
    %cst = arith.constant dense<0.000000e+00> : vector<16x64xf32>
    %5 = tpu.matmul %3, %4, %cst {dimension_numbers = #tpu.dot_dimension_numbers<[1], [0], [0], [1], [0, 0, 1, 1], [], []>} : vector<16x32xbf16>, vector<32x64xbf16>, vector<16x64xf32> -> vector<16x64xf32>
    %c0_4 = arith.constant 0 : index
    %c0_5 = arith.constant 0 : index
    %6 = vector.load %arg4[%c0_4, %c0_5] : memref<1x64xf32, #tpu.memory_space<vmem>>, vector<1x64xf32>
    %7 = vector.broadcast %6 : vector<1x64xf32> to vector<16x64xf32>
    %8 = arith.addf %5, %7 : vector<16x64xf32>
    %cst_6 = arith.constant 0.000000e+00 : f32
    %9 = vector.broadcast %cst_6 : f32 to vector<16x64xf32>
    %10 = arith.maximumf %8, %9 : vector<16x64xf32>
    %c0_7 = arith.constant 0 : index
    %c0_8 = arith.constant 0 : index
    %11 = vector.load %arg10[%c0_7, %c0_8] : memref<16x32xf32, #tpu.memory_space<vmem>>, vector<16x32xf32>
    %12 = arith.truncf %10 : vector<16x64xf32> to vector<16x64xbf16>
    %c0_9 = arith.constant 0 : index
    %c0_10 = arith.constant 0 : index
    %13 = vector.load %arg5[%c0_9, %c0_10] : memref<64x32xbf16, #tpu.memory_space<vmem>>, vector<64x32xbf16>
    %cst_11 = arith.constant dense<0.000000e+00> : vector<16x32xf32>
    %14 = tpu.matmul %12, %13, %cst_11 {dimension_numbers = #tpu.dot_dimension_numbers<[1], [0], [0], [1], [0, 0, 1, 1], [], []>} : vector<16x64xbf16>, vector<64x32xbf16>, vector<16x32xf32> -> vector<16x32xf32>
    %15 = arith.addf %11, %14 : vector<16x32xf32>
    %c0_12 = arith.constant 0 : index
    %c0_13 = arith.constant 0 : index
    %16 = vector.load %arg10[%c0_12, %c0_13] : memref<16x32xf32, #tpu.memory_space<vmem>>, vector<16x32xf32>
    tpu.vector_store %arg10[%c0_12, %c0_13], %15 {strides = array<i32>} : memref<16x32xf32, #tpu.memory_space<vmem>>, vector<16x32xf32>,
    %c0_i32_14 = arith.constant 0 : i32
    %17 = arith.cmpi eq, %arg1, %c0_i32_14 : i32
    %18 = arith.extui %17 : i1 to i32
    %c0_i32_15 = arith.constant 0 : i32
    %19 = arith.cmpi ne, %18, %c0_i32_15 : i32
    scf.if %19 {
      %c0_16 = arith.constant 0 : index
      %c0_17 = arith.constant 0 : index
      %20 = vector.load %arg10[%c0_16, %c0_17] : memref<16x32xf32, #tpu.memory_space<vmem>>, vector<16x32xf32>
      %c0_18 = arith.constant 0 : index
      %c0_19 = arith.constant 0 : index
      %21 = vector.load %arg6[%c0_18, %c0_19] : memref<1x32xf32, #tpu.memory_space<vmem>>, vector<1x32xf32>
      %22 = vector.broadcast %21 : vector<1x32xf32> to vector<16x32xf32>
      %23 = arith.addf %20, %22 : vector<16x32xf32>
      %c0_20 = arith.constant 0 : index
      %c0_21 = arith.constant 0 : index
      %24 = vector.load %arg2[%c0_20, %c0_21] : memref<16x32xf32, #tpu.memory_space<vmem>>, vector<16x32xf32>
      %25 = arith.addf %23, %24 : vector<16x32xf32>
      %cst_22 = arith.constant dense<0.000000e+00> : vector<16xf32>
      %26 = vector.multi_reduction <add>, %25, %cst_22 [1] : vector<16x32xf32> to vector<16xf32>
      %27 = vector.shape_cast %26 : vector<16xf32> to vector<16x1xf32>
      %cst_23 = arith.constant 3.200000e+01 : f32
      %28 = vector.broadcast %cst_23 : f32 to vector<16x1xf32>
      %29 = arith.divf %27, %28 : vector<16x1xf32>
      %30 = vector.broadcast %29 : vector<16x1xf32> to vector<16x32xf32>
      %31 = arith.subf %25, %30 : vector<16x32xf32>
      %32 = arith.mulf %31, %31 : vector<16x32xf32>
      %cst_24 = arith.constant dense<0.000000e+00> : vector<16xf32>
      %33 = vector.multi_reduction <add>, %32, %cst_24 [1] : vector<16x32xf32> to vector<16xf32>
      %34 = vector.shape_cast %33 : vector<16xf32> to vector<16x1xf32>
      %cst_25 = arith.constant 3.200000e+01 : f32
      %35 = vector.broadcast %cst_25 : f32 to vector<16x1xf32>
      %36 = arith.divf %34, %35 : vector<16x1xf32>
      %37 = vector.broadcast %29 : vector<16x1xf32> to vector<16x32xf32>
      %38 = arith.subf %25, %37 : vector<16x32xf32>
      %cst_26 = arith.constant 9.99999974E-6 : f32
      %39 = vector.broadcast %cst_26 : f32 to vector<16x1xf32>
      %40 = arith.addf %36, %39 : vector<16x1xf32>
      %41 = math.rsqrt %40 : vector<16x1xf32>
      %42 = vector.broadcast %41 : vector<16x1xf32> to vector<16x32xf32>
      %43 = arith.mulf %38, %42 : vector<16x32xf32>
      %c0_27 = arith.constant 0 : index
      %c0_28 = arith.constant 0 : index
      %44 = vector.load %arg7[%c0_27, %c0_28] : memref<1x32xf32, #tpu.memory_space<vmem>>, vector<1x32xf32>
      %45 = vector.broadcast %44 : vector<1x32xf32> to vector<16x32xf32>
      %46 = arith.mulf %43, %45 : vector<16x32xf32>
      %c0_29 = arith.constant 0 : index
      %c0_30 = arith.constant 0 : index
      %47 = vector.load %arg8[%c0_29, %c0_30] : memref<1x32xf32, #tpu.memory_space<vmem>>, vector<1x32xf32>
      %48 = vector.broadcast %47 : vector<1x32xf32> to vector<16x32xf32>
      %49 = arith.addf %46, %48 : vector<16x32xf32>
      %c0_31 = arith.constant 0 : index
      %c0_32 = arith.constant 0 : index
      %50 = vector.load %arg9[%c0_31, %c0_32] : memref<16x32xf32, #tpu.memory_space<vmem>>, vector<16x32xf32>
      tpu.vector_store %arg9[%c0_31, %c0_32], %49 {strides = array<i32>} : memref<16x32xf32, #tpu.memory_space<vmem>>, vector<16x32xf32>,
    } else {
    }
    return
  }
  func.func @transform_0(%arg0: i32, %arg1: i32) -> (i32, i32) {
    %c0_i32 = arith.constant 0 : i32
    %c0_i32_0 = arith.constant 0 : i32
    return %arg0, %c0_i32 : i32, i32
  }
  func.func @transform_1(%arg0: i32, %arg1: i32) -> (i32, i32) {
    %c0_i32 = arith.constant 0 : i32
    %c0_i32_0 = arith.constant 0 : i32
    return %c0_i32, %arg1 : i32, i32
  }
  func.func @transform_2(%arg0: i32, %arg1: i32) -> (i32, i32) {
    %c0_i32 = arith.constant 0 : i32
    %c0_i32_0 = arith.constant 0 : i32
    return %c0_i32, %arg1 : i32, i32
  }
  func.func @transform_3(%arg0: i32, %arg1: i32) -> (i32, i32) {
    %c0_i32 = arith.constant 0 : i32
    %c0_i32_0 = arith.constant 0 : i32
    return %arg1, %c0_i32 : i32, i32
  }
  func.func @transform_4(%arg0: i32, %arg1: i32) -> (i32, i32) {
    %c0_i32 = arith.constant 0 : i32
    %c0_i32_0 = arith.constant 0 : i32
    %c0_i32_1 = arith.constant 0 : i32
    return %c0_i32, %c0_i32_0 : i32, i32
  }
  func.func @transform_5(%arg0: i32, %arg1: i32) -> (i32, i32) {
    %c0_i32 = arith.constant 0 : i32
    %c0_i32_0 = arith.constant 0 : i32
    %c0_i32_1 = arith.constant 0 : i32
    return %c0_i32, %c0_i32_0 : i32, i32
  }
  func.func @transform_6(%arg0: i32, %arg1: i32) -> (i32, i32) {
    %c0_i32 = arith.constant 0 : i32
    %c0_i32_0 = arith.constant 0 : i32
    %c0_i32_1 = arith.constant 0 : i32
    return %c0_i32, %c0_i32_0 : i32, i32
  }
  func.func @transform_7(%arg0: i32, %arg1: i32) -> (i32, i32) {
    %c0_i32 = arith.constant 0 : i32
    %c0_i32_0 = arith.constant 0 : i32
    return %arg0, %c0_i32 : i32, i32
  }
}

</mosaic_0001>

<llo_original>
// kernel: decoder_forward.16
$region0: #{decoder_forward.16}
  #allocation0 [shape = 'u32[]', space=smem, size = 0x4, offset = 0x4, fixed_abs, tag = 'smem constant byte address 0x4 - core index']
  #allocation1 [shape = 'u32[144,128]{1,0:T(1,128)}', space=vmem, size = 0x12000, scoped, tag = 'internal scratch']
  #allocation2 [shape = 'f32[16,96]{1,0:T(8,128)}', space=vmem, size = 0x2000, scoped, tag = 'scratch operand']
  %s0 = inlined_call_operand.vmem [shape: f32[16,32], index: 0, kind: input, shape index: {}]
  %s1 = inlined_call_operand.vmem [shape: bf16[32,96], index: 1, kind: input, shape index: {}]
  %s2 = inlined_call_operand.vmem [shape: f32[1,96], index: 2, kind: input, shape index: {}]
  %s3 = inlined_call_operand.vmem [shape: bf16[16,96], index: 3, kind: output, shape index: {}]
  %s4 = sld [smem:[#allocation0]]
  $region30: #{decoder_forward.16} parent=0
    _
  %s6 = ssub.s32 1, %s4
  %s7 = scalar_select 0, %s6, %s4
  // Predicated region
  $region2: #{decoder_forward.16} parent=0 // pred_check
    _
  $region3: #{decoder_forward.16} parent=0 // pred_check_branch
    %9 = sbr.rel (0) target = $region5
  $region4: #{decoder_forward.16} parent=0 // pred_region
    _
  $region5: #{decoder_forward.16} parent=0 // pred_fallthru
    _
  // Predicated region
  $region6: #{decoder_forward.16} parent=0 // pred_check
    _
  $region7: #{decoder_forward.16} parent=0 // pred_check_branch
    %11 = sbr.rel (0) target = $region9
  $region8: #{decoder_forward.16} parent=0 // pred_region
    _
  $region9: #{decoder_forward.16} parent=0 // pred_fallthru
    _
  // Predicated region
  $region10: #{decoder_forward.16} parent=0 // pred_check
    _
  $region11: #{decoder_forward.16} parent=0 // pred_check_branch
    %13 = sbr.rel (0) target = $region13
  $region12: #{decoder_forward.16} parent=0 // pred_region
    _
  $region13: #{decoder_forward.16} parent=0 // pred_fallthru
    _
  %p15 = scmp.eq.s32.totalorder 0, 0
  // Predicated region
  $region14: #{decoder_forward.16} parent=0 // pred_check
    %p16 = pneg %p15
  $region15: #{decoder_forward.16} parent=0 // pred_check_branch
    %18 = sbr.rel (%p16) target = $region17
  $region16: #{decoder_forward.16} parent=0 // pred_region
    %vm19 = vcmask 785408
    %20 = vst.msk [vmem:[#allocation2] sm:$0xff] %vm19, 0.0
    %21 = vst.msk [vmem:[#allocation2 + $0x8] sm:$0xff] %vm19, 0.0
  $region17: #{decoder_forward.16} parent=0 // pred_fallthru
    _
  %v22 = vld [vmem:[#allocation2] sm:$0xff]
  %v23 = vld [vmem:[#allocation2 + $0x8] sm:$0xff]
  %v24 = vld [vmem:[%s0] sm:$0xff]
  %v25 = vld [vmem:[%s0 + $0x8] sm:$0xff]
  %v26 = vpack.c.bf16 %v25, %v24
  %v27 = vld [vmem:[%s1] sm:$0xf]
  %v28 = vld [vmem:[%s1 + $0x4] sm:$0xf]
  %v29 = vld [vmem:[%s1 + $0x8] sm:$0xf]
  %v30 = vld [vmem:[%s1 + $0xc] sm:$0xf]
  %v35 = vunpack.c.l.b16 %v27
  %v36 = vunpack.c.l.b16 %v28
  %v37 = vunpack.c.l.b16 %v29
  %v38 = vunpack.c.l.b16 %v30
  %v39 = vpack.c.b16 %v36, %v35
  %v40 = vpack.c.b16 %v38, %v37
  %vm43 = vcmask 261120
  %v45 = vsel %vm43, %v26, 0
  %47 = vmatprep.subr.bf16.mxu0 0
  %48 = vmatpush1.bf16.msra.mxu0 0
  %49 = vmatprep.subr.bf16.mxu0 0
  %50 = vmatpush1.bf16.msra.mxu0 0
  %51 = vmatprep.subr.bf16.mxu0 0
  %52 = vmatpush1.bf16.msra.mxu0 0
  %53 = vmatprep.subr.bf16.mxu0 0
  %54 = vmatpush1.bf16.msra.mxu0 0
  %55 = vmatprep.subr.bf16.mxu0 0
  %56 = vmatpush1.bf16.msra.mxu0 0
  %57 = vmatprep.subr.bf16.mxu0 0
  %58 = vmatpush1.bf16.msra.mxu0 0
  %59 = vmatprep.subr.bf16.mxu0 0
  %60 = vmatpush1.bf16.msra.mxu0 %v40
  %61 = vmatprep.subr.bf16.mxu0 0
  %62 = vmatpush1.bf16.msra.mxu0 %v39
  %63 = vmatprep.subr.bf16.mxu0 0
  %64 = vmatpush2.bf16.msra.mxu0 0
  %65 = vmatprep.subr.bf16.mxu0 0
  %66 = vmatpush2.bf16.msra.mxu0 0
  %67 = vmatprep.subr.bf16.mxu0 0
  %68 = vmatpush2.bf16.msra.mxu0 0
  %69 = vmatprep.subr.bf16.mxu0 0
  %70 = vmatpush2.bf16.msra.mxu0 0
  %71 = vmatprep.subr.bf16.mxu0 0
  %72 = vmatpush2.bf16.msra.mxu0 0
  %73 = vmatprep.subr.bf16.mxu0 0
  %74 = vmatpush2.bf16.msra.mxu0 0
  %75 = vmatprep.subr.bf16.mxu0 0
  %76 = vmatpush2.bf16.msra.mxu0 0
  %77 = vmatprep.subr.bf16.mxu0 0
  %78 = vmatpush2.bf16.msra.mxu0 0
  %79 = vmatprep.mubr.bf16.mxu0 0
  %80 = vmatmul.mubr.bf16.gmra.mxu0 %v45
  %v81 = vpop.f32.mrf.mxu0
  %v82 = vadd.f32 0.0, %v81
  %v83 = vpop.f32.mrf.mxu0
  %v84 = vpop.f32.mrf.mxu0
  %v85 = vadd.f32 0.0, %v84
  %v86 = vpop.f32.mrf.mxu0
  %87 = vdwg.mxu0
  %v88 = vadd.f32 %v22, %v82
  %v89 = vadd.f32 %v23, %v85
  %vm90 = vcmask 785408
  %91 = vst.msk [vmem:[#allocation2] sm:$0xff] %vm90, %v88
  %92 = vst.msk [vmem:[#allocation2 + $0x8] sm:$0xff] %vm90, %v89
  // Predicated region
  $region18: #{decoder_forward.16} parent=0 // pred_check
    %p93 = pneg %p15
  $region19: #{decoder_forward.16} parent=0 // pred_check_branch
    %95 = sbr.rel (%p93) target = $region21
  $region20: #{decoder_forward.16} parent=0 // pred_region
    %v96 = vld [vmem:[#allocation2] sm:$0xff]
    %v97 = vld [vmem:[#allocation2 + $0x8] sm:$0xff]
    %v98 = vld [vmem:[%s2] sm:$0x1]
    %v100 = vlaneseq
    %v101 = vshrl.u32 %v100, 7
    %v102 = vsub.s32 0, %v101
    %v103 = vrot.slane %v98, %v102
    %v105 = vadd.f32 %v96, %v103
    %v106 = vadd.f32 %v97, %v103
    %v107 = vpack.c.bf16 %v106, %v105
    %v109 = vunpack.c.l.b16 %v107
    %v110 = vunpack.c.h.b16 %v107
    %v111 = vpack.c.b16 %v109, %v109
    %v112 = vpack.c.b16 %v110, %v110
    %vm115 = vcmask 781312
    %116 = vst.msk [vmem:[%s3] sm:$0xf] %vm115, %v111
    %117 = vst.msk [vmem:[%s3 + $0x4] sm:$0xf] %vm115, %v112
  $region21: #{decoder_forward.16} parent=0 // pred_fallthru
    _
  // Predicated region
  $region22: #{decoder_forward.16} parent=0 // pred_check
    _
  $region23: #{decoder_forward.16} parent=0 // pred_check_branch
    %119 = sbr.rel (0) target = $region25
  $region24: #{decoder_forward.16} parent=0 // pred_region
    _
  $region25: #{decoder_forward.16} parent=0 // pred_fallthru
    _
  // Predicated region
  $region26: #{decoder_forward.16} parent=0 // pred_check
    _
  $region27: #{decoder_forward.16} parent=0 // pred_check_branch
    %121 = sbr.rel (0) target = $region29
  $region28: #{decoder_forward.16} parent=0 // pred_region
    _
  $region29: #{decoder_forward.16} parent=0 // pred_fallthru
    _

// kernel: decoder_forward.19
$region0: #{decoder_forward.19}
  #allocation0 [shape = 'u32[]', space=smem, size = 0x4, offset = 0x4, fixed_abs, tag = 'smem constant byte address 0x4 - core index']
  #allocation1 [shape = 'u32[144,128]{1,0:T(1,128)}', space=vmem, size = 0x12000, scoped, tag = 'internal scratch']
  #allocation2 [shape = 'f32[16,32]{1,0:T(8,128)}', space=vmem, size = 0x2000, scoped, tag = 'scratch operand']
  %s0 = inlined_call_operand.vmem [shape: f32[16,32], index: 0, kind: input, shape index: {}]
  %s1 = inlined_call_operand.vmem [shape: bf16[32,32], index: 1, kind: input, shape index: {}]
  %s2 = inlined_call_operand.vmem [shape: f32[1,32], index: 2, kind: input, shape index: {}]
  %s3 = inlined_call_operand.vmem [shape: bf16[16,32], index: 3, kind: output, shape index: {}]
  %s4 = sld [smem:[#allocation0]]
  $region30: #{decoder_forward.19} parent=0
    _
  %s6 = ssub.s32 1, %s4
  %s7 = scalar_select 0, %s6, %s4
  // Predicated region
  $region2: #{decoder_forward.19} parent=0 // pred_check
    _
  $region3: #{decoder_forward.19} parent=0 // pred_check_branch
    %9 = sbr.rel (0) target = $region5
  $region4: #{decoder_forward.19} parent=0 // pred_region
    _
  $region5: #{decoder_forward.19} parent=0 // pred_fallthru
    _
  // Predicated region
  $region6: #{decoder_forward.19} parent=0 // pred_check
    _
  $region7: #{decoder_forward.19} parent=0 // pred_check_branch
    %11 = sbr.rel (0) target = $region9
  $region8: #{decoder_forward.19} parent=0 // pred_region
    _
  $region9: #{decoder_forward.19} parent=0 // pred_fallthru
    _
  // Predicated region
  $region10: #{decoder_forward.19} parent=0 // pred_check
    _
  $region11: #{decoder_forward.19} parent=0 // pred_check_branch
    %13 = sbr.rel (0) target = $region13
  $region12: #{decoder_forward.19} parent=0 // pred_region
    _
  $region13: #{decoder_forward.19} parent=0 // pred_fallthru
    _
  %p15 = scmp.eq.s32.totalorder 0, 0
  // Predicated region
  $region14: #{decoder_forward.19} parent=0 // pred_check
    %p16 = pneg %p15
  $region15: #{decoder_forward.19} parent=0 // pred_check_branch
    %18 = sbr.rel (%p16) target = $region17
  $region16: #{decoder_forward.19} parent=0 // pred_region
    %vm19 = vcmask 261120
    %20 = vst.msk [vmem:[#allocation2] sm:$0xff] %vm19, 0.0
    %21 = vst.msk [vmem:[#allocation2 + $0x8] sm:$0xff] %vm19, 0.0
  $region17: #{decoder_forward.19} parent=0 // pred_fallthru
    _
  %v22 = vld [vmem:[#allocation2] sm:$0xff]
  %v23 = vld [vmem:[#allocation2 + $0x8] sm:$0xff]
  %v24 = vld [vmem:[%s0] sm:$0xff]
  %v25 = vld [vmem:[%s0 + $0x8] sm:$0xff]
  %v26 = vpack.c.bf16 %v25, %v24
  %v27 = vld [vmem:[%s1] sm:$0xf]
  %v28 = vld [vmem:[%s1 + $0x4] sm:$0xf]
  %v29 = vld [vmem:[%s1 + $0x8] sm:$0xf]
  %v30 = vld [vmem:[%s1 + $0xc] sm:$0xf]
  %v35 = vunpack.c.l.b16 %v27
  %v36 = vunpack.c.l.b16 %v28
  %v37 = vunpack.c.l.b16 %v29
  %v38 = vunpack.c.l.b16 %v30
  %v39 = vpack.c.b16 %v36, %v35
  %v40 = vpack.c.b16 %v38, %v37
  %vm43 = vcmask 261120
  %v45 = vsel %vm43, %v26, 0
  %47 = vmatprep.subr.bf16.mxu0 0
  %48 = vmatpush1.bf16.msra.mxu0 0
  %49 = vmatprep.subr.bf16.mxu0 0
  %50 = vmatpush1.bf16.msra.mxu0 0
  %51 = vmatprep.subr.bf16.mxu0 0
  %52 = vmatpush1.bf16.msra.mxu0 0
  %53 = vmatprep.subr.bf16.mxu0 0
  %54 = vmatpush1.bf16.msra.mxu0 0
  %55 = vmatprep.subr.bf16.mxu0 0
  %56 = vmatpush1.bf16.msra.mxu0 0
  %57 = vmatprep.subr.bf16.mxu0 0
  %58 = vmatpush1.bf16.msra.mxu0 0
  %59 = vmatprep.subr.bf16.mxu0 0
  %60 = vmatpush1.bf16.msra.mxu0 %v40
  %61 = vmatprep.subr.bf16.mxu0 0
  %62 = vmatpush1.bf16.msra.mxu0 %v39
  %63 = vmatprep.subr.bf16.mxu0 0
  %64 = vmatpush2.bf16.msra.mxu0 0
  %65 = vmatprep.subr.bf16.mxu0 0
  %66 = vmatpush2.bf16.msra.mxu0 0
  %67 = vmatprep.subr.bf16.mxu0 0
  %68 = vmatpush2.bf16.msra.mxu0 0
  %69 = vmatprep.subr.bf16.mxu0 0
  %70 = vmatpush2.bf16.msra.mxu0 0
  %71 = vmatprep.subr.bf16.mxu0 0
  %72 = vmatpush2.bf16.msra.mxu0 0
  %73 = vmatprep.subr.bf16.mxu0 0
  %74 = vmatpush2.bf16.msra.mxu0 0
  %75 = vmatprep.subr.bf16.mxu0 0
  %76 = vmatpush2.bf16.msra.mxu0 0
  %77 = vmatprep.subr.bf16.mxu0 0
  %78 = vmatpush2.bf16.msra.mxu0 0
  %79 = vmatprep.mubr.bf16.mxu0 0
  %80 = vmatmul.mubr.bf16.gmra.mxu0 %v45
  %v81 = vpop.f32.mrf.mxu0
  %v82 = vadd.f32 0.0, %v81
  %v83 = vpop.f32.mrf.mxu0
  %v84 = vpop.f32.mrf.mxu0
  %v85 = vadd.f32 0.0, %v84
  %v86 = vpop.f32.mrf.mxu0
  %87 = vdwg.mxu0
  %v88 = vadd.f32 %v22, %v82
  %v89 = vadd.f32 %v23, %v85
  %90 = vst.msk [vmem:[#allocation2] sm:$0xff] %vm43, %v88
  %91 = vst.msk [vmem:[#allocation2 + $0x8] sm:$0xff] %vm43, %v89
  // Predicated region
  $region18: #{decoder_forward.19} parent=0 // pred_check
    %p92 = pneg %p15
  $region19: #{decoder_forward.19} parent=0 // pred_check_branch
    %94 = sbr.rel (%p92) target = $region21
  $region20: #{decoder_forward.19} parent=0 // pred_region
    %v95 = vld [vmem:[#allocation2] sm:$0xff]
    %v96 = vld [vmem:[#allocation2 + $0x8] sm:$0xff]
    %v97 = vld [vmem:[%s2] sm:$0x1]
    %v99 = vlaneseq
    %v100 = vshrl.u32 %v99, 7
    %v101 = vsub.s32 0, %v100
    %v102 = vrot.slane %v97, %v101
    %v104 = vadd.f32 %v95, %v102
    %v105 = vadd.f32 %v96, %v102
    %v106 = vpack.c.bf16 %v105, %v104
    %v108 = vunpack.c.l.b16 %v106
    %v109 = vunpack.c.h.b16 %v106
    %v110 = vpack.c.b16 %v108, %v108
    %v111 = vpack.c.b16 %v109, %v109
    %vm114 = vcmask 257024
    %115 = vst.msk [vmem:[%s3] sm:$0xf] %vm114, %v110
    %116 = vst.msk [vmem:[%s3 + $0x4] sm:$0xf] %vm114, %v111
  $region21: #{decoder_forward.19} parent=0 // pred_fallthru
    _
  // Predicated region
  $region22: #{decoder_forward.19} parent=0 // pred_check
    _
  $region23: #{decoder_forward.19} parent=0 // pred_check_branch
    %118 = sbr.rel (0) target = $region25
  $region24: #{decoder_forward.19} parent=0 // pred_region
    _
  $region25: #{decoder_forward.19} parent=0 // pred_fallthru
    _
  // Predicated region
  $region26: #{decoder_forward.19} parent=0 // pred_check
    _
  $region27: #{decoder_forward.19} parent=0 // pred_check_branch
    %120 = sbr.rel (0) target = $region29
  $region28: #{decoder_forward.19} parent=0 // pred_region
    _
  $region29: #{decoder_forward.19} parent=0 // pred_fallthru
    _

// kernel: decoder_forward.18
$region0: #{decoder_forward.18}
  #allocation0 [shape = 'u32[]', space=smem, size = 0x4, offset = 0x4, fixed_abs, tag = 'smem constant byte address 0x4 - core index']
  #allocation1 [shape = 'u32[144,128]{1,0:T(1,128)}', space=vmem, size = 0x12000, scoped, tag = 'internal scratch']
  #allocation2 [shape = 'f32[16,32]{1,0:T(8,128)}', space=vmem, size = 0x2000, scoped, tag = 'scratch operand']
  %s0 = inlined_call_operand.vmem [shape: bf16[16,32], index: 0, kind: input, shape index: {}]
  %s1 = inlined_call_operand.vmem [shape: bf16[32,32], index: 1, kind: input, shape index: {}]
  %s2 = inlined_call_operand.vmem [shape: f32[1,32], index: 2, kind: input, shape index: {}]
  %s3 = inlined_call_operand.vmem [shape: f32[16,32], index: 3, kind: input, shape index: {}]
  %s4 = inlined_call_operand.vmem [shape: f32[1,32], index: 4, kind: input, shape index: {}]
  %s5 = inlined_call_operand.vmem [shape: f32[1,32], index: 5, kind: input, shape index: {}]
  %s6 = inlined_call_operand.vmem [shape: f32[16,32], index: 6, kind: output, shape index: {}]
  %s7 = sld [smem:[#allocation0]]
  $region42: #{decoder_forward.18} parent=0
    _
  %s9 = ssub.s32 1, %s7
  %s10 = scalar_select 0, %s9, %s7
  // Predicated region
  $region2: #{decoder_forward.18} parent=0 // pred_check
    _
  $region3: #{decoder_forward.18} parent=0 // pred_check_branch
    %12 = sbr.rel (0) target = $region5
  $region4: #{decoder_forward.18} parent=0 // pred_region
    _
  $region5: #{decoder_forward.18} parent=0 // pred_fallthru
    _
  // Predicated region
  $region6: #{decoder_forward.18} parent=0 // pred_check
    _
  $region7: #{decoder_forward.18} parent=0 // pred_check_branch
    %14 = sbr.rel (0) target = $region9
  $region8: #{decoder_forward.18} parent=0 // pred_region
    _
  $region9: #{decoder_forward.18} parent=0 // pred_fallthru
    _
  // Predicated region
  $region10: #{decoder_forward.18} parent=0 // pred_check
    _
  $region11: #{decoder_forward.18} parent=0 // pred_check_branch
    %16 = sbr.rel (0) target = $region13
  $region12: #{decoder_forward.18} parent=0 // pred_region
    _
  $region13: #{decoder_forward.18} parent=0 // pred_fallthru
    _
  // Predicated region
  $region14: #{decoder_forward.18} parent=0 // pred_check
    _
  $region15: #{decoder_forward.18} parent=0 // pred_check_branch
    %18 = sbr.rel (0) target = $region17
  $region16: #{decoder_forward.18} parent=0 // pred_region
    _
  $region17: #{decoder_forward.18} parent=0 // pred_fallthru
    _
  // Predicated region
  $region18: #{decoder_forward.18} parent=0 // pred_check
    _
  $region19: #{decoder_forward.18} parent=0 // pred_check_branch
    %20 = sbr.rel (0) target = $region21
  $region20: #{decoder_forward.18} parent=0 // pred_region
    _
  $region21: #{decoder_forward.18} parent=0 // pred_fallthru
    _
  // Predicated region
  $region22: #{decoder_forward.18} parent=0 // pred_check
    _
  $region23: #{decoder_forward.18} parent=0 // pred_check_branch
    %22 = sbr.rel (0) target = $region25
  $region24: #{decoder_forward.18} parent=0 // pred_region
    _
  $region25: #{decoder_forward.18} parent=0 // pred_fallthru
    _
  %p24 = scmp.eq.s32.totalorder 0, 0
  // Predicated region
  $region26: #{decoder_forward.18} parent=0 // pred_check
    %p25 = pneg %p24
  $region27: #{decoder_forward.18} parent=0 // pred_check_branch
    %27 = sbr.rel (%p25) target = $region29
  $region28: #{decoder_forward.18} parent=0 // pred_region
    %vm28 = vcmask 261120
    %29 = vst.msk [vmem:[#allocation2] sm:$0xff] %vm28, 0.0
    %30 = vst.msk [vmem:[#allocation2 + $0x8] sm:$0xff] %vm28, 0.0
  $region29: #{decoder_forward.18} parent=0 // pred_fallthru
    _
  %v31 = vld [vmem:[#allocation2] sm:$0xff]
  %v32 = vld [vmem:[#allocation2 + $0x8] sm:$0xff]
  %v33 = vld [vmem:[%s0] sm:$0xf]
  %v34 = vld [vmem:[%s0 + $0x4] sm:$0xf]
  %v35 = vld [vmem:[%s1] sm:$0xf]
  %v36 = vld [vmem:[%s1 + $0x4] sm:$0xf]
  %v37 = vld [vmem:[%s1 + $0x8] sm:$0xf]
  %v38 = vld [vmem:[%s1 + $0xc] sm:$0xf]
  %v41 = vunpack.c.l.b16 %v33
  %v42 = vunpack.c.l.b16 %v34
  %v43 = vpack.c.b16 %v42, %v41
  %v48 = vunpack.c.l.b16 %v35
  %v49 = vunpack.c.l.b16 %v36
  %v50 = vunpack.c.l.b16 %v37
  %v51 = vunpack.c.l.b16 %v38
  %v52 = vpack.c.b16 %v49, %v48
  %v53 = vpack.c.b16 %v51, %v50
  %vm56 = vcmask 261120
  %v58 = vsel %vm56, %v43, 0
  %60 = vmatprep.subr.bf16.mxu0 0
  %61 = vmatpush1.bf16.msra.mxu0 0
  %62 = vmatprep.subr.bf16.mxu0 0
  %63 = vmatpush1.bf16.msra.mxu0 0
  %64 = vmatprep.subr.bf16.mxu0 0
  %65 = vmatpush1.bf16.msra.mxu0 0
  %66 = vmatprep.subr.bf16.mxu0 0
  %67 = vmatpush1.bf16.msra.mxu0 0
  %68 = vmatprep.subr.bf16.mxu0 0
  %69 = vmatpush1.bf16.msra.mxu0 0
  %70 = vmatprep.subr.bf16.mxu0 0
  %71 = vmatpush1.bf16.msra.mxu0 0
  %72 = vmatprep.subr.bf16.mxu0 0
  %73 = vmatpush1.bf16.msra.mxu0 %v53
  %74 = vmatprep.subr.bf16.mxu0 0
  %75 = vmatpush1.bf16.msra.mxu0 %v52
  %76 = vmatprep.subr.bf16.mxu0 0
  %77 = vmatpush2.bf16.msra.mxu0 0
  %78 = vmatprep.subr.bf16.mxu0 0
  %79 = vmatpush2.bf16.msra.mxu0 0
  %80 = vmatprep.subr.bf16.mxu0 0
  %81 = vmatpush2.bf16.msra.mxu0 0
  %82 = vmatprep.subr.bf16.mxu0 0
  %83 = vmatpush2.bf16.msra.mxu0 0
  %84 = vmatprep.subr.bf16.mxu0 0
  %85 = vmatpush2.bf16.msra.mxu0 0
  %86 = vmatprep.subr.bf16.mxu0 0
  %87 = vmatpush2.bf16.msra.mxu0 0
  %88 = vmatprep.subr.bf16.mxu0 0
  %89 = vmatpush2.bf16.msra.mxu0 0
  %90 = vmatprep.subr.bf16.mxu0 0
  %91 = vmatpush2.bf16.msra.mxu0 0
  %92 = vmatprep.mubr.bf16.mxu0 0
  %93 = vmatmul.mubr.bf16.gmra.mxu0 %v58
  %v94 = vpop.f32.mrf.mxu0
  %v95 = vadd.f32 0.0, %v94
  %v96 = vpop.f32.mrf.mxu0
  %v97 = vpop.f32.mrf.mxu0
  %v98 = vadd.f32 0.0, %v97
  %v99 = vpop.f32.mrf.mxu0
  %100 = vdwg.mxu0
  %v101 = vadd.f32 %v31, %v95
  %v102 = vadd.f32 %v32, %v98
  %103 = vst.msk [vmem:[#allocation2] sm:$0xff] %vm56, %v101
  %104 = vst.msk [vmem:[#allocation2 + $0x8] sm:$0xff] %vm56, %v102
  // Predicated region
  $region30: #{decoder_forward.18} parent=0 // pred_check
    %p105 = pneg %p24
  $region31: #{decoder_forward.18} parent=0 // pred_check_branch
    %107 = sbr.rel (%p105) target = $region33
  $region32: #{decoder_forward.18} parent=0 // pred_region
    %v108 = vld [vmem:[#allocation2] sm:$0xff]
    %v109 = vld [vmem:[#allocation2 + $0x8] sm:$0xff]
    %v110 = vld [vmem:[%s2] sm:$0x1]
    %v112 = vlaneseq
    %v113 = vshrl.u32 %v112, 7
    %v114 = vsub.s32 0, %v113
    %v115 = vrot.slane %v110, %v114
    %v117 = vadd.f32 %v108, %v115
    %v118 = vadd.f32 %v109, %v115
    %v119 = vld [vmem:[%s3] sm:$0xff]
    %v120 = vld [vmem:[%s3 + $0x8] sm:$0xff]
    %v121 = vadd.f32 %v117, %v119
    %v122 = vadd.f32 %v118, %v120
    %v123 = vsel %vm56, %v121, 0.0
    %124 = vadd.xlane.f32.xlu0 %v123
    %v125 = vpop.xlane.xlu0 %124
    %v126 = vsel %vm56, %v122, 0.0
    %127 = vadd.xlane.f32.xlu0 %v126
    %v128 = vpop.xlane.xlu0 %127
    %v129 = vrcp.pop 32.0
    %v130 = vmul.f32 %v125, %v129
    %v131 = vmul.f32 %v128, %v129
    %v132 = vsub.f32 %v121, %v130
    %v133 = vsub.f32 %v122, %v131
    %v134 = vmul.f32 %v132, %v132
    %v135 = vmul.f32 %v133, %v133
    %v136 = vsel %vm56, %v134, 0.0
    %137 = vadd.xlane.f32.xlu0 %v136
    %v138 = vpop.xlane.xlu0 %137
    %v139 = vsel %vm56, %v135, 0.0
    %140 = vadd.xlane.f32.xlu0 %v139
    %v141 = vpop.xlane.xlu0 %140
    %v142 = vmul.f32 %v138, %v129
    %v143 = vmul.f32 %v141, %v129
    %v144 = vadd.f32 %v142, 1e-05
    %v145 = vadd.f32 %v143, 1e-05
    %v146 = vrsqrt.pop %v144
    %v147 = vrsqrt.pop %v145
    %v148 = vmul.f32 %v132, %v146
    %v149 = vmul.f32 %v133, %v147
    %v150 = vld [vmem:[%s4] sm:$0x1]
    %v152 = vlaneseq
    %v153 = vshrl.u32 %v152, 7
    %v154 = vsub.s32 0, %v153
    %v155 = vrot.slane %v150, %v154
    %v157 = vmul.f32 %v148, %v155
    %v158 = vmul.f32 %v149, %v155
    %v159 = vld [vmem:[%s5] sm:$0x1]
    %v161 = vlaneseq
    %v162 = vshrl.u32 %v161, 7
    %v163 = vsub.s32 0, %v162
    %v164 = vrot.slane %v159, %v163
    %v166 = vadd.f32 %v157, %v164
    %v167 = vadd.f32 %v158, %v164
    %168 = vst.msk [vmem:[%s6] sm:$0xff] %vm56, %v166
    %169 = vst.msk [vmem:[%s6 + $0x8] sm:$0xff] %vm56, %v167
  $region33: #{decoder_forward.18} parent=0 // pred_fallthru
    _
  // Predicated region
  $region34: #{decoder_forward.18} parent=0 // pred_check
    _
  $region35: #{decoder_forward.18} parent=0 // pred_check_branch
    %171 = sbr.rel (0) target = $region37
  $region36: #{decoder_forward.18} parent=0 // pred_region
    _
  $region37: #{decoder_forward.18} parent=0 // pred_fallthru
    _
  // Predicated region
  $region38: #{decoder_forward.18} parent=0 // pred_check
    _
  $region39: #{decoder_forward.18} parent=0 // pred_check_branch
    %173 = sbr.rel (0) target = $region41
  $region40: #{decoder_forward.18} parent=0 // pred_region
    _
  $region41: #{decoder_forward.18} parent=0 // pred_fallthru
    _

// kernel: decoder_forward.17
$region0: #{decoder_forward.17}
  #allocation0 [shape = 'u32[]', space=smem, size = 0x4, offset = 0x4, fixed_abs, tag = 'smem constant byte address 0x4 - core index']
  #allocation1 [shape = 'u32[144,128]{1,0:T(1,128)}', space=vmem, size = 0x12000, scoped, tag = 'internal scratch']
  #allocation2 [shape = 'f32[8,4]{1,0:T(8,128)}', space=vmem, size = 0x1000, scoped, tag = 'scratch operand']
  #allocation3 [shape = 'f32[8,4]{1,0:T(8,128)}', space=vmem, size = 0x1000, scoped, tag = 'scratch operand']
  #allocation4 [shape = 'f32[8,32]{1,0:T(8,128)}', space=vmem, size = 0x1000, scoped, tag = 'scratch operand']
  %s0 = inlined_call_operand.vmem [shape: bf16[2,8,3,4,8], index: 0, kind: input, shape index: {}, may-alias: {0,1,2}]
  %s1 = inlined_call_operand.vmem [shape: bf16[2,8,3,4,8], index: 1, kind: input, shape index: {}, may-alias: {0,1,2}]
  %s2 = inlined_call_operand.vmem [shape: bf16[2,8,3,4,8], index: 2, kind: input, shape index: {}, may-alias: {0,1,2}]
  %s3 = inlined_call_operand.vmem [shape: bf16[2,8,32], index: 3, kind: output, shape index: {}]
  %s4 = sld [smem:[#allocation0]]
  $region176: #{decoder_forward.17} parent=0
    _
  %s6 = ssub.s32 1, %s4
  %s7 = scalar_select 0, %s6, %s4
  $region1: #{decoder_forward.17} parent=0
    #allocation5 [shape = 'u8[16384]{0}', space=vmem, size = 0x4000, scoped, tag = 'input window, operand 0']
    #allocation6 [shape = 'u8[16384]{0}', space=vmem, size = 0x4000, scoped, tag = 'input window, operand 1']
    #allocation7 [shape = 'u8[16384]{0}', space=vmem, size = 0x4000, scoped, tag = 'input window, operand 2']
    loop: start=0, step=1, limit=4
    $region2: #{decoder_forward.17} parent=1 // loop_pre_header
      _
    $region3: #{decoder_forward.17} parent=1 // loop_header
      %s9 = sphi 0, %s13
      %p10 = scmp.ge.s32.totalorder %s9, 4
      %s16 = sphi 0, %s35
      %s17 = sphi 0, %s31
      %s18 = sphi 0, %s27
      %s19 = sphi 0, %s16
      %s20 = sphi 0, %s17
      %s21 = sphi 0, %s18
      %s22 = sphi 0, %s19
      %s23 = sphi 0, %s20
      %s24 = sphi 0, %s21
      %s40 = sphi 0, %s42
      %s43 = sphi 0, %s40
      %s44 = sphi 0, %s43
      %s60 = sphi 0, %s44
      %s68 = sphi 0, %s70
      %s71 = sphi 0, %s68
      %s72 = sphi 0, %s71
      %s88 = sphi 0, %s72
      %s96 = sphi 0, %s98
      %s99 = sphi 0, %s96
      %s100 = sphi 0, %s99
      %s116 = sphi 0, %s100
      %s124 = sphi 0, %s126
      %s127 = sphi 0, %s124
      %s128 = sphi 0, %s127
      %s144 = sphi 0, %s128
    $region4: #{decoder_forward.17} parent=1 // loop_header_branch
      %12 = sbr.rel (%p10) target = $region8
    $region5: #{decoder_forward.17} parent=1 // loop_body
      %s14 = ssub.s32 %s9, 1
      %s15 = ssub.s32 %s9, 2
      %s25 = sadd.s32 1, %s18
      %p26 = scmp.ge.s32.totalorder %s25, 1
      %s27 = scalar_select %p26, 0, %s25
      %s28 = sadd.s32 1, %s17
      %s29 = scalar_select %p26, %s28, %s17
      %p30 = scmp.ge.s32.totalorder %s29, 1
      %s31 = scalar_select %p30, 0, %s29
      %s32 = sadd.s32 1, %s16
      %s33 = scalar_select %p30, %s32, %s16
      %p34 = scmp.ge.s32.totalorder %s33, 2
      %s35 = scalar_select %p34, 0, %s33
      %s36 = ssub.s32 %s16, %s35
      %s37 = ssub.s32 %s17, %s31
      %s38 = sor.u32 %s36, %s37
      %p39 = scmp.eq.s32.totalorder %s38, 0
      %s41 = sadd.s32 %s40, 1
      %s42 = scalar_select %p39, %s40, %s41
      %p45 = pneg %p39
      %p46 = scmp.eq.s32.totalorder %s9, 1
      %p47 = por %p45, %p46
      %p48 = scmp.ne.s32.totalorder %s40, %s43
      %p49 = scmp.eq.s32.totalorder %s9, 0
      %p50 = por %p48, %p49
      %p51 = scmp.ne.s32.totalorder %s40, %s43
      %p52 = scmp.eq.s32.totalorder %s14, 1
      %p53 = por %p51, %p52
      %p54 = scmp.ne.s32.totalorder %s43, %s44
      %p55 = scmp.eq.s32.totalorder %s14, 0
      %p56 = por %p54, %p55
      %p57 = scmp.ne.s32.totalorder %s43, %s44
      %p58 = scmp.eq.s32.totalorder %s15, 1
      %p59 = por %p57, %p58
      %p61 = scmp.ne.s32.totalorder %s44, %s60
      %p62 = scmp.eq.s32.totalorder %s15, 0
      %p63 = por %p61, %p62
      %s64 = ssub.s32 %s16, %s35
      %s65 = ssub.s32 %s18, %s27
      %s66 = sor.u32 %s64, %s65
      %p67 = scmp.eq.s32.totalorder %s66, 0
      %s69 = sadd.s32 %s68, 1
      %s70 = scalar_select %p67, %s68, %s69
      %p73 = pneg %p67
      %p74 = scmp.eq.s32.totalorder %s9, 1
      %p75 = por %p73, %p74
      %p76 = scmp.ne.s32.totalorder %s68, %s71
      %p77 = scmp.eq.s32.totalorder %s9, 0
      %p78 = por %p76, %p77
      %p79 = scmp.ne.s32.totalorder %s68, %s71
      %p80 = scmp.eq.s32.totalorder %s14, 1
      %p81 = por %p79, %p80
      %p82 = scmp.ne.s32.totalorder %s71, %s72
      %p83 = scmp.eq.s32.totalorder %s14, 0
      %p84 = por %p82, %p83
      %p85 = scmp.ne.s32.totalorder %s71, %s72
      %p86 = scmp.eq.s32.totalorder %s15, 1
      %p87 = por %p85, %p86
      %p89 = scmp.ne.s32.totalorder %s72, %s88
      %p90 = scmp.eq.s32.totalorder %s15, 0
      %p91 = por %p89, %p90
      %s92 = ssub.s32 %s16, %s35
      %s93 = ssub.s32 %s18, %s27
      %s94 = sor.u32 %s92, %s93
      %p95 = scmp.eq.s32.totalorder %s94, 0
      %s97 = sadd.s32 %s96, 1
      %s98 = scalar_select %p95, %s96, %s97
      %p101 = pneg %p95
      %p102 = scmp.eq.s32.totalorder %s9, 1
      %p103 = por %p101, %p102
      %p104 = scmp.ne.s32.totalorder %s96, %s99
      %p105 = scmp.eq.s32.totalorder %s9, 0
      %p106 = por %p104, %p105
      %p107 = scmp.ne.s32.totalorder %s96, %s99
      %p108 = scmp.eq.s32.totalorder %s14, 1
      %p109 = por %p107, %p108
      %p110 = scmp.ne.s32.totalorder %s99, %s100
      %p111 = scmp.eq.s32.totalorder %s14, 0
      %p112 = por %p110, %p111
      %p113 = scmp.ne.s32.totalorder %s99, %s100
      %p114 = scmp.eq.s32.totalorder %s15, 1
      %p115 = por %p113, %p114
      %p117 = scmp.ne.s32.totalorder %s100, %s116
      %p118 = scmp.eq.s32.totalorder %s15, 0
      %p119 = por %p117, %p118
      %s120 = ssub.s32 %s16, %s35
      %s121 = ssub.s32 %s17, %s31
      %s122 = sor.u32 %s120, %s121
      %p123 = scmp.eq.s32.totalorder %s122, 0
      %s125 = sadd.s32 %s124, 1
      %s126 = scalar_select %p123, %s124, %s125
      %p129 = pneg %p123
      %p130 = scmp.eq.s32.totalorder %s9, 1
      %p131 = por %p129, %p130
      %p132 = scmp.ne.s32.totalorder %s124, %s127
      %p133 = scmp.eq.s32.totalorder %s9, 0
      %p134 = por %p132, %p133
      %p135 = scmp.ne.s32.totalorder %s124, %s127
      %p136 = scmp.eq.s32.totalorder %s14, 1
      %p137 = por %p135, %p136
      %p138 = scmp.ne.s32.totalorder %s127, %s128
      %p139 = scmp.eq.s32.totalorder %s14, 0
      %p140 = por %p138, %p139
      %p141 = scmp.ne.s32.totalorder %s127, %s128
      %p142 = scmp.eq.s32.totalorder %s15, 1
      %p143 = por %p141, %p142
      %p145 = scmp.ne.s32.totalorder %s128, %s144
      %p146 = scmp.eq.s32.totalorder %s15, 0
      %p147 = por %p145, %p146
      %p148 = scmp.le.s32.totalorder 1, %s9
      %p149 = scmp.lt.s32.totalorder %s9, 3
      %p150 = pnand %p148, %p149
      %p151 = pneg %p150
      // Predicated region
      $region9: #{decoder_forward.17} parent=5 // pred_check
        _
      $region10: #{decoder_forward.17} parent=5 // pred_check_branch
        %153 = sbr.rel (%p150) target = $region12
      $region11: #{decoder_forward.17} parent=5 // pred_region
        %s154 = ssub.s32 %s9, 1
      $region12: #{decoder_forward.17} parent=5 // pred_fallthru
        _
      %p155 = scmp.lt.s32.totalorder %s9, 2
      // Predicated region
      $region13: #{decoder_forward.17} parent=5 // pred_check
        %p156 = pneg %p155
      $region14: #{decoder_forward.17} parent=5 // pred_check_branch
        %158 = sbr.rel (%p156) target = $region16
      $region15: #{decoder_forward.17} parent=5 // pred_region
        // Predicated region
        $region17: #{decoder_forward.17} parent=15 // pred_check
          %p159 = pneg %p50
        $region18: #{decoder_forward.17} parent=15 // pred_check_branch
          %161 = sbr.rel (%p159) target = $region20
        $region19: #{decoder_forward.17} parent=15 // pred_region
          %s162 = sand.u32 %s40, 1
          %s163 = sand.u32 %s40, 1
          %s164 = smul.addr %s163, 16
          %s165 = scalar_lea.vmem [#allocation5], %s164
          %s166 = smul.u32 8, %s17
          %s167 = smul.addr %s166, 3
          %s168 = smul.addr %s16, 24
          %s169 = sadd.s32 %s167, %s168
          %s170 = smul.addr %s169, 2
          %s171 = scalar_lea.vmem %s0, %s170
          // Predicated region
          $region21: #{decoder_forward.17} parent=19 // pred_check
            _
          $region22: #{decoder_forward.17} parent=19 // pred_check_branch
            %173 = sbr.rel (0) target = $region24
          $region23: #{decoder_forward.17} parent=19 // pred_region
            // Predicated region
            $region25: #{decoder_forward.17} parent=23 // pred_check
              _
            $region26: #{decoder_forward.17} parent=23 // pred_check_branch
              %175 = sbr.rel target = $region28
            $region27: #{decoder_forward.17} parent=23 // pred_region
              // Predicated region
              $region40: #{decoder_forward.17} parent=27 // pred_check
                _
              $region41: #{decoder_forward.17} parent=27 // pred_check_branch
                %205 = sbr.rel (0) target = $region43
              $region42: #{decoder_forward.17} parent=27 // pred_region
                loop: start=0, step=1, limit=1
                $region44: #{decoder_forward.17} parent=42 // loop_pre_header
                  _
                $region45: #{decoder_forward.17} parent=42 // loop_header
                  %s207 = sphi 0, %s211
                  %p208 = scmp.ge.s32.totalorder %s207, 1
                  %s212 = sphi %s171, %s171
                  %s213 = sphi %s165, %s165
                $region46: #{decoder_forward.17} parent=42 // loop_header_branch
                  %210 = sbr.rel (%p208) target = $region50
                $region47: #{decoder_forward.17} parent=42 // loop_body
                  _
                $region48: #{decoder_forward.17} parent=42 // loop_footer
                  %s211 = sadd.s32 1, %s207
                $region49: #{decoder_forward.17} parent=42 // loop_footer_branch
                  %206 = sbr.rel target = $region45
                $region50: #{decoder_forward.17} parent=42 // loop_exit
                  _
                %s215 = ssub.s32 4, 1
                loop: start=0, step=1, limit=1
                $region51: #{decoder_forward.17} parent=42 // loop_pre_header
                  _
                $region52: #{decoder_forward.17} parent=42 // loop_header
                  %s217 = sphi 0, %s221
                  %p218 = scmp.ge.s32.totalorder %s217, 1
                  %s222 = sphi %s171, %s171
                  %s223 = sphi %s165, %s165
                $region53: #{decoder_forward.17} parent=42 // loop_header_branch
                  %220 = sbr.rel (%p218) target = $region57
                $region54: #{decoder_forward.17} parent=42 // loop_body
                  %v224 = vld [vmem:[%s222] sm:%s215]
                  %225 = vst [vmem:[%s223] sm:%s215] %v224
                  %v226 = vld [vmem:[%s222 + $0x6] sm:%s215]
                  %227 = vst [vmem:[%s223 + $0x2] sm:%s215] %v226
                  %v228 = vld [vmem:[%s222 + $0xc] sm:%s215]
                  %229 = vst [vmem:[%s223 + $0x4] sm:%s215] %v228
                  %v230 = vld [vmem:[%s222 + $0x12] sm:%s215]
                  %231 = vst [vmem:[%s223 + $0x6] sm:%s215] %v230
                  %v232 = vld [vmem:[%s222 + $0x18] sm:%s215]
                  %233 = vst [vmem:[%s223 + $0x8] sm:%s215] %v232
                  %v234 = vld [vmem:[%s222 + $0x1e] sm:%s215]
                  %235 = vst [vmem:[%s223 + $0xa] sm:%s215] %v234
                  %v236 = vld [vmem:[%s222 + $0x24] sm:%s215]
                  %237 = vst [vmem:[%s223 + $0xc] sm:%s215] %v236
                  %v238 = vld [vmem:[%s222 + $0x2a] sm:%s215]
                  %239 = vst [vmem:[%s223 + $0xe] sm:%s215] %v238
                $region55: #{decoder_forward.17} parent=42 // loop_footer
                  %s221 = sadd.s32 1, %s217
                $region56: #{decoder_forward.17} parent=42 // loop_footer_branch
                  %216 = sbr.rel target = $region52
                $region57: #{decoder_forward.17} parent=42 // loop_exit
                  _
              $region43: #{decoder_forward.17} parent=27 // pred_fallthru
                _
            $region28: #{decoder_forward.17} parent=23 // pred_fallthru
              _
            // Predicated region
            $region29: #{decoder_forward.17} parent=23 // pred_check
              _
            $region30: #{decoder_forward.17} parent=23 // pred_check_branch
              %177 = sbr.rel (0) target = $region32
            $region31: #{decoder_forward.17} parent=23 // pred_region
              %s179 = ssub.s32 4, 1
              loop: start=0, step=1, limit=1
              $region33: #{decoder_forward.17} parent=31 // loop_pre_header
                _
              $region34: #{decoder_forward.17} parent=31 // loop_header
                %s181 = sphi 0, %s185
                %p182 = scmp.ge.s32.totalorder %s181, 1
                %s186 = sphi %s171, %s171
                %s187 = sphi %s165, %s165
              $region35: #{decoder_forward.17} parent=31 // loop_header_branch
                %184 = sbr.rel (%p182) target = $region39
              $region36: #{decoder_forward.17} parent=31 // loop_body
                %v188 = vld [vmem:[%s186] sm:%s179]
                %189 = vst [vmem:[%s187] sm:%s179] %v188
                %v190 = vld [vmem:[%s186 + $0x6] sm:%s179]
                %191 = vst [vmem:[%s187 + $0x2] sm:%s179] %v190
                %v192 = vld [vmem:[%s186 + $0xc] sm:%s179]
                %193 = vst [vmem:[%s187 + $0x4] sm:%s179] %v192
                %v194 = vld [vmem:[%s186 + $0x12] sm:%s179]
                %195 = vst [vmem:[%s187 + $0x6] sm:%s179] %v194
                %v196 = vld [vmem:[%s186 + $0x18] sm:%s179]
                %197 = vst [vmem:[%s187 + $0x8] sm:%s179] %v196
                %v198 = vld [vmem:[%s186 + $0x1e] sm:%s179]
                %199 = vst [vmem:[%s187 + $0xa] sm:%s179] %v198
                %v200 = vld [vmem:[%s186 + $0x24] sm:%s179]
                %201 = vst [vmem:[%s187 + $0xc] sm:%s179] %v200
                %v202 = vld [vmem:[%s186 + $0x2a] sm:%s179]
                %203 = vst [vmem:[%s187 + $0xe] sm:%s179] %v202
              $region37: #{decoder_forward.17} parent=31 // loop_footer
                %s185 = sadd.s32 1, %s181
              $region38: #{decoder_forward.17} parent=31 // loop_footer_branch
                %180 = sbr.rel target = $region34
              $region39: #{decoder_forward.17} parent=31 // loop_exit
                _
            $region32: #{decoder_forward.17} parent=23 // pred_fallthru
              _
          $region24: #{decoder_forward.17} parent=19 // pred_fallthru
            _
          %240 = vnop
        $region20: #{decoder_forward.17} parent=15 // pred_fallthru
          _
        // Predicated region
        $region58: #{decoder_forward.17} parent=15 // pred_check
          %p241 = pneg %p78
        $region59: #{decoder_forward.17} parent=15 // pred_check_branch
          %243 = sbr.rel (%p241) target = $region61
        $region60: #{decoder_forward.17} parent=15 // pred_region
          %s244 = sand.u32 %s68, 1
          %s245 = sand.u32 %s68, 1
          %s246 = smul.addr %s245, 16
          %s247 = scalar_lea.vmem [#allocation6], %s246
          %s248 = smul.u32 8, %s18
          %s249 = smul.addr %s248, 3
          %s250 = sadd.s32 1, %s249
          %s251 = smul.addr %s16, 24
          %s252 = sadd.s32 %s250, %s251
          %s253 = smul.addr %s252, 2
          %s254 = scalar_lea.vmem %s1, %s253
          // Predicated region
          $region62: #{decoder_forward.17} parent=60 // pred_check
            _
          $region63: #{decoder_forward.17} parent=60 // pred_check_branch
            %256 = sbr.rel (0) target = $region65
          $region64: #{decoder_forward.17} parent=60 // pred_region
            // Predicated region
            $region66: #{decoder_forward.17} parent=64 // pred_check
              _
            $region67: #{decoder_forward.17} parent=64 // pred_check_branch
              %258 = sbr.rel target = $region69
            $region68: #{decoder_forward.17} parent=64 // pred_region
              // Predicated region
              $region81: #{decoder_forward.17} parent=68 // pred_check
                _
              $region82: #{decoder_forward.17} parent=68 // pred_check_branch
                %288 = sbr.rel (0) target = $region84
              $region83: #{decoder_forward.17} parent=68 // pred_region
                loop: start=0, step=1, limit=1
                $region85: #{decoder_forward.17} parent=83 // loop_pre_header
                  _
                $region86: #{decoder_forward.17} parent=83 // loop_header
                  %s290 = sphi 0, %s294
                  %p291 = scmp.ge.s32.totalorder %s290, 1
                  %s295 = sphi %s254, %s254
                  %s296 = sphi %s247, %s247
                $region87: #{decoder_forward.17} parent=83 // loop_header_branch
                  %293 = sbr.rel (%p291) target = $region91
                $region88: #{decoder_forward.17} parent=83 // loop_body
                  _
                $region89: #{decoder_forward.17} parent=83 // loop_footer
                  %s294 = sadd.s32 1, %s290
                $region90: #{decoder_forward.17} parent=83 // loop_footer_branch
                  %289 = sbr.rel target = $region86
                $region91: #{decoder_forward.17} parent=83 // loop_exit
                  _
                %s298 = ssub.s32 4, 1
                loop: start=0, step=1, limit=1
                $region92: #{decoder_forward.17} parent=83 // loop_pre_header
                  _
                $region93: #{decoder_forward.17} parent=83 // loop_header
                  %s300 = sphi 0, %s304
                  %p301 = scmp.ge.s32.totalorder %s300, 1
                  %s305 = sphi %s254, %s254
                  %s306 = sphi %s247, %s247
                $region94: #{decoder_forward.17} parent=83 // loop_header_branch
                  %303 = sbr.rel (%p301) target = $region98
                $region95: #{decoder_forward.17} parent=83 // loop_body
                  %v307 = vld [vmem:[%s305] sm:%s298]
                  %308 = vst [vmem:[%s306] sm:%s298] %v307
                  %v309 = vld [vmem:[%s305 + $0x6] sm:%s298]
                  %310 = vst [vmem:[%s306 + $0x2] sm:%s298] %v309
                  %v311 = vld [vmem:[%s305 + $0xc] sm:%s298]
                  %312 = vst [vmem:[%s306 + $0x4] sm:%s298] %v311
                  %v313 = vld [vmem:[%s305 + $0x12] sm:%s298]
                  %314 = vst [vmem:[%s306 + $0x6] sm:%s298] %v313
                  %v315 = vld [vmem:[%s305 + $0x18] sm:%s298]
                  %316 = vst [vmem:[%s306 + $0x8] sm:%s298] %v315
                  %v317 = vld [vmem:[%s305 + $0x1e] sm:%s298]
                  %318 = vst [vmem:[%s306 + $0xa] sm:%s298] %v317
                  %v319 = vld [vmem:[%s305 + $0x24] sm:%s298]
                  %320 = vst [vmem:[%s306 + $0xc] sm:%s298] %v319
                  %v321 = vld [vmem:[%s305 + $0x2a] sm:%s298]
                  %322 = vst [vmem:[%s306 + $0xe] sm:%s298] %v321
                $region96: #{decoder_forward.17} parent=83 // loop_footer
                  %s304 = sadd.s32 1, %s300
                $region97: #{decoder_forward.17} parent=83 // loop_footer_branch
                  %299 = sbr.rel target = $region93
                $region98: #{decoder_forward.17} parent=83 // loop_exit
                  _
              $region84: #{decoder_forward.17} parent=68 // pred_fallthru
                _
            $region69: #{decoder_forward.17} parent=64 // pred_fallthru
              _
            // Predicated region
            $region70: #{decoder_forward.17} parent=64 // pred_check
              _
            $region71: #{decoder_forward.17} parent=64 // pred_check_branch
              %260 = sbr.rel (0) target = $region73
            $region72: #{decoder_forward.17} parent=64 // pred_region
              %s262 = ssub.s32 4, 1
              loop: start=0, step=1, limit=1
              $region74: #{decoder_forward.17} parent=72 // loop_pre_header
                _
              $region75: #{decoder_forward.17} parent=72 // loop_header
                %s264 = sphi 0, %s268
                %p265 = scmp.ge.s32.totalorder %s264, 1
                %s269 = sphi %s254, %s254
                %s270 = sphi %s247, %s247
              $region76: #{decoder_forward.17} parent=72 // loop_header_branch
                %267 = sbr.rel (%p265) target = $region80
              $region77: #{decoder_forward.17} parent=72 // loop_body
                %v271 = vld [vmem:[%s269] sm:%s262]
                %272 = vst [vmem:[%s270] sm:%s262] %v271
                %v273 = vld [vmem:[%s269 + $0x6] sm:%s262]
                %274 = vst [vmem:[%s270 + $0x2] sm:%s262] %v273
                %v275 = vld [vmem:[%s269 + $0xc] sm:%s262]
                %276 = vst [vmem:[%s270 + $0x4] sm:%s262] %v275
                %v277 = vld [vmem:[%s269 + $0x12] sm:%s262]
                %278 = vst [vmem:[%s270 + $0x6] sm:%s262] %v277
                %v279 = vld [vmem:[%s269 + $0x18] sm:%s262]
                %280 = vst [vmem:[%s270 + $0x8] sm:%s262] %v279
                %v281 = vld [vmem:[%s269 + $0x1e] sm:%s262]
                %282 = vst [vmem:[%s270 + $0xa] sm:%s262] %v281
                %v283 = vld [vmem:[%s269 + $0x24] sm:%s262]
                %284 = vst [vmem:[%s270 + $0xc] sm:%s262] %v283
                %v285 = vld [vmem:[%s269 + $0x2a] sm:%s262]
                %286 = vst [vmem:[%s270 + $0xe] sm:%s262] %v285
              $region78: #{decoder_forward.17} parent=72 // loop_footer
                %s268 = sadd.s32 1, %s264
              $region79: #{decoder_forward.17} parent=72 // loop_footer_branch
                %263 = sbr.rel target = $region75
              $region80: #{decoder_forward.17} parent=72 // loop_exit
                _
            $region73: #{decoder_forward.17} parent=64 // pred_fallthru
              _
          $region65: #{decoder_forward.17} parent=60 // pred_fallthru
            _
          %323 = vnop
        $region61: #{decoder_forward.17} parent=15 // pred_fallthru
          _
        // Predicated region
        $region99: #{decoder_forward.17} parent=15 // pred_check
          %p324 = pneg %p106
        $region100: #{decoder_forward.17} parent=15 // pred_check_branch
          %326 = sbr.rel (%p324) target = $region102
        $region101: #{decoder_forward.17} parent=15 // pred_region
          %s327 = sand.u32 %s96, 1
          %s328 = sand.u32 %s96, 1
          %s329 = smul.addr %s328, 16
          %s330 = scalar_lea.vmem [#allocation7], %s329
          %s331 = smul.u32 8, %s18
          %s332 = smul.addr %s331, 3
          %s333 = sadd.s32 2, %s332
          %s334 = smul.addr %s16, 24
          %s335 = sadd.s32 %s333, %s334
          %s336 = smul.addr %s335, 2
          %s337 = scalar_lea.vmem %s2, %s336
          // Predicated region
          $region103: #{decoder_forward.17} parent=101 // pred_check
            _
          $region104: #{decoder_forward.17} parent=101 // pred_check_branch
            %339 = sbr.rel (0) target = $region106
          $region105: #{decoder_forward.17} parent=101 // pred_region
            // Predicated region
            $region107: #{decoder_forward.17} parent=105 // pred_check
              _
            $region108: #{decoder_forward.17} parent=105 // pred_check_branch
              %341 = sbr.rel target = $region110
            $region109: #{decoder_forward.17} parent=105 // pred_region
              // Predicated region
              $region122: #{decoder_forward.17} parent=109 // pred_check
                _
              $region123: #{decoder_forward.17} parent=109 // pred_check_branch
                %371 = sbr.rel (0) target = $region125
              $region124: #{decoder_forward.17} parent=109 // pred_region
                loop: start=0, step=1, limit=1
                $region126: #{decoder_forward.17} parent=124 // loop_pre_header
                  _
                $region127: #{decoder_forward.17} parent=124 // loop_header
                  %s373 = sphi 0, %s377
                  %p374 = scmp.ge.s32.totalorder %s373, 1
                  %s378 = sphi %s337, %s337
                  %s379 = sphi %s330, %s330
                $region128: #{decoder_forward.17} parent=124 // loop_header_branch
                  %376 = sbr.rel (%p374) target = $region132
                $region129: #{decoder_forward.17} parent=124 // loop_body
                  _
                $region130: #{decoder_forward.17} parent=124 // loop_footer
                  %s377 = sadd.s32 1, %s373
                $region131: #{decoder_forward.17} parent=124 // loop_footer_branch
                  %372 = sbr.rel target = $region127
                $region132: #{decoder_forward.17} parent=124 // loop_exit
                  _
                %s381 = ssub.s32 4, 1
                loop: start=0, step=1, limit=1
                $region133: #{decoder_forward.17} parent=124 // loop_pre_header
                  _
                $region134: #{decoder_forward.17} parent=124 // loop_header
                  %s383 = sphi 0, %s387
                  %p384 = scmp.ge.s32.totalorder %s383, 1
                  %s388 = sphi %s337, %s337
                  %s389 = sphi %s330, %s330
                $region135: #{decoder_forward.17} parent=124 // loop_header_branch
                  %386 = sbr.rel (%p384) target = $region139
                $region136: #{decoder_forward.17} parent=124 // loop_body
                  %v390 = vld [vmem:[%s388] sm:%s381]
                  %391 = vst [vmem:[%s389] sm:%s381] %v390
                  %v392 = vld [vmem:[%s388 + $0x6] sm:%s381]
                  %393 = vst [vmem:[%s389 + $0x2] sm:%s381] %v392
                  %v394 = vld [vmem:[%s388 + $0xc] sm:%s381]
                  %395 = vst [vmem:[%s389 + $0x4] sm:%s381] %v394
                  %v396 = vld [vmem:[%s388 + $0x12] sm:%s381]
                  %397 = vst [vmem:[%s389 + $0x6] sm:%s381] %v396
                  %v398 = vld [vmem:[%s388 + $0x18] sm:%s381]
                  %399 = vst [vmem:[%s389 + $0x8] sm:%s381] %v398
                  %v400 = vld [vmem:[%s388 + $0x1e] sm:%s381]
                  %401 = vst [vmem:[%s389 + $0xa] sm:%s381] %v400
                  %v402 = vld [vmem:[%s388 + $0x24] sm:%s381]
                  %403 = vst [vmem:[%s389 + $0xc] sm:%s381] %v402
                  %v404 = vld [vmem:[%s388 + $0x2a] sm:%s381]
                  %405 = vst [vmem:[%s389 + $0xe] sm:%s381] %v404
                $region137: #{decoder_forward.17} parent=124 // loop_footer
                  %s387 = sadd.s32 1, %s383
                $region138: #{decoder_forward.17} parent=124 // loop_footer_branch
                  %382 = sbr.rel target = $region134
                $region139: #{decoder_forward.17} parent=124 // loop_exit
                  _
              $region125: #{decoder_forward.17} parent=109 // pred_fallthru
                _
            $region110: #{decoder_forward.17} parent=105 // pred_fallthru
              _
            // Predicated region
            $region111: #{decoder_forward.17} parent=105 // pred_check
              _
            $region112: #{decoder_forward.17} parent=105 // pred_check_branch
              %343 = sbr.rel (0) target = $region114
            $region113: #{decoder_forward.17} parent=105 // pred_region
              %s345 = ssub.s32 4, 1
              loop: start=0, step=1, limit=1
              $region115: #{decoder_forward.17} parent=113 // loop_pre_header
                _
              $region116: #{decoder_forward.17} parent=113 // loop_header
                %s347 = sphi 0, %s351
                %p348 = scmp.ge.s32.totalorder %s347, 1
                %s352 = sphi %s337, %s337
                %s353 = sphi %s330, %s330
              $region117: #{decoder_forward.17} parent=113 // loop_header_branch
                %350 = sbr.rel (%p348) target = $region121
              $region118: #{decoder_forward.17} parent=113 // loop_body
                %v354 = vld [vmem:[%s352] sm:%s345]
                %355 = vst [vmem:[%s353] sm:%s345] %v354
                %v356 = vld [vmem:[%s352 + $0x6] sm:%s345]
                %357 = vst [vmem:[%s353 + $0x2] sm:%s345] %v356
                %v358 = vld [vmem:[%s352 + $0xc] sm:%s345]
                %359 = vst [vmem:[%s353 + $0x4] sm:%s345] %v358
                %v360 = vld [vmem:[%s352 + $0x12] sm:%s345]
                %361 = vst [vmem:[%s353 + $0x6] sm:%s345] %v360
                %v362 = vld [vmem:[%s352 + $0x18] sm:%s345]
                %363 = vst [vmem:[%s353 + $0x8] sm:%s345] %v362
                %v364 = vld [vmem:[%s352 + $0x1e] sm:%s345]
                %365 = vst [vmem:[%s353 + $0xa] sm:%s345] %v364
                %v366 = vld [vmem:[%s352 + $0x24] sm:%s345]
                %367 = vst [vmem:[%s353 + $0xc] sm:%s345] %v366
                %v368 = vld [vmem:[%s352 + $0x2a] sm:%s345]
                %369 = vst [vmem:[%s353 + $0xe] sm:%s345] %v368
              $region119: #{decoder_forward.17} parent=113 // loop_footer
                %s351 = sadd.s32 1, %s347
              $region120: #{decoder_forward.17} parent=113 // loop_footer_branch
                %346 = sbr.rel target = $region116
              $region121: #{decoder_forward.17} parent=113 // loop_exit
                _
            $region114: #{decoder_forward.17} parent=105 // pred_fallthru
              _
          $region106: #{decoder_forward.17} parent=101 // pred_fallthru
            _
          %406 = vnop
        $region102: #{decoder_forward.17} parent=15 // pred_fallthru
          _
      $region16: #{decoder_forward.17} parent=5 // pred_fallthru
        _
      %p407 = scmp.le.s32.totalorder 1, %s9
      %p408 = scmp.lt.s32.totalorder %s9, 3
      %p409 = pnand %p407, %p408
      %p410 = pneg %p409
      // Predicated region
      $region140: #{decoder_forward.17} parent=5 // pred_check
        _
      $region141: #{decoder_forward.17} parent=5 // pred_check_branch
        %412 = sbr.rel (%p409) target = $region143
      $region142: #{decoder_forward.17} parent=5 // pred_region
        %s413 = ssub.s32 %s9, 1
        %s414 = sand.u32 %s43, 1
        %s415 = sand.u32 %s43, 1
        %s416 = smul.addr %s415, 16
        %s417 = scalar_lea.vmem [#allocation5], %s416
        // Predicated region
        $region144: #{decoder_forward.17} parent=142 // pred_check
          %p418 = pneg %p56
        $region145: #{decoder_forward.17} parent=142 // pred_check_branch
          %420 = sbr.rel (%p418) target = $region147
        $region146: #{decoder_forward.17} parent=142 // pred_region
          _
        $region147: #{decoder_forward.17} parent=142 // pred_fallthru
          _
        %s421 = sand.u32 %s71, 1
        %s422 = sand.u32 %s71, 1
        %s423 = smul.addr %s422, 16
        %s424 = scalar_lea.vmem [#allocation6], %s423
        // Predicated region
        $region148: #{decoder_forward.17} parent=142 // pred_check
          %p425 = pneg %p84
        $region149: #{decoder_forward.17} parent=142 // pred_check_branch
          %427 = sbr.rel (%p425) target = $region151
        $region150: #{decoder_forward.17} parent=142 // pred_region
          _
        $region151: #{decoder_forward.17} parent=142 // pred_fallthru
          _
        %s428 = sand.u32 %s99, 1
        %s429 = sand.u32 %s99, 1
        %s430 = smul.addr %s429, 16
        %s431 = scalar_lea.vmem [#allocation7], %s430
        // Predicated region
        $region152: #{decoder_forward.17} parent=142 // pred_check
          %p432 = pneg %p112
        $region153: #{decoder_forward.17} parent=142 // pred_check_branch
          %434 = sbr.rel (%p432) target = $region155
        $region154: #{decoder_forward.17} parent=142 // pred_region
          _
        $region155: #{decoder_forward.17} parent=142 // pred_fallthru
          _
        %s435 = sand.u32 %s43, 1
        %s436 = sand.u32 %s43, 1
        %s437 = smul.addr %s436, 16
        %s438 = scalar_lea.vmem [#allocation5], %s437
        %p439 = pneg %p56
        %p440 = pneg %p53
        %s441 = sand.u32 %s71, 1
        %s442 = sand.u32 %s71, 1
        %s443 = smul.addr %s442, 16
        %s444 = scalar_lea.vmem [#allocation6], %s443
        %p445 = pneg %p84
        %p446 = pneg %p81
        %s447 = sand.u32 %s99, 1
        %s448 = sand.u32 %s99, 1
        %s449 = smul.addr %s448, 16
        %s450 = scalar_lea.vmem [#allocation7], %s449
        %p451 = pneg %p112
        %p452 = pneg %p109
        %p453 = pneg %p140
        %p454 = pneg %p137
        %p455 = scmp.lt.s32.totalorder %s19, 1
        %s456 = scalar_select %p455, %s19, 1
        %p457 = scmp.lt.s32.totalorder %s20, 0
        %s458 = scalar_select %p457, %s20, 0
        %s459 = sadd.s32 %s458, %s456
        %s460 = smul.addr %s459, 4
        %s461 = scalar_lea.vmem %s3, %s460
        %s462 = smul.u32 8, %s20
        %s463 = smul.u32 8, %s21
        %s464 = smul.u32 8, %s21
        %p465 = scmp.lt.s32.totalorder %s19, 1
        %s466 = scalar_select %p465, %s19, 1
        %p467 = scmp.lt.s32.totalorder %s20, 0
        %s468 = scalar_select %p467, %s20, 0
        %s469 = sadd.s32 %s468, %s466
        %s470 = smul.addr %s469, 4
        %s471 = scalar_lea.vmem %s3, %s470
        %p473 = scmp.eq.s32.totalorder %s21, 0
        // Predicated region
        $region156: #{decoder_forward.17} parent=142 // pred_check
          %p474 = pneg %p473
        $region157: #{decoder_forward.17} parent=142 // pred_check_branch
          %476 = sbr.rel (%p474) target = $region159
        $region158: #{decoder_forward.17} parent=142 // pred_region
          %vm477 = vcmask 31744
          %478 = vst.msk [vmem:[#allocation2] sm:$0xff] %vm477, -inf
          %479 = vst.msk [vmem:[#allocation3] sm:$0xff] %vm477, 0.0
          %vm480 = vcmask 261120
          %481 = vst.msk [vmem:[#allocation4] sm:$0xff] %vm480, 0.0
        $region159: #{decoder_forward.17} parent=142 // pred_fallthru
          _
        %v482 = vld [vmem:[%s417] sm:$0x1]
        %v483 = vld [vmem:[%s417 + $0x2] sm:$0x1]
        %v484 = vld [vmem:[%s417 + $0x4] sm:$0x1]
        %v485 = vld [vmem:[%s417 + $0x6] sm:$0x1]
        %v486 = vld [vmem:[%s417 + $0x8] sm:$0x1]
        %v487 = vld [vmem:[%s417 + $0xa] sm:$0x1]
        %v488 = vld [vmem:[%s417 + $0xc] sm:$0x1]
        %v489 = vld [vmem:[%s417 + $0xe] sm:$0x1]
        %v490 = vld [vmem:[%s424] sm:$0x1]
        %v491 = vld [vmem:[%s424 + $0x2] sm:$0x1]
        %v492 = vld [vmem:[%s424 + $0x4] sm:$0x1]
        %v493 = vld [vmem:[%s424 + $0x6] sm:$0x1]
        %v494 = vld [vmem:[%s424 + $0x8] sm:$0x1]
        %v495 = vld [vmem:[%s424 + $0xa] sm:$0x1]
        %v496 = vld [vmem:[%s424 + $0xc] sm:$0x1]
        %v497 = vld [vmem:[%s424 + $0xe] sm:$0x1]
        %v498 = vld [vmem:[%s431] sm:$0x1]
        %v499 = vld [vmem:[%s431 + $0x2] sm:$0x1]
        %v500 = vld [vmem:[%s431 + $0x4] sm:$0x1]
        %v501 = vld [vmem:[%s431 + $0x6] sm:$0x1]
        %v502 = vld [vmem:[%s431 + $0x8] sm:$0x1]
        %v503 = vld [vmem:[%s431 + $0xa] sm:$0x1]
        %v504 = vld [vmem:[%s431 + $0xc] sm:$0x1]
        %v505 = vld [vmem:[%s431 + $0xe] sm:$0x1]
        %v515 = vunpack.c.l.s4 1983009808
        %v516 = vunpack.c.0.s8 %v515
        %v517 = vlaneseq
        %v518 = vshrl.u32 %v517, 7
        %v519 = vsub.s32 %v516, %v518
        %v520 = vrot.slane %v482, %v519
        %v522 = vunpack.c.l.s4 1983009808
        %v523 = vunpack.c.0.s8 %v522
        %v524 = vlaneseq
        %v525 = vshrl.u32 %v524, 7
        %v526 = vsub.s32 %v523, %v525
        %v527 = vrot.slane %v483, %v526
        %v529 = vunpack.c.l.s4 1983009808
        %v530 = vunpack.c.0.s8 %v529
        %v531 = vlaneseq
        %v532 = vshrl.u32 %v531, 7
        %v533 = vsub.s32 %v530, %v532
        %v534 = vrot.slane %v484, %v533
        %v536 = vunpack.c.l.s4 1983009808
        %v537 = vunpack.c.0.s8 %v536
        %v538 = vlaneseq
        %v539 = vshrl.u32 %v538, 7
        %v540 = vsub.s32 %v537, %v539
        %v541 = vrot.slane %v485, %v540
        %v543 = vunpack.c.l.s4 1983009808
        %v544 = vunpack.c.0.s8 %v543
        %v545 = vlaneseq
        %v546 = vshrl.u32 %v545, 7
        %v547 = vsub.s32 %v544, %v546
        %v548 = vrot.slane %v486, %v547
        %v550 = vunpack.c.l.s4 1983009808
        %v551 = vunpack.c.0.s8 %v550
        %v552 = vlaneseq
        %v553 = vshrl.u32 %v552, 7
        %v554 = vsub.s32 %v551, %v553
        %v555 = vrot.slane %v487, %v554
        %v557 = vunpack.c.l.s4 1983009808
        %v558 = vunpack.c.0.s8 %v557
        %v559 = vlaneseq
        %v560 = vshrl.u32 %v559, 7
        %v561 = vsub.s32 %v558, %v560
        %v562 = vrot.slane %v488, %v561
        %v564 = vunpack.c.l.s4 1983009808
        %v565 = vunpack.c.0.s8 %v564
        %v566 = vlaneseq
        %v567 = vshrl.u32 %v566, 7
        %v568 = vsub.s32 %v565, %v567
        %v569 = vrot.slane %v489, %v568
        %v570 = vunpack.c.l.b16 %v520
        %v571 = vunpack.c.l.b16 %v527
        %v572 = vunpack.c.l.b16 %v534
        %v573 = vunpack.c.l.b16 %v541
        %v574 = vunpack.c.l.b16 %v548
        %v575 = vunpack.c.l.b16 %v555
        %v576 = vunpack.c.l.b16 %v562
        %v577 = vunpack.c.l.b16 %v569
        %v578 = vrot.slane %v571, 7
        %vm579 = vcmask 1041409
        %v580 = vsel %vm579, %v578, %v570
        %v581 = vrot.slane %v572, 6
        %vm582 = vcmask 1042434
        %v583 = vsel %vm582, %v581, %v580
        %v584 = vrot.slane %v573, 5
        %vm585 = vcmask 1043459
        %v586 = vsel %vm585, %v584, %v583
        %v587 = vrot.slane %v574, 4
        %vm588 = vcmask 1044484
        %v589 = vsel %vm588, %v587, %v586
        %v590 = vrot.slane %v575, 3
        %vm591 = vcmask 1045509
        %v592 = vsel %vm591, %v590, %v589
        %v593 = vrot.slane %v576, 2
        %vm594 = vcmask 1046534
        %v595 = vsel %vm594, %v593, %v592
        %v596 = vrot.slane %v577, 1
        %vm597 = vcmask 1047559
        %v598 = vsel %vm597, %v596, %v595
        %v599 = vpack.c.b16 %v598, %v598
        %v609 = vunpack.c.l.s4 1983009808
        %v610 = vunpack.c.0.s8 %v609
        %v611 = vlaneseq
        %v612 = vshrl.u32 %v611, 7
        %v613 = vsub.s32 %v610, %v612
        %v614 = vrot.slane %v490, %v613
        %v616 = vunpack.c.l.s4 1983009808
        %v617 = vunpack.c.0.s8 %v616
        %v618 = vlaneseq
        %v619 = vshrl.u32 %v618, 7
        %v620 = vsub.s32 %v617, %v619
        %v621 = vrot.slane %v491, %v620
        %v623 = vunpack.c.l.s4 1983009808
        %v624 = vunpack.c.0.s8 %v623
        %v625 = vlaneseq
        %v626 = vshrl.u32 %v625, 7
        %v627 = vsub.s32 %v624, %v626
        %v628 = vrot.slane %v492, %v627
        %v630 = vunpack.c.l.s4 1983009808
        %v631 = vunpack.c.0.s8 %v630
        %v632 = vlaneseq
        %v633 = vshrl.u32 %v632, 7
        %v634 = vsub.s32 %v631, %v633
        %v635 = vrot.slane %v493, %v634
        %v637 = vunpack.c.l.s4 1983009808
        %v638 = vunpack.c.0.s8 %v637
        %v639 = vlaneseq
        %v640 = vshrl.u32 %v639, 7
        %v641 = vsub.s32 %v638, %v640
        %v642 = vrot.slane %v494, %v641
        %v644 = vunpack.c.l.s4 1983009808
        %v645 = vunpack.c.0.s8 %v644
        %v646 = vlaneseq
        %v647 = vshrl.u32 %v646, 7
        %v648 = vsub.s32 %v645, %v647
        %v649 = vrot.slane %v495, %v648
        %v651 = vunpack.c.l.s4 1983009808
        %v652 = vunpack.c.0.s8 %v651
        %v653 = vlaneseq
        %v654 = vshrl.u32 %v653, 7
        %v655 = vsub.s32 %v652, %v654
        %v656 = vrot.slane %v496, %v655
        %v658 = vunpack.c.l.s4 1983009808
        %v659 = vunpack.c.0.s8 %v658
        %v660 = vlaneseq
        %v661 = vshrl.u32 %v660, 7
        %v662 = vsub.s32 %v659, %v661
        %v663 = vrot.slane %v497, %v662
        %v664 = vunpack.c.l.b16 %v614
        %v665 = vunpack.c.l.b16 %v621
        %v666 = vunpack.c.l.b16 %v628
        %v667 = vunpack.c.l.b16 %v635
        %v668 = vunpack.c.l.b16 %v642
        %v669 = vunpack.c.l.b16 %v649
        %v670 = vunpack.c.l.b16 %v656
        %v671 = vunpack.c.l.b16 %v663
        %v672 = vrot.slane %v665, 7
        %v673 = vsel %vm579, %v672, %v664
        %v674 = vrot.slane %v666, 6
        %v675 = vsel %vm582, %v674, %v673
        %v676 = vrot.slane %v667, 5
        %v677 = vsel %vm585, %v676, %v675
        %v678 = vrot.slane %v668, 4
        %v679 = vsel %vm588, %v678, %v677
        %v680 = vrot.slane %v669, 3
        %v681 = vsel %vm591, %v680, %v679
        %v682 = vrot.slane %v670, 2
        %v683 = vsel %vm594, %v682, %v681
        %v684 = vrot.slane %v671, 1
        %v685 = vsel %vm597, %v684, %v683
        %v686 = vpack.c.b16 %v685, %v685
        %vm687 = vcmask 64512
        %v689 = vsel %vm687, %v599, 0
        %v692 = vsel %vm687, %v686, 0
        %694 = vmatprep.subr.bf16.mxu0 0
        %695 = vmatpush1.bf16.xpose.msra.mxu0 0
        %696 = vmatprep.subr.bf16.mxu0 0
        %697 = vmatpush1.bf16.xpose.msra.mxu0 0
        %698 = vmatprep.subr.bf16.mxu0 0
        %699 = vmatpush1.bf16.xpose.msra.mxu0 0
        %700 = vmatprep.subr.bf16.mxu0 0
        %701 = vmatpush1.bf16.xpose.msra.mxu0 0
        %702 = vmatprep.subr.bf16.mxu0 0
        %703 = vmatpush1.bf16.xpose.msra.mxu0 0
        %704 = vmatprep.subr.bf16.mxu0 0
        %705 = vmatpush1.bf16.xpose.msra.mxu0 0
        %706 = vmatprep.subr.bf16.mxu0 0
        %707 = vmatpush1.bf16.xpose.msra.mxu0 0
        %708 = vmatprep.subr.bf16.mxu0 0
        %709 = vmatpush1.bf16.xpose.msra.mxu0 %v692
        %710 = vmatprep.subr.bf16.mxu0 0
        %711 = vmatpush2.bf16.xpose.msra.mxu0 0
        %712 = vmatprep.subr.bf16.mxu0 0
        %713 = vmatpush2.bf16.xpose.msra.mxu0 0
        %714 = vmatprep.subr.bf16.mxu0 0
        %715 = vmatpush2.bf16.xpose.msra.mxu0 0
        %716 = vmatprep.subr.bf16.mxu0 0
        %717 = vmatpush2.bf16.xpose.msra.mxu0 0
        %718 = vmatprep.subr.bf16.mxu0 0
        %719 = vmatpush2.bf16.xpose.msra.mxu0 0
        %720 = vmatprep.subr.bf16.mxu0 0
        %721 = vmatpush2.bf16.xpose.msra.mxu0 0
        %722 = vmatprep.subr.bf16.mxu0 0
        %723 = vmatpush2.bf16.xpose.msra.mxu0 0
        %724 = vmatprep.subr.bf16.mxu0 0
        %725 = vmatpush2.bf16.xpose.msra.mxu0 0
        %726 = vmatprep.mubr.bf16.mxu0 0
        %727 = vmatmul.mubr.bf16.gmra.mxu0 %v689
        %v728 = vpop.f32.mrf.mxu0
        %v729 = vadd.f32 0.0, %v728
        %v730 = vpop.f32.mrf.mxu0
        %v731 = vpop.f32.mrf.mxu0
        %v732 = vpop.f32.mrf.mxu0
        %733 = vdwg.mxu0
        %v734 = vmul.f32 %v729, 0.35355338
        %v735 = vld [vmem:[#allocation2] sm:$0xff]
        %v736 = vsel %vm687, %v734, -inf
        %737 = vmax.xlane.f32.xlu0 %v736
        %v738 = vpop.xlane.xlu0 %737
        %v739 = vmax.f32 %v735, %v738
        %v740 = vsub.f32 %v735, %v739
        %v741 = vmul.f32 %v740, 1.442695
        %v742 = vpow.pop %v741
        %744 = vset.pattern.permute.xlu0 0
        %745 = vperm.xlu0 %744, %v739
        %v746 = vpop.permute.xlu0 %745
        %v748 = vsub.f32 %v734, %v746
        %v749 = vmul.f32 %v748, 1.442695
        %v750 = vpow.pop %v749
        %v751 = vld [vmem:[#allocation3] sm:$0xff]
        %v752 = vmul.f32 %v742, %v751
        %v753 = vsel %vm687, %v750, 0.0
        %754 = vadd.xlane.f32.xlu0 %v753
        %v755 = vpop.xlane.xlu0 %754
        %v756 = vadd.f32 %v752, %v755
        %vm757 = vcmask 7168
        %758 = vst.msk [vmem:[#allocation3] sm:$0xff] %vm757, %v756
        %v759 = vld [vmem:[#allocation4] sm:$0xff]
        %761 = vset.pattern.permute.xlu0 0
        %762 = vperm.xlu0 %761, %v742
        %v763 = vpop.permute.xlu0 %762
        %v765 = vmul.f32 %v763, %v759
        %v766 = vpack.c.bf16 %v750, %v750
        %v776 = vunpack.c.l.s4 1983009808
        %v777 = vunpack.c.0.s8 %v776
        %v778 = vlaneseq
        %v779 = vshrl.u32 %v778, 7
        %v780 = vsub.s32 %v777, %v779
        %v781 = vrot.slane %v498, %v780
        %v783 = vunpack.c.l.s4 1983009808
        %v784 = vunpack.c.0.s8 %v783
        %v785 = vlaneseq
        %v786 = vshrl.u32 %v785, 7
        %v787 = vsub.s32 %v784, %v786
        %v788 = vrot.slane %v499, %v787
        %v790 = vunpack.c.l.s4 1983009808
        %v791 = vunpack.c.0.s8 %v790
        %v792 = vlaneseq
        %v793 = vshrl.u32 %v792, 7
        %v794 = vsub.s32 %v791, %v793
        %v795 = vrot.slane %v500, %v794
        %v797 = vunpack.c.l.s4 1983009808
        %v798 = vunpack.c.0.s8 %v797
        %v799 = vlaneseq
        %v800 = vshrl.u32 %v799, 7
        %v801 = vsub.s32 %v798, %v800
        %v802 = vrot.slane %v501, %v801
        %v804 = vunpack.c.l.s4 1983009808
        %v805 = vunpack.c.0.s8 %v804
        %v806 = vlaneseq
        %v807 = vshrl.u32 %v806, 7
        %v808 = vsub.s32 %v805, %v807
        %v809 = vrot.slane %v502, %v808
        %v811 = vunpack.c.l.s4 1983009808
        %v812 = vunpack.c.0.s8 %v811
        %v813 = vlaneseq
        %v814 = vshrl.u32 %v813, 7
        %v815 = vsub.s32 %v812, %v814
        %v816 = vrot.slane %v503, %v815
        %v818 = vunpack.c.l.s4 1983009808
        %v819 = vunpack.c.0.s8 %v818
        %v820 = vlaneseq
        %v821 = vshrl.u32 %v820, 7
        %v822 = vsub.s32 %v819, %v821
        %v823 = vrot.slane %v504, %v822
        %v825 = vunpack.c.l.s4 1983009808
        %v826 = vunpack.c.0.s8 %v825
        %v827 = vlaneseq
        %v828 = vshrl.u32 %v827, 7
        %v829 = vsub.s32 %v826, %v828
        %v830 = vrot.slane %v505, %v829
        %v831 = vunpack.c.l.b16 %v781
        %v832 = vunpack.c.l.b16 %v788
        %v833 = vunpack.c.l.b16 %v795
        %v834 = vunpack.c.l.b16 %v802
        %v835 = vunpack.c.l.b16 %v809
        %v836 = vunpack.c.l.b16 %v816
        %v837 = vunpack.c.l.b16 %v823
        %v838 = vunpack.c.l.b16 %v830
        %v839 = vrot.slane %v832, 7
        %v840 = vsel %vm579, %v839, %v831
        %v841 = vrot.slane %v833, 6
        %v842 = vsel %vm582, %v841, %v840
        %v843 = vrot.slane %v834, 5
        %v844 = vsel %vm585, %v843, %v842
        %v845 = vrot.slane %v835, 4
        %v846 = vsel %vm588, %v845, %v844
        %v847 = vrot.slane %v836, 3
        %v848 = vsel %vm591, %v847, %v846
        %v849 = vrot.slane %v837, 2
        %v850 = vsel %vm594, %v849, %v848
        %v851 = vrot.slane %v838, 1
        %v852 = vsel %vm597, %v851, %v850
        %v853 = vpack.c.b16 %v852, %v852
        %v855 = vsel %vm687, %v766, 0
        %vm857 = vcmask 1043456
        %v859 = vsel %vm857, %v853, 0
        %861 = vmatprep.subr.bf16.mxu0 0
        %862 = vmatpush1.bf16.msra.mxu0 0
        %863 = vmatprep.subr.bf16.mxu0 0
        %864 = vmatpush1.bf16.msra.mxu0 0
        %865 = vmatprep.subr.bf16.mxu0 0
        %866 = vmatpush1.bf16.msra.mxu0 0
        %867 = vmatprep.subr.bf16.mxu0 0
        %868 = vmatpush1.bf16.msra.mxu0 0
        %869 = vmatprep.subr.bf16.mxu0 0
        %870 = vmatpush1.bf16.msra.mxu0 0
        %871 = vmatprep.subr.bf16.mxu0 0
        %872 = vmatpush1.bf16.msra.mxu0 0
        %873 = vmatprep.subr.bf16.mxu0 0
        %874 = vmatpush1.bf16.msra.mxu0 0
        %875 = vmatprep.subr.bf16.mxu0 0
        %876 = vmatpush1.bf16.msra.mxu0 %v859
        %877 = vmatprep.subr.bf16.mxu0 0
        %878 = vmatpush2.bf16.msra.mxu0 0
        %879 = vmatprep.subr.bf16.mxu0 0
        %880 = vmatpush2.bf16.msra.mxu0 0
        %881 = vmatprep.subr.bf16.mxu0 0
        %882 = vmatpush2.bf16.msra.mxu0 0
        %883 = vmatprep.subr.bf16.mxu0 0
        %884 = vmatpush2.bf16.msra.mxu0 0
        %885 = vmatprep.subr.bf16.mxu0 0
        %886 = vmatpush2.bf16.msra.mxu0 0
        %887 = vmatprep.subr.bf16.mxu0 0
        %888 = vmatpush2.bf16.msra.mxu0 0
        %889 = vmatprep.subr.bf16.mxu0 0
        %890 = vmatpush2.bf16.msra.mxu0 0
        %891 = vmatprep.subr.bf16.mxu0 0
        %892 = vmatpush2.bf16.msra.mxu0 0
        %893 = vmatprep.mubr.bf16.mxu0 0
        %894 = vmatmul.mubr.bf16.gmra.mxu0 %v855
        %v895 = vpop.f32.mrf.mxu0
        %v896 = vadd.f32 0.0, %v895
        %v897 = vpop.f32.mrf.mxu0
        %v898 = vpop.f32.mrf.mxu0
        %v899 = vpop.f32.mrf.mxu0
        %900 = vdwg.mxu0
        %v901 = vadd.f32 %v765, %v896
        %902 = vst.msk [vmem:[#allocation4] sm:$0xff] %vm687, %v901
        %903 = vst.msk [vmem:[#allocation2] sm:$0xff] %vm757, %v739
        %v904 = vld [vmem:[%s417] sm:$0x1]
        %v905 = vld [vmem:[%s417 + $0x2] sm:$0x1]
        %v906 = vld [vmem:[%s417 + $0x4] sm:$0x1]
        %v907 = vld [vmem:[%s417 + $0x6] sm:$0x1]
        %v908 = vld [vmem:[%s417 + $0x8] sm:$0x1]
        %v909 = vld [vmem:[%s417 + $0xa] sm:$0x1]
        %v910 = vld [vmem:[%s417 + $0xc] sm:$0x1]
        %v911 = vld [vmem:[%s417 + $0xe] sm:$0x1]
        %v912 = vld [vmem:[%s424] sm:$0x1]
        %v913 = vld [vmem:[%s424 + $0x2] sm:$0x1]
        %v914 = vld [vmem:[%s424 + $0x4] sm:$0x1]
        %v915 = vld [vmem:[%s424 + $0x6] sm:$0x1]
        %v916 = vld [vmem:[%s424 + $0x8] sm:$0x1]
        %v917 = vld [vmem:[%s424 + $0xa] sm:$0x1]
        %v918 = vld [vmem:[%s424 + $0xc] sm:$0x1]
        %v919 = vld [vmem:[%s424 + $0xe] sm:$0x1]
        %v920 = vld [vmem:[%s431] sm:$0x1]
        %v921 = vld [vmem:[%s431 + $0x2] sm:$0x1]
        %v922 = vld [vmem:[%s431 + $0x4] sm:$0x1]
        %v923 = vld [vmem:[%s431 + $0x6] sm:$0x1]
        %v924 = vld [vmem:[%s431 + $0x8] sm:$0x1]
        %v925 = vld [vmem:[%s431 + $0xa] sm:$0x1]
        %v926 = vld [vmem:[%s431 + $0xc] sm:$0x1]
        %v927 = vld [vmem:[%s431 + $0xe] sm:$0x1]
        %v937 = vunpack.c.l.s4 1983009808
        %v938 = vunpack.c.0.s8 %v937
        %v939 = vlaneseq
        %v940 = vshrl.u32 %v939, 7
        %v941 = vsub.s32 %v938, %v940
        %v942 = vrot.slane %v904, %v941
        %v944 = vunpack.c.l.s4 1983009808
        %v945 = vunpack.c.0.s8 %v944
        %v946 = vlaneseq
        %v947 = vshrl.u32 %v946, 7
        %v948 = vsub.s32 %v945, %v947
        %v949 = vrot.slane %v905, %v948
        %v951 = vunpack.c.l.s4 1983009808
        %v952 = vunpack.c.0.s8 %v951
        %v953 = vlaneseq
        %v954 = vshrl.u32 %v953, 7
        %v955 = vsub.s32 %v952, %v954
        %v956 = vrot.slane %v906, %v955
        %v958 = vunpack.c.l.s4 1983009808
        %v959 = vunpack.c.0.s8 %v958
        %v960 = vlaneseq
        %v961 = vshrl.u32 %v960, 7
        %v962 = vsub.s32 %v959, %v961
        %v963 = vrot.slane %v907, %v962
        %v965 = vunpack.c.l.s4 1983009808
        %v966 = vunpack.c.0.s8 %v965
        %v967 = vlaneseq
        %v968 = vshrl.u32 %v967, 7
        %v969 = vsub.s32 %v966, %v968
        %v970 = vrot.slane %v908, %v969
        %v972 = vunpack.c.l.s4 1983009808
        %v973 = vunpack.c.0.s8 %v972
        %v974 = vlaneseq
        %v975 = vshrl.u32 %v974, 7
        %v976 = vsub.s32 %v973, %v975
        %v977 = vrot.slane %v909, %v976
        %v979 = vunpack.c.l.s4 1983009808
        %v980 = vunpack.c.0.s8 %v979
        %v981 = vlaneseq
        %v982 = vshrl.u32 %v981, 7
        %v983 = vsub.s32 %v980, %v982
        %v984 = vrot.slane %v910, %v983
        %v986 = vunpack.c.l.s4 1983009808
        %v987 = vunpack.c.0.s8 %v986
        %v988 = vlaneseq
        %v989 = vshrl.u32 %v988, 7
        %v990 = vsub.s32 %v987, %v989
        %v991 = vrot.slane %v911, %v990
        %v992 = vunpack.c.l.b16 %v942
        %v993 = vunpack.c.l.b16 %v949
        %v994 = vunpack.c.l.b16 %v956
        %v995 = vunpack.c.l.b16 %v963
        %v996 = vunpack.c.l.b16 %v970
        %v997 = vunpack.c.l.b16 %v977
        %v998 = vunpack.c.l.b16 %v984
        %v999 = vunpack.c.l.b16 %v991
        %v1000 = vrot.slane %v992, 1
        %v1001 = vsel %vm579, %v993, %v1000
        %v1002 = vrot.slane %v994, 7
        %v1003 = vsel %vm582, %v1002, %v1001
        %v1004 = vrot.slane %v995, 6
        %v1005 = vsel %vm585, %v1004, %v1003
        %v1006 = vrot.slane %v996, 5
        %v1007 = vsel %vm588, %v1006, %v1005
        %v1008 = vrot.slane %v997, 4
        %v1009 = vsel %vm591, %v1008, %v1007
        %v1010 = vrot.slane %v998, 3
        %v1011 = vsel %vm594, %v1010, %v1009
        %v1012 = vrot.slane %v999, 2
        %v1013 = vsel %vm597, %v1012, %v1011
        %v1014 = vpack.c.b16 %v1013, %v1013
        %v1024 = vunpack.c.l.s4 1983009808
        %v1025 = vunpack.c.0.s8 %v1024
        %v1026 = vlaneseq
        %v1027 = vshrl.u32 %v1026, 7
        %v1028 = vsub.s32 %v1025, %v1027
        %v1029 = vrot.slane %v912, %v1028
        %v1031 = vunpack.c.l.s4 1983009808
        %v1032 = vunpack.c.0.s8 %v1031
        %v1033 = vlaneseq
        %v1034 = vshrl.u32 %v1033, 7
        %v1035 = vsub.s32 %v1032, %v1034
        %v1036 = vrot.slane %v913, %v1035
        %v1038 = vunpack.c.l.s4 1983009808
        %v1039 = vunpack.c.0.s8 %v1038
        %v1040 = vlaneseq
        %v1041 = vshrl.u32 %v1040, 7
        %v1042 = vsub.s32 %v1039, %v1041
        %v1043 = vrot.slane %v914, %v1042
        %v1045 = vunpack.c.l.s4 1983009808
        %v1046 = vunpack.c.0.s8 %v1045
        %v1047 = vlaneseq
        %v1048 = vshrl.u32 %v1047, 7
        %v1049 = vsub.s32 %v1046, %v1048
        %v1050 = vrot.slane %v915, %v1049
        %v1052 = vunpack.c.l.s4 1983009808
        %v1053 = vunpack.c.0.s8 %v1052
        %v1054 = vlaneseq
        %v1055 = vshrl.u32 %v1054, 7
        %v1056 = vsub.s32 %v1053, %v1055
        %v1057 = vrot.slane %v916, %v1056
        %v1059 = vunpack.c.l.s4 1983009808
        %v1060 = vunpack.c.0.s8 %v1059
        %v1061 = vlaneseq
        %v1062 = vshrl.u32 %v1061, 7
        %v1063 = vsub.s32 %v1060, %v1062
        %v1064 = vrot.slane %v917, %v1063
        %v1066 = vunpack.c.l.s4 1983009808
        %v1067 = vunpack.c.0.s8 %v1066
        %v1068 = vlaneseq
        %v1069 = vshrl.u32 %v1068, 7
        %v1070 = vsub.s32 %v1067, %v1069
        %v1071 = vrot.slane %v918, %v1070
        %v1073 = vunpack.c.l.s4 1983009808
        %v1074 = vunpack.c.0.s8 %v1073
        %v1075 = vlaneseq
        %v1076 = vshrl.u32 %v1075, 7
        %v1077 = vsub.s32 %v1074, %v1076
        %v1078 = vrot.slane %v919, %v1077
        %v1079 = vunpack.c.l.b16 %v1029
        %v1080 = vunpack.c.l.b16 %v1036
        %v1081 = vunpack.c.l.b16 %v1043
        %v1082 = vunpack.c.l.b16 %v1050
        %v1083 = vunpack.c.l.b16 %v1057
        %v1084 = vunpack.c.l.b16 %v1064
        %v1085 = vunpack.c.l.b16 %v1071
        %v1086 = vunpack.c.l.b16 %v1078
        %v1087 = vrot.slane %v1079, 1
        %v1088 = vsel %vm579, %v1080, %v1087
        %v1089 = vrot.slane %v1081, 7
        %v1090 = vsel %vm582, %v1089, %v1088
        %v1091 = vrot.slane %v1082, 6
        %v1092 = vsel %vm585, %v1091, %v1090
        %v1093 = vrot.slane %v1083, 5
        %v1094 = vsel %vm588, %v1093, %v1092
        %v1095 = vrot.slane %v1084, 4
        %v1096 = vsel %vm591, %v1095, %v1094
        %v1097 = vrot.slane %v1085, 3
        %v1098 = vsel %vm594, %v1097, %v1096
        %v1099 = vrot.slane %v1086, 2
        %v1100 = vsel %vm597, %v1099, %v1098
        %v1101 = vpack.c.b16 %v1100, %v1100
        %v1103 = vsel %vm687, %v1014, 0
        %v1106 = vsel %vm687, %v1101, 0
        %1108 = vmatprep.subr.bf16.mxu0 0
        %1109 = vmatpush1.bf16.xpose.msra.mxu0 0
        %1110 = vmatprep.subr.bf16.mxu0 0
        %1111 = vmatpush1.bf16.xpose.msra.mxu0 0
        %1112 = vmatprep.subr.bf16.mxu0 0
        %1113 = vmatpush1.bf16.xpose.msra.mxu0 0
        %1114 = vmatprep.subr.bf16.mxu0 0
        %1115 = vmatpush1.bf16.xpose.msra.mxu0 0
        %1116 = vmatprep.subr.bf16.mxu0 0
        %1117 = vmatpush1.bf16.xpose.msra.mxu0 0
        %1118 = vmatprep.subr.bf16.mxu0 0
        %1119 = vmatpush1.bf16.xpose.msra.mxu0 0
        %1120 = vmatprep.subr.bf16.mxu0 0
        %1121 = vmatpush1.bf16.xpose.msra.mxu0 0
        %1122 = vmatprep.subr.bf16.mxu0 0
        %1123 = vmatpush1.bf16.xpose.msra.mxu0 %v1106
        %1124 = vmatprep.subr.bf16.mxu0 0
        %1125 = vmatpush2.bf16.xpose.msra.mxu0 0
        %1126 = vmatprep.subr.bf16.mxu0 0
        %1127 = vmatpush2.bf16.xpose.msra.mxu0 0
        %1128 = vmatprep.subr.bf16.mxu0 0
        %1129 = vmatpush2.bf16.xpose.msra.mxu0 0
        %1130 = vmatprep.subr.bf16.mxu0 0
        %1131 = vmatpush2.bf16.xpose.msra.mxu0 0
        %1132 = vmatprep.subr.bf16.mxu0 0
        %1133 = vmatpush2.bf16.xpose.msra.mxu0 0
        %1134 = vmatprep.subr.bf16.mxu0 0
        %1135 = vmatpush2.bf16.xpose.msra.mxu0 0
        %1136 = vmatprep.subr.bf16.mxu0 0
        %1137 = vmatpush2.bf16.xpose.msra.mxu0 0
        %1138 = vmatprep.subr.bf16.mxu0 0
        %1139 = vmatpush2.bf16.xpose.msra.mxu0 0
        %1140 = vmatprep.mubr.bf16.mxu0 0
        %1141 = vmatmul.mubr.bf16.gmra.mxu0 %v1103
        %v1142 = vpop.f32.mrf.mxu0
        %v1143 = vadd.f32 0.0, %v1142
        %v1144 = vpop.f32.mrf.mxu0
        %v1145 = vpop.f32.mrf.mxu0
        %v1146 = vpop.f32.mrf.mxu0
        %1147 = vdwg.mxu0
        %v1148 = vmul.f32 %v1143, 0.35355338
        %v1149 = vld [vmem:[#allocation2] sm:$0xff]
        %v1150 = vsel %vm687, %v1148, -inf
        %1151 = vmax.xlane.f32.xlu0 %v1150
        %v1152 = vpop.xlane.xlu0 %1151
        %v1153 = vmax.f32 %v1149, %v1152
        %v1154 = vsub.f32 %v1149, %v1153
        %v1155 = vmul.f32 %v1154, 1.442695
        %v1156 = vpow.pop %v1155
        %1158 = vset.pattern.permute.xlu0 1
        %1159 = vperm.xlu0 %1158, %v1153
        %v1160 = vpop.permute.xlu0 %1159
        %v1162 = vsub.f32 %v1148, %v1160
        %v1163 = vmul.f32 %v1162, 1.442695
        %v1164 = vpow.pop %v1163
        %v1165 = vld [vmem:[#allocation3] sm:$0xff]
        %v1166 = vmul.f32 %v1156, %v1165
        %v1167 = vsel %vm687, %v1164, 0.0
        %1168 = vadd.xlane.f32.xlu0 %v1167
        %v1169 = vpop.xlane.xlu0 %1168
        %v1170 = vadd.f32 %v1166, %v1169
        %vm1171 = vcmask 15368
        %1172 = vst.msk [vmem:[#allocation3] sm:$0xff] %vm1171, %v1170
        %v1173 = vld [vmem:[#allocation4] sm:$0xff]
        %1175 = vset.pattern.permute.xlu0 1
        %1176 = vperm.xlu0 %1175, %v1156
        %v1177 = vpop.permute.xlu0 %1176
        %v1179 = vmul.f32 %v1177, %v1173
        %v1180 = vpack.c.bf16 %v1164, %v1164
        %v1190 = vunpack.c.l.s4 1983009808
        %v1191 = vunpack.c.0.s8 %v1190
        %v1192 = vlaneseq
        %v1193 = vshrl.u32 %v1192, 7
        %v1194 = vsub.s32 %v1191, %v1193
        %v1195 = vrot.slane %v920, %v1194
        %v1197 = vunpack.c.l.s4 1983009808
        %v1198 = vunpack.c.0.s8 %v1197
        %v1199 = vlaneseq
        %v1200 = vshrl.u32 %v1199, 7
        %v1201 = vsub.s32 %v1198, %v1200
        %v1202 = vrot.slane %v921, %v1201
        %v1204 = vunpack.c.l.s4 1983009808
        %v1205 = vunpack.c.0.s8 %v1204
        %v1206 = vlaneseq
        %v1207 = vshrl.u32 %v1206, 7
        %v1208 = vsub.s32 %v1205, %v1207
        %v1209 = vrot.slane %v922, %v1208
        %v1211 = vunpack.c.l.s4 1983009808
        %v1212 = vunpack.c.0.s8 %v1211
        %v1213 = vlaneseq
        %v1214 = vshrl.u32 %v1213, 7
        %v1215 = vsub.s32 %v1212, %v1214
        %v1216 = vrot.slane %v923, %v1215
        %v1218 = vunpack.c.l.s4 1983009808
        %v1219 = vunpack.c.0.s8 %v1218
        %v1220 = vlaneseq
        %v1221 = vshrl.u32 %v1220, 7
        %v1222 = vsub.s32 %v1219, %v1221
        %v1223 = vrot.slane %v924, %v1222
        %v1225 = vunpack.c.l.s4 1983009808
        %v1226 = vunpack.c.0.s8 %v1225
        %v1227 = vlaneseq
        %v1228 = vshrl.u32 %v1227, 7
        %v1229 = vsub.s32 %v1226, %v1228
        %v1230 = vrot.slane %v925, %v1229
        %v1232 = vunpack.c.l.s4 1983009808
        %v1233 = vunpack.c.0.s8 %v1232
        %v1234 = vlaneseq
        %v1235 = vshrl.u32 %v1234, 7
        %v1236 = vsub.s32 %v1233, %v1235
        %v1237 = vrot.slane %v926, %v1236
        %v1239 = vunpack.c.l.s4 1983009808
        %v1240 = vunpack.c.0.s8 %v1239
        %v1241 = vlaneseq
        %v1242 = vshrl.u32 %v1241, 7
        %v1243 = vsub.s32 %v1240, %v1242
        %v1244 = vrot.slane %v927, %v1243
        %v1245 = vunpack.c.l.b16 %v1195
        %v1246 = vunpack.c.l.b16 %v1202
        %v1247 = vunpack.c.l.b16 %v1209
        %v1248 = vunpack.c.l.b16 %v1216
        %v1249 = vunpack.c.l.b16 %v1223
        %v1250 = vunpack.c.l.b16 %v1230
        %v1251 = vunpack.c.l.b16 %v1237
        %v1252 = vunpack.c.l.b16 %v1244
        %v1253 = vrot.slane %v1245, 1
        %v1254 = vsel %vm579, %v1246, %v1253
        %v1255 = vrot.slane %v1247, 7
        %v1256 = vsel %vm582, %v1255, %v1254
        %v1257 = vrot.slane %v1248, 6
        %v1258 = vsel %vm585, %v1257, %v1256
        %v1259 = vrot.slane %v1249, 5
        %v1260 = vsel %vm588, %v1259, %v1258
        %v1261 = vrot.slane %v1250, 4
        %v1262 = vsel %vm591, %v1261, %v1260
        %v1263 = vrot.slane %v1251, 3
        %v1264 = vsel %vm594, %v1263, %v1262
        %v1265 = vrot.slane %v1252, 2
        %v1266 = vsel %vm597, %v1265, %v1264
        %v1267 = vpack.c.b16 %v1266, %v1266
        %v1269 = vsel %vm687, %v1180, 0
        %v1272 = vsel %vm857, %v1267, 0
        %1274 = vmatprep.subr.bf16.mxu0 0
        %1275 = vmatpush1.bf16.msra.mxu0 0
        %1276 = vmatprep.subr.bf16.mxu0 0
        %1277 = vmatpush1.bf16.msra.mxu0 0
        %1278 = vmatprep.subr.bf16.mxu0 0
        %1279 = vmatpush1.bf16.msra.mxu0 0
        %1280 = vmatprep.subr.bf16.mxu0 0
        %1281 = vmatpush1.bf16.msra.mxu0 0
        %1282 = vmatprep.subr.bf16.mxu0 0
        %1283 = vmatpush1.bf16.msra.mxu0 0
        %1284 = vmatprep.subr.bf16.mxu0 0
        %1285 = vmatpush1.bf16.msra.mxu0 0
        %1286 = vmatprep.subr.bf16.mxu0 0
        %1287 = vmatpush1.bf16.msra.mxu0 0
        %1288 = vmatprep.subr.bf16.mxu0 0
        %1289 = vmatpush1.bf16.msra.mxu0 %v1272
        %1290 = vmatprep.subr.bf16.mxu0 0
        %1291 = vmatpush2.bf16.msra.mxu0 0
        %1292 = vmatprep.subr.bf16.mxu0 0
        %1293 = vmatpush2.bf16.msra.mxu0 0
        %1294 = vmatprep.subr.bf16.mxu0 0
        %1295 = vmatpush2.bf16.msra.mxu0 0
        %1296 = vmatprep.subr.bf16.mxu0 0
        %1297 = vmatpush2.bf16.msra.mxu0 0
        %1298 = vmatprep.subr.bf16.mxu0 0
        %1299 = vmatpush2.bf16.msra.mxu0 0
        %1300 = vmatprep.subr.bf16.mxu0 0
        %1301 = vmatpush2.bf16.msra.mxu0 0
        %1302 = vmatprep.subr.bf16.mxu0 0
        %1303 = vmatpush2.bf16.msra.mxu0 0
        %1304 = vmatprep.subr.bf16.mxu0 0
        %1305 = vmatpush2.bf16.msra.mxu0 0
        %1306 = vmatprep.mubr.bf16.mxu0 0
        %1307 = vmatmul.mubr.bf16.gmra.mxu0 %v1269
        %v1308 = vpop.f32.mrf.mxu0
        %v1309 = vadd.f32 0.0, %v1308
        %v1310 = vpop.f32.mrf.mxu0
        %v1311 = vpop.f32.mrf.mxu0
        %v1312 = vpop.f32.mrf.mxu0
        %1313 = vdwg.mxu0
        %1315 = vrot.lane.b32.xlu0 %v1309, 8
        %v1316 = vpop.permute.xlu0 %1315
        %v1318 = vadd.f32 %v1179, %v1316
        %vm1319 = vcmask 130112
        %1320 = vst.msk [vmem:[#allocation4] sm:$0xff] %vm1319, %v1318
        %1321 = vst.msk [vmem:[#allocation2] sm:$0xff] %vm1171, %v1153
        %v1322 = vld [vmem:[%s417] sm:$0x2]
        %v1323 = vld [vmem:[%s417 + $0x2] sm:$0x2]
        %v1324 = vld [vmem:[%s417 + $0x4] sm:$0x2]
        %v1325 = vld [vmem:[%s417 + $0x6] sm:$0x2]
        %v1326 = vld [vmem:[%s417 + $0x8] sm:$0x2]
        %v1327 = vld [vmem:[%s417 + $0xa] sm:$0x2]
        %v1328 = vld [vmem:[%s417 + $0xc] sm:$0x2]
        %v1329 = vld [vmem:[%s417 + $0xe] sm:$0x2]
        %v1330 = vld [vmem:[%s424] sm:$0x2]
        %v1331 = vld [vmem:[%s424 + $0x2] sm:$0x2]
        %v1332 = vld [vmem:[%s424 + $0x4] sm:$0x2]
        %v1333 = vld [vmem:[%s424 + $0x6] sm:$0x2]
        %v1334 = vld [vmem:[%s424 + $0x8] sm:$0x2]
        %v1335 = vld [vmem:[%s424 + $0xa] sm:$0x2]
        %v1336 = vld [vmem:[%s424 + $0xc] sm:$0x2]
        %v1337 = vld [vmem:[%s424 + $0xe] sm:$0x2]
        %v1338 = vld [vmem:[%s431] sm:$0x2]
        %v1339 = vld [vmem:[%s431 + $0x2] sm:$0x2]
        %v1340 = vld [vmem:[%s431 + $0x4] sm:$0x2]
        %v1341 = vld [vmem:[%s431 + $0x6] sm:$0x2]
        %v1342 = vld [vmem:[%s431 + $0x8] sm:$0x2]
        %v1343 = vld [vmem:[%s431 + $0xa] sm:$0x2]
        %v1344 = vld [vmem:[%s431 + $0xc] sm:$0x2]
        %v1345 = vld [vmem:[%s431 + $0xe] sm:$0x2]
        %v1355 = vunpack.c.l.s4 1983009808
        %v1356 = vunpack.c.0.s8 %v1355
        %v1357 = vlaneseq
        %v1358 = vshrl.u32 %v1357, 7
        %v1359 = vsub.s32 %v1356, %v1358
        %v1360 = vrot.slane %v1322, %v1359
        %v1362 = vunpack.c.l.s4 1983009808
        %v1363 = vunpack.c.0.s8 %v1362
        %v1364 = vlaneseq
        %v1365 = vshrl.u32 %v1364, 7
        %v1366 = vsub.s32 %v1363, %v1365
        %v1367 = vrot.slane %v1323, %v1366
        %v1369 = vunpack.c.l.s4 1983009808
        %v1370 = vunpack.c.0.s8 %v1369
        %v1371 = vlaneseq
        %v1372 = vshrl.u32 %v1371, 7
        %v1373 = vsub.s32 %v1370, %v1372
        %v1374 = vrot.slane %v1324, %v1373
        %v1376 = vunpack.c.l.s4 1983009808
        %v1377 = vunpack.c.0.s8 %v1376
        %v1378 = vlaneseq
        %v1379 = vshrl.u32 %v1378, 7
        %v1380 = vsub.s32 %v1377, %v1379
        %v1381 = vrot.slane %v1325, %v1380
        %v1383 = vunpack.c.l.s4 1983009808
        %v1384 = vunpack.c.0.s8 %v1383
        %v1385 = vlaneseq
        %v1386 = vshrl.u32 %v1385, 7
        %v1387 = vsub.s32 %v1384, %v1386
        %v1388 = vrot.slane %v1326, %v1387
        %v1390 = vunpack.c.l.s4 1983009808
        %v1391 = vunpack.c.0.s8 %v1390
        %v1392 = vlaneseq
        %v1393 = vshrl.u32 %v1392, 7
        %v1394 = vsub.s32 %v1391, %v1393
        %v1395 = vrot.slane %v1327, %v1394
        %v1397 = vunpack.c.l.s4 1983009808
        %v1398 = vunpack.c.0.s8 %v1397
        %v1399 = vlaneseq
        %v1400 = vshrl.u32 %v1399, 7
        %v1401 = vsub.s32 %v1398, %v1400
        %v1402 = vrot.slane %v1328, %v1401
        %v1404 = vunpack.c.l.s4 1983009808
        %v1405 = vunpack.c.0.s8 %v1404
        %v1406 = vlaneseq
        %v1407 = vshrl.u32 %v1406, 7
        %v1408 = vsub.s32 %v1405, %v1407
        %v1409 = vrot.slane %v1329, %v1408
        %v1410 = vunpack.c.l.b16 %v1360
        %v1411 = vunpack.c.l.b16 %v1367
        %v1412 = vunpack.c.l.b16 %v1374
        %v1413 = vunpack.c.l.b16 %v1381
        %v1414 = vunpack.c.l.b16 %v1388
        %v1415 = vunpack.c.l.b16 %v1395
        %v1416 = vunpack.c.l.b16 %v1402
        %v1417 = vunpack.c.l.b16 %v1409
        %v1418 = vrot.slane %v1410, 2
        %v1419 = vrot.slane %v1411, 1
        %v1420 = vsel %vm579, %v1419, %v1418
        %v1421 = vsel %vm582, %v1412, %v1420
        %v1422 = vrot.slane %v1413, 7
        %v1423 = vsel %vm585, %v1422, %v1421
        %v1424 = vrot.slane %v1414, 6
        %v1425 = vsel %vm588, %v1424, %v1423
        %v1426 = vrot.slane %v1415, 5
        %v1427 = vsel %vm591, %v1426, %v1425
        %v1428 = vrot.slane %v1416, 4
        %v1429 = vsel %vm594, %v1428, %v1427
        %v1430 = vrot.slane %v1417, 3
        %v1431 = vsel %vm597, %v1430, %v1429
        %v1432 = vpack.c.b16 %v1431, %v1431
        %v1442 = vunpack.c.l.s4 1983009808
        %v1443 = vunpack.c.0.s8 %v1442
        %v1444 = vlaneseq
        %v1445 = vshrl.u32 %v1444, 7
        %v1446 = vsub.s32 %v1443, %v1445
        %v1447 = vrot.slane %v1330, %v1446
        %v1449 = vunpack.c.l.s4 1983009808
        %v1450 = vunpack.c.0.s8 %v1449
        %v1451 = vlaneseq
        %v1452 = vshrl.u32 %v1451, 7
        %v1453 = vsub.s32 %v1450, %v1452
        %v1454 = vrot.slane %v1331, %v1453
        %v1456 = vunpack.c.l.s4 1983009808
        %v1457 = vunpack.c.0.s8 %v1456
        %v1458 = vlaneseq
        %v1459 = vshrl.u32 %v1458, 7
        %v1460 = vsub.s32 %v1457, %v1459
        %v1461 = vrot.slane %v1332, %v1460
        %v1463 = vunpack.c.l.s4 1983009808
        %v1464 = vunpack.c.0.s8 %v1463
        %v1465 = vlaneseq
        %v1466 = vshrl.u32 %v1465, 7
        %v1467 = vsub.s32 %v1464, %v1466
        %v1468 = vrot.slane %v1333, %v1467
        %v1470 = vunpack.c.l.s4 1983009808
        %v1471 = vunpack.c.0.s8 %v1470
        %v1472 = vlaneseq
        %v1473 = vshrl.u32 %v1472, 7
        %v1474 = vsub.s32 %v1471, %v1473
        %v1475 = vrot.slane %v1334, %v1474
        %v1477 = vunpack.c.l.s4 1983009808
        %v1478 = vunpack.c.0.s8 %v1477
        %v1479 = vlaneseq
        %v1480 = vshrl.u32 %v1479, 7
        %v1481 = vsub.s32 %v1478, %v1480
        %v1482 = vrot.slane %v1335, %v1481
        %v1484 = vunpack.c.l.s4 1983009808
        %v1485 = vunpack.c.0.s8 %v1484
        %v1486 = vlaneseq
        %v1487 = vshrl.u32 %v1486, 7
        %v1488 = vsub.s32 %v1485, %v1487
        %v1489 = vrot.slane %v1336, %v1488
        %v1491 = vunpack.c.l.s4 1983009808
        %v1492 = vunpack.c.0.s8 %v1491
        %v1493 = vlaneseq
        %v1494 = vshrl.u32 %v1493, 7
        %v1495 = vsub.s32 %v1492, %v1494
        %v1496 = vrot.slane %v1337, %v1495
        %v1497 = vunpack.c.l.b16 %v1447
        %v1498 = vunpack.c.l.b16 %v1454
        %v1499 = vunpack.c.l.b16 %v1461
        %v1500 = vunpack.c.l.b16 %v1468
        %v1501 = vunpack.c.l.b16 %v1475
        %v1502 = vunpack.c.l.b16 %v1482
        %v1503 = vunpack.c.l.b16 %v1489
        %v1504 = vunpack.c.l.b16 %v1496
        %v1505 = vrot.slane %v1497, 2
        %v1506 = vrot.slane %v1498, 1
        %v1507 = vsel %vm579, %v1506, %v1505
        %v1508 = vsel %vm582, %v1499, %v1507
        %v1509 = vrot.slane %v1500, 7
        %v1510 = vsel %vm585, %v1509, %v1508
        %v1511 = vrot.slane %v1501, 6
        %v1512 = vsel %vm588, %v1511, %v1510
        %v1513 = vrot.slane %v1502, 5
        %v1514 = vsel %vm591, %v1513, %v1512
        %v1515 = vrot.slane %v1503, 4
        %v1516 = vsel %vm594, %v1515, %v1514
        %v1517 = vrot.slane %v1504, 3
        %v1518 = vsel %vm597, %v1517, %v1516
        %v1519 = vpack.c.b16 %v1518, %v1518
        %v1521 = vsel %vm687, %v1432, 0
        %v1524 = vsel %vm687, %v1519, 0
        %1526 = vmatprep.subr.bf16.mxu0 0
        %1527 = vmatpush1.bf16.xpose.msra.mxu0 0
        %1528 = vmatprep.subr.bf16.mxu0 0
        %1529 = vmatpush1.bf16.xpose.msra.mxu0 0
        %1530 = vmatprep.subr.bf16.mxu0 0
        %1531 = vmatpush1.bf16.xpose.msra.mxu0 0
        %1532 = vmatprep.subr.bf16.mxu0 0
        %1533 = vmatpush1.bf16.xpose.msra.mxu0 0
        %1534 = vmatprep.subr.bf16.mxu0 0
        %1535 = vmatpush1.bf16.xpose.msra.mxu0 0
        %1536 = vmatprep.subr.bf16.mxu0 0
        %1537 = vmatpush1.bf16.xpose.msra.mxu0 0
        %1538 = vmatprep.subr.bf16.mxu0 0
        %1539 = vmatpush1.bf16.xpose.msra.mxu0 0
        %1540 = vmatprep.subr.bf16.mxu0 0
        %1541 = vmatpush1.bf16.xpose.msra.mxu0 %v1524
        %1542 = vmatprep.subr.bf16.mxu0 0
        %1543 = vmatpush2.bf16.xpose.msra.mxu0 0
        %1544 = vmatprep.subr.bf16.mxu0 0
        %1545 = vmatpush2.bf16.xpose.msra.mxu0 0
        %1546 = vmatprep.subr.bf16.mxu0 0
        %1547 = vmatpush2.bf16.xpose.msra.mxu0 0
        %1548 = vmatprep.subr.bf16.mxu0 0
        %1549 = vmatpush2.bf16.xpose.msra.mxu0 0
        %1550 = vmatprep.subr.bf16.mxu0 0
        %1551 = vmatpush2.bf16.xpose.msra.mxu0 0
        %1552 = vmatprep.subr.bf16.mxu0 0
        %1553 = vmatpush2.bf16.xpose.msra.mxu0 0
        %1554 = vmatprep.subr.bf16.mxu0 0
        %1555 = vmatpush2.bf16.xpose.msra.mxu0 0
        %1556 = vmatprep.subr.bf16.mxu0 0
        %1557 = vmatpush2.bf16.xpose.msra.mxu0 0
        %1558 = vmatprep.mubr.bf16.mxu0 0
        %1559 = vmatmul.mubr.bf16.gmra.mxu0 %v1521
        %v1560 = vpop.f32.mrf.mxu0
        %v1561 = vadd.f32 0.0, %v1560
        %v1562 = vpop.f32.mrf.mxu0
        %v1563 = vpop.f32.mrf.mxu0
        %v1564 = vpop.f32.mrf.mxu0
        %1565 = vdwg.mxu0
        %v1566 = vmul.f32 %v1561, 0.35355338
        %v1567 = vld [vmem:[#allocation2] sm:$0xff]
        %v1568 = vsel %vm687, %v1566, -inf
        %1569 = vmax.xlane.f32.xlu0 %v1568
        %v1570 = vpop.xlane.xlu0 %1569
        %v1571 = vmax.f32 %v1567, %v1570
        %v1572 = vsub.f32 %v1567, %v1571
        %v1573 = vmul.f32 %v1572, 1.442695
        %v1574 = vpow.pop %v1573
        %1576 = vset.pattern.permute.xlu0 2
        %1577 = vperm.xlu0 %1576, %v1571
        %v1578 = vpop.permute.xlu0 %1577
        %v1580 = vsub.f32 %v1566, %v1578
        %v1581 = vmul.f32 %v1580, 1.442695
        %v1582 = vpow.pop %v1581
        %v1583 = vld [vmem:[#allocation3] sm:$0xff]
        %v1584 = vmul.f32 %v1574, %v1583
        %v1585 = vsel %vm687, %v1582, 0.0
        %1586 = vadd.xlane.f32.xlu0 %v1585
        %v1587 = vpop.xlane.xlu0 %1586
        %v1588 = vadd.f32 %v1584, %v1587
        %vm1589 = vcmask 23568
        %1590 = vst.msk [vmem:[#allocation3] sm:$0xff] %vm1589, %v1588
        %v1591 = vld [vmem:[#allocation4] sm:$0xff]
        %1593 = vset.pattern.permute.xlu0 2
        %1594 = vperm.xlu0 %1593, %v1574
        %v1595 = vpop.permute.xlu0 %1594
        %v1597 = vmul.f32 %v1595, %v1591
        %v1598 = vpack.c.bf16 %v1582, %v1582
        %v1608 = vunpack.c.l.s4 1983009808
        %v1609 = vunpack.c.0.s8 %v1608
        %v1610 = vlaneseq
        %v1611 = vshrl.u32 %v1610, 7
        %v1612 = vsub.s32 %v1609, %v1611
        %v1613 = vrot.slane %v1338, %v1612
        %v1615 = vunpack.c.l.s4 1983009808
        %v1616 = vunpack.c.0.s8 %v1615
        %v1617 = vlaneseq
        %v1618 = vshrl.u32 %v1617, 7
        %v1619 = vsub.s32 %v1616, %v1618
        %v1620 = vrot.slane %v1339, %v1619
        %v1622 = vunpack.c.l.s4 1983009808
        %v1623 = vunpack.c.0.s8 %v1622
        %v1624 = vlaneseq
        %v1625 = vshrl.u32 %v1624, 7
        %v1626 = vsub.s32 %v1623, %v1625
        %v1627 = vrot.slane %v1340, %v1626
        %v1629 = vunpack.c.l.s4 1983009808
        %v1630 = vunpack.c.0.s8 %v1629
        %v1631 = vlaneseq
        %v1632 = vshrl.u32 %v1631, 7
        %v1633 = vsub.s32 %v1630, %v1632
        %v1634 = vrot.slane %v1341, %v1633
        %v1636 = vunpack.c.l.s4 1983009808
        %v1637 = vunpack.c.0.s8 %v1636
        %v1638 = vlaneseq
        %v1639 = vshrl.u32 %v1638, 7
        %v1640 = vsub.s32 %v1637, %v1639
        %v1641 = vrot.slane %v1342, %v1640
        %v1643 = vunpack.c.l.s4 1983009808
        %v1644 = vunpack.c.0.s8 %v1643
        %v1645 = vlaneseq
        %v1646 = vshrl.u32 %v1645, 7
        %v1647 = vsub.s32 %v1644, %v1646
        %v1648 = vrot.slane %v1343, %v1647
        %v1650 = vunpack.c.l.s4 1983009808
        %v1651 = vunpack.c.0.s8 %v1650
        %v1652 = vlaneseq
        %v1653 = vshrl.u32 %v1652, 7
        %v1654 = vsub.s32 %v1651, %v1653
        %v1655 = vrot.slane %v1344, %v1654
        %v1657 = vunpack.c.l.s4 1983009808
        %v1658 = vunpack.c.0.s8 %v1657
        %v1659 = vlaneseq
        %v1660 = vshrl.u32 %v1659, 7
        %v1661 = vsub.s32 %v1658, %v1660
        %v1662 = vrot.slane %v1345, %v1661
        %v1663 = vunpack.c.l.b16 %v1613
        %v1664 = vunpack.c.l.b16 %v1620
        %v1665 = vunpack.c.l.b16 %v1627
        %v1666 = vunpack.c.l.b16 %v1634
        %v1667 = vunpack.c.l.b16 %v1641
        %v1668 = vunpack.c.l.b16 %v1648
        %v1669 = vunpack.c.l.b16 %v1655
        %v1670 = vunpack.c.l.b16 %v1662
        %v1671 = vrot.slane %v1663, 2
        %v1672 = vrot.slane %v1664, 1
        %v1673 = vsel %vm579, %v1672, %v1671
        %v1674 = vsel %vm582, %v1665, %v1673
        %v1675 = vrot.slane %v1666, 7
        %v1676 = vsel %vm585, %v1675, %v1674
        %v1677 = vrot.slane %v1667, 6
        %v1678 = vsel %vm588, %v1677, %v1676
        %v1679 = vrot.slane %v1668, 5
        %v1680 = vsel %vm591, %v1679, %v1678
        %v1681 = vrot.slane %v1669, 4
        %v1682 = vsel %vm594, %v1681, %v1680
        %v1683 = vrot.slane %v1670, 3
        %v1684 = vsel %vm597, %v1683, %v1682
        %v1685 = vpack.c.b16 %v1684, %v1684
        %v1687 = vsel %vm687, %v1598, 0
        %v1690 = vsel %vm857, %v1685, 0
        %1692 = vmatprep.subr.bf16.mxu0 0
        %1693 = vmatpush1.bf16.msra.mxu0 0
        %1694 = vmatprep.subr.bf16.mxu0 0
        %1695 = vmatpush1.bf16.msra.mxu0 0
        %1696 = vmatprep.subr.bf16.mxu0 0
        %1697 = vmatpush1.bf16.msra.mxu0 0
        %1698 = vmatprep.subr.bf16.mxu0 0
        %1699 = vmatpush1.bf16.msra.mxu0 0
        %1700 = vmatprep.subr.bf16.mxu0 0
        %1701 = vmatpush1.bf16.msra.mxu0 0
        %1702 = vmatprep.subr.bf16.mxu0 0
        %1703 = vmatpush1.bf16.msra.mxu0 0
        %1704 = vmatprep.subr.bf16.mxu0 0
        %1705 = vmatpush1.bf16.msra.mxu0 0
        %1706 = vmatprep.subr.bf16.mxu0 0
        %1707 = vmatpush1.bf16.msra.mxu0 %v1690
        %1708 = vmatprep.subr.bf16.mxu0 0
        %1709 = vmatpush2.bf16.msra.mxu0 0
        %1710 = vmatprep.subr.bf16.mxu0 0
        %1711 = vmatpush2.bf16.msra.mxu0 0
        %1712 = vmatprep.subr.bf16.mxu0 0
        %1713 = vmatpush2.bf16.msra.mxu0 0
        %1714 = vmatprep.subr.bf16.mxu0 0
        %1715 = vmatpush2.bf16.msra.mxu0 0
        %1716 = vmatprep.subr.bf16.mxu0 0
        %1717 = vmatpush2.bf16.msra.mxu0 0
        %1718 = vmatprep.subr.bf16.mxu0 0
        %1719 = vmatpush2.bf16.msra.mxu0 0
        %1720 = vmatprep.subr.bf16.mxu0 0
        %1721 = vmatpush2.bf16.msra.mxu0 0
        %1722 = vmatprep.subr.bf16.mxu0 0
        %1723 = vmatpush2.bf16.msra.mxu0 0
        %1724 = vmatprep.mubr.bf16.mxu0 0
        %1725 = vmatmul.mubr.bf16.gmra.mxu0 %v1687
        %v1726 = vpop.f32.mrf.mxu0
        %v1727 = vadd.f32 0.0, %v1726
        %v1728 = vpop.f32.mrf.mxu0
        %v1729 = vpop.f32.mrf.mxu0
        %v1730 = vpop.f32.mrf.mxu0
        %1731 = vdwg.mxu0
        %1733 = vrot.lane.b32.xlu0 %v1727, 16
        %v1734 = vpop.permute.xlu0 %1733
        %v1736 = vadd.f32 %v1597, %v1734
        %vm1737 = vcmask 195712
        %1738 = vst.msk [vmem:[#allocation4] sm:$0xff] %vm1737, %v1736
        %1739 = vst.msk [vmem:[#allocation2] sm:$0xff] %vm1589, %v1571
        %v1740 = vld [vmem:[%s417] sm:$0x2]
        %v1741 = vld [vmem:[%s417 + $0x2] sm:$0x2]
        %v1742 = vld [vmem:[%s417 + $0x4] sm:$0x2]
        %v1743 = vld [vmem:[%s417 + $0x6] sm:$0x2]
        %v1744 = vld [vmem:[%s417 + $0x8] sm:$0x2]
        %v1745 = vld [vmem:[%s417 + $0xa] sm:$0x2]
        %v1746 = vld [vmem:[%s417 + $0xc] sm:$0x2]
        %v1747 = vld [vmem:[%s417 + $0xe] sm:$0x2]
        %v1748 = vld [vmem:[%s424] sm:$0x2]
        %v1749 = vld [vmem:[%s424 + $0x2] sm:$0x2]
        %v1750 = vld [vmem:[%s424 + $0x4] sm:$0x2]
        %v1751 = vld [vmem:[%s424 + $0x6] sm:$0x2]
        %v1752 = vld [vmem:[%s424 + $0x8] sm:$0x2]
        %v1753 = vld [vmem:[%s424 + $0xa] sm:$0x2]
        %v1754 = vld [vmem:[%s424 + $0xc] sm:$0x2]
        %v1755 = vld [vmem:[%s424 + $0xe] sm:$0x2]
        %v1756 = vld [vmem:[%s431] sm:$0x2]
        %v1757 = vld [vmem:[%s431 + $0x2] sm:$0x2]
        %v1758 = vld [vmem:[%s431 + $0x4] sm:$0x2]
        %v1759 = vld [vmem:[%s431 + $0x6] sm:$0x2]
        %v1760 = vld [vmem:[%s431 + $0x8] sm:$0x2]
        %v1761 = vld [vmem:[%s431 + $0xa] sm:$0x2]
        %v1762 = vld [vmem:[%s431 + $0xc] sm:$0x2]
        %v1763 = vld [vmem:[%s431 + $0xe] sm:$0x2]
        %v1773 = vunpack.c.l.s4 1983009808
        %v1774 = vunpack.c.0.s8 %v1773
        %v1775 = vlaneseq
        %v1776 = vshrl.u32 %v1775, 7
        %v1777 = vsub.s32 %v1774, %v1776
        %v1778 = vrot.slane %v1740, %v1777
        %v1780 = vunpack.c.l.s4 1983009808
        %v1781 = vunpack.c.0.s8 %v1780
        %v1782 = vlaneseq
        %v1783 = vshrl.u32 %v1782, 7
        %v1784 = vsub.s32 %v1781, %v1783
        %v1785 = vrot.slane %v1741, %v1784
        %v1787 = vunpack.c.l.s4 1983009808
        %v1788 = vunpack.c.0.s8 %v1787
        %v1789 = vlaneseq
        %v1790 = vshrl.u32 %v1789, 7
        %v1791 = vsub.s32 %v1788, %v1790
        %v1792 = vrot.slane %v1742, %v1791
        %v1794 = vunpack.c.l.s4 1983009808
        %v1795 = vunpack.c.0.s8 %v1794
        %v1796 = vlaneseq
        %v1797 = vshrl.u32 %v1796, 7
        %v1798 = vsub.s32 %v1795, %v1797
        %v1799 = vrot.slane %v1743, %v1798
        %v1801 = vunpack.c.l.s4 1983009808
        %v1802 = vunpack.c.0.s8 %v1801
        %v1803 = vlaneseq
        %v1804 = vshrl.u32 %v1803, 7
        %v1805 = vsub.s32 %v1802, %v1804
        %v1806 = vrot.slane %v1744, %v1805
        %v1808 = vunpack.c.l.s4 1983009808
        %v1809 = vunpack.c.0.s8 %v1808
        %v1810 = vlaneseq
        %v1811 = vshrl.u32 %v1810, 7
        %v1812 = vsub.s32 %v1809, %v1811
        %v1813 = vrot.slane %v1745, %v1812
        %v1815 = vunpack.c.l.s4 1983009808
        %v1816 = vunpack.c.0.s8 %v1815
        %v1817 = vlaneseq
        %v1818 = vshrl.u32 %v1817, 7
        %v1819 = vsub.s32 %v1816, %v1818
        %v1820 = vrot.slane %v1746, %v1819
        %v1822 = vunpack.c.l.s4 1983009808
        %v1823 = vunpack.c.0.s8 %v1822
        %v1824 = vlaneseq
        %v1825 = vshrl.u32 %v1824, 7
        %v1826 = vsub.s32 %v1823, %v1825
        %v1827 = vrot.slane %v1747, %v1826
        %v1828 = vunpack.c.l.b16 %v1778
        %v1829 = vunpack.c.l.b16 %v1785
        %v1830 = vunpack.c.l.b16 %v1792
        %v1831 = vunpack.c.l.b16 %v1799
        %v1832 = vunpack.c.l.b16 %v1806
        %v1833 = vunpack.c.l.b16 %v1813
        %v1834 = vunpack.c.l.b16 %v1820
        %v1835 = vunpack.c.l.b16 %v1827
        %v1836 = vrot.slane %v1828, 3
        %v1837 = vrot.slane %v1829, 2
        %v1838 = vsel %vm579, %v1837, %v1836
        %v1839 = vrot.slane %v1830, 1
        %v1840 = vsel %vm582, %v1839, %v1838
        %v1841 = vsel %vm585, %v1831, %v1840
        %v1842 = vrot.slane %v1832, 7
        %v1843 = vsel %vm588, %v1842, %v1841
        %v1844 = vrot.slane %v1833, 6
        %v1845 = vsel %vm591, %v1844, %v1843
        %v1846 = vrot.slane %v1834, 5
        %v1847 = vsel %vm594, %v1846, %v1845
        %v1848 = vrot.slane %v1835, 4
        %v1849 = vsel %vm597, %v1848, %v1847
        %v1850 = vpack.c.b16 %v1849, %v1849
        %v1860 = vunpack.c.l.s4 1983009808
        %v1861 = vunpack.c.0.s8 %v1860
        %v1862 = vlaneseq
        %v1863 = vshrl.u32 %v1862, 7
        %v1864 = vsub.s32 %v1861, %v1863
        %v1865 = vrot.slane %v1748, %v1864
        %v1867 = vunpack.c.l.s4 1983009808
        %v1868 = vunpack.c.0.s8 %v1867
        %v1869 = vlaneseq
        %v1870 = vshrl.u32 %v1869, 7
        %v1871 = vsub.s32 %v1868, %v1870
        %v1872 = vrot.slane %v1749, %v1871
        %v1874 = vunpack.c.l.s4 1983009808
        %v1875 = vunpack.c.0.s8 %v1874
        %v1876 = vlaneseq
        %v1877 = vshrl.u32 %v1876, 7
        %v1878 = vsub.s32 %v1875, %v1877
        %v1879 = vrot.slane %v1750, %v1878
        %v1881 = vunpack.c.l.s4 1983009808
        %v1882 = vunpack.c.0.s8 %v1881
        %v1883 = vlaneseq
        %v1884 = vshrl.u32 %v1883, 7
        %v1885 = vsub.s32 %v1882, %v1884
        %v1886 = vrot.slane %v1751, %v1885
        %v1888 = vunpack.c.l.s4 1983009808
        %v1889 = vunpack.c.0.s8 %v1888
        %v1890 = vlaneseq
        %v1891 = vshrl.u32 %v1890, 7
        %v1892 = vsub.s32 %v1889, %v1891
        %v1893 = vrot.slane %v1752, %v1892
        %v1895 = vunpack.c.l.s4 1983009808
        %v1896 = vunpack.c.0.s8 %v1895
        %v1897 = vlaneseq
        %v1898 = vshrl.u32 %v1897, 7
        %v1899 = vsub.s32 %v1896, %v1898
        %v1900 = vrot.slane %v1753, %v1899
        %v1902 = vunpack.c.l.s4 1983009808
        %v1903 = vunpack.c.0.s8 %v1902
        %v1904 = vlaneseq
        %v1905 = vshrl.u32 %v1904, 7
        %v1906 = vsub.s32 %v1903, %v1905
        %v1907 = vrot.slane %v1754, %v1906
        %v1909 = vunpack.c.l.s4 1983009808
        %v1910 = vunpack.c.0.s8 %v1909
        %v1911 = vlaneseq
        %v1912 = vshrl.u32 %v1911, 7
        %v1913 = vsub.s32 %v1910, %v1912
        %v1914 = vrot.slane %v1755, %v1913
        %v1915 = vunpack.c.l.b16 %v1865
        %v1916 = vunpack.c.l.b16 %v1872
        %v1917 = vunpack.c.l.b16 %v1879
        %v1918 = vunpack.c.l.b16 %v1886
        %v1919 = vunpack.c.l.b16 %v1893
        %v1920 = vunpack.c.l.b16 %v1900
        %v1921 = vunpack.c.l.b16 %v1907
        %v1922 = vunpack.c.l.b16 %v1914
        %v1923 = vrot.slane %v1915, 3
        %v1924 = vrot.slane %v1916, 2
        %v1925 = vsel %vm579, %v1924, %v1923
        %v1926 = vrot.slane %v1917, 1
        %v1927 = vsel %vm582, %v1926, %v1925
        %v1928 = vsel %vm585, %v1918, %v1927
        %v1929 = vrot.slane %v1919, 7
        %v1930 = vsel %vm588, %v1929, %v1928
        %v1931 = vrot.slane %v1920, 6
        %v1932 = vsel %vm591, %v1931, %v1930
        %v1933 = vrot.slane %v1921, 5
        %v1934 = vsel %vm594, %v1933, %v1932
        %v1935 = vrot.slane %v1922, 4
        %v1936 = vsel %vm597, %v1935, %v1934
        %v1937 = vpack.c.b16 %v1936, %v1936
        %v1939 = vsel %vm687, %v1850, 0
        %v1942 = vsel %vm687, %v1937, 0
        %1944 = vmatprep.subr.bf16.mxu0 0
        %1945 = vmatpush1.bf16.xpose.msra.mxu0 0
        %1946 = vmatprep.subr.bf16.mxu0 0
        %1947 = vmatpush1.bf16.xpose.msra.mxu0 0
        %1948 = vmatprep.subr.bf16.mxu0 0
        %1949 = vmatpush1.bf16.xpose.msra.mxu0 0
        %1950 = vmatprep.subr.bf16.mxu0 0
        %1951 = vmatpush1.bf16.xpose.msra.mxu0 0
        %1952 = vmatprep.subr.bf16.mxu0 0
        %1953 = vmatpush1.bf16.xpose.msra.mxu0 0
        %1954 = vmatprep.subr.bf16.mxu0 0
        %1955 = vmatpush1.bf16.xpose.msra.mxu0 0
        %1956 = vmatprep.subr.bf16.mxu0 0
        %1957 = vmatpush1.bf16.xpose.msra.mxu0 0
        %1958 = vmatprep.subr.bf16.mxu0 0
        %1959 = vmatpush1.bf16.xpose.msra.mxu0 %v1942
        %1960 = vmatprep.subr.bf16.mxu0 0
        %1961 = vmatpush2.bf16.xpose.msra.mxu0 0
        %1962 = vmatprep.subr.bf16.mxu0 0
        %1963 = vmatpush2.bf16.xpose.msra.mxu0 0
        %1964 = vmatprep.subr.bf16.mxu0 0
        %1965 = vmatpush2.bf16.xpose.msra.mxu0 0
        %1966 = vmatprep.subr.bf16.mxu0 0
        %1967 = vmatpush2.bf16.xpose.msra.mxu0 0
        %1968 = vmatprep.subr.bf16.mxu0 0
        %1969 = vmatpush2.bf16.xpose.msra.mxu0 0
        %1970 = vmatprep.subr.bf16.mxu0 0
        %1971 = vmatpush2.bf16.xpose.msra.mxu0 0
        %1972 = vmatprep.subr.bf16.mxu0 0
        %1973 = vmatpush2.bf16.xpose.msra.mxu0 0
        %1974 = vmatprep.subr.bf16.mxu0 0
        %1975 = vmatpush2.bf16.xpose.msra.mxu0 0
        %1976 = vmatprep.mubr.bf16.mxu0 0
        %1977 = vmatmul.mubr.bf16.gmra.mxu0 %v1939
        %v1978 = vpop.f32.mrf.mxu0
        %v1979 = vadd.f32 0.0, %v1978
        %v1980 = vpop.f32.mrf.mxu0
        %v1981 = vpop.f32.mrf.mxu0
        %v1982 = vpop.f32.mrf.mxu0
        %1983 = vdwg.mxu0
        %v1984 = vmul.f32 %v1979, 0.35355338
        %v1985 = vld [vmem:[#allocation2] sm:$0xff]
        %v1986 = vsel %vm687, %v1984, -inf
        %1987 = vmax.xlane.f32.xlu0 %v1986
        %v1988 = vpop.xlane.xlu0 %1987
        %v1989 = vmax.f32 %v1985, %v1988
        %v1990 = vsub.f32 %v1985, %v1989
        %v1991 = vmul.f32 %v1990, 1.442695
        %v1992 = vpow.pop %v1991
        %1994 = vset.pattern.permute.xlu0 3
        %1995 = vperm.xlu0 %1994, %v1989
        %v1996 = vpop.permute.xlu0 %1995
        %v1998 = vsub.f32 %v1984, %v1996
        %v1999 = vmul.f32 %v1998, 1.442695
        %v2000 = vpow.pop %v1999
        %v2001 = vld [vmem:[#allocation3] sm:$0xff]
        %v2002 = vmul.f32 %v1992, %v2001
        %v2003 = vsel %vm687, %v2000, 0.0
        %2004 = vadd.xlane.f32.xlu0 %v2003
        %v2005 = vpop.xlane.xlu0 %2004
        %v2006 = vadd.f32 %v2002, %v2005
        %vm2007 = vcmask 31768
        %2008 = vst.msk [vmem:[#allocation3] sm:$0xff] %vm2007, %v2006
        %v2009 = vld [vmem:[#allocation4] sm:$0xff]
        %2011 = vset.pattern.permute.xlu0 3
        %2012 = vperm.xlu0 %2011, %v1992
        %v2013 = vpop.permute.xlu0 %2012
        %v2015 = vmul.f32 %v2013, %v2009
        %v2016 = vpack.c.bf16 %v2000, %v2000
        %v2026 = vunpack.c.l.s4 1983009808
        %v2027 = vunpack.c.0.s8 %v2026
        %v2028 = vlaneseq
        %v2029 = vshrl.u32 %v2028, 7
        %v2030 = vsub.s32 %v2027, %v2029
        %v2031 = vrot.slane %v1756, %v2030
        %v2033 = vunpack.c.l.s4 1983009808
        %v2034 = vunpack.c.0.s8 %v2033
        %v2035 = vlaneseq
        %v2036 = vshrl.u32 %v2035, 7
        %v2037 = vsub.s32 %v2034, %v2036
        %v2038 = vrot.slane %v1757, %v2037
        %v2040 = vunpack.c.l.s4 1983009808
        %v2041 = vunpack.c.0.s8 %v2040
        %v2042 = vlaneseq
        %v2043 = vshrl.u32 %v2042, 7
        %v2044 = vsub.s32 %v2041, %v2043
        %v2045 = vrot.slane %v1758, %v2044
        %v2047 = vunpack.c.l.s4 1983009808
        %v2048 = vunpack.c.0.s8 %v2047
        %v2049 = vlaneseq
        %v2050 = vshrl.u32 %v2049, 7
        %v2051 = vsub.s32 %v2048, %v2050
        %v2052 = vrot.slane %v1759, %v2051
        %v2054 = vunpack.c.l.s4 1983009808
        %v2055 = vunpack.c.0.s8 %v2054
        %v2056 = vlaneseq
        %v2057 = vshrl.u32 %v2056, 7
        %v2058 = vsub.s32 %v2055, %v2057
        %v2059 = vrot.slane %v1760, %v2058
        %v2061 = vunpack.c.l.s4 1983009808
        %v2062 = vunpack.c.0.s8 %v2061
        %v2063 = vlaneseq
        %v2064 = vshrl.u32 %v2063, 7
        %v2065 = vsub.s32 %v2062, %v2064
        %v2066 = vrot.slane %v1761, %v2065
        %v2068 = vunpack.c.l.s4 1983009808
        %v2069 = vunpack.c.0.s8 %v2068
        %v2070 = vlaneseq
        %v2071 = vshrl.u32 %v2070, 7
        %v2072 = vsub.s32 %v2069, %v2071
        %v2073 = vrot.slane %v1762, %v2072
        %v2075 = vunpack.c.l.s4 1983009808
        %v2076 = vunpack.c.0.s8 %v2075
        %v2077 = vlaneseq
        %v2078 = vshrl.u32 %v2077, 7
        %v2079 = vsub.s32 %v2076, %v2078
        %v2080 = vrot.slane %v1763, %v2079
        %v2081 = vunpack.c.l.b16 %v2031
        %v2082 = vunpack.c.l.b16 %v2038
        %v2083 = vunpack.c.l.b16 %v2045
        %v2084 = vunpack.c.l.b16 %v2052
        %v2085 = vunpack.c.l.b16 %v2059
        %v2086 = vunpack.c.l.b16 %v2066
        %v2087 = vunpack.c.l.b16 %v2073
        %v2088 = vunpack.c.l.b16 %v2080
        %v2089 = vrot.slane %v2081, 3
        %v2090 = vrot.slane %v2082, 2
        %v2091 = vsel %vm579, %v2090, %v2089
        %v2092 = vrot.slane %v2083, 1
        %v2093 = vsel %vm582, %v2092, %v2091
        %v2094 = vsel %vm585, %v2084, %v2093
        %v2095 = vrot.slane %v2085, 7
        %v2096 = vsel %vm588, %v2095, %v2094
        %v2097 = vrot.slane %v2086, 6
        %v2098 = vsel %vm591, %v2097, %v2096
        %v2099 = vrot.slane %v2087, 5
        %v2100 = vsel %vm594, %v2099, %v2098
        %v2101 = vrot.slane %v2088, 4
        %v2102 = vsel %vm597, %v2101, %v2100
        %v2103 = vpack.c.b16 %v2102, %v2102
        %v2105 = vsel %vm687, %v2016, 0
        %v2108 = vsel %vm857, %v2103, 0
        %2110 = vmatprep.subr.bf16.mxu0 0
        %2111 = vmatpush1.bf16.msra.mxu0 0
        %2112 = vmatprep.subr.bf16.mxu0 0
        %2113 = vmatpush1.bf16.msra.mxu0 0
        %2114 = vmatprep.subr.bf16.mxu0 0
        %2115 = vmatpush1.bf16.msra.mxu0 0
        %2116 = vmatprep.subr.bf16.mxu0 0
        %2117 = vmatpush1.bf16.msra.mxu0 0
        %2118 = vmatprep.subr.bf16.mxu0 0
        %2119 = vmatpush1.bf16.msra.mxu0 0
        %2120 = vmatprep.subr.bf16.mxu0 0
        %2121 = vmatpush1.bf16.msra.mxu0 0
        %2122 = vmatprep.subr.bf16.mxu0 0
        %2123 = vmatpush1.bf16.msra.mxu0 0
        %2124 = vmatprep.subr.bf16.mxu0 0
        %2125 = vmatpush1.bf16.msra.mxu0 %v2108
        %2126 = vmatprep.subr.bf16.mxu0 0
        %2127 = vmatpush2.bf16.msra.mxu0 0
        %2128 = vmatprep.subr.bf16.mxu0 0
        %2129 = vmatpush2.bf16.msra.mxu0 0
        %2130 = vmatprep.subr.bf16.mxu0 0
        %2131 = vmatpush2.bf16.msra.mxu0 0
        %2132 = vmatprep.subr.bf16.mxu0 0
        %2133 = vmatpush2.bf16.msra.mxu0 0
        %2134 = vmatprep.subr.bf16.mxu0 0
        %2135 = vmatpush2.bf16.msra.mxu0 0
        %2136 = vmatprep.subr.bf16.mxu0 0
        %2137 = vmatpush2.bf16.msra.mxu0 0
        %2138 = vmatprep.subr.bf16.mxu0 0
        %2139 = vmatpush2.bf16.msra.mxu0 0
        %2140 = vmatprep.subr.bf16.mxu0 0
        %2141 = vmatpush2.bf16.msra.mxu0 0
        %2142 = vmatprep.mubr.bf16.mxu0 0
        %2143 = vmatmul.mubr.bf16.gmra.mxu0 %v2105
        %v2144 = vpop.f32.mrf.mxu0
        %v2145 = vadd.f32 0.0, %v2144
        %v2146 = vpop.f32.mrf.mxu0
        %v2147 = vpop.f32.mrf.mxu0
        %v2148 = vpop.f32.mrf.mxu0
        %2149 = vdwg.mxu0
        %2151 = vrot.lane.b32.xlu0 %v2145, 24
        %v2152 = vpop.permute.xlu0 %2151
        %v2154 = vadd.f32 %v2015, %v2152
        %vm2155 = vcmask 261312
        %2156 = vst.msk [vmem:[#allocation4] sm:$0xff] %vm2155, %v2154
        %2157 = vst.msk [vmem:[#allocation2] sm:$0xff] %vm2007, %v1989
        // Predicated region
        $region160: #{decoder_forward.17} parent=142 // pred_check
          %p2158 = pneg %p473
        $region161: #{decoder_forward.17} parent=142 // pred_check_branch
          %2160 = sbr.rel (%p2158) target = $region163
        $region162: #{decoder_forward.17} parent=142 // pred_region
          %v2161 = vld [vmem:[#allocation4] sm:$0xff]
          %v2162 = vld [vmem:[#allocation3] sm:$0xff]
          %2164 = vset.pattern.permute.xlu0 0
          %2165 = vperm.xlu0 %2164, %v2162
          %v2166 = vpop.permute.xlu0 %2165
          %v2168 = vrcp.pop %v2166
          %v2169 = vmul.f32 %v2161, %v2168
          %2170 = vst.msk [vmem:[#allocation4] sm:$0xff] %vm687, %v2169
          %v2171 = vld [vmem:[#allocation4] sm:$0xff]
          %v2172 = vld [vmem:[#allocation3] sm:$0xff]
          %2174 = vset.pattern.permute.xlu0 1
          %2175 = vperm.xlu0 %2174, %v2172
          %v2176 = vpop.permute.xlu0 %2175
          %v2178 = vrcp.pop %v2176
          %v2179 = vmul.f32 %v2171, %v2178
          %2180 = vst.msk [vmem:[#allocation4] sm:$0xff] %vm1319, %v2179
          %v2181 = vld [vmem:[#allocation4] sm:$0xff]
          %v2182 = vld [vmem:[#allocation3] sm:$0xff]
          %2184 = vset.pattern.permute.xlu0 2
          %2185 = vperm.xlu0 %2184, %v2182
          %v2186 = vpop.permute.xlu0 %2185
          %v2188 = vrcp.pop %v2186
          %v2189 = vmul.f32 %v2181, %v2188
          %2190 = vst.msk [vmem:[#allocation4] sm:$0xff] %vm1737, %v2189
          %v2191 = vld [vmem:[#allocation4] sm:$0xff]
          %v2192 = vld [vmem:[#allocation3] sm:$0xff]
          %2194 = vset.pattern.permute.xlu0 3
          %2195 = vperm.xlu0 %2194, %v2192
          %v2196 = vpop.permute.xlu0 %2195
          %v2198 = vrcp.pop %v2196
          %v2199 = vmul.f32 %v2191, %v2198
          %2200 = vst.msk [vmem:[#allocation4] sm:$0xff] %vm2155, %v2199
          %v2201 = vld [vmem:[#allocation4] sm:$0xff]
          %v2202 = vpack.c.bf16 %v2201, %v2201
          %vm2203 = vcmask 257024
          %2204 = vst.msk [vmem:[%s471] sm:$0xf] %vm2203, %v2202
        $region163: #{decoder_forward.17} parent=142 // pred_fallthru
          _
        %p2205 = scmp.lt.s32.totalorder %s19, 1
        %s2206 = scalar_select %p2205, %s19, 1
        %p2207 = scmp.lt.s32.totalorder %s20, 0
        %s2208 = scalar_select %p2207, %s20, 0
        %s2209 = sadd.s32 %s2208, %s2206
        %s2210 = smul.addr %s2209, 4
        %s2211 = scalar_lea.vmem %s3, %s2210
        // Predicated region
        $region164: #{decoder_forward.17} parent=142 // pred_check
          %p2212 = pneg %p137
        $region165: #{decoder_forward.17} parent=142 // pred_check_branch
          %2214 = sbr.rel (%p2212) target = $region167
        $region166: #{decoder_forward.17} parent=142 // pred_region
          _
        $region167: #{decoder_forward.17} parent=142 // pred_fallthru
          _
      $region143: #{decoder_forward.17} parent=5 // pred_fallthru
        _
      %p2215 = scmp.le.s32.totalorder 2, %s9
      // Predicated region
      $region168: #{decoder_forward.17} parent=5 // pred_check
        %p2216 = pneg %p2215
      $region169: #{decoder_forward.17} parent=5 // pred_check_branch
        %2218 = sbr.rel (%p2216) target = $region171
      $region170: #{decoder_forward.17} parent=5 // pred_region
        %s2219 = ssub.s32 %s9, 2
        // Predicated region
        $region172: #{decoder_forward.17} parent=170 // pred_check
          %p2220 = pneg %p143
        $region173: #{decoder_forward.17} parent=170 // pred_check_branch
          %2222 = sbr.rel (%p2220) target = $region175
        $region174: #{decoder_forward.17} parent=170 // pred_region
          %p2223 = scmp.lt.s32.totalorder %s22, 1
          %s2224 = scalar_select %p2223, %s22, 1
          %p2225 = scmp.lt.s32.totalorder %s23, 0
          %s2226 = scalar_select %p2225, %s23, 0
          %s2227 = sadd.s32 %s2226, %s2224
          %s2228 = smul.addr %s2227, 4
          %s2229 = scalar_lea.vmem %s3, %s2228
        $region175: #{decoder_forward.17} parent=170 // pred_fallthru
          _
      $region171: #{decoder_forward.17} parent=5 // pred_fallthru
        _
    $region6: #{decoder_forward.17} parent=1 // loop_footer
      %s13 = sadd.s32 1, %s9
    $region7: #{decoder_forward.17} parent=1 // loop_footer_branch
      %8 = sbr.rel target = $region3
    $region8: #{decoder_forward.17} parent=1 // loop_exit
      _

// kernel: decoder_forward.20
$region0: #{decoder_forward.20}
  #allocation0 [shape = 'u32[]', space=smem, size = 0x4, offset = 0x4, fixed_abs, tag = 'smem constant byte address 0x4 - core index']
  #allocation1 [shape = 'u32[144,128]{1,0:T(1,128)}', space=vmem, size = 0x12000, scoped, tag = 'internal scratch']
  #allocation2 [shape = 'f32[16,64]{1,0:T(8,128)}', space=vmem, size = 0x2000, scoped, tag = 'scratch operand']
  %s0 = inlined_call_operand.vmem [shape: f32[16,32], index: 0, kind: input, shape index: {}]
  %s1 = inlined_call_operand.vmem [shape: bf16[32,64], index: 1, kind: input, shape index: {}]
  %s2 = inlined_call_operand.vmem [shape: f32[1,64], index: 2, kind: input, shape index: {}]
  %s3 = inlined_call_operand.vmem [shape: bf16[16,64], index: 3, kind: output, shape index: {}]
  %s4 = sld [smem:[#allocation0]]
  $region30: #{decoder_forward.20} parent=0
    _
  %s6 = ssub.s32 1, %s4
  %s7 = scalar_select 0, %s6, %s4
  // Predicated region
  $region2: #{decoder_forward.20} parent=0 // pred_check
    _
  $region3: #{decoder_forward.20} parent=0 // pred_check_branch
    %9 = sbr.rel (0) target = $region5
  $region4: #{decoder_forward.20} parent=0 // pred_region
    _
  $region5: #{decoder_forward.20} parent=0 // pred_fallthru
    _
  // Predicated region
  $region6: #{decoder_forward.20} parent=0 // pred_check
    _
  $region7: #{decoder_forward.20} parent=0 // pred_check_branch
    %11 = sbr.rel (0) target = $region9
  $region8: #{decoder_forward.20} parent=0 // pred_region
    _
  $region9: #{decoder_forward.20} parent=0 // pred_fallthru
    _
  // Predicated region
  $region10: #{decoder_forward.20} parent=0 // pred_check
    _
  $region11: #{decoder_forward.20} parent=0 // pred_check_branch
    %13 = sbr.rel (0) target = $region13
  $region12: #{decoder_forward.20} parent=0 // pred_region
    _
  $region13: #{decoder_forward.20} parent=0 // pred_fallthru
    _
  %p15 = scmp.eq.s32.totalorder 0, 0
  // Predicated region
  $region14: #{decoder_forward.20} parent=0 // pred_check
    %p16 = pneg %p15
  $region15: #{decoder_forward.20} parent=0 // pred_check_branch
    %18 = sbr.rel (%p16) target = $region17
  $region16: #{decoder_forward.20} parent=0 // pred_region
    %vm19 = vcmask 523264
    %20 = vst.msk [vmem:[#allocation2] sm:$0xff] %vm19, 0.0
    %21 = vst.msk [vmem:[#allocation2 + $0x8] sm:$0xff] %vm19, 0.0
  $region17: #{decoder_forward.20} parent=0 // pred_fallthru
    _
  %v22 = vld [vmem:[#allocation2] sm:$0xff]
  %v23 = vld [vmem:[#allocation2 + $0x8] sm:$0xff]
  %v24 = vld [vmem:[%s0] sm:$0xff]
  %v25 = vld [vmem:[%s0 + $0x8] sm:$0xff]
  %v26 = vpack.c.bf16 %v25, %v24
  %v27 = vld [vmem:[%s1] sm:$0xf]
  %v28 = vld [vmem:[%s1 + $0x4] sm:$0xf]
  %v29 = vld [vmem:[%s1 + $0x8] sm:$0xf]
  %v30 = vld [vmem:[%s1 + $0xc] sm:$0xf]
  %v35 = vunpack.c.l.b16 %v27
  %v36 = vunpack.c.l.b16 %v28
  %v37 = vunpack.c.l.b16 %v29
  %v38 = vunpack.c.l.b16 %v30
  %v39 = vpack.c.b16 %v36, %v35
  %v40 = vpack.c.b16 %v38, %v37
  %vm43 = vcmask 261120
  %v45 = vsel %vm43, %v26, 0
  %47 = vmatprep.subr.bf16.mxu0 0
  %48 = vmatpush1.bf16.msra.mxu0 0
  %49 = vmatprep.subr.bf16.mxu0 0
  %50 = vmatpush1.bf16.msra.mxu0 0
  %51 = vmatprep.subr.bf16.mxu0 0
  %52 = vmatpush1.bf16.msra.mxu0 0
  %53 = vmatprep.subr.bf16.mxu0 0
  %54 = vmatpush1.bf16.msra.mxu0 0
  %55 = vmatprep.subr.bf16.mxu0 0
  %56 = vmatpush1.bf16.msra.mxu0 0
  %57 = vmatprep.subr.bf16.mxu0 0
  %58 = vmatpush1.bf16.msra.mxu0 0
  %59 = vmatprep.subr.bf16.mxu0 0
  %60 = vmatpush1.bf16.msra.mxu0 %v40
  %61 = vmatprep.subr.bf16.mxu0 0
  %62 = vmatpush1.bf16.msra.mxu0 %v39
  %63 = vmatprep.subr.bf16.mxu0 0
  %64 = vmatpush2.bf16.msra.mxu0 0
  %65 = vmatprep.subr.bf16.mxu0 0
  %66 = vmatpush2.bf16.msra.mxu0 0
  %67 = vmatprep.subr.bf16.mxu0 0
  %68 = vmatpush2.bf16.msra.mxu0 0
  %69 = vmatprep.subr.bf16.mxu0 0
  %70 = vmatpush2.bf16.msra.mxu0 0
  %71 = vmatprep.subr.bf16.mxu0 0
  %72 = vmatpush2.bf16.msra.mxu0 0
  %73 = vmatprep.subr.bf16.mxu0 0
  %74 = vmatpush2.bf16.msra.mxu0 0
  %75 = vmatprep.subr.bf16.mxu0 0
  %76 = vmatpush2.bf16.msra.mxu0 0
  %77 = vmatprep.subr.bf16.mxu0 0
  %78 = vmatpush2.bf16.msra.mxu0 0
  %79 = vmatprep.mubr.bf16.mxu0 0
  %80 = vmatmul.mubr.bf16.gmra.mxu0 %v45
  %v81 = vpop.f32.mrf.mxu0
  %v82 = vadd.f32 0.0, %v81
  %v83 = vpop.f32.mrf.mxu0
  %v84 = vpop.f32.mrf.mxu0
  %v85 = vadd.f32 0.0, %v84
  %v86 = vpop.f32.mrf.mxu0
  %87 = vdwg.mxu0
  %v88 = vadd.f32 %v22, %v82
  %v89 = vadd.f32 %v23, %v85
  %vm90 = vcmask 523264
  %91 = vst.msk [vmem:[#allocation2] sm:$0xff] %vm90, %v88
  %92 = vst.msk [vmem:[#allocation2 + $0x8] sm:$0xff] %vm90, %v89
  // Predicated region
  $region18: #{decoder_forward.20} parent=0 // pred_check
    %p93 = pneg %p15
  $region19: #{decoder_forward.20} parent=0 // pred_check_branch
    %95 = sbr.rel (%p93) target = $region21
  $region20: #{decoder_forward.20} parent=0 // pred_region
    %v96 = vld [vmem:[#allocation2] sm:$0xff]
    %v97 = vld [vmem:[#allocation2 + $0x8] sm:$0xff]
    %v98 = vld [vmem:[%s2] sm:$0x1]
    %v100 = vlaneseq
    %v101 = vshrl.u32 %v100, 7
    %v102 = vsub.s32 0, %v101
    %v103 = vrot.slane %v98, %v102
    %v105 = vadd.f32 %v96, %v103
    %v106 = vadd.f32 %v97, %v103
    %v107 = vpack.c.bf16 %v106, %v105
    %v109 = vunpack.c.l.b16 %v107
    %v110 = vunpack.c.h.b16 %v107
    %v111 = vpack.c.b16 %v109, %v109
    %v112 = vpack.c.b16 %v110, %v110
    %vm115 = vcmask 519168
    %116 = vst.msk [vmem:[%s3] sm:$0xf] %vm115, %v111
    %117 = vst.msk [vmem:[%s3 + $0x4] sm:$0xf] %vm115, %v112
  $region21: #{decoder_forward.20} parent=0 // pred_fallthru
    _
  // Predicated region
  $region22: #{decoder_forward.20} parent=0 // pred_check
    _
  $region23: #{decoder_forward.20} parent=0 // pred_check_branch
    %119 = sbr.rel (0) target = $region25
  $region24: #{decoder_forward.20} parent=0 // pred_region
    _
  $region25: #{decoder_forward.20} parent=0 // pred_fallthru
    _
  // Predicated region
  $region26: #{decoder_forward.20} parent=0 // pred_check
    _
  $region27: #{decoder_forward.20} parent=0 // pred_check_branch
    %121 = sbr.rel (0) target = $region29
  $region28: #{decoder_forward.20} parent=0 // pred_region
    _
  $region29: #{decoder_forward.20} parent=0 // pred_fallthru
    _

// kernel: decoder_forward.23
$region0: #{decoder_forward.23}
  #allocation0 [shape = 'u32[]', space=smem, size = 0x4, offset = 0x4, fixed_abs, tag = 'smem constant byte address 0x4 - core index']
  #allocation1 [shape = 'u32[144,128]{1,0:T(1,128)}', space=vmem, size = 0x12000, scoped, tag = 'internal scratch']
  #allocation2 [shape = 'f32[16,32]{1,0:T(8,128)}', space=vmem, size = 0x2000, scoped, tag = 'scratch operand']
  #allocation3 [shape = 'bf16[16,32]{1,0:T(8,128)(2,1)}', space=vmem, size = 0x1000, scoped, tag = 'scratch operand']
  %s0 = inlined_call_operand.vmem [shape: f32[16,32], index: 0, kind: input, shape index: {}]
  %s1 = inlined_call_operand.vmem [shape: bf16[32,64], index: 1, kind: input, shape index: {}]
  %s2 = inlined_call_operand.vmem [shape: f32[1,64], index: 2, kind: input, shape index: {}]
  %s3 = inlined_call_operand.vmem [shape: bf16[64,32], index: 3, kind: input, shape index: {}]
  %s4 = inlined_call_operand.vmem [shape: f32[1,32], index: 4, kind: input, shape index: {}]
  %s5 = inlined_call_operand.vmem [shape: f32[1,32], index: 5, kind: input, shape index: {}]
  %s6 = inlined_call_operand.vmem [shape: f32[1,32], index: 6, kind: input, shape index: {}]
  %s7 = inlined_call_operand.vmem [shape: f32[16,32], index: 7, kind: output, shape index: {}]
  %s8 = sld [smem:[#allocation0]]
  $region46: #{decoder_forward.23} parent=0
    _
  %s10 = ssub.s32 1, %s8
  %s11 = scalar_select 0, %s10, %s8
  // Predicated region
  $region2: #{decoder_forward.23} parent=0 // pred_check
    _
  $region3: #{decoder_forward.23} parent=0 // pred_check_branch
    %13 = sbr.rel (0) target = $region5
  $region4: #{decoder_forward.23} parent=0 // pred_region
    _
  $region5: #{decoder_forward.23} parent=0 // pred_fallthru
    _
  // Predicated region
  $region6: #{decoder_forward.23} parent=0 // pred_check
    _
  $region7: #{decoder_forward.23} parent=0 // pred_check_branch
    %15 = sbr.rel (0) target = $region9
  $region8: #{decoder_forward.23} parent=0 // pred_region
    _
  $region9: #{decoder_forward.23} parent=0 // pred_fallthru
    _
  // Predicated region
  $region10: #{decoder_forward.23} parent=0 // pred_check
    _
  $region11: #{decoder_forward.23} parent=0 // pred_check_branch
    %17 = sbr.rel (0) target = $region13
  $region12: #{decoder_forward.23} parent=0 // pred_region
    _
  $region13: #{decoder_forward.23} parent=0 // pred_fallthru
    _
  // Predicated region
  $region14: #{decoder_forward.23} parent=0 // pred_check
    _
  $region15: #{decoder_forward.23} parent=0 // pred_check_branch
    %19 = sbr.rel (0) target = $region17
  $region16: #{decoder_forward.23} parent=0 // pred_region
    _
  $region17: #{decoder_forward.23} parent=0 // pred_fallthru
    _
  // Predicated region
  $region18: #{decoder_forward.23} parent=0 // pred_check
    _
  $region19: #{decoder_forward.23} parent=0 // pred_check_branch
    %21 = sbr.rel (0) target = $region21
  $region20: #{decoder_forward.23} parent=0 // pred_region
    _
  $region21: #{decoder_forward.23} parent=0 // pred_fallthru
    _
  // Predicated region
  $region22: #{decoder_forward.23} parent=0 // pred_check
    _
  $region23: #{decoder_forward.23} parent=0 // pred_check_branch
    %23 = sbr.rel (0) target = $region25
  $region24: #{decoder_forward.23} parent=0 // pred_region
    _
  $region25: #{decoder_forward.23} parent=0 // pred_fallthru
    _
  // Predicated region
  $region26: #{decoder_forward.23} parent=0 // pred_check
    _
  $region27: #{decoder_forward.23} parent=0 // pred_check_branch
    %25 = sbr.rel (0) target = $region29
  $region28: #{decoder_forward.23} parent=0 // pred_region
    _
  $region29: #{decoder_forward.23} parent=0 // pred_fallthru
    _
  %p27 = scmp.eq.s32.totalorder 0, 0
  // Predicated region
  $region30: #{decoder_forward.23} parent=0 // pred_check
    %p28 = pneg %p27
  $region31: #{decoder_forward.23} parent=0 // pred_check_branch
    %30 = sbr.rel (%p28) target = $region33
  $region32: #{decoder_forward.23} parent=0 // pred_region
    %vm31 = vcmask 261120
    %32 = vst.msk [vmem:[#allocation2] sm:$0xff] %vm31, 0.0
    %33 = vst.msk [vmem:[#allocation2 + $0x8] sm:$0xff] %vm31, 0.0
    %v34 = vld [vmem:[%s0] sm:$0xff]
    %v35 = vld [vmem:[%s0 + $0x8] sm:$0xff]
    %v36 = vpack.c.bf16 %v35, %v34
    %v38 = vunpack.c.l.b16 %v36
    %v39 = vunpack.c.h.b16 %v36
    %v40 = vpack.c.b16 %v38, %v38
    %v41 = vpack.c.b16 %v39, %v39
    %vm44 = vcmask 257024
    %45 = vst.msk [vmem:[#allocation3] sm:$0xf] %vm44, %v40
    %46 = vst.msk [vmem:[#allocation3 + $0x4] sm:$0xf] %vm44, %v41
  $region33: #{decoder_forward.23} parent=0 // pred_fallthru
    _
  %v47 = vld [vmem:[#allocation3] sm:$0xf]
  %v48 = vld [vmem:[#allocation3 + $0x4] sm:$0xf]
  %v49 = vld [vmem:[%s1] sm:$0xf]
  %v50 = vld [vmem:[%s1 + $0x4] sm:$0xf]
  %v51 = vld [vmem:[%s1 + $0x8] sm:$0xf]
  %v52 = vld [vmem:[%s1 + $0xc] sm:$0xf]
  %v53 = vld [vmem:[%s2] sm:$0x1]
  %v55 = vlaneseq
  %v56 = vshrl.u32 %v55, 7
  %v57 = vsub.s32 0, %v56
  %v58 = vrot.slane %v53, %v57
  %v62 = vunpack.c.l.b16 %v47
  %v63 = vunpack.c.l.b16 %v48
  %v64 = vpack.c.b16 %v63, %v62
  %v69 = vunpack.c.l.b16 %v49
  %v70 = vunpack.c.l.b16 %v50
  %v71 = vunpack.c.l.b16 %v51
  %v72 = vunpack.c.l.b16 %v52
  %v73 = vpack.c.b16 %v70, %v69
  %v74 = vpack.c.b16 %v72, %v71
  %vm77 = vcmask 261120
  %v79 = vsel %vm77, %v64, 0
  %81 = vmatprep.subr.bf16.mxu0 0
  %82 = vmatpush1.bf16.msra.mxu0 0
  %83 = vmatprep.subr.bf16.mxu0 0
  %84 = vmatpush1.bf16.msra.mxu0 0
  %85 = vmatprep.subr.bf16.mxu0 0
  %86 = vmatpush1.bf16.msra.mxu0 0
  %87 = vmatprep.subr.bf16.mxu0 0
  %88 = vmatpush1.bf16.msra.mxu0 0
  %89 = vmatprep.subr.bf16.mxu0 0
  %90 = vmatpush1.bf16.msra.mxu0 0
  %91 = vmatprep.subr.bf16.mxu0 0
  %92 = vmatpush1.bf16.msra.mxu0 0
  %93 = vmatprep.subr.bf16.mxu0 0
  %94 = vmatpush1.bf16.msra.mxu0 %v74
  %95 = vmatprep.subr.bf16.mxu0 0
  %96 = vmatpush1.bf16.msra.mxu0 %v73
  %97 = vmatprep.subr.bf16.mxu0 0
  %98 = vmatpush2.bf16.msra.mxu0 0
  %99 = vmatprep.subr.bf16.mxu0 0
  %100 = vmatpush2.bf16.msra.mxu0 0
  %101 = vmatprep.subr.bf16.mxu0 0
  %102 = vmatpush2.bf16.msra.mxu0 0
  %103 = vmatprep.subr.bf16.mxu0 0
  %104 = vmatpush2.bf16.msra.mxu0 0
  %105 = vmatprep.subr.bf16.mxu0 0
  %106 = vmatpush2.bf16.msra.mxu0 0
  %107 = vmatprep.subr.bf16.mxu0 0
  %108 = vmatpush2.bf16.msra.mxu0 0
  %109 = vmatprep.subr.bf16.mxu0 0
  %110 = vmatpush2.bf16.msra.mxu0 0
  %111 = vmatprep.subr.bf16.mxu0 0
  %112 = vmatpush2.bf16.msra.mxu0 0
  %113 = vmatprep.mubr.bf16.mxu0 0
  %114 = vmatmul.mubr.bf16.gmra.mxu0 %v79
  %v115 = vpop.f32.mrf.mxu0
  %v116 = vadd.f32 %v58, %v115
  %v117 = vpop.f32.mrf.mxu0
  %v118 = vpop.f32.mrf.mxu0
  %v119 = vadd.f32 %v58, %v118
  %v120 = vpop.f32.mrf.mxu0
  %121 = vdwg.mxu0
  %v122 = vmax.f32 %v116, 0.0
  %v123 = vmax.f32 %v119, 0.0
  %v124 = vld [vmem:[#allocation2] sm:$0xff]
  %v125 = vld [vmem:[#allocation2 + $0x8] sm:$0xff]
  %v126 = vpack.c.bf16 %v123, %v122
  %v127 = vld [vmem:[%s3] sm:$0xf]
  %v128 = vld [vmem:[%s3 + $0x4] sm:$0xf]
  %v129 = vld [vmem:[%s3 + $0x8] sm:$0xf]
  %v130 = vld [vmem:[%s3 + $0xc] sm:$0xf]
  %v131 = vld [vmem:[%s3 + $0x10] sm:$0xf]
  %v132 = vld [vmem:[%s3 + $0x14] sm:$0xf]
  %v133 = vld [vmem:[%s3 + $0x18] sm:$0xf]
  %v134 = vld [vmem:[%s3 + $0x1c] sm:$0xf]
  %v143 = vunpack.c.l.b16 %v127
  %v144 = vunpack.c.l.b16 %v128
  %v145 = vunpack.c.l.b16 %v129
  %v146 = vunpack.c.l.b16 %v130
  %v147 = vunpack.c.l.b16 %v131
  %v148 = vunpack.c.l.b16 %v132
  %v149 = vunpack.c.l.b16 %v133
  %v150 = vunpack.c.l.b16 %v134
  %v151 = vpack.c.b16 %v144, %v143
  %v152 = vpack.c.b16 %v146, %v145
  %v153 = vpack.c.b16 %v148, %v147
  %v154 = vpack.c.b16 %v150, %v149
  %vm159 = vcmask 523264
  %v161 = vsel %vm159, %v126, 0
  %163 = vmatprep.subr.bf16.mxu0 0
  %164 = vmatpush1.bf16.msra.mxu0 0
  %165 = vmatprep.subr.bf16.mxu0 0
  %166 = vmatpush1.bf16.msra.mxu0 0
  %167 = vmatprep.subr.bf16.mxu0 0
  %168 = vmatpush1.bf16.msra.mxu0 0
  %169 = vmatprep.subr.bf16.mxu0 0
  %170 = vmatpush1.bf16.msra.mxu0 0
  %171 = vmatprep.subr.bf16.mxu0 0
  %172 = vmatpush1.bf16.msra.mxu0 %v154
  %173 = vmatprep.subr.bf16.mxu0 0
  %174 = vmatpush1.bf16.msra.mxu0 %v153
  %175 = vmatprep.subr.bf16.mxu0 0
  %176 = vmatpush1.bf16.msra.mxu0 %v152
  %177 = vmatprep.subr.bf16.mxu0 0
  %178 = vmatpush1.bf16.msra.mxu0 %v151
  %179 = vmatprep.subr.bf16.mxu0 0
  %180 = vmatpush2.bf16.msra.mxu0 0
  %181 = vmatprep.subr.bf16.mxu0 0
  %182 = vmatpush2.bf16.msra.mxu0 0
  %183 = vmatprep.subr.bf16.mxu0 0
  %184 = vmatpush2.bf16.msra.mxu0 0
  %185 = vmatprep.subr.bf16.mxu0 0
  %186 = vmatpush2.bf16.msra.mxu0 0
  %187 = vmatprep.subr.bf16.mxu0 0
  %188 = vmatpush2.bf16.msra.mxu0 0
  %189 = vmatprep.subr.bf16.mxu0 0
  %190 = vmatpush2.bf16.msra.mxu0 0
  %191 = vmatprep.subr.bf16.mxu0 0
  %192 = vmatpush2.bf16.msra.mxu0 0
  %193 = vmatprep.subr.bf16.mxu0 0
  %194 = vmatpush2.bf16.msra.mxu0 0
  %195 = vmatprep.mubr.bf16.mxu0 0
  %196 = vmatmul.mubr.bf16.gmra.mxu0 %v161
  %v197 = vpop.f32.mrf.mxu0
  %v198 = vadd.f32 0.0, %v197
  %v199 = vpop.f32.mrf.mxu0
  %v200 = vpop.f32.mrf.mxu0
  %v201 = vadd.f32 0.0, %v200
  %v202 = vpop.f32.mrf.mxu0
  %203 = vdwg.mxu0
  %v204 = vadd.f32 %v124, %v198
  %v205 = vadd.f32 %v125, %v201
  %206 = vst.msk [vmem:[#allocation2] sm:$0xff] %vm77, %v204
  %207 = vst.msk [vmem:[#allocation2 + $0x8] sm:$0xff] %vm77, %v205
  // Predicated region
  $region34: #{decoder_forward.23} parent=0 // pred_check
    %p208 = pneg %p27
  $region35: #{decoder_forward.23} parent=0 // pred_check_branch
    %210 = sbr.rel (%p208) target = $region37
  $region36: #{decoder_forward.23} parent=0 // pred_region
    %v211 = vld [vmem:[#allocation2] sm:$0xff]
    %v212 = vld [vmem:[#allocation2 + $0x8] sm:$0xff]
    %v213 = vld [vmem:[%s4] sm:$0x1]
    %v215 = vlaneseq
    %v216 = vshrl.u32 %v215, 7
    %v217 = vsub.s32 0, %v216
    %v218 = vrot.slane %v213, %v217
    %v220 = vadd.f32 %v211, %v218
    %v221 = vadd.f32 %v212, %v218
    %v222 = vld [vmem:[%s0] sm:$0xff]
    %v223 = vld [vmem:[%s0 + $0x8] sm:$0xff]
    %v224 = vadd.f32 %v220, %v222
    %v225 = vadd.f32 %v221, %v223
    %v226 = vsel %vm77, %v224, 0.0
    %227 = vadd.xlane.f32.xlu0 %v226
    %v228 = vpop.xlane.xlu0 %227
    %v229 = vsel %vm77, %v225, 0.0
    %230 = vadd.xlane.f32.xlu0 %v229
    %v231 = vpop.xlane.xlu0 %230
    %v232 = vrcp.pop 32.0
    %v233 = vmul.f32 %v228, %v232
    %v234 = vmul.f32 %v231, %v232
    %v235 = vsub.f32 %v224, %v233
    %v236 = vsub.f32 %v225, %v234
    %v237 = vmul.f32 %v235, %v235
    %v238 = vmul.f32 %v236, %v236
    %v239 = vsel %vm77, %v237, 0.0
    %240 = vadd.xlane.f32.xlu0 %v239
    %v241 = vpop.xlane.xlu0 %240
    %v242 = vsel %vm77, %v238, 0.0
    %243 = vadd.xlane.f32.xlu0 %v242
    %v244 = vpop.xlane.xlu0 %243
    %v245 = vmul.f32 %v241, %v232
    %v246 = vmul.f32 %v244, %v232
    %v247 = vadd.f32 %v245, 1e-05
    %v248 = vadd.f32 %v246, 1e-05
    %v249 = vrsqrt.pop %v247
    %v250 = vrsqrt.pop %v248
    %v251 = vmul.f32 %v235, %v249
    %v252 = vmul.f32 %v236, %v250
    %v253 = vld [vmem:[%s5] sm:$0x1]
    %v255 = vlaneseq
    %v256 = vshrl.u32 %v255, 7
    %v257 = vsub.s32 0, %v256
    %v258 = vrot.slane %v253, %v257
    %v260 = vmul.f32 %v251, %v258
    %v261 = vmul.f32 %v252, %v258
    %v262 = vld [vmem:[%s6] sm:$0x1]
    %v264 = vlaneseq
    %v265 = vshrl.u32 %v264, 7
    %v266 = vsub.s32 0, %v265
    %v267 = vrot.slane %v262, %v266
    %v269 = vadd.f32 %v260, %v267
    %v270 = vadd.f32 %v261, %v267
    %271 = vst.msk [vmem:[%s7] sm:$0xff] %vm77, %v269
    %272 = vst.msk [vmem:[%s7 + $0x8] sm:$0xff] %vm77, %v270
  $region37: #{decoder_forward.23} parent=0 // pred_fallthru
    _
  // Predicated region
  $region38: #{decoder_forward.23} parent=0 // pred_check
    _
  $region39: #{decoder_forward.23} parent=0 // pred_check_branch
    %274 = sbr.rel (0) target = $region41
  $region40: #{decoder_forward.23} parent=0 // pred_region
    _
  $region41: #{decoder_forward.23} parent=0 // pred_fallthru
    _
  // Predicated region
  $region42: #{decoder_forward.23} parent=0 // pred_check
    _
  $region43: #{decoder_forward.23} parent=0 // pred_check_branch
    %276 = sbr.rel (0) target = $region45
  $region44: #{decoder_forward.23} parent=0 // pred_region
    _
  $region45: #{decoder_forward.23} parent=0 // pred_fallthru
    _

// kernel: decoder_forward.21
$region0: #{decoder_forward.21}
  #allocation0 [shape = 'u32[]', space=smem, size = 0x4, offset = 0x4, fixed_abs, tag = 'smem constant byte address 0x4 - core index']
  #allocation1 [shape = 'u32[144,128]{1,0:T(1,128)}', space=vmem, size = 0x12000, scoped, tag = 'internal scratch']
  #allocation2 [shape = 'f32[8,4]{1,0:T(8,128)}', space=vmem, size = 0x1000, scoped, tag = 'scratch operand']
  #allocation3 [shape = 'f32[8,4]{1,0:T(8,128)}', space=vmem, size = 0x1000, scoped, tag = 'scratch operand']
  #allocation4 [shape = 'f32[8,32]{1,0:T(8,128)}', space=vmem, size = 0x1000, scoped, tag = 'scratch operand']
  %s0 = inlined_call_operand.vmem [shape: bf16[2,8,1,4,8], index: 0, kind: input, shape index: {}]
  %s1 = inlined_call_operand.vmem [shape: bf16[2,8,2,4,8], index: 1, kind: input, shape index: {}, may-alias: {1,2}]
  %s2 = inlined_call_operand.vmem [shape: bf16[2,8,2,4,8], index: 2, kind: input, shape index: {}, may-alias: {1,2}]
  %s3 = inlined_call_operand.vmem [shape: bf16[2,8,32], index: 3, kind: output, shape index: {}]
  %s4 = sld [smem:[#allocation0]]
  $region135: #{decoder_forward.21} parent=0
    _
  %s6 = ssub.s32 1, %s4
  %s7 = scalar_select 0, %s6, %s4
  $region1: #{decoder_forward.21} parent=0
    #allocation5 [shape = 'u8[16384]{0}', space=vmem, size = 0x4000, scoped, tag = 'input window, operand 1']
    #allocation6 [shape = 'u8[16384]{0}', space=vmem, size = 0x4000, scoped, tag = 'input window, operand 2']
    loop: start=0, step=1, limit=4
    $region2: #{decoder_forward.21} parent=1 // loop_pre_header
      _
    $region3: #{decoder_forward.21} parent=1 // loop_header
      %s9 = sphi 0, %s13
      %p10 = scmp.ge.s32.totalorder %s9, 4
      %s16 = sphi 0, %s35
      %s17 = sphi 0, %s31
      %s18 = sphi 0, %s27
      %s19 = sphi 0, %s16
      %s20 = sphi 0, %s17
      %s21 = sphi 0, %s18
      %s22 = sphi 0, %s19
      %s23 = sphi 0, %s20
      %s24 = sphi 0, %s21
      %s40 = sphi 0, %s42
      %s43 = sphi 0, %s40
      %s44 = sphi 0, %s43
      %s60 = sphi 0, %s44
      %s68 = sphi 0, %s70
      %s71 = sphi 0, %s68
      %s72 = sphi 0, %s71
      %s88 = sphi 0, %s72
      %s96 = sphi 0, %s98
      %s99 = sphi 0, %s96
      %s100 = sphi 0, %s99
      %s116 = sphi 0, %s100
      %s124 = sphi 0, %s126
      %s127 = sphi 0, %s124
      %s128 = sphi 0, %s127
      %s144 = sphi 0, %s128
    $region4: #{decoder_forward.21} parent=1 // loop_header_branch
      %12 = sbr.rel (%p10) target = $region8
    $region5: #{decoder_forward.21} parent=1 // loop_body
      %s14 = ssub.s32 %s9, 1
      %s15 = ssub.s32 %s9, 2
      %s25 = sadd.s32 1, %s18
      %p26 = scmp.ge.s32.totalorder %s25, 1
      %s27 = scalar_select %p26, 0, %s25
      %s28 = sadd.s32 1, %s17
      %s29 = scalar_select %p26, %s28, %s17
      %p30 = scmp.ge.s32.totalorder %s29, 1
      %s31 = scalar_select %p30, 0, %s29
      %s32 = sadd.s32 1, %s16
      %s33 = scalar_select %p30, %s32, %s16
      %p34 = scmp.ge.s32.totalorder %s33, 2
      %s35 = scalar_select %p34, 0, %s33
      %s36 = ssub.s32 %s16, %s35
      %s37 = ssub.s32 %s17, %s31
      %s38 = sor.u32 %s36, %s37
      %p39 = scmp.eq.s32.totalorder %s38, 0
      %s41 = sadd.s32 %s40, 1
      %s42 = scalar_select %p39, %s40, %s41
      %p45 = pneg %p39
      %p46 = scmp.eq.s32.totalorder %s9, 1
      %p47 = por %p45, %p46
      %p48 = scmp.ne.s32.totalorder %s40, %s43
      %p49 = scmp.eq.s32.totalorder %s9, 0
      %p50 = por %p48, %p49
      %p51 = scmp.ne.s32.totalorder %s40, %s43
      %p52 = scmp.eq.s32.totalorder %s14, 1
      %p53 = por %p51, %p52
      %p54 = scmp.ne.s32.totalorder %s43, %s44
      %p55 = scmp.eq.s32.totalorder %s14, 0
      %p56 = por %p54, %p55
      %p57 = scmp.ne.s32.totalorder %s43, %s44
      %p58 = scmp.eq.s32.totalorder %s15, 1
      %p59 = por %p57, %p58
      %p61 = scmp.ne.s32.totalorder %s44, %s60
      %p62 = scmp.eq.s32.totalorder %s15, 0
      %p63 = por %p61, %p62
      %s64 = ssub.s32 %s16, %s35
      %s65 = ssub.s32 %s18, %s27
      %s66 = sor.u32 %s64, %s65
      %p67 = scmp.eq.s32.totalorder %s66, 0
      %s69 = sadd.s32 %s68, 1
      %s70 = scalar_select %p67, %s68, %s69
      %p73 = pneg %p67
      %p74 = scmp.eq.s32.totalorder %s9, 1
      %p75 = por %p73, %p74
      %p76 = scmp.ne.s32.totalorder %s68, %s71
      %p77 = scmp.eq.s32.totalorder %s9, 0
      %p78 = por %p76, %p77
      %p79 = scmp.ne.s32.totalorder %s68, %s71
      %p80 = scmp.eq.s32.totalorder %s14, 1
      %p81 = por %p79, %p80
      %p82 = scmp.ne.s32.totalorder %s71, %s72
      %p83 = scmp.eq.s32.totalorder %s14, 0
      %p84 = por %p82, %p83
      %p85 = scmp.ne.s32.totalorder %s71, %s72
      %p86 = scmp.eq.s32.totalorder %s15, 1
      %p87 = por %p85, %p86
      %p89 = scmp.ne.s32.totalorder %s72, %s88
      %p90 = scmp.eq.s32.totalorder %s15, 0
      %p91 = por %p89, %p90
      %s92 = ssub.s32 %s16, %s35
      %s93 = ssub.s32 %s18, %s27
      %s94 = sor.u32 %s92, %s93
      %p95 = scmp.eq.s32.totalorder %s94, 0
      %s97 = sadd.s32 %s96, 1
      %s98 = scalar_select %p95, %s96, %s97
      %p101 = pneg %p95
      %p102 = scmp.eq.s32.totalorder %s9, 1
      %p103 = por %p101, %p102
      %p104 = scmp.ne.s32.totalorder %s96, %s99
      %p105 = scmp.eq.s32.totalorder %s9, 0
      %p106 = por %p104, %p105
      %p107 = scmp.ne.s32.totalorder %s96, %s99
      %p108 = scmp.eq.s32.totalorder %s14, 1
      %p109 = por %p107, %p108
      %p110 = scmp.ne.s32.totalorder %s99, %s100
      %p111 = scmp.eq.s32.totalorder %s14, 0
      %p112 = por %p110, %p111
      %p113 = scmp.ne.s32.totalorder %s99, %s100
      %p114 = scmp.eq.s32.totalorder %s15, 1
      %p115 = por %p113, %p114
      %p117 = scmp.ne.s32.totalorder %s100, %s116
      %p118 = scmp.eq.s32.totalorder %s15, 0
      %p119 = por %p117, %p118
      %s120 = ssub.s32 %s16, %s35
      %s121 = ssub.s32 %s17, %s31
      %s122 = sor.u32 %s120, %s121
      %p123 = scmp.eq.s32.totalorder %s122, 0
      %s125 = sadd.s32 %s124, 1
      %s126 = scalar_select %p123, %s124, %s125
      %p129 = pneg %p123
      %p130 = scmp.eq.s32.totalorder %s9, 1
      %p131 = por %p129, %p130
      %p132 = scmp.ne.s32.totalorder %s124, %s127
      %p133 = scmp.eq.s32.totalorder %s9, 0
      %p134 = por %p132, %p133
      %p135 = scmp.ne.s32.totalorder %s124, %s127
      %p136 = scmp.eq.s32.totalorder %s14, 1
      %p137 = por %p135, %p136
      %p138 = scmp.ne.s32.totalorder %s127, %s128
      %p139 = scmp.eq.s32.totalorder %s14, 0
      %p140 = por %p138, %p139
      %p141 = scmp.ne.s32.totalorder %s127, %s128
      %p142 = scmp.eq.s32.totalorder %s15, 1
      %p143 = por %p141, %p142
      %p145 = scmp.ne.s32.totalorder %s128, %s144
      %p146 = scmp.eq.s32.totalorder %s15, 0
      %p147 = por %p145, %p146
      %p148 = scmp.le.s32.totalorder 1, %s9
      %p149 = scmp.lt.s32.totalorder %s9, 3
      %p150 = pnand %p148, %p149
      %p151 = pneg %p150
      // Predicated region
      $region9: #{decoder_forward.21} parent=5 // pred_check
        _
      $region10: #{decoder_forward.21} parent=5 // pred_check_branch
        %153 = sbr.rel (%p150) target = $region12
      $region11: #{decoder_forward.21} parent=5 // pred_region
        %s154 = ssub.s32 %s9, 1
      $region12: #{decoder_forward.21} parent=5 // pred_fallthru
        _
      %p155 = scmp.lt.s32.totalorder %s9, 2
      // Predicated region
      $region13: #{decoder_forward.21} parent=5 // pred_check
        %p156 = pneg %p155
      $region14: #{decoder_forward.21} parent=5 // pred_check_branch
        %158 = sbr.rel (%p156) target = $region16
      $region15: #{decoder_forward.21} parent=5 // pred_region
        // Predicated region
        $region17: #{decoder_forward.21} parent=15 // pred_check
          %p159 = pneg %p50
        $region18: #{decoder_forward.21} parent=15 // pred_check_branch
          %161 = sbr.rel (%p159) target = $region20
        $region19: #{decoder_forward.21} parent=15 // pred_region
          %s162 = smul.u32 8, %s17
          %p163 = scmp.lt.s32.totalorder %s16, 1
          %s164 = scalar_select %p163, %s16, 1
          %p165 = scmp.lt.s32.totalorder %s162, 7
          %s166 = scalar_select %p165, %s162, 7
          %s167 = smul.addr %s164, 8
          %s168 = sadd.s32 %s166, %s167
          %s169 = smul.addr %s168, 2
          %s170 = scalar_lea.vmem %s0, %s169
          %s171 = smul.u32 8, %s17
        $region20: #{decoder_forward.21} parent=15 // pred_fallthru
          _
        // Predicated region
        $region21: #{decoder_forward.21} parent=15 // pred_check
          %p172 = pneg %p78
        $region22: #{decoder_forward.21} parent=15 // pred_check_branch
          %174 = sbr.rel (%p172) target = $region24
        $region23: #{decoder_forward.21} parent=15 // pred_region
          %s175 = sand.u32 %s68, 1
          %s176 = sand.u32 %s68, 1
          %s177 = smul.addr %s176, 16
          %s178 = scalar_lea.vmem [#allocation5], %s177
          %s179 = smul.u32 8, %s18
          %s180 = smul.addr %s179, 2
          %s181 = smul.addr %s16, 16
          %s182 = sadd.s32 %s180, %s181
          %s183 = smul.addr %s182, 2
          %s184 = scalar_lea.vmem %s1, %s183
          // Predicated region
          $region25: #{decoder_forward.21} parent=23 // pred_check
            _
          $region26: #{decoder_forward.21} parent=23 // pred_check_branch
            %186 = sbr.rel (0) target = $region28
          $region27: #{decoder_forward.21} parent=23 // pred_region
            // Predicated region
            $region29: #{decoder_forward.21} parent=27 // pred_check
              _
            $region30: #{decoder_forward.21} parent=27 // pred_check_branch
              %188 = sbr.rel target = $region32
            $region31: #{decoder_forward.21} parent=27 // pred_region
              // Predicated region
              $region44: #{decoder_forward.21} parent=31 // pred_check
                _
              $region45: #{decoder_forward.21} parent=31 // pred_check_branch
                %218 = sbr.rel (0) target = $region47
              $region46: #{decoder_forward.21} parent=31 // pred_region
                loop: start=0, step=1, limit=1
                $region48: #{decoder_forward.21} parent=46 // loop_pre_header
                  _
                $region49: #{decoder_forward.21} parent=46 // loop_header
                  %s220 = sphi 0, %s224
                  %p221 = scmp.ge.s32.totalorder %s220, 1
                  %s225 = sphi %s184, %s184
                  %s226 = sphi %s178, %s178
                $region50: #{decoder_forward.21} parent=46 // loop_header_branch
                  %223 = sbr.rel (%p221) target = $region54
                $region51: #{decoder_forward.21} parent=46 // loop_body
                  _
                $region52: #{decoder_forward.21} parent=46 // loop_footer
                  %s224 = sadd.s32 1, %s220
                $region53: #{decoder_forward.21} parent=46 // loop_footer_branch
                  %219 = sbr.rel target = $region49
                $region54: #{decoder_forward.21} parent=46 // loop_exit
                  _
                %s228 = ssub.s32 4, 1
                loop: start=0, step=1, limit=1
                $region55: #{decoder_forward.21} parent=46 // loop_pre_header
                  _
                $region56: #{decoder_forward.21} parent=46 // loop_header
                  %s230 = sphi 0, %s234
                  %p231 = scmp.ge.s32.totalorder %s230, 1
                  %s235 = sphi %s184, %s184
                  %s236 = sphi %s178, %s178
                $region57: #{decoder_forward.21} parent=46 // loop_header_branch
                  %233 = sbr.rel (%p231) target = $region61
                $region58: #{decoder_forward.21} parent=46 // loop_body
                  %v237 = vld [vmem:[%s235] sm:%s228]
                  %238 = vst [vmem:[%s236] sm:%s228] %v237
                  %v239 = vld [vmem:[%s235 + $0x4] sm:%s228]
                  %240 = vst [vmem:[%s236 + $0x2] sm:%s228] %v239
                  %v241 = vld [vmem:[%s235 + $0x8] sm:%s228]
                  %242 = vst [vmem:[%s236 + $0x4] sm:%s228] %v241
                  %v243 = vld [vmem:[%s235 + $0xc] sm:%s228]
                  %244 = vst [vmem:[%s236 + $0x6] sm:%s228] %v243
                  %v245 = vld [vmem:[%s235 + $0x10] sm:%s228]
                  %246 = vst [vmem:[%s236 + $0x8] sm:%s228] %v245
                  %v247 = vld [vmem:[%s235 + $0x14] sm:%s228]
                  %248 = vst [vmem:[%s236 + $0xa] sm:%s228] %v247
                  %v249 = vld [vmem:[%s235 + $0x18] sm:%s228]
                  %250 = vst [vmem:[%s236 + $0xc] sm:%s228] %v249
                  %v251 = vld [vmem:[%s235 + $0x1c] sm:%s228]
                  %252 = vst [vmem:[%s236 + $0xe] sm:%s228] %v251
                $region59: #{decoder_forward.21} parent=46 // loop_footer
                  %s234 = sadd.s32 1, %s230
                $region60: #{decoder_forward.21} parent=46 // loop_footer_branch
                  %229 = sbr.rel target = $region56
                $region61: #{decoder_forward.21} parent=46 // loop_exit
                  _
              $region47: #{decoder_forward.21} parent=31 // pred_fallthru
                _
            $region32: #{decoder_forward.21} parent=27 // pred_fallthru
              _
            // Predicated region
            $region33: #{decoder_forward.21} parent=27 // pred_check
              _
            $region34: #{decoder_forward.21} parent=27 // pred_check_branch
              %190 = sbr.rel (0) target = $region36
            $region35: #{decoder_forward.21} parent=27 // pred_region
              %s192 = ssub.s32 4, 1
              loop: start=0, step=1, limit=1
              $region37: #{decoder_forward.21} parent=35 // loop_pre_header
                _
              $region38: #{decoder_forward.21} parent=35 // loop_header
                %s194 = sphi 0, %s198
                %p195 = scmp.ge.s32.totalorder %s194, 1
                %s199 = sphi %s184, %s184
                %s200 = sphi %s178, %s178
              $region39: #{decoder_forward.21} parent=35 // loop_header_branch
                %197 = sbr.rel (%p195) target = $region43
              $region40: #{decoder_forward.21} parent=35 // loop_body
                %v201 = vld [vmem:[%s199] sm:%s192]
                %202 = vst [vmem:[%s200] sm:%s192] %v201
                %v203 = vld [vmem:[%s199 + $0x4] sm:%s192]
                %204 = vst [vmem:[%s200 + $0x2] sm:%s192] %v203
                %v205 = vld [vmem:[%s199 + $0x8] sm:%s192]
                %206 = vst [vmem:[%s200 + $0x4] sm:%s192] %v205
                %v207 = vld [vmem:[%s199 + $0xc] sm:%s192]
                %208 = vst [vmem:[%s200 + $0x6] sm:%s192] %v207
                %v209 = vld [vmem:[%s199 + $0x10] sm:%s192]
                %210 = vst [vmem:[%s200 + $0x8] sm:%s192] %v209
                %v211 = vld [vmem:[%s199 + $0x14] sm:%s192]
                %212 = vst [vmem:[%s200 + $0xa] sm:%s192] %v211
                %v213 = vld [vmem:[%s199 + $0x18] sm:%s192]
                %214 = vst [vmem:[%s200 + $0xc] sm:%s192] %v213
                %v215 = vld [vmem:[%s199 + $0x1c] sm:%s192]
                %216 = vst [vmem:[%s200 + $0xe] sm:%s192] %v215
              $region41: #{decoder_forward.21} parent=35 // loop_footer
                %s198 = sadd.s32 1, %s194
              $region42: #{decoder_forward.21} parent=35 // loop_footer_branch
                %193 = sbr.rel target = $region38
              $region43: #{decoder_forward.21} parent=35 // loop_exit
                _
            $region36: #{decoder_forward.21} parent=27 // pred_fallthru
              _
          $region28: #{decoder_forward.21} parent=23 // pred_fallthru
            _
          %253 = vnop
        $region24: #{decoder_forward.21} parent=15 // pred_fallthru
          _
        // Predicated region
        $region62: #{decoder_forward.21} parent=15 // pred_check
          %p254 = pneg %p106
        $region63: #{decoder_forward.21} parent=15 // pred_check_branch
          %256 = sbr.rel (%p254) target = $region65
        $region64: #{decoder_forward.21} parent=15 // pred_region
          %s257 = sand.u32 %s96, 1
          %s258 = sand.u32 %s96, 1
          %s259 = smul.addr %s258, 16
          %s260 = scalar_lea.vmem [#allocation6], %s259
          %s261 = smul.u32 8, %s18
          %s262 = smul.addr %s261, 2
          %s263 = sadd.s32 1, %s262
          %s264 = smul.addr %s16, 16
          %s265 = sadd.s32 %s263, %s264
          %s266 = smul.addr %s265, 2
          %s267 = scalar_lea.vmem %s2, %s266
          // Predicated region
          $region66: #{decoder_forward.21} parent=64 // pred_check
            _
          $region67: #{decoder_forward.21} parent=64 // pred_check_branch
            %269 = sbr.rel (0) target = $region69
          $region68: #{decoder_forward.21} parent=64 // pred_region
            // Predicated region
            $region70: #{decoder_forward.21} parent=68 // pred_check
              _
            $region71: #{decoder_forward.21} parent=68 // pred_check_branch
              %271 = sbr.rel target = $region73
            $region72: #{decoder_forward.21} parent=68 // pred_region
              // Predicated region
              $region85: #{decoder_forward.21} parent=72 // pred_check
                _
              $region86: #{decoder_forward.21} parent=72 // pred_check_branch
                %301 = sbr.rel (0) target = $region88
              $region87: #{decoder_forward.21} parent=72 // pred_region
                loop: start=0, step=1, limit=1
                $region89: #{decoder_forward.21} parent=87 // loop_pre_header
                  _
                $region90: #{decoder_forward.21} parent=87 // loop_header
                  %s303 = sphi 0, %s307
                  %p304 = scmp.ge.s32.totalorder %s303, 1
                  %s308 = sphi %s267, %s267
                  %s309 = sphi %s260, %s260
                $region91: #{decoder_forward.21} parent=87 // loop_header_branch
                  %306 = sbr.rel (%p304) target = $region95
                $region92: #{decoder_forward.21} parent=87 // loop_body
                  _
                $region93: #{decoder_forward.21} parent=87 // loop_footer
                  %s307 = sadd.s32 1, %s303
                $region94: #{decoder_forward.21} parent=87 // loop_footer_branch
                  %302 = sbr.rel target = $region90
                $region95: #{decoder_forward.21} parent=87 // loop_exit
                  _
                %s311 = ssub.s32 4, 1
                loop: start=0, step=1, limit=1
                $region96: #{decoder_forward.21} parent=87 // loop_pre_header
                  _
                $region97: #{decoder_forward.21} parent=87 // loop_header
                  %s313 = sphi 0, %s317
                  %p314 = scmp.ge.s32.totalorder %s313, 1
                  %s318 = sphi %s267, %s267
                  %s319 = sphi %s260, %s260
                $region98: #{decoder_forward.21} parent=87 // loop_header_branch
                  %316 = sbr.rel (%p314) target = $region102
                $region99: #{decoder_forward.21} parent=87 // loop_body
                  %v320 = vld [vmem:[%s318] sm:%s311]
                  %321 = vst [vmem:[%s319] sm:%s311] %v320
                  %v322 = vld [vmem:[%s318 + $0x4] sm:%s311]
                  %323 = vst [vmem:[%s319 + $0x2] sm:%s311] %v322
                  %v324 = vld [vmem:[%s318 + $0x8] sm:%s311]
                  %325 = vst [vmem:[%s319 + $0x4] sm:%s311] %v324
                  %v326 = vld [vmem:[%s318 + $0xc] sm:%s311]
                  %327 = vst [vmem:[%s319 + $0x6] sm:%s311] %v326
                  %v328 = vld [vmem:[%s318 + $0x10] sm:%s311]
                  %329 = vst [vmem:[%s319 + $0x8] sm:%s311] %v328
                  %v330 = vld [vmem:[%s318 + $0x14] sm:%s311]
                  %331 = vst [vmem:[%s319 + $0xa] sm:%s311] %v330
                  %v332 = vld [vmem:[%s318 + $0x18] sm:%s311]
                  %333 = vst [vmem:[%s319 + $0xc] sm:%s311] %v332
                  %v334 = vld [vmem:[%s318 + $0x1c] sm:%s311]
                  %335 = vst [vmem:[%s319 + $0xe] sm:%s311] %v334
                $region100: #{decoder_forward.21} parent=87 // loop_footer
                  %s317 = sadd.s32 1, %s313
                $region101: #{decoder_forward.21} parent=87 // loop_footer_branch
                  %312 = sbr.rel target = $region97
                $region102: #{decoder_forward.21} parent=87 // loop_exit
                  _
              $region88: #{decoder_forward.21} parent=72 // pred_fallthru
                _
            $region73: #{decoder_forward.21} parent=68 // pred_fallthru
              _
            // Predicated region
            $region74: #{decoder_forward.21} parent=68 // pred_check
              _
            $region75: #{decoder_forward.21} parent=68 // pred_check_branch
              %273 = sbr.rel (0) target = $region77
            $region76: #{decoder_forward.21} parent=68 // pred_region
              %s275 = ssub.s32 4, 1
              loop: start=0, step=1, limit=1
              $region78: #{decoder_forward.21} parent=76 // loop_pre_header
                _
              $region79: #{decoder_forward.21} parent=76 // loop_header
                %s277 = sphi 0, %s281
                %p278 = scmp.ge.s32.totalorder %s277, 1
                %s282 = sphi %s267, %s267
                %s283 = sphi %s260, %s260
              $region80: #{decoder_forward.21} parent=76 // loop_header_branch
                %280 = sbr.rel (%p278) target = $region84
              $region81: #{decoder_forward.21} parent=76 // loop_body
                %v284 = vld [vmem:[%s282] sm:%s275]
                %285 = vst [vmem:[%s283] sm:%s275] %v284
                %v286 = vld [vmem:[%s282 + $0x4] sm:%s275]
                %287 = vst [vmem:[%s283 + $0x2] sm:%s275] %v286
                %v288 = vld [vmem:[%s282 + $0x8] sm:%s275]
                %289 = vst [vmem:[%s283 + $0x4] sm:%s275] %v288
                %v290 = vld [vmem:[%s282 + $0xc] sm:%s275]
                %291 = vst [vmem:[%s283 + $0x6] sm:%s275] %v290
                %v292 = vld [vmem:[%s282 + $0x10] sm:%s275]
                %293 = vst [vmem:[%s283 + $0x8] sm:%s275] %v292
                %v294 = vld [vmem:[%s282 + $0x14] sm:%s275]
                %295 = vst [vmem:[%s283 + $0xa] sm:%s275] %v294
                %v296 = vld [vmem:[%s282 + $0x18] sm:%s275]
                %297 = vst [vmem:[%s283 + $0xc] sm:%s275] %v296
                %v298 = vld [vmem:[%s282 + $0x1c] sm:%s275]
                %299 = vst [vmem:[%s283 + $0xe] sm:%s275] %v298
              $region82: #{decoder_forward.21} parent=76 // loop_footer
                %s281 = sadd.s32 1, %s277
              $region83: #{decoder_forward.21} parent=76 // loop_footer_branch
                %276 = sbr.rel target = $region79
              $region84: #{decoder_forward.21} parent=76 // loop_exit
                _
            $region77: #{decoder_forward.21} parent=68 // pred_fallthru
              _
          $region69: #{decoder_forward.21} parent=64 // pred_fallthru
            _
          %336 = vnop
        $region65: #{decoder_forward.21} parent=15 // pred_fallthru
          _
      $region16: #{decoder_forward.21} parent=5 // pred_fallthru
        _
      %p337 = scmp.le.s32.totalorder 1, %s9
      %p338 = scmp.lt.s32.totalorder %s9, 3
      %p339 = pnand %p337, %p338
      %p340 = pneg %p339
      // Predicated region
      $region103: #{decoder_forward.21} parent=5 // pred_check
        _
      $region104: #{decoder_forward.21} parent=5 // pred_check_branch
        %342 = sbr.rel (%p339) target = $region106
      $region105: #{decoder_forward.21} parent=5 // pred_region
        %s343 = ssub.s32 %s9, 1
        %s344 = sand.u32 %s71, 1
        %s345 = sand.u32 %s71, 1
        %s346 = smul.addr %s345, 16
        %s347 = scalar_lea.vmem [#allocation5], %s346
        // Predicated region
        $region107: #{decoder_forward.21} parent=105 // pred_check
          %p348 = pneg %p84
        $region108: #{decoder_forward.21} parent=105 // pred_check_branch
          %350 = sbr.rel (%p348) target = $region110
        $region109: #{decoder_forward.21} parent=105 // pred_region
          _
        $region110: #{decoder_forward.21} parent=105 // pred_fallthru
          _
        %s351 = sand.u32 %s99, 1
        %s352 = sand.u32 %s99, 1
        %s353 = smul.addr %s352, 16
        %s354 = scalar_lea.vmem [#allocation6], %s353
        // Predicated region
        $region111: #{decoder_forward.21} parent=105 // pred_check
          %p355 = pneg %p112
        $region112: #{decoder_forward.21} parent=105 // pred_check_branch
          %357 = sbr.rel (%p355) target = $region114
        $region113: #{decoder_forward.21} parent=105 // pred_region
          _
        $region114: #{decoder_forward.21} parent=105 // pred_fallthru
          _
        %s358 = smul.u32 8, %s20
        %p359 = scmp.lt.s32.totalorder %s19, 1
        %s360 = scalar_select %p359, %s19, 1
        %p361 = scmp.lt.s32.totalorder %s358, 7
        %s362 = scalar_select %p361, %s358, 7
        %s363 = smul.addr %s360, 8
        %s364 = sadd.s32 %s362, %s363
        %s365 = smul.addr %s364, 2
        %s366 = scalar_lea.vmem %s0, %s365
        %p367 = pneg %p56
        %p368 = pneg %p53
        %s369 = sand.u32 %s71, 1
        %s370 = sand.u32 %s71, 1
        %s371 = smul.addr %s370, 16
        %s372 = scalar_lea.vmem [#allocation5], %s371
        %p373 = pneg %p84
        %p374 = pneg %p81
        %s375 = sand.u32 %s99, 1
        %s376 = sand.u32 %s99, 1
        %s377 = smul.addr %s376, 16
        %s378 = scalar_lea.vmem [#allocation6], %s377
        %p379 = pneg %p112
        %p380 = pneg %p109
        %p381 = pneg %p140
        %p382 = pneg %p137
        %p383 = scmp.lt.s32.totalorder %s19, 1
        %s384 = scalar_select %p383, %s19, 1
        %p385 = scmp.lt.s32.totalorder %s20, 0
        %s386 = scalar_select %p385, %s20, 0
        %s387 = sadd.s32 %s386, %s384
        %s388 = smul.addr %s387, 4
        %s389 = scalar_lea.vmem %s3, %s388
        %s390 = smul.u32 8, %s20
        %p391 = scmp.lt.s32.totalorder %s19, 1
        %s392 = scalar_select %p391, %s19, 1
        %p393 = scmp.lt.s32.totalorder %s390, 7
        %s394 = scalar_select %p393, %s390, 7
        %s395 = smul.addr %s392, 8
        %s396 = sadd.s32 %s394, %s395
        %s397 = smul.addr %s396, 2
        %s398 = scalar_lea.vmem %s0, %s397
        %s399 = smul.u32 8, %s20
        %s400 = smul.u32 8, %s21
        %s401 = smul.u32 8, %s21
        %p402 = scmp.lt.s32.totalorder %s19, 1
        %s403 = scalar_select %p402, %s19, 1
        %p404 = scmp.lt.s32.totalorder %s20, 0
        %s405 = scalar_select %p404, %s20, 0
        %s406 = sadd.s32 %s405, %s403
        %s407 = smul.addr %s406, 4
        %s408 = scalar_lea.vmem %s3, %s407
        %p410 = scmp.eq.s32.totalorder %s21, 0
        // Predicated region
        $region115: #{decoder_forward.21} parent=105 // pred_check
          %p411 = pneg %p410
        $region116: #{decoder_forward.21} parent=105 // pred_check_branch
          %413 = sbr.rel (%p411) target = $region118
        $region117: #{decoder_forward.21} parent=105 // pred_region
          %vm414 = vcmask 31744
          %415 = vst.msk [vmem:[#allocation2] sm:$0xff] %vm414, -inf
          %416 = vst.msk [vmem:[#allocation3] sm:$0xff] %vm414, 0.0
          %vm417 = vcmask 261120
          %418 = vst.msk [vmem:[#allocation4] sm:$0xff] %vm417, 0.0
        $region118: #{decoder_forward.21} parent=105 // pred_fallthru
          _
        %v419 = vld [vmem:[%s398] sm:$0x1]
        %v420 = vld [vmem:[%s398 + $0x2] sm:$0x1]
        %v421 = vld [vmem:[%s398 + $0x4] sm:$0x1]
        %v422 = vld [vmem:[%s398 + $0x6] sm:$0x1]
        %v423 = vld [vmem:[%s398 + $0x8] sm:$0x1]
        %v424 = vld [vmem:[%s398 + $0xa] sm:$0x1]
        %v425 = vld [vmem:[%s398 + $0xc] sm:$0x1]
        %v426 = vld [vmem:[%s398 + $0xe] sm:$0x1]
        %v427 = vld [vmem:[%s347] sm:$0x1]
        %v428 = vld [vmem:[%s347 + $0x2] sm:$0x1]
        %v429 = vld [vmem:[%s347 + $0x4] sm:$0x1]
        %v430 = vld [vmem:[%s347 + $0x6] sm:$0x1]
        %v431 = vld [vmem:[%s347 + $0x8] sm:$0x1]
        %v432 = vld [vmem:[%s347 + $0xa] sm:$0x1]
        %v433 = vld [vmem:[%s347 + $0xc] sm:$0x1]
        %v434 = vld [vmem:[%s347 + $0xe] sm:$0x1]
        %v435 = vld [vmem:[%s354] sm:$0x1]
        %v436 = vld [vmem:[%s354 + $0x2] sm:$0x1]
        %v437 = vld [vmem:[%s354 + $0x4] sm:$0x1]
        %v438 = vld [vmem:[%s354 + $0x6] sm:$0x1]
        %v439 = vld [vmem:[%s354 + $0x8] sm:$0x1]
        %v440 = vld [vmem:[%s354 + $0xa] sm:$0x1]
        %v441 = vld [vmem:[%s354 + $0xc] sm:$0x1]
        %v442 = vld [vmem:[%s354 + $0xe] sm:$0x1]
        %v452 = vunpack.c.l.s4 1983009808
        %v453 = vunpack.c.0.s8 %v452
        %v454 = vlaneseq
        %v455 = vshrl.u32 %v454, 7
        %v456 = vsub.s32 %v453, %v455
        %v457 = vrot.slane %v419, %v456
        %v459 = vunpack.c.l.s4 1983009808
        %v460 = vunpack.c.0.s8 %v459
        %v461 = vlaneseq
        %v462 = vshrl.u32 %v461, 7
        %v463 = vsub.s32 %v460, %v462
        %v464 = vrot.slane %v420, %v463
        %v466 = vunpack.c.l.s4 1983009808
        %v467 = vunpack.c.0.s8 %v466
        %v468 = vlaneseq
        %v469 = vshrl.u32 %v468, 7
        %v470 = vsub.s32 %v467, %v469
        %v471 = vrot.slane %v421, %v470
        %v473 = vunpack.c.l.s4 1983009808
        %v474 = vunpack.c.0.s8 %v473
        %v475 = vlaneseq
        %v476 = vshrl.u32 %v475, 7
        %v477 = vsub.s32 %v474, %v476
        %v478 = vrot.slane %v422, %v477
        %v480 = vunpack.c.l.s4 1983009808
        %v481 = vunpack.c.0.s8 %v480
        %v482 = vlaneseq
        %v483 = vshrl.u32 %v482, 7
        %v484 = vsub.s32 %v481, %v483
        %v485 = vrot.slane %v423, %v484
        %v487 = vunpack.c.l.s4 1983009808
        %v488 = vunpack.c.0.s8 %v487
        %v489 = vlaneseq
        %v490 = vshrl.u32 %v489, 7
        %v491 = vsub.s32 %v488, %v490
        %v492 = vrot.slane %v424, %v491
        %v494 = vunpack.c.l.s4 1983009808
        %v495 = vunpack.c.0.s8 %v494
        %v496 = vlaneseq
        %v497 = vshrl.u32 %v496, 7
        %v498 = vsub.s32 %v495, %v497
        %v499 = vrot.slane %v425, %v498
        %v501 = vunpack.c.l.s4 1983009808
        %v502 = vunpack.c.0.s8 %v501
        %v503 = vlaneseq
        %v504 = vshrl.u32 %v503, 7
        %v505 = vsub.s32 %v502, %v504
        %v506 = vrot.slane %v426, %v505
        %v507 = vunpack.c.l.b16 %v457
        %v508 = vunpack.c.l.b16 %v464
        %v509 = vunpack.c.l.b16 %v471
        %v510 = vunpack.c.l.b16 %v478
        %v511 = vunpack.c.l.b16 %v485
        %v512 = vunpack.c.l.b16 %v492
        %v513 = vunpack.c.l.b16 %v499
        %v514 = vunpack.c.l.b16 %v506
        %v515 = vrot.slane %v508, 7
        %vm516 = vcmask 1041409
        %v517 = vsel %vm516, %v515, %v507
        %v518 = vrot.slane %v509, 6
        %vm519 = vcmask 1042434
        %v520 = vsel %vm519, %v518, %v517
        %v521 = vrot.slane %v510, 5
        %vm522 = vcmask 1043459
        %v523 = vsel %vm522, %v521, %v520
        %v524 = vrot.slane %v511, 4
        %vm525 = vcmask 1044484
        %v526 = vsel %vm525, %v524, %v523
        %v527 = vrot.slane %v512, 3
        %vm528 = vcmask 1045509
        %v529 = vsel %vm528, %v527, %v526
        %v530 = vrot.slane %v513, 2
        %vm531 = vcmask 1046534
        %v532 = vsel %vm531, %v530, %v529
        %v533 = vrot.slane %v514, 1
        %vm534 = vcmask 1047559
        %v535 = vsel %vm534, %v533, %v532
        %v536 = vpack.c.b16 %v535, %v535
        %v546 = vunpack.c.l.s4 1983009808
        %v547 = vunpack.c.0.s8 %v546
        %v548 = vlaneseq
        %v549 = vshrl.u32 %v548, 7
        %v550 = vsub.s32 %v547, %v549
        %v551 = vrot.slane %v427, %v550
        %v553 = vunpack.c.l.s4 1983009808
        %v554 = vunpack.c.0.s8 %v553
        %v555 = vlaneseq
        %v556 = vshrl.u32 %v555, 7
        %v557 = vsub.s32 %v554, %v556
        %v558 = vrot.slane %v428, %v557
        %v560 = vunpack.c.l.s4 1983009808
        %v561 = vunpack.c.0.s8 %v560
        %v562 = vlaneseq
        %v563 = vshrl.u32 %v562, 7
        %v564 = vsub.s32 %v561, %v563
        %v565 = vrot.slane %v429, %v564
        %v567 = vunpack.c.l.s4 1983009808
        %v568 = vunpack.c.0.s8 %v567
        %v569 = vlaneseq
        %v570 = vshrl.u32 %v569, 7
        %v571 = vsub.s32 %v568, %v570
        %v572 = vrot.slane %v430, %v571
        %v574 = vunpack.c.l.s4 1983009808
        %v575 = vunpack.c.0.s8 %v574
        %v576 = vlaneseq
        %v577 = vshrl.u32 %v576, 7
        %v578 = vsub.s32 %v575, %v577
        %v579 = vrot.slane %v431, %v578
        %v581 = vunpack.c.l.s4 1983009808
        %v582 = vunpack.c.0.s8 %v581
        %v583 = vlaneseq
        %v584 = vshrl.u32 %v583, 7
        %v585 = vsub.s32 %v582, %v584
        %v586 = vrot.slane %v432, %v585
        %v588 = vunpack.c.l.s4 1983009808
        %v589 = vunpack.c.0.s8 %v588
        %v590 = vlaneseq
        %v591 = vshrl.u32 %v590, 7
        %v592 = vsub.s32 %v589, %v591
        %v593 = vrot.slane %v433, %v592
        %v595 = vunpack.c.l.s4 1983009808
        %v596 = vunpack.c.0.s8 %v595
        %v597 = vlaneseq
        %v598 = vshrl.u32 %v597, 7
        %v599 = vsub.s32 %v596, %v598
        %v600 = vrot.slane %v434, %v599
        %v601 = vunpack.c.l.b16 %v551
        %v602 = vunpack.c.l.b16 %v558
        %v603 = vunpack.c.l.b16 %v565
        %v604 = vunpack.c.l.b16 %v572
        %v605 = vunpack.c.l.b16 %v579
        %v606 = vunpack.c.l.b16 %v586
        %v607 = vunpack.c.l.b16 %v593
        %v608 = vunpack.c.l.b16 %v600
        %v609 = vrot.slane %v602, 7
        %v610 = vsel %vm516, %v609, %v601
        %v611 = vrot.slane %v603, 6
        %v612 = vsel %vm519, %v611, %v610
        %v613 = vrot.slane %v604, 5
        %v614 = vsel %vm522, %v613, %v612
        %v615 = vrot.slane %v605, 4
        %v616 = vsel %vm525, %v615, %v614
        %v617 = vrot.slane %v606, 3
        %v618 = vsel %vm528, %v617, %v616
        %v619 = vrot.slane %v607, 2
        %v620 = vsel %vm531, %v619, %v618
        %v621 = vrot.slane %v608, 1
        %v622 = vsel %vm534, %v621, %v620
        %v623 = vpack.c.b16 %v622, %v622
        %vm624 = vcmask 64512
        %v626 = vsel %vm624, %v536, 0
        %v629 = vsel %vm624, %v623, 0
        %631 = vmatprep.subr.bf16.mxu0 0
        %632 = vmatpush1.bf16.xpose.msra.mxu0 0
        %633 = vmatprep.subr.bf16.mxu0 0
        %634 = vmatpush1.bf16.xpose.msra.mxu0 0
        %635 = vmatprep.subr.bf16.mxu0 0
        %636 = vmatpush1.bf16.xpose.msra.mxu0 0
        %637 = vmatprep.subr.bf16.mxu0 0
        %638 = vmatpush1.bf16.xpose.msra.mxu0 0
        %639 = vmatprep.subr.bf16.mxu0 0
        %640 = vmatpush1.bf16.xpose.msra.mxu0 0
        %641 = vmatprep.subr.bf16.mxu0 0
        %642 = vmatpush1.bf16.xpose.msra.mxu0 0
        %643 = vmatprep.subr.bf16.mxu0 0
        %644 = vmatpush1.bf16.xpose.msra.mxu0 0
        %645 = vmatprep.subr.bf16.mxu0 0
        %646 = vmatpush1.bf16.xpose.msra.mxu0 %v629
        %647 = vmatprep.subr.bf16.mxu0 0
        %648 = vmatpush2.bf16.xpose.msra.mxu0 0
        %649 = vmatprep.subr.bf16.mxu0 0
        %650 = vmatpush2.bf16.xpose.msra.mxu0 0
        %651 = vmatprep.subr.bf16.mxu0 0
        %652 = vmatpush2.bf16.xpose.msra.mxu0 0
        %653 = vmatprep.subr.bf16.mxu0 0
        %654 = vmatpush2.bf16.xpose.msra.mxu0 0
        %655 = vmatprep.subr.bf16.mxu0 0
        %656 = vmatpush2.bf16.xpose.msra.mxu0 0
        %657 = vmatprep.subr.bf16.mxu0 0
        %658 = vmatpush2.bf16.xpose.msra.mxu0 0
        %659 = vmatprep.subr.bf16.mxu0 0
        %660 = vmatpush2.bf16.xpose.msra.mxu0 0
        %661 = vmatprep.subr.bf16.mxu0 0
        %662 = vmatpush2.bf16.xpose.msra.mxu0 0
        %663 = vmatprep.mubr.bf16.mxu0 0
        %664 = vmatmul.mubr.bf16.gmra.mxu0 %v626
        %v665 = vpop.f32.mrf.mxu0
        %v666 = vadd.f32 0.0, %v665
        %v667 = vpop.f32.mrf.mxu0
        %v668 = vpop.f32.mrf.mxu0
        %v669 = vpop.f32.mrf.mxu0
        %670 = vdwg.mxu0
        %v671 = vmul.f32 %v666, 0.35355338
        %v672 = vld [vmem:[#allocation2] sm:$0xff]
        %v673 = vsel %vm624, %v671, -inf
        %674 = vmax.xlane.f32.xlu0 %v673
        %v675 = vpop.xlane.xlu0 %674
        %v676 = vmax.f32 %v672, %v675
        %v677 = vsub.f32 %v672, %v676
        %v678 = vmul.f32 %v677, 1.442695
        %v679 = vpow.pop %v678
        %681 = vset.pattern.permute.xlu0 0
        %682 = vperm.xlu0 %681, %v676
        %v683 = vpop.permute.xlu0 %682
        %v685 = vsub.f32 %v671, %v683
        %v686 = vmul.f32 %v685, 1.442695
        %v687 = vpow.pop %v686
        %v688 = vld [vmem:[#allocation3] sm:$0xff]
        %v689 = vmul.f32 %v679, %v688
        %v690 = vsel %vm624, %v687, 0.0
        %691 = vadd.xlane.f32.xlu0 %v690
        %v692 = vpop.xlane.xlu0 %691
        %v693 = vadd.f32 %v689, %v692
        %vm694 = vcmask 7168
        %695 = vst.msk [vmem:[#allocation3] sm:$0xff] %vm694, %v693
        %v696 = vld [vmem:[#allocation4] sm:$0xff]
        %698 = vset.pattern.permute.xlu0 0
        %699 = vperm.xlu0 %698, %v679
        %v700 = vpop.permute.xlu0 %699
        %v702 = vmul.f32 %v700, %v696
        %v703 = vpack.c.bf16 %v687, %v687
        %v713 = vunpack.c.l.s4 1983009808
        %v714 = vunpack.c.0.s8 %v713
        %v715 = vlaneseq
        %v716 = vshrl.u32 %v715, 7
        %v717 = vsub.s32 %v714, %v716
        %v718 = vrot.slane %v435, %v717
        %v720 = vunpack.c.l.s4 1983009808
        %v721 = vunpack.c.0.s8 %v720
        %v722 = vlaneseq
        %v723 = vshrl.u32 %v722, 7
        %v724 = vsub.s32 %v721, %v723
        %v725 = vrot.slane %v436, %v724
        %v727 = vunpack.c.l.s4 1983009808
        %v728 = vunpack.c.0.s8 %v727
        %v729 = vlaneseq
        %v730 = vshrl.u32 %v729, 7
        %v731 = vsub.s32 %v728, %v730
        %v732 = vrot.slane %v437, %v731
        %v734 = vunpack.c.l.s4 1983009808
        %v735 = vunpack.c.0.s8 %v734
        %v736 = vlaneseq
        %v737 = vshrl.u32 %v736, 7
        %v738 = vsub.s32 %v735, %v737
        %v739 = vrot.slane %v438, %v738
        %v741 = vunpack.c.l.s4 1983009808
        %v742 = vunpack.c.0.s8 %v741
        %v743 = vlaneseq
        %v744 = vshrl.u32 %v743, 7
        %v745 = vsub.s32 %v742, %v744
        %v746 = vrot.slane %v439, %v745
        %v748 = vunpack.c.l.s4 1983009808
        %v749 = vunpack.c.0.s8 %v748
        %v750 = vlaneseq
        %v751 = vshrl.u32 %v750, 7
        %v752 = vsub.s32 %v749, %v751
        %v753 = vrot.slane %v440, %v752
        %v755 = vunpack.c.l.s4 1983009808
        %v756 = vunpack.c.0.s8 %v755
        %v757 = vlaneseq
        %v758 = vshrl.u32 %v757, 7
        %v759 = vsub.s32 %v756, %v758
        %v760 = vrot.slane %v441, %v759
        %v762 = vunpack.c.l.s4 1983009808
        %v763 = vunpack.c.0.s8 %v762
        %v764 = vlaneseq
        %v765 = vshrl.u32 %v764, 7
        %v766 = vsub.s32 %v763, %v765
        %v767 = vrot.slane %v442, %v766
        %v768 = vunpack.c.l.b16 %v718
        %v769 = vunpack.c.l.b16 %v725
        %v770 = vunpack.c.l.b16 %v732
        %v771 = vunpack.c.l.b16 %v739
        %v772 = vunpack.c.l.b16 %v746
        %v773 = vunpack.c.l.b16 %v753
        %v774 = vunpack.c.l.b16 %v760
        %v775 = vunpack.c.l.b16 %v767
        %v776 = vrot.slane %v769, 7
        %v777 = vsel %vm516, %v776, %v768
        %v778 = vrot.slane %v770, 6
        %v779 = vsel %vm519, %v778, %v777
        %v780 = vrot.slane %v771, 5
        %v781 = vsel %vm522, %v780, %v779
        %v782 = vrot.slane %v772, 4
        %v783 = vsel %vm525, %v782, %v781
        %v784 = vrot.slane %v773, 3
        %v785 = vsel %vm528, %v784, %v783
        %v786 = vrot.slane %v774, 2
        %v787 = vsel %vm531, %v786, %v785
        %v788 = vrot.slane %v775, 1
        %v789 = vsel %vm534, %v788, %v787
        %v790 = vpack.c.b16 %v789, %v789
        %v792 = vsel %vm624, %v703, 0
        %vm794 = vcmask 1043456
        %v796 = vsel %vm794, %v790, 0
        %798 = vmatprep.subr.bf16.mxu0 0
        %799 = vmatpush1.bf16.msra.mxu0 0
        %800 = vmatprep.subr.bf16.mxu0 0
        %801 = vmatpush1.bf16.msra.mxu0 0
        %802 = vmatprep.subr.bf16.mxu0 0
        %803 = vmatpush1.bf16.msra.mxu0 0
        %804 = vmatprep.subr.bf16.mxu0 0
        %805 = vmatpush1.bf16.msra.mxu0 0
        %806 = vmatprep.subr.bf16.mxu0 0
        %807 = vmatpush1.bf16.msra.mxu0 0
        %808 = vmatprep.subr.bf16.mxu0 0
        %809 = vmatpush1.bf16.msra.mxu0 0
        %810 = vmatprep.subr.bf16.mxu0 0
        %811 = vmatpush1.bf16.msra.mxu0 0
        %812 = vmatprep.subr.bf16.mxu0 0
        %813 = vmatpush1.bf16.msra.mxu0 %v796
        %814 = vmatprep.subr.bf16.mxu0 0
        %815 = vmatpush2.bf16.msra.mxu0 0
        %816 = vmatprep.subr.bf16.mxu0 0
        %817 = vmatpush2.bf16.msra.mxu0 0
        %818 = vmatprep.subr.bf16.mxu0 0
        %819 = vmatpush2.bf16.msra.mxu0 0
        %820 = vmatprep.subr.bf16.mxu0 0
        %821 = vmatpush2.bf16.msra.mxu0 0
        %822 = vmatprep.subr.bf16.mxu0 0
        %823 = vmatpush2.bf16.msra.mxu0 0
        %824 = vmatprep.subr.bf16.mxu0 0
        %825 = vmatpush2.bf16.msra.mxu0 0
        %826 = vmatprep.subr.bf16.mxu0 0
        %827 = vmatpush2.bf16.msra.mxu0 0
        %828 = vmatprep.subr.bf16.mxu0 0
        %829 = vmatpush2.bf16.msra.mxu0 0
        %830 = vmatprep.mubr.bf16.mxu0 0
        %831 = vmatmul.mubr.bf16.gmra.mxu0 %v792
        %v832 = vpop.f32.mrf.mxu0
        %v833 = vadd.f32 0.0, %v832
        %v834 = vpop.f32.mrf.mxu0
        %v835 = vpop.f32.mrf.mxu0
        %v836 = vpop.f32.mrf.mxu0
        %837 = vdwg.mxu0
        %v838 = vadd.f32 %v702, %v833
        %839 = vst.msk [vmem:[#allocation4] sm:$0xff] %vm624, %v838
        %840 = vst.msk [vmem:[#allocation2] sm:$0xff] %vm694, %v676
        %v841 = vld [vmem:[%s398] sm:$0x1]
        %v842 = vld [vmem:[%s398 + $0x2] sm:$0x1]
        %v843 = vld [vmem:[%s398 + $0x4] sm:$0x1]
        %v844 = vld [vmem:[%s398 + $0x6] sm:$0x1]
        %v845 = vld [vmem:[%s398 + $0x8] sm:$0x1]
        %v846 = vld [vmem:[%s398 + $0xa] sm:$0x1]
        %v847 = vld [vmem:[%s398 + $0xc] sm:$0x1]
        %v848 = vld [vmem:[%s398 + $0xe] sm:$0x1]
        %v849 = vld [vmem:[%s347] sm:$0x1]
        %v850 = vld [vmem:[%s347 + $0x2] sm:$0x1]
        %v851 = vld [vmem:[%s347 + $0x4] sm:$0x1]
        %v852 = vld [vmem:[%s347 + $0x6] sm:$0x1]
        %v853 = vld [vmem:[%s347 + $0x8] sm:$0x1]
        %v854 = vld [vmem:[%s347 + $0xa] sm:$0x1]
        %v855 = vld [vmem:[%s347 + $0xc] sm:$0x1]
        %v856 = vld [vmem:[%s347 + $0xe] sm:$0x1]
        %v857 = vld [vmem:[%s354] sm:$0x1]
        %v858 = vld [vmem:[%s354 + $0x2] sm:$0x1]
        %v859 = vld [vmem:[%s354 + $0x4] sm:$0x1]
        %v860 = vld [vmem:[%s354 + $0x6] sm:$0x1]
        %v861 = vld [vmem:[%s354 + $0x8] sm:$0x1]
        %v862 = vld [vmem:[%s354 + $0xa] sm:$0x1]
        %v863 = vld [vmem:[%s354 + $0xc] sm:$0x1]
        %v864 = vld [vmem:[%s354 + $0xe] sm:$0x1]
        %v874 = vunpack.c.l.s4 1983009808
        %v875 = vunpack.c.0.s8 %v874
        %v876 = vlaneseq
        %v877 = vshrl.u32 %v876, 7
        %v878 = vsub.s32 %v875, %v877
        %v879 = vrot.slane %v841, %v878
        %v881 = vunpack.c.l.s4 1983009808
        %v882 = vunpack.c.0.s8 %v881
        %v883 = vlaneseq
        %v884 = vshrl.u32 %v883, 7
        %v885 = vsub.s32 %v882, %v884
        %v886 = vrot.slane %v842, %v885
        %v888 = vunpack.c.l.s4 1983009808
        %v889 = vunpack.c.0.s8 %v888
        %v890 = vlaneseq
        %v891 = vshrl.u32 %v890, 7
        %v892 = vsub.s32 %v889, %v891
        %v893 = vrot.slane %v843, %v892
        %v895 = vunpack.c.l.s4 1983009808
        %v896 = vunpack.c.0.s8 %v895
        %v897 = vlaneseq
        %v898 = vshrl.u32 %v897, 7
        %v899 = vsub.s32 %v896, %v898
        %v900 = vrot.slane %v844, %v899
        %v902 = vunpack.c.l.s4 1983009808
        %v903 = vunpack.c.0.s8 %v902
        %v904 = vlaneseq
        %v905 = vshrl.u32 %v904, 7
        %v906 = vsub.s32 %v903, %v905
        %v907 = vrot.slane %v845, %v906
        %v909 = vunpack.c.l.s4 1983009808
        %v910 = vunpack.c.0.s8 %v909
        %v911 = vlaneseq
        %v912 = vshrl.u32 %v911, 7
        %v913 = vsub.s32 %v910, %v912
        %v914 = vrot.slane %v846, %v913
        %v916 = vunpack.c.l.s4 1983009808
        %v917 = vunpack.c.0.s8 %v916
        %v918 = vlaneseq
        %v919 = vshrl.u32 %v918, 7
        %v920 = vsub.s32 %v917, %v919
        %v921 = vrot.slane %v847, %v920
        %v923 = vunpack.c.l.s4 1983009808
        %v924 = vunpack.c.0.s8 %v923
        %v925 = vlaneseq
        %v926 = vshrl.u32 %v925, 7
        %v927 = vsub.s32 %v924, %v926
        %v928 = vrot.slane %v848, %v927
        %v929 = vunpack.c.l.b16 %v879
        %v930 = vunpack.c.l.b16 %v886
        %v931 = vunpack.c.l.b16 %v893
        %v932 = vunpack.c.l.b16 %v900
        %v933 = vunpack.c.l.b16 %v907
        %v934 = vunpack.c.l.b16 %v914
        %v935 = vunpack.c.l.b16 %v921
        %v936 = vunpack.c.l.b16 %v928
        %v937 = vrot.slane %v929, 1
        %v938 = vsel %vm516, %v930, %v937
        %v939 = vrot.slane %v931, 7
        %v940 = vsel %vm519, %v939, %v938
        %v941 = vrot.slane %v932, 6
        %v942 = vsel %vm522, %v941, %v940
        %v943 = vrot.slane %v933, 5
        %v944 = vsel %vm525, %v943, %v942
        %v945 = vrot.slane %v934, 4
        %v946 = vsel %vm528, %v945, %v944
        %v947 = vrot.slane %v935, 3
        %v948 = vsel %vm531, %v947, %v946
        %v949 = vrot.slane %v936, 2
        %v950 = vsel %vm534, %v949, %v948
        %v951 = vpack.c.b16 %v950, %v950
        %v961 = vunpack.c.l.s4 1983009808
        %v962 = vunpack.c.0.s8 %v961
        %v963 = vlaneseq
        %v964 = vshrl.u32 %v963, 7
        %v965 = vsub.s32 %v962, %v964
        %v966 = vrot.slane %v849, %v965
        %v968 = vunpack.c.l.s4 1983009808
        %v969 = vunpack.c.0.s8 %v968
        %v970 = vlaneseq
        %v971 = vshrl.u32 %v970, 7
        %v972 = vsub.s32 %v969, %v971
        %v973 = vrot.slane %v850, %v972
        %v975 = vunpack.c.l.s4 1983009808
        %v976 = vunpack.c.0.s8 %v975
        %v977 = vlaneseq
        %v978 = vshrl.u32 %v977, 7
        %v979 = vsub.s32 %v976, %v978
        %v980 = vrot.slane %v851, %v979
        %v982 = vunpack.c.l.s4 1983009808
        %v983 = vunpack.c.0.s8 %v982
        %v984 = vlaneseq
        %v985 = vshrl.u32 %v984, 7
        %v986 = vsub.s32 %v983, %v985
        %v987 = vrot.slane %v852, %v986
        %v989 = vunpack.c.l.s4 1983009808
        %v990 = vunpack.c.0.s8 %v989
        %v991 = vlaneseq
        %v992 = vshrl.u32 %v991, 7
        %v993 = vsub.s32 %v990, %v992
        %v994 = vrot.slane %v853, %v993
        %v996 = vunpack.c.l.s4 1983009808
        %v997 = vunpack.c.0.s8 %v996
        %v998 = vlaneseq
        %v999 = vshrl.u32 %v998, 7
        %v1000 = vsub.s32 %v997, %v999
        %v1001 = vrot.slane %v854, %v1000
        %v1003 = vunpack.c.l.s4 1983009808
        %v1004 = vunpack.c.0.s8 %v1003
        %v1005 = vlaneseq
        %v1006 = vshrl.u32 %v1005, 7
        %v1007 = vsub.s32 %v1004, %v1006
        %v1008 = vrot.slane %v855, %v1007
        %v1010 = vunpack.c.l.s4 1983009808
        %v1011 = vunpack.c.0.s8 %v1010
        %v1012 = vlaneseq
        %v1013 = vshrl.u32 %v1012, 7
        %v1014 = vsub.s32 %v1011, %v1013
        %v1015 = vrot.slane %v856, %v1014
        %v1016 = vunpack.c.l.b16 %v966
        %v1017 = vunpack.c.l.b16 %v973
        %v1018 = vunpack.c.l.b16 %v980
        %v1019 = vunpack.c.l.b16 %v987
        %v1020 = vunpack.c.l.b16 %v994
        %v1021 = vunpack.c.l.b16 %v1001
        %v1022 = vunpack.c.l.b16 %v1008
        %v1023 = vunpack.c.l.b16 %v1015
        %v1024 = vrot.slane %v1016, 1
        %v1025 = vsel %vm516, %v1017, %v1024
        %v1026 = vrot.slane %v1018, 7
        %v1027 = vsel %vm519, %v1026, %v1025
        %v1028 = vrot.slane %v1019, 6
        %v1029 = vsel %vm522, %v1028, %v1027
        %v1030 = vrot.slane %v1020, 5
        %v1031 = vsel %vm525, %v1030, %v1029
        %v1032 = vrot.slane %v1021, 4
        %v1033 = vsel %vm528, %v1032, %v1031
        %v1034 = vrot.slane %v1022, 3
        %v1035 = vsel %vm531, %v1034, %v1033
        %v1036 = vrot.slane %v1023, 2
        %v1037 = vsel %vm534, %v1036, %v1035
        %v1038 = vpack.c.b16 %v1037, %v1037
        %v1040 = vsel %vm624, %v951, 0
        %v1043 = vsel %vm624, %v1038, 0
        %1045 = vmatprep.subr.bf16.mxu0 0
        %1046 = vmatpush1.bf16.xpose.msra.mxu0 0
        %1047 = vmatprep.subr.bf16.mxu0 0
        %1048 = vmatpush1.bf16.xpose.msra.mxu0 0
        %1049 = vmatprep.subr.bf16.mxu0 0
        %1050 = vmatpush1.bf16.xpose.msra.mxu0 0
        %1051 = vmatprep.subr.bf16.mxu0 0
        %1052 = vmatpush1.bf16.xpose.msra.mxu0 0
        %1053 = vmatprep.subr.bf16.mxu0 0
        %1054 = vmatpush1.bf16.xpose.msra.mxu0 0
        %1055 = vmatprep.subr.bf16.mxu0 0
        %1056 = vmatpush1.bf16.xpose.msra.mxu0 0
        %1057 = vmatprep.subr.bf16.mxu0 0
        %1058 = vmatpush1.bf16.xpose.msra.mxu0 0
        %1059 = vmatprep.subr.bf16.mxu0 0
        %1060 = vmatpush1.bf16.xpose.msra.mxu0 %v1043
        %1061 = vmatprep.subr.bf16.mxu0 0
        %1062 = vmatpush2.bf16.xpose.msra.mxu0 0
        %1063 = vmatprep.subr.bf16.mxu0 0
        %1064 = vmatpush2.bf16.xpose.msra.mxu0 0
        %1065 = vmatprep.subr.bf16.mxu0 0
        %1066 = vmatpush2.bf16.xpose.msra.mxu0 0
        %1067 = vmatprep.subr.bf16.mxu0 0
        %1068 = vmatpush2.bf16.xpose.msra.mxu0 0
        %1069 = vmatprep.subr.bf16.mxu0 0
        %1070 = vmatpush2.bf16.xpose.msra.mxu0 0
        %1071 = vmatprep.subr.bf16.mxu0 0
        %1072 = vmatpush2.bf16.xpose.msra.mxu0 0
        %1073 = vmatprep.subr.bf16.mxu0 0
        %1074 = vmatpush2.bf16.xpose.msra.mxu0 0
        %1075 = vmatprep.subr.bf16.mxu0 0
        %1076 = vmatpush2.bf16.xpose.msra.mxu0 0
        %1077 = vmatprep.mubr.bf16.mxu0 0
        %1078 = vmatmul.mubr.bf16.gmra.mxu0 %v1040
        %v1079 = vpop.f32.mrf.mxu0
        %v1080 = vadd.f32 0.0, %v1079
        %v1081 = vpop.f32.mrf.mxu0
        %v1082 = vpop.f32.mrf.mxu0
        %v1083 = vpop.f32.mrf.mxu0
        %1084 = vdwg.mxu0
        %v1085 = vmul.f32 %v1080, 0.35355338
        %v1086 = vld [vmem:[#allocation2] sm:$0xff]
        %v1087 = vsel %vm624, %v1085, -inf
        %1088 = vmax.xlane.f32.xlu0 %v1087
        %v1089 = vpop.xlane.xlu0 %1088
        %v1090 = vmax.f32 %v1086, %v1089
        %v1091 = vsub.f32 %v1086, %v1090
        %v1092 = vmul.f32 %v1091, 1.442695
        %v1093 = vpow.pop %v1092
        %1095 = vset.pattern.permute.xlu0 1
        %1096 = vperm.xlu0 %1095, %v1090
        %v1097 = vpop.permute.xlu0 %1096
        %v1099 = vsub.f32 %v1085, %v1097
        %v1100 = vmul.f32 %v1099, 1.442695
        %v1101 = vpow.pop %v1100
        %v1102 = vld [vmem:[#allocation3] sm:$0xff]
        %v1103 = vmul.f32 %v1093, %v1102
        %v1104 = vsel %vm624, %v1101, 0.0
        %1105 = vadd.xlane.f32.xlu0 %v1104
        %v1106 = vpop.xlane.xlu0 %1105
        %v1107 = vadd.f32 %v1103, %v1106
        %vm1108 = vcmask 15368
        %1109 = vst.msk [vmem:[#allocation3] sm:$0xff] %vm1108, %v1107
        %v1110 = vld [vmem:[#allocation4] sm:$0xff]
        %1112 = vset.pattern.permute.xlu0 1
        %1113 = vperm.xlu0 %1112, %v1093
        %v1114 = vpop.permute.xlu0 %1113
        %v1116 = vmul.f32 %v1114, %v1110
        %v1117 = vpack.c.bf16 %v1101, %v1101
        %v1127 = vunpack.c.l.s4 1983009808
        %v1128 = vunpack.c.0.s8 %v1127
        %v1129 = vlaneseq
        %v1130 = vshrl.u32 %v1129, 7
        %v1131 = vsub.s32 %v1128, %v1130
        %v1132 = vrot.slane %v857, %v1131
        %v1134 = vunpack.c.l.s4 1983009808
        %v1135 = vunpack.c.0.s8 %v1134
        %v1136 = vlaneseq
        %v1137 = vshrl.u32 %v1136, 7
        %v1138 = vsub.s32 %v1135, %v1137
        %v1139 = vrot.slane %v858, %v1138
        %v1141 = vunpack.c.l.s4 1983009808
        %v1142 = vunpack.c.0.s8 %v1141
        %v1143 = vlaneseq
        %v1144 = vshrl.u32 %v1143, 7
        %v1145 = vsub.s32 %v1142, %v1144
        %v1146 = vrot.slane %v859, %v1145
        %v1148 = vunpack.c.l.s4 1983009808
        %v1149 = vunpack.c.0.s8 %v1148
        %v1150 = vlaneseq
        %v1151 = vshrl.u32 %v1150, 7
        %v1152 = vsub.s32 %v1149, %v1151
        %v1153 = vrot.slane %v860, %v1152
        %v1155 = vunpack.c.l.s4 1983009808
        %v1156 = vunpack.c.0.s8 %v1155
        %v1157 = vlaneseq
        %v1158 = vshrl.u32 %v1157, 7
        %v1159 = vsub.s32 %v1156, %v1158
        %v1160 = vrot.slane %v861, %v1159
        %v1162 = vunpack.c.l.s4 1983009808
        %v1163 = vunpack.c.0.s8 %v1162
        %v1164 = vlaneseq
        %v1165 = vshrl.u32 %v1164, 7
        %v1166 = vsub.s32 %v1163, %v1165
        %v1167 = vrot.slane %v862, %v1166
        %v1169 = vunpack.c.l.s4 1983009808
        %v1170 = vunpack.c.0.s8 %v1169
        %v1171 = vlaneseq
        %v1172 = vshrl.u32 %v1171, 7
        %v1173 = vsub.s32 %v1170, %v1172
        %v1174 = vrot.slane %v863, %v1173
        %v1176 = vunpack.c.l.s4 1983009808
        %v1177 = vunpack.c.0.s8 %v1176
        %v1178 = vlaneseq
        %v1179 = vshrl.u32 %v1178, 7
        %v1180 = vsub.s32 %v1177, %v1179
        %v1181 = vrot.slane %v864, %v1180
        %v1182 = vunpack.c.l.b16 %v1132
        %v1183 = vunpack.c.l.b16 %v1139
        %v1184 = vunpack.c.l.b16 %v1146
        %v1185 = vunpack.c.l.b16 %v1153
        %v1186 = vunpack.c.l.b16 %v1160
        %v1187 = vunpack.c.l.b16 %v1167
        %v1188 = vunpack.c.l.b16 %v1174
        %v1189 = vunpack.c.l.b16 %v1181
        %v1190 = vrot.slane %v1182, 1
        %v1191 = vsel %vm516, %v1183, %v1190
        %v1192 = vrot.slane %v1184, 7
        %v1193 = vsel %vm519, %v1192, %v1191
        %v1194 = vrot.slane %v1185, 6
        %v1195 = vsel %vm522, %v1194, %v1193
        %v1196 = vrot.slane %v1186, 5
        %v1197 = vsel %vm525, %v1196, %v1195
        %v1198 = vrot.slane %v1187, 4
        %v1199 = vsel %vm528, %v1198, %v1197
        %v1200 = vrot.slane %v1188, 3
        %v1201 = vsel %vm531, %v1200, %v1199
        %v1202 = vrot.slane %v1189, 2
        %v1203 = vsel %vm534, %v1202, %v1201
        %v1204 = vpack.c.b16 %v1203, %v1203
        %v1206 = vsel %vm624, %v1117, 0
        %v1209 = vsel %vm794, %v1204, 0
        %1211 = vmatprep.subr.bf16.mxu0 0
        %1212 = vmatpush1.bf16.msra.mxu0 0
        %1213 = vmatprep.subr.bf16.mxu0 0
        %1214 = vmatpush1.bf16.msra.mxu0 0
        %1215 = vmatprep.subr.bf16.mxu0 0
        %1216 = vmatpush1.bf16.msra.mxu0 0
        %1217 = vmatprep.subr.bf16.mxu0 0
        %1218 = vmatpush1.bf16.msra.mxu0 0
        %1219 = vmatprep.subr.bf16.mxu0 0
        %1220 = vmatpush1.bf16.msra.mxu0 0
        %1221 = vmatprep.subr.bf16.mxu0 0
        %1222 = vmatpush1.bf16.msra.mxu0 0
        %1223 = vmatprep.subr.bf16.mxu0 0
        %1224 = vmatpush1.bf16.msra.mxu0 0
        %1225 = vmatprep.subr.bf16.mxu0 0
        %1226 = vmatpush1.bf16.msra.mxu0 %v1209
        %1227 = vmatprep.subr.bf16.mxu0 0
        %1228 = vmatpush2.bf16.msra.mxu0 0
        %1229 = vmatprep.subr.bf16.mxu0 0
        %1230 = vmatpush2.bf16.msra.mxu0 0
        %1231 = vmatprep.subr.bf16.mxu0 0
        %1232 = vmatpush2.bf16.msra.mxu0 0
        %1233 = vmatprep.subr.bf16.mxu0 0
        %1234 = vmatpush2.bf16.msra.mxu0 0
        %1235 = vmatprep.subr.bf16.mxu0 0
        %1236 = vmatpush2.bf16.msra.mxu0 0
        %1237 = vmatprep.subr.bf16.mxu0 0
        %1238 = vmatpush2.bf16.msra.mxu0 0
        %1239 = vmatprep.subr.bf16.mxu0 0
        %1240 = vmatpush2.bf16.msra.mxu0 0
        %1241 = vmatprep.subr.bf16.mxu0 0
        %1242 = vmatpush2.bf16.msra.mxu0 0
        %1243 = vmatprep.mubr.bf16.mxu0 0
        %1244 = vmatmul.mubr.bf16.gmra.mxu0 %v1206
        %v1245 = vpop.f32.mrf.mxu0
        %v1246 = vadd.f32 0.0, %v1245
        %v1247 = vpop.f32.mrf.mxu0
        %v1248 = vpop.f32.mrf.mxu0
        %v1249 = vpop.f32.mrf.mxu0
        %1250 = vdwg.mxu0
        %1252 = vrot.lane.b32.xlu0 %v1246, 8
        %v1253 = vpop.permute.xlu0 %1252
        %v1255 = vadd.f32 %v1116, %v1253
        %vm1256 = vcmask 130112
        %1257 = vst.msk [vmem:[#allocation4] sm:$0xff] %vm1256, %v1255
        %1258 = vst.msk [vmem:[#allocation2] sm:$0xff] %vm1108, %v1090
        %v1259 = vld [vmem:[%s398] sm:$0x2]
        %v1260 = vld [vmem:[%s398 + $0x2] sm:$0x2]
        %v1261 = vld [vmem:[%s398 + $0x4] sm:$0x2]
        %v1262 = vld [vmem:[%s398 + $0x6] sm:$0x2]
        %v1263 = vld [vmem:[%s398 + $0x8] sm:$0x2]
        %v1264 = vld [vmem:[%s398 + $0xa] sm:$0x2]
        %v1265 = vld [vmem:[%s398 + $0xc] sm:$0x2]
        %v1266 = vld [vmem:[%s398 + $0xe] sm:$0x2]
        %v1267 = vld [vmem:[%s347] sm:$0x2]
        %v1268 = vld [vmem:[%s347 + $0x2] sm:$0x2]
        %v1269 = vld [vmem:[%s347 + $0x4] sm:$0x2]
        %v1270 = vld [vmem:[%s347 + $0x6] sm:$0x2]
        %v1271 = vld [vmem:[%s347 + $0x8] sm:$0x2]
        %v1272 = vld [vmem:[%s347 + $0xa] sm:$0x2]
        %v1273 = vld [vmem:[%s347 + $0xc] sm:$0x2]
        %v1274 = vld [vmem:[%s347 + $0xe] sm:$0x2]
        %v1275 = vld [vmem:[%s354] sm:$0x2]
        %v1276 = vld [vmem:[%s354 + $0x2] sm:$0x2]
        %v1277 = vld [vmem:[%s354 + $0x4] sm:$0x2]
        %v1278 = vld [vmem:[%s354 + $0x6] sm:$0x2]
        %v1279 = vld [vmem:[%s354 + $0x8] sm:$0x2]
        %v1280 = vld [vmem:[%s354 + $0xa] sm:$0x2]
        %v1281 = vld [vmem:[%s354 + $0xc] sm:$0x2]
        %v1282 = vld [vmem:[%s354 + $0xe] sm:$0x2]
        %v1292 = vunpack.c.l.s4 1983009808
        %v1293 = vunpack.c.0.s8 %v1292
        %v1294 = vlaneseq
        %v1295 = vshrl.u32 %v1294, 7
        %v1296 = vsub.s32 %v1293, %v1295
        %v1297 = vrot.slane %v1259, %v1296
        %v1299 = vunpack.c.l.s4 1983009808
        %v1300 = vunpack.c.0.s8 %v1299
        %v1301 = vlaneseq
        %v1302 = vshrl.u32 %v1301, 7
        %v1303 = vsub.s32 %v1300, %v1302
        %v1304 = vrot.slane %v1260, %v1303
        %v1306 = vunpack.c.l.s4 1983009808
        %v1307 = vunpack.c.0.s8 %v1306
        %v1308 = vlaneseq
        %v1309 = vshrl.u32 %v1308, 7
        %v1310 = vsub.s32 %v1307, %v1309
        %v1311 = vrot.slane %v1261, %v1310
        %v1313 = vunpack.c.l.s4 1983009808
        %v1314 = vunpack.c.0.s8 %v1313
        %v1315 = vlaneseq
        %v1316 = vshrl.u32 %v1315, 7
        %v1317 = vsub.s32 %v1314, %v1316
        %v1318 = vrot.slane %v1262, %v1317
        %v1320 = vunpack.c.l.s4 1983009808
        %v1321 = vunpack.c.0.s8 %v1320
        %v1322 = vlaneseq
        %v1323 = vshrl.u32 %v1322, 7
        %v1324 = vsub.s32 %v1321, %v1323
        %v1325 = vrot.slane %v1263, %v1324
        %v1327 = vunpack.c.l.s4 1983009808
        %v1328 = vunpack.c.0.s8 %v1327
        %v1329 = vlaneseq
        %v1330 = vshrl.u32 %v1329, 7
        %v1331 = vsub.s32 %v1328, %v1330
        %v1332 = vrot.slane %v1264, %v1331
        %v1334 = vunpack.c.l.s4 1983009808
        %v1335 = vunpack.c.0.s8 %v1334
        %v1336 = vlaneseq
        %v1337 = vshrl.u32 %v1336, 7
        %v1338 = vsub.s32 %v1335, %v1337
        %v1339 = vrot.slane %v1265, %v1338
        %v1341 = vunpack.c.l.s4 1983009808
        %v1342 = vunpack.c.0.s8 %v1341
        %v1343 = vlaneseq
        %v1344 = vshrl.u32 %v1343, 7
        %v1345 = vsub.s32 %v1342, %v1344
        %v1346 = vrot.slane %v1266, %v1345
        %v1347 = vunpack.c.l.b16 %v1297
        %v1348 = vunpack.c.l.b16 %v1304
        %v1349 = vunpack.c.l.b16 %v1311
        %v1350 = vunpack.c.l.b16 %v1318
        %v1351 = vunpack.c.l.b16 %v1325
        %v1352 = vunpack.c.l.b16 %v1332
        %v1353 = vunpack.c.l.b16 %v1339
        %v1354 = vunpack.c.l.b16 %v1346
        %v1355 = vrot.slane %v1347, 2
        %v1356 = vrot.slane %v1348, 1
        %v1357 = vsel %vm516, %v1356, %v1355
        %v1358 = vsel %vm519, %v1349, %v1357
        %v1359 = vrot.slane %v1350, 7
        %v1360 = vsel %vm522, %v1359, %v1358
        %v1361 = vrot.slane %v1351, 6
        %v1362 = vsel %vm525, %v1361, %v1360
        %v1363 = vrot.slane %v1352, 5
        %v1364 = vsel %vm528, %v1363, %v1362
        %v1365 = vrot.slane %v1353, 4
        %v1366 = vsel %vm531, %v1365, %v1364
        %v1367 = vrot.slane %v1354, 3
        %v1368 = vsel %vm534, %v1367, %v1366
        %v1369 = vpack.c.b16 %v1368, %v1368
        %v1379 = vunpack.c.l.s4 1983009808
        %v1380 = vunpack.c.0.s8 %v1379
        %v1381 = vlaneseq
        %v1382 = vshrl.u32 %v1381, 7
        %v1383 = vsub.s32 %v1380, %v1382
        %v1384 = vrot.slane %v1267, %v1383
        %v1386 = vunpack.c.l.s4 1983009808
        %v1387 = vunpack.c.0.s8 %v1386
        %v1388 = vlaneseq
        %v1389 = vshrl.u32 %v1388, 7
        %v1390 = vsub.s32 %v1387, %v1389
        %v1391 = vrot.slane %v1268, %v1390
        %v1393 = vunpack.c.l.s4 1983009808
        %v1394 = vunpack.c.0.s8 %v1393
        %v1395 = vlaneseq
        %v1396 = vshrl.u32 %v1395, 7
        %v1397 = vsub.s32 %v1394, %v1396
        %v1398 = vrot.slane %v1269, %v1397
        %v1400 = vunpack.c.l.s4 1983009808
        %v1401 = vunpack.c.0.s8 %v1400
        %v1402 = vlaneseq
        %v1403 = vshrl.u32 %v1402, 7
        %v1404 = vsub.s32 %v1401, %v1403
        %v1405 = vrot.slane %v1270, %v1404
        %v1407 = vunpack.c.l.s4 1983009808
        %v1408 = vunpack.c.0.s8 %v1407
        %v1409 = vlaneseq
        %v1410 = vshrl.u32 %v1409, 7
        %v1411 = vsub.s32 %v1408, %v1410
        %v1412 = vrot.slane %v1271, %v1411
        %v1414 = vunpack.c.l.s4 1983009808
        %v1415 = vunpack.c.0.s8 %v1414
        %v1416 = vlaneseq
        %v1417 = vshrl.u32 %v1416, 7
        %v1418 = vsub.s32 %v1415, %v1417
        %v1419 = vrot.slane %v1272, %v1418
        %v1421 = vunpack.c.l.s4 1983009808
        %v1422 = vunpack.c.0.s8 %v1421
        %v1423 = vlaneseq
        %v1424 = vshrl.u32 %v1423, 7
        %v1425 = vsub.s32 %v1422, %v1424
        %v1426 = vrot.slane %v1273, %v1425
        %v1428 = vunpack.c.l.s4 1983009808
        %v1429 = vunpack.c.0.s8 %v1428
        %v1430 = vlaneseq
        %v1431 = vshrl.u32 %v1430, 7
        %v1432 = vsub.s32 %v1429, %v1431
        %v1433 = vrot.slane %v1274, %v1432
        %v1434 = vunpack.c.l.b16 %v1384
        %v1435 = vunpack.c.l.b16 %v1391
        %v1436 = vunpack.c.l.b16 %v1398
        %v1437 = vunpack.c.l.b16 %v1405
        %v1438 = vunpack.c.l.b16 %v1412
        %v1439 = vunpack.c.l.b16 %v1419
        %v1440 = vunpack.c.l.b16 %v1426
        %v1441 = vunpack.c.l.b16 %v1433
        %v1442 = vrot.slane %v1434, 2
        %v1443 = vrot.slane %v1435, 1
        %v1444 = vsel %vm516, %v1443, %v1442
        %v1445 = vsel %vm519, %v1436, %v1444
        %v1446 = vrot.slane %v1437, 7
        %v1447 = vsel %vm522, %v1446, %v1445
        %v1448 = vrot.slane %v1438, 6
        %v1449 = vsel %vm525, %v1448, %v1447
        %v1450 = vrot.slane %v1439, 5
        %v1451 = vsel %vm528, %v1450, %v1449
        %v1452 = vrot.slane %v1440, 4
        %v1453 = vsel %vm531, %v1452, %v1451
        %v1454 = vrot.slane %v1441, 3
        %v1455 = vsel %vm534, %v1454, %v1453
        %v1456 = vpack.c.b16 %v1455, %v1455
        %v1458 = vsel %vm624, %v1369, 0
        %v1461 = vsel %vm624, %v1456, 0
        %1463 = vmatprep.subr.bf16.mxu0 0
        %1464 = vmatpush1.bf16.xpose.msra.mxu0 0
        %1465 = vmatprep.subr.bf16.mxu0 0
        %1466 = vmatpush1.bf16.xpose.msra.mxu0 0
        %1467 = vmatprep.subr.bf16.mxu0 0
        %1468 = vmatpush1.bf16.xpose.msra.mxu0 0
        %1469 = vmatprep.subr.bf16.mxu0 0
        %1470 = vmatpush1.bf16.xpose.msra.mxu0 0
        %1471 = vmatprep.subr.bf16.mxu0 0
        %1472 = vmatpush1.bf16.xpose.msra.mxu0 0
        %1473 = vmatprep.subr.bf16.mxu0 0
        %1474 = vmatpush1.bf16.xpose.msra.mxu0 0
        %1475 = vmatprep.subr.bf16.mxu0 0
        %1476 = vmatpush1.bf16.xpose.msra.mxu0 0
        %1477 = vmatprep.subr.bf16.mxu0 0
        %1478 = vmatpush1.bf16.xpose.msra.mxu0 %v1461
        %1479 = vmatprep.subr.bf16.mxu0 0
        %1480 = vmatpush2.bf16.xpose.msra.mxu0 0
        %1481 = vmatprep.subr.bf16.mxu0 0
        %1482 = vmatpush2.bf16.xpose.msra.mxu0 0
        %1483 = vmatprep.subr.bf16.mxu0 0
        %1484 = vmatpush2.bf16.xpose.msra.mxu0 0
        %1485 = vmatprep.subr.bf16.mxu0 0
        %1486 = vmatpush2.bf16.xpose.msra.mxu0 0
        %1487 = vmatprep.subr.bf16.mxu0 0
        %1488 = vmatpush2.bf16.xpose.msra.mxu0 0
        %1489 = vmatprep.subr.bf16.mxu0 0
        %1490 = vmatpush2.bf16.xpose.msra.mxu0 0
        %1491 = vmatprep.subr.bf16.mxu0 0
        %1492 = vmatpush2.bf16.xpose.msra.mxu0 0
        %1493 = vmatprep.subr.bf16.mxu0 0
        %1494 = vmatpush2.bf16.xpose.msra.mxu0 0
        %1495 = vmatprep.mubr.bf16.mxu0 0
        %1496 = vmatmul.mubr.bf16.gmra.mxu0 %v1458
        %v1497 = vpop.f32.mrf.mxu0
        %v1498 = vadd.f32 0.0, %v1497
        %v1499 = vpop.f32.mrf.mxu0
        %v1500 = vpop.f32.mrf.mxu0
        %v1501 = vpop.f32.mrf.mxu0
        %1502 = vdwg.mxu0
        %v1503 = vmul.f32 %v1498, 0.35355338
        %v1504 = vld [vmem:[#allocation2] sm:$0xff]
        %v1505 = vsel %vm624, %v1503, -inf
        %1506 = vmax.xlane.f32.xlu0 %v1505
        %v1507 = vpop.xlane.xlu0 %1506
        %v1508 = vmax.f32 %v1504, %v1507
        %v1509 = vsub.f32 %v1504, %v1508
        %v1510 = vmul.f32 %v1509, 1.442695
        %v1511 = vpow.pop %v1510
        %1513 = vset.pattern.permute.xlu0 2
        %1514 = vperm.xlu0 %1513, %v1508
        %v1515 = vpop.permute.xlu0 %1514
        %v1517 = vsub.f32 %v1503, %v1515
        %v1518 = vmul.f32 %v1517, 1.442695
        %v1519 = vpow.pop %v1518
        %v1520 = vld [vmem:[#allocation3] sm:$0xff]
        %v1521 = vmul.f32 %v1511, %v1520
        %v1522 = vsel %vm624, %v1519, 0.0
        %1523 = vadd.xlane.f32.xlu0 %v1522
        %v1524 = vpop.xlane.xlu0 %1523
        %v1525 = vadd.f32 %v1521, %v1524
        %vm1526 = vcmask 23568
        %1527 = vst.msk [vmem:[#allocation3] sm:$0xff] %vm1526, %v1525
        %v1528 = vld [vmem:[#allocation4] sm:$0xff]
        %1530 = vset.pattern.permute.xlu0 2
        %1531 = vperm.xlu0 %1530, %v1511
        %v1532 = vpop.permute.xlu0 %1531
        %v1534 = vmul.f32 %v1532, %v1528
        %v1535 = vpack.c.bf16 %v1519, %v1519
        %v1545 = vunpack.c.l.s4 1983009808
        %v1546 = vunpack.c.0.s8 %v1545
        %v1547 = vlaneseq
        %v1548 = vshrl.u32 %v1547, 7
        %v1549 = vsub.s32 %v1546, %v1548
        %v1550 = vrot.slane %v1275, %v1549
        %v1552 = vunpack.c.l.s4 1983009808
        %v1553 = vunpack.c.0.s8 %v1552
        %v1554 = vlaneseq
        %v1555 = vshrl.u32 %v1554, 7
        %v1556 = vsub.s32 %v1553, %v1555
        %v1557 = vrot.slane %v1276, %v1556
        %v1559 = vunpack.c.l.s4 1983009808
        %v1560 = vunpack.c.0.s8 %v1559
        %v1561 = vlaneseq
        %v1562 = vshrl.u32 %v1561, 7
        %v1563 = vsub.s32 %v1560, %v1562
        %v1564 = vrot.slane %v1277, %v1563
        %v1566 = vunpack.c.l.s4 1983009808
        %v1567 = vunpack.c.0.s8 %v1566
        %v1568 = vlaneseq
        %v1569 = vshrl.u32 %v1568, 7
        %v1570 = vsub.s32 %v1567, %v1569
        %v1571 = vrot.slane %v1278, %v1570
        %v1573 = vunpack.c.l.s4 1983009808
        %v1574 = vunpack.c.0.s8 %v1573
        %v1575 = vlaneseq
        %v1576 = vshrl.u32 %v1575, 7
        %v1577 = vsub.s32 %v1574, %v1576
        %v1578 = vrot.slane %v1279, %v1577
        %v1580 = vunpack.c.l.s4 1983009808
        %v1581 = vunpack.c.0.s8 %v1580
        %v1582 = vlaneseq
        %v1583 = vshrl.u32 %v1582, 7
        %v1584 = vsub.s32 %v1581, %v1583
        %v1585 = vrot.slane %v1280, %v1584
        %v1587 = vunpack.c.l.s4 1983009808
        %v1588 = vunpack.c.0.s8 %v1587
        %v1589 = vlaneseq
        %v1590 = vshrl.u32 %v1589, 7
        %v1591 = vsub.s32 %v1588, %v1590
        %v1592 = vrot.slane %v1281, %v1591
        %v1594 = vunpack.c.l.s4 1983009808
        %v1595 = vunpack.c.0.s8 %v1594
        %v1596 = vlaneseq
        %v1597 = vshrl.u32 %v1596, 7
        %v1598 = vsub.s32 %v1595, %v1597
        %v1599 = vrot.slane %v1282, %v1598
        %v1600 = vunpack.c.l.b16 %v1550
        %v1601 = vunpack.c.l.b16 %v1557
        %v1602 = vunpack.c.l.b16 %v1564
        %v1603 = vunpack.c.l.b16 %v1571
        %v1604 = vunpack.c.l.b16 %v1578
        %v1605 = vunpack.c.l.b16 %v1585
        %v1606 = vunpack.c.l.b16 %v1592
        %v1607 = vunpack.c.l.b16 %v1599
        %v1608 = vrot.slane %v1600, 2
        %v1609 = vrot.slane %v1601, 1
        %v1610 = vsel %vm516, %v1609, %v1608
        %v1611 = vsel %vm519, %v1602, %v1610
        %v1612 = vrot.slane %v1603, 7
        %v1613 = vsel %vm522, %v1612, %v1611
        %v1614 = vrot.slane %v1604, 6
        %v1615 = vsel %vm525, %v1614, %v1613
        %v1616 = vrot.slane %v1605, 5
        %v1617 = vsel %vm528, %v1616, %v1615
        %v1618 = vrot.slane %v1606, 4
        %v1619 = vsel %vm531, %v1618, %v1617
        %v1620 = vrot.slane %v1607, 3
        %v1621 = vsel %vm534, %v1620, %v1619
        %v1622 = vpack.c.b16 %v1621, %v1621
        %v1624 = vsel %vm624, %v1535, 0
        %v1627 = vsel %vm794, %v1622, 0
        %1629 = vmatprep.subr.bf16.mxu0 0
        %1630 = vmatpush1.bf16.msra.mxu0 0
        %1631 = vmatprep.subr.bf16.mxu0 0
        %1632 = vmatpush1.bf16.msra.mxu0 0
        %1633 = vmatprep.subr.bf16.mxu0 0
        %1634 = vmatpush1.bf16.msra.mxu0 0
        %1635 = vmatprep.subr.bf16.mxu0 0
        %1636 = vmatpush1.bf16.msra.mxu0 0
        %1637 = vmatprep.subr.bf16.mxu0 0
        %1638 = vmatpush1.bf16.msra.mxu0 0
        %1639 = vmatprep.subr.bf16.mxu0 0
        %1640 = vmatpush1.bf16.msra.mxu0 0
        %1641 = vmatprep.subr.bf16.mxu0 0
        %1642 = vmatpush1.bf16.msra.mxu0 0
        %1643 = vmatprep.subr.bf16.mxu0 0
        %1644 = vmatpush1.bf16.msra.mxu0 %v1627
        %1645 = vmatprep.subr.bf16.mxu0 0
        %1646 = vmatpush2.bf16.msra.mxu0 0
        %1647 = vmatprep.subr.bf16.mxu0 0
        %1648 = vmatpush2.bf16.msra.mxu0 0
        %1649 = vmatprep.subr.bf16.mxu0 0
        %1650 = vmatpush2.bf16.msra.mxu0 0
        %1651 = vmatprep.subr.bf16.mxu0 0
        %1652 = vmatpush2.bf16.msra.mxu0 0
        %1653 = vmatprep.subr.bf16.mxu0 0
        %1654 = vmatpush2.bf16.msra.mxu0 0
        %1655 = vmatprep.subr.bf16.mxu0 0
        %1656 = vmatpush2.bf16.msra.mxu0 0
        %1657 = vmatprep.subr.bf16.mxu0 0
        %1658 = vmatpush2.bf16.msra.mxu0 0
        %1659 = vmatprep.subr.bf16.mxu0 0
        %1660 = vmatpush2.bf16.msra.mxu0 0
        %1661 = vmatprep.mubr.bf16.mxu0 0
        %1662 = vmatmul.mubr.bf16.gmra.mxu0 %v1624
        %v1663 = vpop.f32.mrf.mxu0
        %v1664 = vadd.f32 0.0, %v1663
        %v1665 = vpop.f32.mrf.mxu0
        %v1666 = vpop.f32.mrf.mxu0
        %v1667 = vpop.f32.mrf.mxu0
        %1668 = vdwg.mxu0
        %1670 = vrot.lane.b32.xlu0 %v1664, 16
        %v1671 = vpop.permute.xlu0 %1670
        %v1673 = vadd.f32 %v1534, %v1671
        %vm1674 = vcmask 195712
        %1675 = vst.msk [vmem:[#allocation4] sm:$0xff] %vm1674, %v1673
        %1676 = vst.msk [vmem:[#allocation2] sm:$0xff] %vm1526, %v1508
        %v1677 = vld [vmem:[%s398] sm:$0x2]
        %v1678 = vld [vmem:[%s398 + $0x2] sm:$0x2]
        %v1679 = vld [vmem:[%s398 + $0x4] sm:$0x2]
        %v1680 = vld [vmem:[%s398 + $0x6] sm:$0x2]
        %v1681 = vld [vmem:[%s398 + $0x8] sm:$0x2]
        %v1682 = vld [vmem:[%s398 + $0xa] sm:$0x2]
        %v1683 = vld [vmem:[%s398 + $0xc] sm:$0x2]
        %v1684 = vld [vmem:[%s398 + $0xe] sm:$0x2]
        %v1685 = vld [vmem:[%s347] sm:$0x2]
        %v1686 = vld [vmem:[%s347 + $0x2] sm:$0x2]
        %v1687 = vld [vmem:[%s347 + $0x4] sm:$0x2]
        %v1688 = vld [vmem:[%s347 + $0x6] sm:$0x2]
        %v1689 = vld [vmem:[%s347 + $0x8] sm:$0x2]
        %v1690 = vld [vmem:[%s347 + $0xa] sm:$0x2]
        %v1691 = vld [vmem:[%s347 + $0xc] sm:$0x2]
        %v1692 = vld [vmem:[%s347 + $0xe] sm:$0x2]
        %v1693 = vld [vmem:[%s354] sm:$0x2]
        %v1694 = vld [vmem:[%s354 + $0x2] sm:$0x2]
        %v1695 = vld [vmem:[%s354 + $0x4] sm:$0x2]
        %v1696 = vld [vmem:[%s354 + $0x6] sm:$0x2]
        %v1697 = vld [vmem:[%s354 + $0x8] sm:$0x2]
        %v1698 = vld [vmem:[%s354 + $0xa] sm:$0x2]
        %v1699 = vld [vmem:[%s354 + $0xc] sm:$0x2]
        %v1700 = vld [vmem:[%s354 + $0xe] sm:$0x2]
        %v1710 = vunpack.c.l.s4 1983009808
        %v1711 = vunpack.c.0.s8 %v1710
        %v1712 = vlaneseq
        %v1713 = vshrl.u32 %v1712, 7
        %v1714 = vsub.s32 %v1711, %v1713
        %v1715 = vrot.slane %v1677, %v1714
        %v1717 = vunpack.c.l.s4 1983009808
        %v1718 = vunpack.c.0.s8 %v1717
        %v1719 = vlaneseq
        %v1720 = vshrl.u32 %v1719, 7
        %v1721 = vsub.s32 %v1718, %v1720
        %v1722 = vrot.slane %v1678, %v1721
        %v1724 = vunpack.c.l.s4 1983009808
        %v1725 = vunpack.c.0.s8 %v1724
        %v1726 = vlaneseq
        %v1727 = vshrl.u32 %v1726, 7
        %v1728 = vsub.s32 %v1725, %v1727
        %v1729 = vrot.slane %v1679, %v1728
        %v1731 = vunpack.c.l.s4 1983009808
        %v1732 = vunpack.c.0.s8 %v1731
        %v1733 = vlaneseq
        %v1734 = vshrl.u32 %v1733, 7
        %v1735 = vsub.s32 %v1732, %v1734
        %v1736 = vrot.slane %v1680, %v1735
        %v1738 = vunpack.c.l.s4 1983009808
        %v1739 = vunpack.c.0.s8 %v1738
        %v1740 = vlaneseq
        %v1741 = vshrl.u32 %v1740, 7
        %v1742 = vsub.s32 %v1739, %v1741
        %v1743 = vrot.slane %v1681, %v1742
        %v1745 = vunpack.c.l.s4 1983009808
        %v1746 = vunpack.c.0.s8 %v1745
        %v1747 = vlaneseq
        %v1748 = vshrl.u32 %v1747, 7
        %v1749 = vsub.s32 %v1746, %v1748
        %v1750 = vrot.slane %v1682, %v1749
        %v1752 = vunpack.c.l.s4 1983009808
        %v1753 = vunpack.c.0.s8 %v1752
        %v1754 = vlaneseq
        %v1755 = vshrl.u32 %v1754, 7
        %v1756 = vsub.s32 %v1753, %v1755
        %v1757 = vrot.slane %v1683, %v1756
        %v1759 = vunpack.c.l.s4 1983009808
        %v1760 = vunpack.c.0.s8 %v1759
        %v1761 = vlaneseq
        %v1762 = vshrl.u32 %v1761, 7
        %v1763 = vsub.s32 %v1760, %v1762
        %v1764 = vrot.slane %v1684, %v1763
        %v1765 = vunpack.c.l.b16 %v1715
        %v1766 = vunpack.c.l.b16 %v1722
        %v1767 = vunpack.c.l.b16 %v1729
        %v1768 = vunpack.c.l.b16 %v1736
        %v1769 = vunpack.c.l.b16 %v1743
        %v1770 = vunpack.c.l.b16 %v1750
        %v1771 = vunpack.c.l.b16 %v1757
        %v1772 = vunpack.c.l.b16 %v1764
        %v1773 = vrot.slane %v1765, 3
        %v1774 = vrot.slane %v1766, 2
        %v1775 = vsel %vm516, %v1774, %v1773
        %v1776 = vrot.slane %v1767, 1
        %v1777 = vsel %vm519, %v1776, %v1775
        %v1778 = vsel %vm522, %v1768, %v1777
        %v1779 = vrot.slane %v1769, 7
        %v1780 = vsel %vm525, %v1779, %v1778
        %v1781 = vrot.slane %v1770, 6
        %v1782 = vsel %vm528, %v1781, %v1780
        %v1783 = vrot.slane %v1771, 5
        %v1784 = vsel %vm531, %v1783, %v1782
        %v1785 = vrot.slane %v1772, 4
        %v1786 = vsel %vm534, %v1785, %v1784
        %v1787 = vpack.c.b16 %v1786, %v1786
        %v1797 = vunpack.c.l.s4 1983009808
        %v1798 = vunpack.c.0.s8 %v1797
        %v1799 = vlaneseq
        %v1800 = vshrl.u32 %v1799, 7
        %v1801 = vsub.s32 %v1798, %v1800
        %v1802 = vrot.slane %v1685, %v1801
        %v1804 = vunpack.c.l.s4 1983009808
        %v1805 = vunpack.c.0.s8 %v1804
        %v1806 = vlaneseq
        %v1807 = vshrl.u32 %v1806, 7
        %v1808 = vsub.s32 %v1805, %v1807
        %v1809 = vrot.slane %v1686, %v1808
        %v1811 = vunpack.c.l.s4 1983009808
        %v1812 = vunpack.c.0.s8 %v1811
        %v1813 = vlaneseq
        %v1814 = vshrl.u32 %v1813, 7
        %v1815 = vsub.s32 %v1812, %v1814
        %v1816 = vrot.slane %v1687, %v1815
        %v1818 = vunpack.c.l.s4 1983009808
        %v1819 = vunpack.c.0.s8 %v1818
        %v1820 = vlaneseq
        %v1821 = vshrl.u32 %v1820, 7
        %v1822 = vsub.s32 %v1819, %v1821
        %v1823 = vrot.slane %v1688, %v1822
        %v1825 = vunpack.c.l.s4 1983009808
        %v1826 = vunpack.c.0.s8 %v1825
        %v1827 = vlaneseq
        %v1828 = vshrl.u32 %v1827, 7
        %v1829 = vsub.s32 %v1826, %v1828
        %v1830 = vrot.slane %v1689, %v1829
        %v1832 = vunpack.c.l.s4 1983009808
        %v1833 = vunpack.c.0.s8 %v1832
        %v1834 = vlaneseq
        %v1835 = vshrl.u32 %v1834, 7
        %v1836 = vsub.s32 %v1833, %v1835
        %v1837 = vrot.slane %v1690, %v1836
        %v1839 = vunpack.c.l.s4 1983009808
        %v1840 = vunpack.c.0.s8 %v1839
        %v1841 = vlaneseq
        %v1842 = vshrl.u32 %v1841, 7
        %v1843 = vsub.s32 %v1840, %v1842
        %v1844 = vrot.slane %v1691, %v1843
        %v1846 = vunpack.c.l.s4 1983009808
        %v1847 = vunpack.c.0.s8 %v1846
        %v1848 = vlaneseq
        %v1849 = vshrl.u32 %v1848, 7
        %v1850 = vsub.s32 %v1847, %v1849
        %v1851 = vrot.slane %v1692, %v1850
        %v1852 = vunpack.c.l.b16 %v1802
        %v1853 = vunpack.c.l.b16 %v1809
        %v1854 = vunpack.c.l.b16 %v1816
        %v1855 = vunpack.c.l.b16 %v1823
        %v1856 = vunpack.c.l.b16 %v1830
        %v1857 = vunpack.c.l.b16 %v1837
        %v1858 = vunpack.c.l.b16 %v1844
        %v1859 = vunpack.c.l.b16 %v1851
        %v1860 = vrot.slane %v1852, 3
        %v1861 = vrot.slane %v1853, 2
        %v1862 = vsel %vm516, %v1861, %v1860
        %v1863 = vrot.slane %v1854, 1
        %v1864 = vsel %vm519, %v1863, %v1862
        %v1865 = vsel %vm522, %v1855, %v1864
        %v1866 = vrot.slane %v1856, 7
        %v1867 = vsel %vm525, %v1866, %v1865
        %v1868 = vrot.slane %v1857, 6
        %v1869 = vsel %vm528, %v1868, %v1867
        %v1870 = vrot.slane %v1858, 5
        %v1871 = vsel %vm531, %v1870, %v1869
        %v1872 = vrot.slane %v1859, 4
        %v1873 = vsel %vm534, %v1872, %v1871
        %v1874 = vpack.c.b16 %v1873, %v1873
        %v1876 = vsel %vm624, %v1787, 0
        %v1879 = vsel %vm624, %v1874, 0
        %1881 = vmatprep.subr.bf16.mxu0 0
        %1882 = vmatpush1.bf16.xpose.msra.mxu0 0
        %1883 = vmatprep.subr.bf16.mxu0 0
        %1884 = vmatpush1.bf16.xpose.msra.mxu0 0
        %1885 = vmatprep.subr.bf16.mxu0 0
        %1886 = vmatpush1.bf16.xpose.msra.mxu0 0
        %1887 = vmatprep.subr.bf16.mxu0 0
        %1888 = vmatpush1.bf16.xpose.msra.mxu0 0
        %1889 = vmatprep.subr.bf16.mxu0 0
        %1890 = vmatpush1.bf16.xpose.msra.mxu0 0
        %1891 = vmatprep.subr.bf16.mxu0 0
        %1892 = vmatpush1.bf16.xpose.msra.mxu0 0
        %1893 = vmatprep.subr.bf16.mxu0 0
        %1894 = vmatpush1.bf16.xpose.msra.mxu0 0
        %1895 = vmatprep.subr.bf16.mxu0 0
        %1896 = vmatpush1.bf16.xpose.msra.mxu0 %v1879
        %1897 = vmatprep.subr.bf16.mxu0 0
        %1898 = vmatpush2.bf16.xpose.msra.mxu0 0
        %1899 = vmatprep.subr.bf16.mxu0 0
        %1900 = vmatpush2.bf16.xpose.msra.mxu0 0
        %1901 = vmatprep.subr.bf16.mxu0 0
        %1902 = vmatpush2.bf16.xpose.msra.mxu0 0
        %1903 = vmatprep.subr.bf16.mxu0 0
        %1904 = vmatpush2.bf16.xpose.msra.mxu0 0
        %1905 = vmatprep.subr.bf16.mxu0 0
        %1906 = vmatpush2.bf16.xpose.msra.mxu0 0
        %1907 = vmatprep.subr.bf16.mxu0 0
        %1908 = vmatpush2.bf16.xpose.msra.mxu0 0
        %1909 = vmatprep.subr.bf16.mxu0 0
        %1910 = vmatpush2.bf16.xpose.msra.mxu0 0
        %1911 = vmatprep.subr.bf16.mxu0 0
        %1912 = vmatpush2.bf16.xpose.msra.mxu0 0
        %1913 = vmatprep.mubr.bf16.mxu0 0
        %1914 = vmatmul.mubr.bf16.gmra.mxu0 %v1876
        %v1915 = vpop.f32.mrf.mxu0
        %v1916 = vadd.f32 0.0, %v1915
        %v1917 = vpop.f32.mrf.mxu0
        %v1918 = vpop.f32.mrf.mxu0
        %v1919 = vpop.f32.mrf.mxu0
        %1920 = vdwg.mxu0
        %v1921 = vmul.f32 %v1916, 0.35355338
        %v1922 = vld [vmem:[#allocation2] sm:$0xff]
        %v1923 = vsel %vm624, %v1921, -inf
        %1924 = vmax.xlane.f32.xlu0 %v1923
        %v1925 = vpop.xlane.xlu0 %1924
        %v1926 = vmax.f32 %v1922, %v1925
        %v1927 = vsub.f32 %v1922, %v1926
        %v1928 = vmul.f32 %v1927, 1.442695
        %v1929 = vpow.pop %v1928
        %1931 = vset.pattern.permute.xlu0 3
        %1932 = vperm.xlu0 %1931, %v1926
        %v1933 = vpop.permute.xlu0 %1932
        %v1935 = vsub.f32 %v1921, %v1933
        %v1936 = vmul.f32 %v1935, 1.442695
        %v1937 = vpow.pop %v1936
        %v1938 = vld [vmem:[#allocation3] sm:$0xff]
        %v1939 = vmul.f32 %v1929, %v1938
        %v1940 = vsel %vm624, %v1937, 0.0
        %1941 = vadd.xlane.f32.xlu0 %v1940
        %v1942 = vpop.xlane.xlu0 %1941
        %v1943 = vadd.f32 %v1939, %v1942
        %vm1944 = vcmask 31768
        %1945 = vst.msk [vmem:[#allocation3] sm:$0xff] %vm1944, %v1943
        %v1946 = vld [vmem:[#allocation4] sm:$0xff]
        %1948 = vset.pattern.permute.xlu0 3
        %1949 = vperm.xlu0 %1948, %v1929
        %v1950 = vpop.permute.xlu0 %1949
        %v1952 = vmul.f32 %v1950, %v1946
        %v1953 = vpack.c.bf16 %v1937, %v1937
        %v1963 = vunpack.c.l.s4 1983009808
        %v1964 = vunpack.c.0.s8 %v1963
        %v1965 = vlaneseq
        %v1966 = vshrl.u32 %v1965, 7
        %v1967 = vsub.s32 %v1964, %v1966
        %v1968 = vrot.slane %v1693, %v1967
        %v1970 = vunpack.c.l.s4 1983009808
        %v1971 = vunpack.c.0.s8 %v1970
        %v1972 = vlaneseq
        %v1973 = vshrl.u32 %v1972, 7
        %v1974 = vsub.s32 %v1971, %v1973
        %v1975 = vrot.slane %v1694, %v1974
        %v1977 = vunpack.c.l.s4 1983009808
        %v1978 = vunpack.c.0.s8 %v1977
        %v1979 = vlaneseq
        %v1980 = vshrl.u32 %v1979, 7
        %v1981 = vsub.s32 %v1978, %v1980
        %v1982 = vrot.slane %v1695, %v1981
        %v1984 = vunpack.c.l.s4 1983009808
        %v1985 = vunpack.c.0.s8 %v1984
        %v1986 = vlaneseq
        %v1987 = vshrl.u32 %v1986, 7
        %v1988 = vsub.s32 %v1985, %v1987
        %v1989 = vrot.slane %v1696, %v1988
        %v1991 = vunpack.c.l.s4 1983009808
        %v1992 = vunpack.c.0.s8 %v1991
        %v1993 = vlaneseq
        %v1994 = vshrl.u32 %v1993, 7
        %v1995 = vsub.s32 %v1992, %v1994
        %v1996 = vrot.slane %v1697, %v1995
        %v1998 = vunpack.c.l.s4 1983009808
        %v1999 = vunpack.c.0.s8 %v1998
        %v2000 = vlaneseq
        %v2001 = vshrl.u32 %v2000, 7
        %v2002 = vsub.s32 %v1999, %v2001
        %v2003 = vrot.slane %v1698, %v2002
        %v2005 = vunpack.c.l.s4 1983009808
        %v2006 = vunpack.c.0.s8 %v2005
        %v2007 = vlaneseq
        %v2008 = vshrl.u32 %v2007, 7
        %v2009 = vsub.s32 %v2006, %v2008
        %v2010 = vrot.slane %v1699, %v2009
        %v2012 = vunpack.c.l.s4 1983009808
        %v2013 = vunpack.c.0.s8 %v2012
        %v2014 = vlaneseq
        %v2015 = vshrl.u32 %v2014, 7
        %v2016 = vsub.s32 %v2013, %v2015
        %v2017 = vrot.slane %v1700, %v2016
        %v2018 = vunpack.c.l.b16 %v1968
        %v2019 = vunpack.c.l.b16 %v1975
        %v2020 = vunpack.c.l.b16 %v1982
        %v2021 = vunpack.c.l.b16 %v1989
        %v2022 = vunpack.c.l.b16 %v1996
        %v2023 = vunpack.c.l.b16 %v2003
        %v2024 = vunpack.c.l.b16 %v2010
        %v2025 = vunpack.c.l.b16 %v2017
        %v2026 = vrot.slane %v2018, 3
        %v2027 = vrot.slane %v2019, 2
        %v2028 = vsel %vm516, %v2027, %v2026
        %v2029 = vrot.slane %v2020, 1
        %v2030 = vsel %vm519, %v2029, %v2028
        %v2031 = vsel %vm522, %v2021, %v2030
        %v2032 = vrot.slane %v2022, 7
        %v2033 = vsel %vm525, %v2032, %v2031
        %v2034 = vrot.slane %v2023, 6
        %v2035 = vsel %vm528, %v2034, %v2033
        %v2036 = vrot.slane %v2024, 5
        %v2037 = vsel %vm531, %v2036, %v2035
        %v2038 = vrot.slane %v2025, 4
        %v2039 = vsel %vm534, %v2038, %v2037
        %v2040 = vpack.c.b16 %v2039, %v2039
        %v2042 = vsel %vm624, %v1953, 0
        %v2045 = vsel %vm794, %v2040, 0
        %2047 = vmatprep.subr.bf16.mxu0 0
        %2048 = vmatpush1.bf16.msra.mxu0 0
        %2049 = vmatprep.subr.bf16.mxu0 0
        %2050 = vmatpush1.bf16.msra.mxu0 0
        %2051 = vmatprep.subr.bf16.mxu0 0
        %2052 = vmatpush1.bf16.msra.mxu0 0
        %2053 = vmatprep.subr.bf16.mxu0 0
        %2054 = vmatpush1.bf16.msra.mxu0 0
        %2055 = vmatprep.subr.bf16.mxu0 0
        %2056 = vmatpush1.bf16.msra.mxu0 0
        %2057 = vmatprep.subr.bf16.mxu0 0
        %2058 = vmatpush1.bf16.msra.mxu0 0
        %2059 = vmatprep.subr.bf16.mxu0 0
        %2060 = vmatpush1.bf16.msra.mxu0 0
        %2061 = vmatprep.subr.bf16.mxu0 0
        %2062 = vmatpush1.bf16.msra.mxu0 %v2045
        %2063 = vmatprep.subr.bf16.mxu0 0
        %2064 = vmatpush2.bf16.msra.mxu0 0
        %2065 = vmatprep.subr.bf16.mxu0 0
        %2066 = vmatpush2.bf16.msra.mxu0 0
        %2067 = vmatprep.subr.bf16.mxu0 0
        %2068 = vmatpush2.bf16.msra.mxu0 0
        %2069 = vmatprep.subr.bf16.mxu0 0
        %2070 = vmatpush2.bf16.msra.mxu0 0
        %2071 = vmatprep.subr.bf16.mxu0 0
        %2072 = vmatpush2.bf16.msra.mxu0 0
        %2073 = vmatprep.subr.bf16.mxu0 0
        %2074 = vmatpush2.bf16.msra.mxu0 0
        %2075 = vmatprep.subr.bf16.mxu0 0
        %2076 = vmatpush2.bf16.msra.mxu0 0
        %2077 = vmatprep.subr.bf16.mxu0 0
        %2078 = vmatpush2.bf16.msra.mxu0 0
        %2079 = vmatprep.mubr.bf16.mxu0 0
        %2080 = vmatmul.mubr.bf16.gmra.mxu0 %v2042
        %v2081 = vpop.f32.mrf.mxu0
        %v2082 = vadd.f32 0.0, %v2081
        %v2083 = vpop.f32.mrf.mxu0
        %v2084 = vpop.f32.mrf.mxu0
        %v2085 = vpop.f32.mrf.mxu0
        %2086 = vdwg.mxu0
        %2088 = vrot.lane.b32.xlu0 %v2082, 24
        %v2089 = vpop.permute.xlu0 %2088
        %v2091 = vadd.f32 %v1952, %v2089
        %vm2092 = vcmask 261312
        %2093 = vst.msk [vmem:[#allocation4] sm:$0xff] %vm2092, %v2091
        %2094 = vst.msk [vmem:[#allocation2] sm:$0xff] %vm1944, %v1926
        // Predicated region
        $region119: #{decoder_forward.21} parent=105 // pred_check
          %p2095 = pneg %p410
        $region120: #{decoder_forward.21} parent=105 // pred_check_branch
          %2097 = sbr.rel (%p2095) target = $region122
        $region121: #{decoder_forward.21} parent=105 // pred_region
          %v2098 = vld [vmem:[#allocation4] sm:$0xff]
          %v2099 = vld [vmem:[#allocation3] sm:$0xff]
          %2101 = vset.pattern.permute.xlu0 0
          %2102 = vperm.xlu0 %2101, %v2099
          %v2103 = vpop.permute.xlu0 %2102
          %v2105 = vrcp.pop %v2103
          %v2106 = vmul.f32 %v2098, %v2105
          %2107 = vst.msk [vmem:[#allocation4] sm:$0xff] %vm624, %v2106
          %v2108 = vld [vmem:[#allocation4] sm:$0xff]
          %v2109 = vld [vmem:[#allocation3] sm:$0xff]
          %2111 = vset.pattern.permute.xlu0 1
          %2112 = vperm.xlu0 %2111, %v2109
          %v2113 = vpop.permute.xlu0 %2112
          %v2115 = vrcp.pop %v2113
          %v2116 = vmul.f32 %v2108, %v2115
          %2117 = vst.msk [vmem:[#allocation4] sm:$0xff] %vm1256, %v2116
          %v2118 = vld [vmem:[#allocation4] sm:$0xff]
          %v2119 = vld [vmem:[#allocation3] sm:$0xff]
          %2121 = vset.pattern.permute.xlu0 2
          %2122 = vperm.xlu0 %2121, %v2119
          %v2123 = vpop.permute.xlu0 %2122
          %v2125 = vrcp.pop %v2123
          %v2126 = vmul.f32 %v2118, %v2125
          %2127 = vst.msk [vmem:[#allocation4] sm:$0xff] %vm1674, %v2126
          %v2128 = vld [vmem:[#allocation4] sm:$0xff]
          %v2129 = vld [vmem:[#allocation3] sm:$0xff]
          %2131 = vset.pattern.permute.xlu0 3
          %2132 = vperm.xlu0 %2131, %v2129
          %v2133 = vpop.permute.xlu0 %2132
          %v2135 = vrcp.pop %v2133
          %v2136 = vmul.f32 %v2128, %v2135
          %2137 = vst.msk [vmem:[#allocation4] sm:$0xff] %vm2092, %v2136
          %v2138 = vld [vmem:[#allocation4] sm:$0xff]
          %v2139 = vpack.c.bf16 %v2138, %v2138
          %vm2140 = vcmask 257024
          %2141 = vst.msk [vmem:[%s408] sm:$0xf] %vm2140, %v2139
        $region122: #{decoder_forward.21} parent=105 // pred_fallthru
          _
        %p2142 = scmp.lt.s32.totalorder %s19, 1
        %s2143 = scalar_select %p2142, %s19, 1
        %p2144 = scmp.lt.s32.totalorder %s20, 0
        %s2145 = scalar_select %p2144, %s20, 0
        %s2146 = sadd.s32 %s2145, %s2143
        %s2147 = smul.addr %s2146, 4
        %s2148 = scalar_lea.vmem %s3, %s2147
        // Predicated region
        $region123: #{decoder_forward.21} parent=105 // pred_check
          %p2149 = pneg %p137
        $region124: #{decoder_forward.21} parent=105 // pred_check_branch
          %2151 = sbr.rel (%p2149) target = $region126
        $region125: #{decoder_forward.21} parent=105 // pred_region
          _
        $region126: #{decoder_forward.21} parent=105 // pred_fallthru
          _
      $region106: #{decoder_forward.21} parent=5 // pred_fallthru
        _
      %p2152 = scmp.le.s32.totalorder 2, %s9
      // Predicated region
      $region127: #{decoder_forward.21} parent=5 // pred_check
        %p2153 = pneg %p2152
      $region128: #{decoder_forward.21} parent=5 // pred_check_branch
        %2155 = sbr.rel (%p2153) target = $region130
      $region129: #{decoder_forward.21} parent=5 // pred_region
        %s2156 = ssub.s32 %s9, 2
        // Predicated region
        $region131: #{decoder_forward.21} parent=129 // pred_check
          %p2157 = pneg %p143
        $region132: #{decoder_forward.21} parent=129 // pred_check_branch
          %2159 = sbr.rel (%p2157) target = $region134
        $region133: #{decoder_forward.21} parent=129 // pred_region
          %p2160 = scmp.lt.s32.totalorder %s22, 1
          %s2161 = scalar_select %p2160, %s22, 1
          %p2162 = scmp.lt.s32.totalorder %s23, 0
          %s2163 = scalar_select %p2162, %s23, 0
          %s2164 = sadd.s32 %s2163, %s2161
          %s2165 = smul.addr %s2164, 4
          %s2166 = scalar_lea.vmem %s3, %s2165
        $region134: #{decoder_forward.21} parent=129 // pred_fallthru
          _
      $region130: #{decoder_forward.21} parent=5 // pred_fallthru
        _
    $region6: #{decoder_forward.21} parent=1 // loop_footer
      %s13 = sadd.s32 1, %s9
    $region7: #{decoder_forward.21} parent=1 // loop_footer_branch
      %8 = sbr.rel target = $region3
    $region8: #{decoder_forward.21} parent=1 // loop_exit
      _

</llo_original>
